<compile_context>
chip_gen: v7x
topology: tpu7x:2x2x1
jax: 0.10.0
libtpu: 0.0.40
codegen_flags: <defaults>
</compile_context>

<pallas_src>
import functools

import jax
import jax.numpy as jnp
from jax.experimental import pallas as pl
from jax.experimental.pallas import tpu as pltpu


def _conv_row_kernel(row_map_ref, x_ref, w_ref, b_ref, o_ref, *,
                     KH, KW, OW, S, TH):
    """One (image, output-row-tile) grid step.

    row_map_ref: SMEM int32[Hp]        padded/upsampled row -> source row (fused H up+pad)
    x_ref:       VMEM (H, Cin, Wp)     source rows; W already upsampled + reflection padded
    w_ref:       VMEM (KH*KW, Cout, Cin) pre-packed per-tap weights
    b_ref:       VMEM (Cout, 1)        bias
    o_ref:       VMEM (Cout, TH, OW)   NCHW output row tile
    """
    t = pl.program_id(1)
    Cout = o_ref.shape[0]

    # Hoisted out of the hot loop: per-tap weights and the bias broadcast stay
    # resident for the whole tile.
    w_taps = [w_ref[i] for i in range(KH * KW)]                 # each (Cout, Cin)
    bias_tile = jnp.broadcast_to(b_ref[...].astype(jnp.float32), (Cout, OW))

    for oh in range(TH):                                        # static unroll (TH <= 8 typically)
        base = (t * TH + oh) * S        # first padded/upsampled row feeding this output row
        acc = bias_tile                                         # (Cout, OW) f32, ~1 vreg tall
        for kh in range(KH):
            src = row_map_ref[base + kh]     # fused nearest-upsample + reflection (rows)
            row = x_ref[src]                 # (Cin, Wp): Cin on sublanes, W lane-dense
            for kw in range(KW):
                if S == 1:
                    patch = row[:, kw:kw + OW]                  # static lane-offset slice
                else:
                    patch = row[:, kw:kw + (OW - 1) * S + 1:S]
                acc = acc + jnp.dot(w_taps[kh * KW + kw], patch,
                                    preferred_element_type=jnp.float32)
        o_ref[:, oh, :] = acc.astype(o_ref.dtype)               # lane-dense row store


def _reflect_upsample_index(padded_len, pad, up, orig_len):
    """Map padded+upsampled coordinate -> original coordinate (int32 vector)."""
    up_len = orig_len * up
    u = jnp.arange(padded_len) - pad
    u = jnp.abs(u)                                  # reflect at the low edge
    u = (up_len - 1) - jnp.abs((up_len - 1) - u)    # reflect at the high edge
    return (u // up).astype(jnp.int32)


def _pick_row_tile(oh):
    # 8 output rows per grid step (one sublane tile of the output block); fall
    # back to the full height so the (8,128) block rule is never violated.
    return 8 if (oh >= 8 and oh % 8 == 0) else oh


def upsample_conv_layer(x_nchw, weight_oihw, bias, *, kernel_size, stride,
                        upsample=None):
    """Forward pass of UpsampleConvLayer.  Inputs/outputs are NCHW like PyTorch."""
    x = jnp.asarray(x_nchw, jnp.float32)
    weight = jnp.asarray(weight_oihw, jnp.float32)
    bias = jnp.asarray(bias, jnp.float32)

    N, Cin, H, W = x.shape
    Cout, _, KH, KW = weight.shape
    up = int(upsample) if upsample else 1
    S = int(stride)
    pad = kernel_size // 2

    H_up, W_up = H * up, W * up
    Hp, Wp = H_up + 2 * pad, W_up + 2 * pad
    OH = (Hp - KH) // S + 1
    OW = (Wp - KW) // S + 1
    assert pad < H_up and pad < W_up, "reflection pad must be smaller than the (upsampled) input"

    # Fused upsample + reflection-pad index maps.  Rows are applied inside the
    # kernel (scalar prefetch); columns are applied here as a single gather
    # that also places channels on sublanes: (N, Cin, H, W) -> (N, H, Cin, Wp).
    row_map = _reflect_upsample_index(Hp, pad, up, H)
    col_map = _reflect_upsample_index(Wp, pad, up, W)
    x_rows = jnp.take(jnp.transpose(x, (0, 2, 1, 3)), col_map, axis=3)

    # Pre-packed parameters: zero layout work inside the kernel.
    w_taps = jnp.transpose(weight, (2, 3, 0, 1)).reshape(KH * KW, Cout, Cin)
    b2d = bias.reshape(Cout, 1)

    TH = _pick_row_tile(OH)
    kernel = functools.partial(_conv_row_kernel, KH=KH, KW=KW, OW=OW, S=S, TH=TH)

    return pl.pallas_call(
        kernel,
        out_shape=jax.ShapeDtypeStruct((N, Cout, OH, OW), jnp.float32),
        grid_spec=pltpu.PrefetchScalarGridSpec(
            num_scalar_prefetch=1,
            grid=(N, OH // TH),
            in_specs=[
                # Whole (W-expanded) source image per batch item; stays resident
                # across the row-tile axis.
                pl.BlockSpec((None, H, Cin, Wp), lambda n, t, rm: (n, 0, 0, 0)),
                pl.BlockSpec((KH * KW, Cout, Cin), lambda n, t, rm: (0, 0, 0)),
                pl.BlockSpec((Cout, 1), lambda n, t, rm: (0, 0)),
            ],
            out_specs=pl.BlockSpec((None, Cout, TH, OW),
                                   lambda n, t, rm: (n, 0, t, 0)),
        ),
        compiler_params=pltpu.CompilerParams(
            dimension_semantics=("parallel", "parallel")),
    )(row_map, x_rows, w_taps, b2d)


def _reference(x_nchw, weight_oihw, bias, *, kernel_size, stride, upsample):
    """Pure-JAX reference (lax conv) for a correctness check."""
    x = x_nchw
    if upsample:
        x = jnp.repeat(x, upsample, axis=2)
        x = jnp.repeat(x, upsample, axis=3)
    pad = kernel_size // 2
    x = jnp.pad(x, ((0, 0), (0, 0), (pad, pad), (pad, pad)), mode="reflect")
    out = jax.lax.conv_general_dilated(
        x, weight_oihw, window_strides=(stride, stride), padding="VALID",
        dimension_numbers=("NCHW", "OIHW", "NCHW"),
    )
    return out + bias.reshape(1, -1, 1, 1)


if __name__ == "__main__":
    # Shapes consistent with the module: in_channels=4, out_channels=8,
    # kernel_size=3, stride=1, upsample=2.
    key = jax.random.PRNGKey(0)
    k_x, k_w, k_b = jax.random.split(key, 3)

    N, Cin, H, W = 2, 4, 16, 16
    Cout, K, S, UP = 8, 3, 1, 2

    x = jax.random.normal(k_x, (N, Cin, H, W), dtype=jnp.float32)
    fan_in = Cin * K * K
    weight = jax.random.normal(k_w, (Cout, Cin, K, K), dtype=jnp.float32) / jnp.sqrt(fan_in)
    bias = jax.random.normal(k_b, (Cout,), dtype=jnp.float32) * 0.01

    out = upsample_conv_layer(x, weight, bias, kernel_size=K, stride=S, upsample=UP)
    out = jax.block_until_ready(out)

    ref = _reference(x, weight, bias, kernel_size=K, stride=S, upsample=UP)
    ref = jax.block_until_ready(ref)

    assert out.shape == (N, Cout, H * UP, W * UP), out.shape
    assert jnp.allclose(out, ref, atol=1e-4, rtol=1e-4), float(jnp.max(jnp.abs(out - ref)))

    print("KERNEL_OK")
</pallas_src>

<mosaic_0001>
module attributes {stable_mosaic.version = 11 : i64} {
  func.func @_conv_row_kernel(%arg0: i32, %arg1: i32, %arg2: memref<34xi32, #tpu.memory_space<smem>>, %arg3: memref<1x16x4x34xf32, #tpu.memory_space<vmem>>, %arg4: memref<9x8x4xf32, #tpu.memory_space<vmem>>, %arg5: memref<8x1xf32, #tpu.memory_space<vmem>>, %arg6: memref<1x8x8x32xf32, #tpu.memory_space<vmem>>) attributes {dimension_semantics = [#tpu.dimension_semantics<parallel>, #tpu.dimension_semantics<parallel>], iteration_bounds = array<i64: 2, 4>, scalar_prefetch = 1 : i64, scratch_operands = 0 : i64, tpu.core_type = #tpu.core_type<tc>, window_params = [{transform_indices = @transform_0, window_bounds = array<i64: 1, 16, 4, 34>}, {pipeline_mode = #tpu.pipeline_mode<synchronous>, transform_indices = @transform_1, window_bounds = array<i64: 9, 8, 4>}, {pipeline_mode = #tpu.pipeline_mode<synchronous>, transform_indices = @transform_2, window_bounds = array<i64: 8, 1>}, {transform_indices = @transform_3, window_bounds = array<i64: 1, 8, 8, 32>}]} {
    %c0 = arith.constant 0 : index
    %c0_0 = arith.constant 0 : index
    %c0_1 = arith.constant 0 : index
    %0 = vector.load %arg4[%c0, %c0_0, %c0_1] : memref<9x8x4xf32, #tpu.memory_space<vmem>>, vector<1x8x4xf32>
    %1 = vector.shape_cast %0 : vector<1x8x4xf32> to vector<8x4xf32>
    %c1 = arith.constant 1 : index
    %c0_2 = arith.constant 0 : index
    %c0_3 = arith.constant 0 : index
    %2 = vector.load %arg4[%c1, %c0_2, %c0_3] : memref<9x8x4xf32, #tpu.memory_space<vmem>>, vector<1x8x4xf32>
    %3 = vector.shape_cast %2 : vector<1x8x4xf32> to vector<8x4xf32>
    %c2 = arith.constant 2 : index
    %c0_4 = arith.constant 0 : index
    %c0_5 = arith.constant 0 : index
    %4 = vector.load %arg4[%c2, %c0_4, %c0_5] : memref<9x8x4xf32, #tpu.memory_space<vmem>>, vector<1x8x4xf32>
    %5 = vector.shape_cast %4 : vector<1x8x4xf32> to vector<8x4xf32>
    %c3 = arith.constant 3 : index
    %c0_6 = arith.constant 0 : index
    %c0_7 = arith.constant 0 : index
    %6 = vector.load %arg4[%c3, %c0_6, %c0_7] : memref<9x8x4xf32, #tpu.memory_space<vmem>>, vector<1x8x4xf32>
    %7 = vector.shape_cast %6 : vector<1x8x4xf32> to vector<8x4xf32>
    %c4 = arith.constant 4 : index
    %c0_8 = arith.constant 0 : index
    %c0_9 = arith.constant 0 : index
    %8 = vector.load %arg4[%c4, %c0_8, %c0_9] : memref<9x8x4xf32, #tpu.memory_space<vmem>>, vector<1x8x4xf32>
    %9 = vector.shape_cast %8 : vector<1x8x4xf32> to vector<8x4xf32>
    %c5 = arith.constant 5 : index
    %c0_10 = arith.constant 0 : index
    %c0_11 = arith.constant 0 : index
    %10 = vector.load %arg4[%c5, %c0_10, %c0_11] : memref<9x8x4xf32, #tpu.memory_space<vmem>>, vector<1x8x4xf32>
    %11 = vector.shape_cast %10 : vector<1x8x4xf32> to vector<8x4xf32>
    %c6 = arith.constant 6 : index
    %c0_12 = arith.constant 0 : index
    %c0_13 = arith.constant 0 : index
    %12 = vector.load %arg4[%c6, %c0_12, %c0_13] : memref<9x8x4xf32, #tpu.memory_space<vmem>>, vector<1x8x4xf32>
    %13 = vector.shape_cast %12 : vector<1x8x4xf32> to vector<8x4xf32>
    %c7 = arith.constant 7 : index
    %c0_14 = arith.constant 0 : index
    %c0_15 = arith.constant 0 : index
    %14 = vector.load %arg4[%c7, %c0_14, %c0_15] : memref<9x8x4xf32, #tpu.memory_space<vmem>>, vector<1x8x4xf32>
    %15 = vector.shape_cast %14 : vector<1x8x4xf32> to vector<8x4xf32>
    %c8 = arith.constant 8 : index
    %c0_16 = arith.constant 0 : index
    %c0_17 = arith.constant 0 : index
    %16 = vector.load %arg4[%c8, %c0_16, %c0_17] : memref<9x8x4xf32, #tpu.memory_space<vmem>>, vector<1x8x4xf32>
    %17 = vector.shape_cast %16 : vector<1x8x4xf32> to vector<8x4xf32>
    %c0_18 = arith.constant 0 : index
    %c0_19 = arith.constant 0 : index
    %18 = vector.load %arg5[%c0_18, %c0_19] : memref<8x1xf32, #tpu.memory_space<vmem>>, vector<8x1xf32>
    %19 = vector.shape_cast %18 : vector<8x1xf32> to vector<8x1xf32>
    %20 = vector.broadcast %19 : vector<8x1xf32> to vector<8x32xf32>
    %c8_i32 = arith.constant 8 : i32
    %21 = arith.muli %arg1, %c8_i32 : i32
    %c0_i32 = arith.constant 0 : i32
    %22 = arith.addi %21, %c0_i32 : i32
    %c1_i32 = arith.constant 1 : i32
    %23 = arith.muli %22, %c1_i32 : i32
    %c0_i32_20 = arith.constant 0 : i32
    %24 = arith.addi %23, %c0_i32_20 : i32
    %25 = arith.index_cast %24 : i32 to index
    %26 = memref.load %arg2[%25] : memref<34xi32, #tpu.memory_space<smem>>
    %c0_21 = arith.constant 0 : index
    %27 = arith.index_cast %26 : i32 to index
    %c0_22 = arith.constant 0 : index
    %c0_23 = arith.constant 0 : index
    %28 = vector.load %arg3[%c0_21, %27, %c0_22, %c0_23] : memref<1x16x4x34xf32, #tpu.memory_space<vmem>>, vector<1x1x4x34xf32>
    %29 = vector.shape_cast %28 : vector<1x1x4x34xf32> to vector<4x34xf32>
    %30 = vector.extract_strided_slice %29 {offsets = [0, 0], sizes = [4, 32], strides = [1, 1]} : vector<4x34xf32> to vector<4x32xf32>
    %cst = arith.constant dense<0.000000e+00> : vector<8x32xf32>
    %31 = tpu.matmul %1, %30, %cst {dimension_numbers = #tpu.dot_dimension_numbers<[1], [0], [0], [1], [0, 0, 1, 1], [], []>} : vector<8x4xf32>, vector<4x32xf32>, vector<8x32xf32> -> vector<8x32xf32>
    %32 = arith.addf %20, %31 : vector<8x32xf32>
    %33 = vector.extract_strided_slice %29 {offsets = [0, 1], sizes = [4, 32], strides = [1, 1]} : vector<4x34xf32> to vector<4x32xf32>
    %cst_24 = arith.constant dense<0.000000e+00> : vector<8x32xf32>
    %34 = tpu.matmul %3, %33, %cst_24 {dimension_numbers = #tpu.dot_dimension_numbers<[1], [0], [0], [1], [0, 0, 1, 1], [], []>} : vector<8x4xf32>, vector<4x32xf32>, vector<8x32xf32> -> vector<8x32xf32>
    %35 = arith.addf %32, %34 : vector<8x32xf32>
    %36 = vector.extract_strided_slice %29 {offsets = [0, 2], sizes = [4, 32], strides = [1, 1]} : vector<4x34xf32> to vector<4x32xf32>
    %cst_25 = arith.constant dense<0.000000e+00> : vector<8x32xf32>
    %37 = tpu.matmul %5, %36, %cst_25 {dimension_numbers = #tpu.dot_dimension_numbers<[1], [0], [0], [1], [0, 0, 1, 1], [], []>} : vector<8x4xf32>, vector<4x32xf32>, vector<8x32xf32> -> vector<8x32xf32>
    %38 = arith.addf %35, %37 : vector<8x32xf32>
    %c1_i32_26 = arith.constant 1 : i32
    %39 = arith.addi %23, %c1_i32_26 : i32
    %40 = arith.index_cast %39 : i32 to index
    %41 = memref.load %arg2[%40] : memref<34xi32, #tpu.memory_space<smem>>
    %c0_27 = arith.constant 0 : index
    %42 = arith.index_cast %41 : i32 to index
    %c0_28 = arith.constant 0 : index
    %c0_29 = arith.constant 0 : index
    %43 = vector.load %arg3[%c0_27, %42, %c0_28, %c0_29] : memref<1x16x4x34xf32, #tpu.memory_space<vmem>>, vector<1x1x4x34xf32>
    %44 = vector.shape_cast %43 : vector<1x1x4x34xf32> to vector<4x34xf32>
    %45 = vector.extract_strided_slice %44 {offsets = [0, 0], sizes = [4, 32], strides = [1, 1]} : vector<4x34xf32> to vector<4x32xf32>
    %cst_30 = arith.constant dense<0.000000e+00> : vector<8x32xf32>
    %46 = tpu.matmul %7, %45, %cst_30 {dimension_numbers = #tpu.dot_dimension_numbers<[1], [0], [0], [1], [0, 0, 1, 1], [], []>} : vector<8x4xf32>, vector<4x32xf32>, vector<8x32xf32> -> vector<8x32xf32>
    %47 = arith.addf %38, %46 : vector<8x32xf32>
    %48 = vector.extract_strided_slice %44 {offsets = [0, 1], sizes = [4, 32], strides = [1, 1]} : vector<4x34xf32> to vector<4x32xf32>
    %cst_31 = arith.constant dense<0.000000e+00> : vector<8x32xf32>
    %49 = tpu.matmul %9, %48, %cst_31 {dimension_numbers = #tpu.dot_dimension_numbers<[1], [0], [0], [1], [0, 0, 1, 1], [], []>} : vector<8x4xf32>, vector<4x32xf32>, vector<8x32xf32> -> vector<8x32xf32>
    %50 = arith.addf %47, %49 : vector<8x32xf32>
    %51 = vector.extract_strided_slice %44 {offsets = [0, 2], sizes = [4, 32], strides = [1, 1]} : vector<4x34xf32> to vector<4x32xf32>
    %cst_32 = arith.constant dense<0.000000e+00> : vector<8x32xf32>
    %52 = tpu.matmul %11, %51, %cst_32 {dimension_numbers = #tpu.dot_dimension_numbers<[1], [0], [0], [1], [0, 0, 1, 1], [], []>} : vector<8x4xf32>, vector<4x32xf32>, vector<8x32xf32> -> vector<8x32xf32>
    %53 = arith.addf %50, %52 : vector<8x32xf32>
    %c2_i32 = arith.constant 2 : i32
    %54 = arith.addi %23, %c2_i32 : i32
    %55 = arith.index_cast %54 : i32 to index
    %56 = memref.load %arg2[%55] : memref<34xi32, #tpu.memory_space<smem>>
    %c0_33 = arith.constant 0 : index
    %57 = arith.index_cast %56 : i32 to index
    %c0_34 = arith.constant 0 : index
    %c0_35 = arith.constant 0 : index
    %58 = vector.load %arg3[%c0_33, %57, %c0_34, %c0_35] : memref<1x16x4x34xf32, #tpu.memory_space<vmem>>, vector<1x1x4x34xf32>
    %59 = vector.shape_cast %58 : vector<1x1x4x34xf32> to vector<4x34xf32>
    %60 = vector.extract_strided_slice %59 {offsets = [0, 0], sizes = [4, 32], strides = [1, 1]} : vector<4x34xf32> to vector<4x32xf32>
    %cst_36 = arith.constant dense<0.000000e+00> : vector<8x32xf32>
    %61 = tpu.matmul %13, %60, %cst_36 {dimension_numbers = #tpu.dot_dimension_numbers<[1], [0], [0], [1], [0, 0, 1, 1], [], []>} : vector<8x4xf32>, vector<4x32xf32>, vector<8x32xf32> -> vector<8x32xf32>
    %62 = arith.addf %53, %61 : vector<8x32xf32>
    %63 = vector.extract_strided_slice %59 {offsets = [0, 1], sizes = [4, 32], strides = [1, 1]} : vector<4x34xf32> to vector<4x32xf32>
    %cst_37 = arith.constant dense<0.000000e+00> : vector<8x32xf32>
    %64 = tpu.matmul %15, %63, %cst_37 {dimension_numbers = #tpu.dot_dimension_numbers<[1], [0], [0], [1], [0, 0, 1, 1], [], []>} : vector<8x4xf32>, vector<4x32xf32>, vector<8x32xf32> -> vector<8x32xf32>
    %65 = arith.addf %62, %64 : vector<8x32xf32>
    %66 = vector.extract_strided_slice %59 {offsets = [0, 2], sizes = [4, 32], strides = [1, 1]} : vector<4x34xf32> to vector<4x32xf32>
    %cst_38 = arith.constant dense<0.000000e+00> : vector<8x32xf32>
    %67 = tpu.matmul %17, %66, %cst_38 {dimension_numbers = #tpu.dot_dimension_numbers<[1], [0], [0], [1], [0, 0, 1, 1], [], []>} : vector<8x4xf32>, vector<4x32xf32>, vector<8x32xf32> -> vector<8x32xf32>
    %68 = arith.addf %65, %67 : vector<8x32xf32>
    %c0_39 = arith.constant 0 : index
    %c0_40 = arith.constant 0 : index
    %c0_41 = arith.constant 0 : index
    %c0_42 = arith.constant 0 : index
    %69 = vector.load %arg6[%c0_39, %c0_40, %c0_41, %c0_42] : memref<1x8x8x32xf32, #tpu.memory_space<vmem>>, vector<1x8x1x32xf32>
    %70 = vector.shape_cast %69 : vector<1x8x1x32xf32> to vector<8x32xf32>
    %71 = vector.shape_cast %68 : vector<8x32xf32> to vector<1x8x1x32xf32>
    tpu.vector_store %arg6[%c0_39, %c0_40, %c0_41, %c0_42], %71 {strides = array<i32>} : memref<1x8x8x32xf32, #tpu.memory_space<vmem>>, vector<1x8x1x32xf32>,
    %c8_i32_43 = arith.constant 8 : i32
    %72 = arith.muli %arg1, %c8_i32_43 : i32
    %c1_i32_44 = arith.constant 1 : i32
    %73 = arith.addi %72, %c1_i32_44 : i32
    %c1_i32_45 = arith.constant 1 : i32
    %74 = arith.muli %73, %c1_i32_45 : i32
    %c0_i32_46 = arith.constant 0 : i32
    %75 = arith.addi %74, %c0_i32_46 : i32
    %76 = arith.index_cast %75 : i32 to index
    %77 = memref.load %arg2[%76] : memref<34xi32, #tpu.memory_space<smem>>
    %c0_47 = arith.constant 0 : index
    %78 = arith.index_cast %77 : i32 to index
    %c0_48 = arith.constant 0 : index
    %c0_49 = arith.constant 0 : index
    %79 = vector.load %arg3[%c0_47, %78, %c0_48, %c0_49] : memref<1x16x4x34xf32, #tpu.memory_space<vmem>>, vector<1x1x4x34xf32>
    %80 = vector.shape_cast %79 : vector<1x1x4x34xf32> to vector<4x34xf32>
    %81 = vector.extract_strided_slice %80 {offsets = [0, 0], sizes = [4, 32], strides = [1, 1]} : vector<4x34xf32> to vector<4x32xf32>
    %cst_50 = arith.constant dense<0.000000e+00> : vector<8x32xf32>
    %82 = tpu.matmul %1, %81, %cst_50 {dimension_numbers = #tpu.dot_dimension_numbers<[1], [0], [0], [1], [0, 0, 1, 1], [], []>} : vector<8x4xf32>, vector<4x32xf32>, vector<8x32xf32> -> vector<8x32xf32>
    %83 = arith.addf %20, %82 : vector<8x32xf32>
    %84 = vector.extract_strided_slice %80 {offsets = [0, 1], sizes = [4, 32], strides = [1, 1]} : vector<4x34xf32> to vector<4x32xf32>
    %cst_51 = arith.constant dense<0.000000e+00> : vector<8x32xf32>
    %85 = tpu.matmul %3, %84, %cst_51 {dimension_numbers = #tpu.dot_dimension_numbers<[1], [0], [0], [1], [0, 0, 1, 1], [], []>} : vector<8x4xf32>, vector<4x32xf32>, vector<8x32xf32> -> vector<8x32xf32>
    %86 = arith.addf %83, %85 : vector<8x32xf32>
    %87 = vector.extract_strided_slice %80 {offsets = [0, 2], sizes = [4, 32], strides = [1, 1]} : vector<4x34xf32> to vector<4x32xf32>
    %cst_52 = arith.constant dense<0.000000e+00> : vector<8x32xf32>
    %88 = tpu.matmul %5, %87, %cst_52 {dimension_numbers = #tpu.dot_dimension_numbers<[1], [0], [0], [1], [0, 0, 1, 1], [], []>} : vector<8x4xf32>, vector<4x32xf32>, vector<8x32xf32> -> vector<8x32xf32>
    %89 = arith.addf %86, %88 : vector<8x32xf32>
    %c1_i32_53 = arith.constant 1 : i32
    %90 = arith.addi %74, %c1_i32_53 : i32
    %91 = arith.index_cast %90 : i32 to index
    %92 = memref.load %arg2[%91] : memref<34xi32, #tpu.memory_space<smem>>
    %c0_54 = arith.constant 0 : index
    %93 = arith.index_cast %92 : i32 to index
    %c0_55 = arith.constant 0 : index
    %c0_56 = arith.constant 0 : index
    %94 = vector.load %arg3[%c0_54, %93, %c0_55, %c0_56] : memref<1x16x4x34xf32, #tpu.memory_space<vmem>>, vector<1x1x4x34xf32>
    %95 = vector.shape_cast %94 : vector<1x1x4x34xf32> to vector<4x34xf32>
    %96 = vector.extract_strided_slice %95 {offsets = [0, 0], sizes = [4, 32], strides = [1, 1]} : vector<4x34xf32> to vector<4x32xf32>
    %cst_57 = arith.constant dense<0.000000e+00> : vector<8x32xf32>
    %97 = tpu.matmul %7, %96, %cst_57 {dimension_numbers = #tpu.dot_dimension_numbers<[1], [0], [0], [1], [0, 0, 1, 1], [], []>} : vector<8x4xf32>, vector<4x32xf32>, vector<8x32xf32> -> vector<8x32xf32>
    %98 = arith.addf %89, %97 : vector<8x32xf32>
    %99 = vector.extract_strided_slice %95 {offsets = [0, 1], sizes = [4, 32], strides = [1, 1]} : vector<4x34xf32> to vector<4x32xf32>
    %cst_58 = arith.constant dense<0.000000e+00> : vector<8x32xf32>
    %100 = tpu.matmul %9, %99, %cst_58 {dimension_numbers = #tpu.dot_dimension_numbers<[1], [0], [0], [1], [0, 0, 1, 1], [], []>} : vector<8x4xf32>, vector<4x32xf32>, vector<8x32xf32> -> vector<8x32xf32>
    %101 = arith.addf %98, %100 : vector<8x32xf32>
    %102 = vector.extract_strided_slice %95 {offsets = [0, 2], sizes = [4, 32], strides = [1, 1]} : vector<4x34xf32> to vector<4x32xf32>
    %cst_59 = arith.constant dense<0.000000e+00> : vector<8x32xf32>
    %103 = tpu.matmul %11, %102, %cst_59 {dimension_numbers = #tpu.dot_dimension_numbers<[1], [0], [0], [1], [0, 0, 1, 1], [], []>} : vector<8x4xf32>, vector<4x32xf32>, vector<8x32xf32> -> vector<8x32xf32>
    %104 = arith.addf %101, %103 : vector<8x32xf32>
    %c2_i32_60 = arith.constant 2 : i32
    %105 = arith.addi %74, %c2_i32_60 : i32
    %106 = arith.index_cast %105 : i32 to index
    %107 = memref.load %arg2[%106] : memref<34xi32, #tpu.memory_space<smem>>
    %c0_61 = arith.constant 0 : index
    %108 = arith.index_cast %107 : i32 to index
    %c0_62 = arith.constant 0 : index
    %c0_63 = arith.constant 0 : index
    %109 = vector.load %arg3[%c0_61, %108, %c0_62, %c0_63] : memref<1x16x4x34xf32, #tpu.memory_space<vmem>>, vector<1x1x4x34xf32>
    %110 = vector.shape_cast %109 : vector<1x1x4x34xf32> to vector<4x34xf32>
    %111 = vector.extract_strided_slice %110 {offsets = [0, 0], sizes = [4, 32], strides = [1, 1]} : vector<4x34xf32> to vector<4x32xf32>
    %cst_64 = arith.constant dense<0.000000e+00> : vector<8x32xf32>
    %112 = tpu.matmul %13, %111, %cst_64 {dimension_numbers = #tpu.dot_dimension_numbers<[1], [0], [0], [1], [0, 0, 1, 1], [], []>} : vector<8x4xf32>, vector<4x32xf32>, vector<8x32xf32> -> vector<8x32xf32>
    %113 = arith.addf %104, %112 : vector<8x32xf32>
    %114 = vector.extract_strided_slice %110 {offsets = [0, 1], sizes = [4, 32], strides = [1, 1]} : vector<4x34xf32> to vector<4x32xf32>
    %cst_65 = arith.constant dense<0.000000e+00> : vector<8x32xf32>
    %115 = tpu.matmul %15, %114, %cst_65 {dimension_numbers = #tpu.dot_dimension_numbers<[1], [0], [0], [1], [0, 0, 1, 1], [], []>} : vector<8x4xf32>, vector<4x32xf32>, vector<8x32xf32> -> vector<8x32xf32>
    %116 = arith.addf %113, %115 : vector<8x32xf32>
    %117 = vector.extract_strided_slice %110 {offsets = [0, 2], sizes = [4, 32], strides = [1, 1]} : vector<4x34xf32> to vector<4x32xf32>
    %cst_66 = arith.constant dense<0.000000e+00> : vector<8x32xf32>
    %118 = tpu.matmul %17, %117, %cst_66 {dimension_numbers = #tpu.dot_dimension_numbers<[1], [0], [0], [1], [0, 0, 1, 1], [], []>} : vector<8x4xf32>, vector<4x32xf32>, vector<8x32xf32> -> vector<8x32xf32>
    %119 = arith.addf %116, %118 : vector<8x32xf32>
    %c0_67 = arith.constant 0 : index
    %c0_68 = arith.constant 0 : index
    %c1_69 = arith.constant 1 : index
    %c0_70 = arith.constant 0 : index
    %120 = vector.load %arg6[%c0_67, %c0_68, %c1_69, %c0_70] : memref<1x8x8x32xf32, #tpu.memory_space<vmem>>, vector<1x8x1x32xf32>
    %121 = vector.shape_cast %120 : vector<1x8x1x32xf32> to vector<8x32xf32>
    %122 = vector.shape_cast %119 : vector<8x32xf32> to vector<1x8x1x32xf32>
    tpu.vector_store %arg6[%c0_67, %c0_68, %c1_69, %c0_70], %122 {strides = array<i32>} : memref<1x8x8x32xf32, #tpu.memory_space<vmem>>, vector<1x8x1x32xf32>,
    %c8_i32_71 = arith.constant 8 : i32
    %123 = arith.muli %arg1, %c8_i32_71 : i32
    %c2_i32_72 = arith.constant 2 : i32
    %124 = arith.addi %123, %c2_i32_72 : i32
    %c1_i32_73 = arith.constant 1 : i32
    %125 = arith.muli %124, %c1_i32_73 : i32
    %c0_i32_74 = arith.constant 0 : i32
    %126 = arith.addi %125, %c0_i32_74 : i32
    %127 = arith.index_cast %126 : i32 to index
    %128 = memref.load %arg2[%127] : memref<34xi32, #tpu.memory_space<smem>>
    %c0_75 = arith.constant 0 : index
    %129 = arith.index_cast %128 : i32 to index
    %c0_76 = arith.constant 0 : index
    %c0_77 = arith.constant 0 : index
    %130 = vector.load %arg3[%c0_75, %129, %c0_76, %c0_77] : memref<1x16x4x34xf32, #tpu.memory_space<vmem>>, vector<1x1x4x34xf32>
    %131 = vector.shape_cast %130 : vector<1x1x4x34xf32> to vector<4x34xf32>
    %132 = vector.extract_strided_slice %131 {offsets = [0, 0], sizes = [4, 32], strides = [1, 1]} : vector<4x34xf32> to vector<4x32xf32>
    %cst_78 = arith.constant dense<0.000000e+00> : vector<8x32xf32>
    %133 = tpu.matmul %1, %132, %cst_78 {dimension_numbers = #tpu.dot_dimension_numbers<[1], [0], [0], [1], [0, 0, 1, 1], [], []>} : vector<8x4xf32>, vector<4x32xf32>, vector<8x32xf32> -> vector<8x32xf32>
    %134 = arith.addf %20, %133 : vector<8x32xf32>
    %135 = vector.extract_strided_slice %131 {offsets = [0, 1], sizes = [4, 32], strides = [1, 1]} : vector<4x34xf32> to vector<4x32xf32>
    %cst_79 = arith.constant dense<0.000000e+00> : vector<8x32xf32>
    %136 = tpu.matmul %3, %135, %cst_79 {dimension_numbers = #tpu.dot_dimension_numbers<[1], [0], [0], [1], [0, 0, 1, 1], [], []>} : vector<8x4xf32>, vector<4x32xf32>, vector<8x32xf32> -> vector<8x32xf32>
    %137 = arith.addf %134, %136 : vector<8x32xf32>
    %138 = vector.extract_strided_slice %131 {offsets = [0, 2], sizes = [4, 32], strides = [1, 1]} : vector<4x34xf32> to vector<4x32xf32>
    %cst_80 = arith.constant dense<0.000000e+00> : vector<8x32xf32>
    %139 = tpu.matmul %5, %138, %cst_80 {dimension_numbers = #tpu.dot_dimension_numbers<[1], [0], [0], [1], [0, 0, 1, 1], [], []>} : vector<8x4xf32>, vector<4x32xf32>, vector<8x32xf32> -> vector<8x32xf32>
    %140 = arith.addf %137, %139 : vector<8x32xf32>
    %c1_i32_81 = arith.constant 1 : i32
    %141 = arith.addi %125, %c1_i32_81 : i32
    %142 = arith.index_cast %141 : i32 to index
    %143 = memref.load %arg2[%142] : memref<34xi32, #tpu.memory_space<smem>>
    %c0_82 = arith.constant 0 : index
    %144 = arith.index_cast %143 : i32 to index
    %c0_83 = arith.constant 0 : index
    %c0_84 = arith.constant 0 : index
    %145 = vector.load %arg3[%c0_82, %144, %c0_83, %c0_84] : memref<1x16x4x34xf32, #tpu.memory_space<vmem>>, vector<1x1x4x34xf32>
    %146 = vector.shape_cast %145 : vector<1x1x4x34xf32> to vector<4x34xf32>
    %147 = vector.extract_strided_slice %146 {offsets = [0, 0], sizes = [4, 32], strides = [1, 1]} : vector<4x34xf32> to vector<4x32xf32>
    %cst_85 = arith.constant dense<0.000000e+00> : vector<8x32xf32>
    %148 = tpu.matmul %7, %147, %cst_85 {dimension_numbers = #tpu.dot_dimension_numbers<[1], [0], [0], [1], [0, 0, 1, 1], [], []>} : vector<8x4xf32>, vector<4x32xf32>, vector<8x32xf32> -> vector<8x32xf32>
    %149 = arith.addf %140, %148 : vector<8x32xf32>
    %150 = vector.extract_strided_slice %146 {offsets = [0, 1], sizes = [4, 32], strides = [1, 1]} : vector<4x34xf32> to vector<4x32xf32>
    %cst_86 = arith.constant dense<0.000000e+00> : vector<8x32xf32>
    %151 = tpu.matmul %9, %150, %cst_86 {dimension_numbers = #tpu.dot_dimension_numbers<[1], [0], [0], [1], [0, 0, 1, 1], [], []>} : vector<8x4xf32>, vector<4x32xf32>, vector<8x32xf32> -> vector<8x32xf32>
    %152 = arith.addf %149, %151 : vector<8x32xf32>
    %153 = vector.extract_strided_slice %146 {offsets = [0, 2], sizes = [4, 32], strides = [1, 1]} : vector<4x34xf32> to vector<4x32xf32>
    %cst_87 = arith.constant dense<0.000000e+00> : vector<8x32xf32>
    %154 = tpu.matmul %11, %153, %cst_87 {dimension_numbers = #tpu.dot_dimension_numbers<[1], [0], [0], [1], [0, 0, 1, 1], [], []>} : vector<8x4xf32>, vector<4x32xf32>, vector<8x32xf32> -> vector<8x32xf32>
    %155 = arith.addf %152, %154 : vector<8x32xf32>
    %c2_i32_88 = arith.constant 2 : i32
    %156 = arith.addi %125, %c2_i32_88 : i32
    %157 = arith.index_cast %156 : i32 to index
    %158 = memref.load %arg2[%157] : memref<34xi32, #tpu.memory_space<smem>>
    %c0_89 = arith.constant 0 : index
    %159 = arith.index_cast %158 : i32 to index
    %c0_90 = arith.constant 0 : index
    %c0_91 = arith.constant 0 : index
    %160 = vector.load %arg3[%c0_89, %159, %c0_90, %c0_91] : memref<1x16x4x34xf32, #tpu.memory_space<vmem>>, vector<1x1x4x34xf32>
    %161 = vector.shape_cast %160 : vector<1x1x4x34xf32> to vector<4x34xf32>
    %162 = vector.extract_strided_slice %161 {offsets = [0, 0], sizes = [4, 32], strides = [1, 1]} : vector<4x34xf32> to vector<4x32xf32>
    %cst_92 = arith.constant dense<0.000000e+00> : vector<8x32xf32>
    %163 = tpu.matmul %13, %162, %cst_92 {dimension_numbers = #tpu.dot_dimension_numbers<[1], [0], [0], [1], [0, 0, 1, 1], [], []>} : vector<8x4xf32>, vector<4x32xf32>, vector<8x32xf32> -> vector<8x32xf32>
    %164 = arith.addf %155, %163 : vector<8x32xf32>
    %165 = vector.extract_strided_slice %161 {offsets = [0, 1], sizes = [4, 32], strides = [1, 1]} : vector<4x34xf32> to vector<4x32xf32>
    %cst_93 = arith.constant dense<0.000000e+00> : vector<8x32xf32>
    %166 = tpu.matmul %15, %165, %cst_93 {dimension_numbers = #tpu.dot_dimension_numbers<[1], [0], [0], [1], [0, 0, 1, 1], [], []>} : vector<8x4xf32>, vector<4x32xf32>, vector<8x32xf32> -> vector<8x32xf32>
    %167 = arith.addf %164, %166 : vector<8x32xf32>
    %168 = vector.extract_strided_slice %161 {offsets = [0, 2], sizes = [4, 32], strides = [1, 1]} : vector<4x34xf32> to vector<4x32xf32>
    %cst_94 = arith.constant dense<0.000000e+00> : vector<8x32xf32>
    %169 = tpu.matmul %17, %168, %cst_94 {dimension_numbers = #tpu.dot_dimension_numbers<[1], [0], [0], [1], [0, 0, 1, 1], [], []>} : vector<8x4xf32>, vector<4x32xf32>, vector<8x32xf32> -> vector<8x32xf32>
    %170 = arith.addf %167, %169 : vector<8x32xf32>
    %c0_95 = arith.constant 0 : index
    %c0_96 = arith.constant 0 : index
    %c2_97 = arith.constant 2 : index
    %c0_98 = arith.constant 0 : index
    %171 = vector.load %arg6[%c0_95, %c0_96, %c2_97, %c0_98] : memref<1x8x8x32xf32, #tpu.memory_space<vmem>>, vector<1x8x1x32xf32>
    %172 = vector.shape_cast %171 : vector<1x8x1x32xf32> to vector<8x32xf32>
    %173 = vector.shape_cast %170 : vector<8x32xf32> to vector<1x8x1x32xf32>
    tpu.vector_store %arg6[%c0_95, %c0_96, %c2_97, %c0_98], %173 {strides = array<i32>} : memref<1x8x8x32xf32, #tpu.memory_space<vmem>>, vector<1x8x1x32xf32>,
    %c8_i32_99 = arith.constant 8 : i32
    %174 = arith.muli %arg1, %c8_i32_99 : i32
    %c3_i32 = arith.constant 3 : i32
    %175 = arith.addi %174, %c3_i32 : i32
    %c1_i32_100 = arith.constant 1 : i32
    %176 = arith.muli %175, %c1_i32_100 : i32
    %c0_i32_101 = arith.constant 0 : i32
    %177 = arith.addi %176, %c0_i32_101 : i32
    %178 = arith.index_cast %177 : i32 to index
    %179 = memref.load %arg2[%178] : memref<34xi32, #tpu.memory_space<smem>>
    %c0_102 = arith.constant 0 : index
    %180 = arith.index_cast %179 : i32 to index
    %c0_103 = arith.constant 0 : index
    %c0_104 = arith.constant 0 : index
    %181 = vector.load %arg3[%c0_102, %180, %c0_103, %c0_104] : memref<1x16x4x34xf32, #tpu.memory_space<vmem>>, vector<1x1x4x34xf32>
    %182 = vector.shape_cast %181 : vector<1x1x4x34xf32> to vector<4x34xf32>
    %183 = vector.extract_strided_slice %182 {offsets = [0, 0], sizes = [4, 32], strides = [1, 1]} : vector<4x34xf32> to vector<4x32xf32>
    %cst_105 = arith.constant dense<0.000000e+00> : vector<8x32xf32>
    %184 = tpu.matmul %1, %183, %cst_105 {dimension_numbers = #tpu.dot_dimension_numbers<[1], [0], [0], [1], [0, 0, 1, 1], [], []>} : vector<8x4xf32>, vector<4x32xf32>, vector<8x32xf32> -> vector<8x32xf32>
    %185 = arith.addf %20, %184 : vector<8x32xf32>
    %186 = vector.extract_strided_slice %182 {offsets = [0, 1], sizes = [4, 32], strides = [1, 1]} : vector<4x34xf32> to vector<4x32xf32>
    %cst_106 = arith.constant dense<0.000000e+00> : vector<8x32xf32>
    %187 = tpu.matmul %3, %186, %cst_106 {dimension_numbers = #tpu.dot_dimension_numbers<[1], [0], [0], [1], [0, 0, 1, 1], [], []>} : vector<8x4xf32>, vector<4x32xf32>, vector<8x32xf32> -> vector<8x32xf32>
    %188 = arith.addf %185, %187 : vector<8x32xf32>
    %189 = vector.extract_strided_slice %182 {offsets = [0, 2], sizes = [4, 32], strides = [1, 1]} : vector<4x34xf32> to vector<4x32xf32>
    %cst_107 = arith.constant dense<0.000000e+00> : vector<8x32xf32>
    %190 = tpu.matmul %5, %189, %cst_107 {dimension_numbers = #tpu.dot_dimension_numbers<[1], [0], [0], [1], [0, 0, 1, 1], [], []>} : vector<8x4xf32>, vector<4x32xf32>, vector<8x32xf32> -> vector<8x32xf32>
    %191 = arith.addf %188, %190 : vector<8x32xf32>
    %c1_i32_108 = arith.constant 1 : i32
    %192 = arith.addi %176, %c1_i32_108 : i32
    %193 = arith.index_cast %192 : i32 to index
    %194 = memref.load %arg2[%193] : memref<34xi32, #tpu.memory_space<smem>>
    %c0_109 = arith.constant 0 : index
    %195 = arith.index_cast %194 : i32 to index
    %c0_110 = arith.constant 0 : index
    %c0_111 = arith.constant 0 : index
    %196 = vector.load %arg3[%c0_109, %195, %c0_110, %c0_111] : memref<1x16x4x34xf32, #tpu.memory_space<vmem>>, vector<1x1x4x34xf32>
    %197 = vector.shape_cast %196 : vector<1x1x4x34xf32> to vector<4x34xf32>
    %198 = vector.extract_strided_slice %197 {offsets = [0, 0], sizes = [4, 32], strides = [1, 1]} : vector<4x34xf32> to vector<4x32xf32>
    %cst_112 = arith.constant dense<0.000000e+00> : vector<8x32xf32>
    %199 = tpu.matmul %7, %198, %cst_112 {dimension_numbers = #tpu.dot_dimension_numbers<[1], [0], [0], [1], [0, 0, 1, 1], [], []>} : vector<8x4xf32>, vector<4x32xf32>, vector<8x32xf32> -> vector<8x32xf32>
    %200 = arith.addf %191, %199 : vector<8x32xf32>
    %201 = vector.extract_strided_slice %197 {offsets = [0, 1], sizes = [4, 32], strides = [1, 1]} : vector<4x34xf32> to vector<4x32xf32>
    %cst_113 = arith.constant dense<0.000000e+00> : vector<8x32xf32>
    %202 = tpu.matmul %9, %201, %cst_113 {dimension_numbers = #tpu.dot_dimension_numbers<[1], [0], [0], [1], [0, 0, 1, 1], [], []>} : vector<8x4xf32>, vector<4x32xf32>, vector<8x32xf32> -> vector<8x32xf32>
    %203 = arith.addf %200, %202 : vector<8x32xf32>
    %204 = vector.extract_strided_slice %197 {offsets = [0, 2], sizes = [4, 32], strides = [1, 1]} : vector<4x34xf32> to vector<4x32xf32>
    %cst_114 = arith.constant dense<0.000000e+00> : vector<8x32xf32>
    %205 = tpu.matmul %11, %204, %cst_114 {dimension_numbers = #tpu.dot_dimension_numbers<[1], [0], [0], [1], [0, 0, 1, 1], [], []>} : vector<8x4xf32>, vector<4x32xf32>, vector<8x32xf32> -> vector<8x32xf32>
    %206 = arith.addf %203, %205 : vector<8x32xf32>
    %c2_i32_115 = arith.constant 2 : i32
    %207 = arith.addi %176, %c2_i32_115 : i32
    %208 = arith.index_cast %207 : i32 to index
    %209 = memref.load %arg2[%208] : memref<34xi32, #tpu.memory_space<smem>>
    %c0_116 = arith.constant 0 : index
    %210 = arith.index_cast %209 : i32 to index
    %c0_117 = arith.constant 0 : index
    %c0_118 = arith.constant 0 : index
    %211 = vector.load %arg3[%c0_116, %210, %c0_117, %c0_118] : memref<1x16x4x34xf32, #tpu.memory_space<vmem>>, vector<1x1x4x34xf32>
    %212 = vector.shape_cast %211 : vector<1x1x4x34xf32> to vector<4x34xf32>
    %213 = vector.extract_strided_slice %212 {offsets = [0, 0], sizes = [4, 32], strides = [1, 1]} : vector<4x34xf32> to vector<4x32xf32>
    %cst_119 = arith.constant dense<0.000000e+00> : vector<8x32xf32>
    %214 = tpu.matmul %13, %213, %cst_119 {dimension_numbers = #tpu.dot_dimension_numbers<[1], [0], [0], [1], [0, 0, 1, 1], [], []>} : vector<8x4xf32>, vector<4x32xf32>, vector<8x32xf32> -> vector<8x32xf32>
    %215 = arith.addf %206, %214 : vector<8x32xf32>
    %216 = vector.extract_strided_slice %212 {offsets = [0, 1], sizes = [4, 32], strides = [1, 1]} : vector<4x34xf32> to vector<4x32xf32>
    %cst_120 = arith.constant dense<0.000000e+00> : vector<8x32xf32>
    %217 = tpu.matmul %15, %216, %cst_120 {dimension_numbers = #tpu.dot_dimension_numbers<[1], [0], [0], [1], [0, 0, 1, 1], [], []>} : vector<8x4xf32>, vector<4x32xf32>, vector<8x32xf32> -> vector<8x32xf32>
    %218 = arith.addf %215, %217 : vector<8x32xf32>
    %219 = vector.extract_strided_slice %212 {offsets = [0, 2], sizes = [4, 32], strides = [1, 1]} : vector<4x34xf32> to vector<4x32xf32>
    %cst_121 = arith.constant dense<0.000000e+00> : vector<8x32xf32>
    %220 = tpu.matmul %17, %219, %cst_121 {dimension_numbers = #tpu.dot_dimension_numbers<[1], [0], [0], [1], [0, 0, 1, 1], [], []>} : vector<8x4xf32>, vector<4x32xf32>, vector<8x32xf32> -> vector<8x32xf32>
    %221 = arith.addf %218, %220 : vector<8x32xf32>
    %c0_122 = arith.constant 0 : index
    %c0_123 = arith.constant 0 : index
    %c3_124 = arith.constant 3 : index
    %c0_125 = arith.constant 0 : index
    %222 = vector.load %arg6[%c0_122, %c0_123, %c3_124, %c0_125] : memref<1x8x8x32xf32, #tpu.memory_space<vmem>>, vector<1x8x1x32xf32>
    %223 = vector.shape_cast %222 : vector<1x8x1x32xf32> to vector<8x32xf32>
    %224 = vector.shape_cast %221 : vector<8x32xf32> to vector<1x8x1x32xf32>
    tpu.vector_store %arg6[%c0_122, %c0_123, %c3_124, %c0_125], %224 {strides = array<i32>} : memref<1x8x8x32xf32, #tpu.memory_space<vmem>>, vector<1x8x1x32xf32>,
    %c8_i32_126 = arith.constant 8 : i32
    %225 = arith.muli %arg1, %c8_i32_126 : i32
    %c4_i32 = arith.constant 4 : i32
    %226 = arith.addi %225, %c4_i32 : i32
    %c1_i32_127 = arith.constant 1 : i32
    %227 = arith.muli %226, %c1_i32_127 : i32
    %c0_i32_128 = arith.constant 0 : i32
    %228 = arith.addi %227, %c0_i32_128 : i32
    %229 = arith.index_cast %228 : i32 to index
    %230 = memref.load %arg2[%229] : memref<34xi32, #tpu.memory_space<smem>>
    %c0_129 = arith.constant 0 : index
    %231 = arith.index_cast %230 : i32 to index
    %c0_130 = arith.constant 0 : index
    %c0_131 = arith.constant 0 : index
    %232 = vector.load %arg3[%c0_129, %231, %c0_130, %c0_131] : memref<1x16x4x34xf32, #tpu.memory_space<vmem>>, vector<1x1x4x34xf32>
    %233 = vector.shape_cast %232 : vector<1x1x4x34xf32> to vector<4x34xf32>
    %234 = vector.extract_strided_slice %233 {offsets = [0, 0], sizes = [4, 32], strides = [1, 1]} : vector<4x34xf32> to vector<4x32xf32>
    %cst_132 = arith.constant dense<0.000000e+00> : vector<8x32xf32>
    %235 = tpu.matmul %1, %234, %cst_132 {dimension_numbers = #tpu.dot_dimension_numbers<[1], [0], [0], [1], [0, 0, 1, 1], [], []>} : vector<8x4xf32>, vector<4x32xf32>, vector<8x32xf32> -> vector<8x32xf32>
    %236 = arith.addf %20, %235 : vector<8x32xf32>
    %237 = vector.extract_strided_slice %233 {offsets = [0, 1], sizes = [4, 32], strides = [1, 1]} : vector<4x34xf32> to vector<4x32xf32>
    %cst_133 = arith.constant dense<0.000000e+00> : vector<8x32xf32>
    %238 = tpu.matmul %3, %237, %cst_133 {dimension_numbers = #tpu.dot_dimension_numbers<[1], [0], [0], [1], [0, 0, 1, 1], [], []>} : vector<8x4xf32>, vector<4x32xf32>, vector<8x32xf32> -> vector<8x32xf32>
    %239 = arith.addf %236, %238 : vector<8x32xf32>
    %240 = vector.extract_strided_slice %233 {offsets = [0, 2], sizes = [4, 32], strides = [1, 1]} : vector<4x34xf32> to vector<4x32xf32>
    %cst_134 = arith.constant dense<0.000000e+00> : vector<8x32xf32>
    %241 = tpu.matmul %5, %240, %cst_134 {dimension_numbers = #tpu.dot_dimension_numbers<[1], [0], [0], [1], [0, 0, 1, 1], [], []>} : vector<8x4xf32>, vector<4x32xf32>, vector<8x32xf32> -> vector<8x32xf32>
    %242 = arith.addf %239, %241 : vector<8x32xf32>
    %c1_i32_135 = arith.constant 1 : i32
    %243 = arith.addi %227, %c1_i32_135 : i32
    %244 = arith.index_cast %243 : i32 to index
    %245 = memref.load %arg2[%244] : memref<34xi32, #tpu.memory_space<smem>>
    %c0_136 = arith.constant 0 : index
    %246 = arith.index_cast %245 : i32 to index
    %c0_137 = arith.constant 0 : index
    %c0_138 = arith.constant 0 : index
    %247 = vector.load %arg3[%c0_136, %246, %c0_137, %c0_138] : memref<1x16x4x34xf32, #tpu.memory_space<vmem>>, vector<1x1x4x34xf32>
    %248 = vector.shape_cast %247 : vector<1x1x4x34xf32> to vector<4x34xf32>
    %249 = vector.extract_strided_slice %248 {offsets = [0, 0], sizes = [4, 32], strides = [1, 1]} : vector<4x34xf32> to vector<4x32xf32>
    %cst_139 = arith.constant dense<0.000000e+00> : vector<8x32xf32>
    %250 = tpu.matmul %7, %249, %cst_139 {dimension_numbers = #tpu.dot_dimension_numbers<[1], [0], [0], [1], [0, 0, 1, 1], [], []>} : vector<8x4xf32>, vector<4x32xf32>, vector<8x32xf32> -> vector<8x32xf32>
    %251 = arith.addf %242, %250 : vector<8x32xf32>
    %252 = vector.extract_strided_slice %248 {offsets = [0, 1], sizes = [4, 32], strides = [1, 1]} : vector<4x34xf32> to vector<4x32xf32>
    %cst_140 = arith.constant dense<0.000000e+00> : vector<8x32xf32>
    %253 = tpu.matmul %9, %252, %cst_140 {dimension_numbers = #tpu.dot_dimension_numbers<[1], [0], [0], [1], [0, 0, 1, 1], [], []>} : vector<8x4xf32>, vector<4x32xf32>, vector<8x32xf32> -> vector<8x32xf32>
    %254 = arith.addf %251, %253 : vector<8x32xf32>
    %255 = vector.extract_strided_slice %248 {offsets = [0, 2], sizes = [4, 32], strides = [1, 1]} : vector<4x34xf32> to vector<4x32xf32>
    %cst_141 = arith.constant dense<0.000000e+00> : vector<8x32xf32>
    %256 = tpu.matmul %11, %255, %cst_141 {dimension_numbers = #tpu.dot_dimension_numbers<[1], [0], [0], [1], [0, 0, 1, 1], [], []>} : vector<8x4xf32>, vector<4x32xf32>, vector<8x32xf32> -> vector<8x32xf32>
    %257 = arith.addf %254, %256 : vector<8x32xf32>
    %c2_i32_142 = arith.constant 2 : i32
    %258 = arith.addi %227, %c2_i32_142 : i32
    %259 = arith.index_cast %258 : i32 to index
    %260 = memref.load %arg2[%259] : memref<34xi32, #tpu.memory_space<smem>>
    %c0_143 = arith.constant 0 : index
    %261 = arith.index_cast %260 : i32 to index
    %c0_144 = arith.constant 0 : index
    %c0_145 = arith.constant 0 : index
    %262 = vector.load %arg3[%c0_143, %261, %c0_144, %c0_145] : memref<1x16x4x34xf32, #tpu.memory_space<vmem>>, vector<1x1x4x34xf32>
    %263 = vector.shape_cast %262 : vector<1x1x4x34xf32> to vector<4x34xf32>
    %264 = vector.extract_strided_slice %263 {offsets = [0, 0], sizes = [4, 32], strides = [1, 1]} : vector<4x34xf32> to vector<4x32xf32>
    %cst_146 = arith.constant dense<0.000000e+00> : vector<8x32xf32>
    %265 = tpu.matmul %13, %264, %cst_146 {dimension_numbers = #tpu.dot_dimension_numbers<[1], [0], [0], [1], [0, 0, 1, 1], [], []>} : vector<8x4xf32>, vector<4x32xf32>, vector<8x32xf32> -> vector<8x32xf32>
    %266 = arith.addf %257, %265 : vector<8x32xf32>
    %267 = vector.extract_strided_slice %263 {offsets = [0, 1], sizes = [4, 32], strides = [1, 1]} : vector<4x34xf32> to vector<4x32xf32>
    %cst_147 = arith.constant dense<0.000000e+00> : vector<8x32xf32>
    %268 = tpu.matmul %15, %267, %cst_147 {dimension_numbers = #tpu.dot_dimension_numbers<[1], [0], [0], [1], [0, 0, 1, 1], [], []>} : vector<8x4xf32>, vector<4x32xf32>, vector<8x32xf32> -> vector<8x32xf32>
    %269 = arith.addf %266, %268 : vector<8x32xf32>
    %270 = vector.extract_strided_slice %263 {offsets = [0, 2], sizes = [4, 32], strides = [1, 1]} : vector<4x34xf32> to vector<4x32xf32>
    %cst_148 = arith.constant dense<0.000000e+00> : vector<8x32xf32>
    %271 = tpu.matmul %17, %270, %cst_148 {dimension_numbers = #tpu.dot_dimension_numbers<[1], [0], [0], [1], [0, 0, 1, 1], [], []>} : vector<8x4xf32>, vector<4x32xf32>, vector<8x32xf32> -> vector<8x32xf32>
    %272 = arith.addf %269, %271 : vector<8x32xf32>
    %c0_149 = arith.constant 0 : index
    %c0_150 = arith.constant 0 : index
    %c4_151 = arith.constant 4 : index
    %c0_152 = arith.constant 0 : index
    %273 = vector.load %arg6[%c0_149, %c0_150, %c4_151, %c0_152] : memref<1x8x8x32xf32, #tpu.memory_space<vmem>>, vector<1x8x1x32xf32>
    %274 = vector.shape_cast %273 : vector<1x8x1x32xf32> to vector<8x32xf32>
    %275 = vector.shape_cast %272 : vector<8x32xf32> to vector<1x8x1x32xf32>
    tpu.vector_store %arg6[%c0_149, %c0_150, %c4_151, %c0_152], %275 {strides = array<i32>} : memref<1x8x8x32xf32, #tpu.memory_space<vmem>>, vector<1x8x1x32xf32>,
    %c8_i32_153 = arith.constant 8 : i32
    %276 = arith.muli %arg1, %c8_i32_153 : i32
    %c5_i32 = arith.constant 5 : i32
    %277 = arith.addi %276, %c5_i32 : i32
    %c1_i32_154 = arith.constant 1 : i32
    %278 = arith.muli %277, %c1_i32_154 : i32
    %c0_i32_155 = arith.constant 0 : i32
    %279 = arith.addi %278, %c0_i32_155 : i32
    %280 = arith.index_cast %279 : i32 to index
    %281 = memref.load %arg2[%280] : memref<34xi32, #tpu.memory_space<smem>>
    %c0_156 = arith.constant 0 : index
    %282 = arith.index_cast %281 : i32 to index
    %c0_157 = arith.constant 0 : index
    %c0_158 = arith.constant 0 : index
    %283 = vector.load %arg3[%c0_156, %282, %c0_157, %c0_158] : memref<1x16x4x34xf32, #tpu.memory_space<vmem>>, vector<1x1x4x34xf32>
    %284 = vector.shape_cast %283 : vector<1x1x4x34xf32> to vector<4x34xf32>
    %285 = vector.extract_strided_slice %284 {offsets = [0, 0], sizes = [4, 32], strides = [1, 1]} : vector<4x34xf32> to vector<4x32xf32>
    %cst_159 = arith.constant dense<0.000000e+00> : vector<8x32xf32>
    %286 = tpu.matmul %1, %285, %cst_159 {dimension_numbers = #tpu.dot_dimension_numbers<[1], [0], [0], [1], [0, 0, 1, 1], [], []>} : vector<8x4xf32>, vector<4x32xf32>, vector<8x32xf32> -> vector<8x32xf32>
    %287 = arith.addf %20, %286 : vector<8x32xf32>
    %288 = vector.extract_strided_slice %284 {offsets = [0, 1], sizes = [4, 32], strides = [1, 1]} : vector<4x34xf32> to vector<4x32xf32>
    %cst_160 = arith.constant dense<0.000000e+00> : vector<8x32xf32>
    %289 = tpu.matmul %3, %288, %cst_160 {dimension_numbers = #tpu.dot_dimension_numbers<[1], [0], [0], [1], [0, 0, 1, 1], [], []>} : vector<8x4xf32>, vector<4x32xf32>, vector<8x32xf32> -> vector<8x32xf32>
    %290 = arith.addf %287, %289 : vector<8x32xf32>
    %291 = vector.extract_strided_slice %284 {offsets = [0, 2], sizes = [4, 32], strides = [1, 1]} : vector<4x34xf32> to vector<4x32xf32>
    %cst_161 = arith.constant dense<0.000000e+00> : vector<8x32xf32>
    %292 = tpu.matmul %5, %291, %cst_161 {dimension_numbers = #tpu.dot_dimension_numbers<[1], [0], [0], [1], [0, 0, 1, 1], [], []>} : vector<8x4xf32>, vector<4x32xf32>, vector<8x32xf32> -> vector<8x32xf32>
    %293 = arith.addf %290, %292 : vector<8x32xf32>
    %c1_i32_162 = arith.constant 1 : i32
    %294 = arith.addi %278, %c1_i32_162 : i32
    %295 = arith.index_cast %294 : i32 to index
    %296 = memref.load %arg2[%295] : memref<34xi32, #tpu.memory_space<smem>>
    %c0_163 = arith.constant 0 : index
    %297 = arith.index_cast %296 : i32 to index
    %c0_164 = arith.constant 0 : index
    %c0_165 = arith.constant 0 : index
    %298 = vector.load %arg3[%c0_163, %297, %c0_164, %c0_165] : memref<1x16x4x34xf32, #tpu.memory_space<vmem>>, vector<1x1x4x34xf32>
    %299 = vector.shape_cast %298 : vector<1x1x4x34xf32> to vector<4x34xf32>
    %300 = vector.extract_strided_slice %299 {offsets = [0, 0], sizes = [4, 32], strides = [1, 1]} : vector<4x34xf32> to vector<4x32xf32>
    %cst_166 = arith.constant dense<0.000000e+00> : vector<8x32xf32>
    %301 = tpu.matmul %7, %300, %cst_166 {dimension_numbers = #tpu.dot_dimension_numbers<[1], [0], [0], [1], [0, 0, 1, 1], [], []>} : vector<8x4xf32>, vector<4x32xf32>, vector<8x32xf32> -> vector<8x32xf32>
    %302 = arith.addf %293, %301 : vector<8x32xf32>
    %303 = vector.extract_strided_slice %299 {offsets = [0, 1], sizes = [4, 32], strides = [1, 1]} : vector<4x34xf32> to vector<4x32xf32>
    %cst_167 = arith.constant dense<0.000000e+00> : vector<8x32xf32>
    %304 = tpu.matmul %9, %303, %cst_167 {dimension_numbers = #tpu.dot_dimension_numbers<[1], [0], [0], [1], [0, 0, 1, 1], [], []>} : vector<8x4xf32>, vector<4x32xf32>, vector<8x32xf32> -> vector<8x32xf32>
    %305 = arith.addf %302, %304 : vector<8x32xf32>
    %306 = vector.extract_strided_slice %299 {offsets = [0, 2], sizes = [4, 32], strides = [1, 1]} : vector<4x34xf32> to vector<4x32xf32>
    %cst_168 = arith.constant dense<0.000000e+00> : vector<8x32xf32>
    %307 = tpu.matmul %11, %306, %cst_168 {dimension_numbers = #tpu.dot_dimension_numbers<[1], [0], [0], [1], [0, 0, 1, 1], [], []>} : vector<8x4xf32>, vector<4x32xf32>, vector<8x32xf32> -> vector<8x32xf32>
    %308 = arith.addf %305, %307 : vector<8x32xf32>
    %c2_i32_169 = arith.constant 2 : i32
    %309 = arith.addi %278, %c2_i32_169 : i32
    %310 = arith.index_cast %309 : i32 to index
    %311 = memref.load %arg2[%310] : memref<34xi32, #tpu.memory_space<smem>>
    %c0_170 = arith.constant 0 : index
    %312 = arith.index_cast %311 : i32 to index
    %c0_171 = arith.constant 0 : index
    %c0_172 = arith.constant 0 : index
    %313 = vector.load %arg3[%c0_170, %312, %c0_171, %c0_172] : memref<1x16x4x34xf32, #tpu.memory_space<vmem>>, vector<1x1x4x34xf32>
    %314 = vector.shape_cast %313 : vector<1x1x4x34xf32> to vector<4x34xf32>
    %315 = vector.extract_strided_slice %314 {offsets = [0, 0], sizes = [4, 32], strides = [1, 1]} : vector<4x34xf32> to vector<4x32xf32>
    %cst_173 = arith.constant dense<0.000000e+00> : vector<8x32xf32>
    %316 = tpu.matmul %13, %315, %cst_173 {dimension_numbers = #tpu.dot_dimension_numbers<[1], [0], [0], [1], [0, 0, 1, 1], [], []>} : vector<8x4xf32>, vector<4x32xf32>, vector<8x32xf32> -> vector<8x32xf32>
    %317 = arith.addf %308, %316 : vector<8x32xf32>
    %318 = vector.extract_strided_slice %314 {offsets = [0, 1], sizes = [4, 32], strides = [1, 1]} : vector<4x34xf32> to vector<4x32xf32>
    %cst_174 = arith.constant dense<0.000000e+00> : vector<8x32xf32>
    %319 = tpu.matmul %15, %318, %cst_174 {dimension_numbers = #tpu.dot_dimension_numbers<[1], [0], [0], [1], [0, 0, 1, 1], [], []>} : vector<8x4xf32>, vector<4x32xf32>, vector<8x32xf32> -> vector<8x32xf32>
    %320 = arith.addf %317, %319 : vector<8x32xf32>
    %321 = vector.extract_strided_slice %314 {offsets = [0, 2], sizes = [4, 32], strides = [1, 1]} : vector<4x34xf32> to vector<4x32xf32>
    %cst_175 = arith.constant dense<0.000000e+00> : vector<8x32xf32>
    %322 = tpu.matmul %17, %321, %cst_175 {dimension_numbers = #tpu.dot_dimension_numbers<[1], [0], [0], [1], [0, 0, 1, 1], [], []>} : vector<8x4xf32>, vector<4x32xf32>, vector<8x32xf32> -> vector<8x32xf32>
    %323 = arith.addf %320, %322 : vector<8x32xf32>
    %c0_176 = arith.constant 0 : index
    %c0_177 = arith.constant 0 : index
    %c5_178 = arith.constant 5 : index
    %c0_179 = arith.constant 0 : index
    %324 = vector.load %arg6[%c0_176, %c0_177, %c5_178, %c0_179] : memref<1x8x8x32xf32, #tpu.memory_space<vmem>>, vector<1x8x1x32xf32>
    %325 = vector.shape_cast %324 : vector<1x8x1x32xf32> to vector<8x32xf32>
    %326 = vector.shape_cast %323 : vector<8x32xf32> to vector<1x8x1x32xf32>
    tpu.vector_store %arg6[%c0_176, %c0_177, %c5_178, %c0_179], %326 {strides = array<i32>} : memref<1x8x8x32xf32, #tpu.memory_space<vmem>>, vector<1x8x1x32xf32>,
    %c8_i32_180 = arith.constant 8 : i32
    %327 = arith.muli %arg1, %c8_i32_180 : i32
    %c6_i32 = arith.constant 6 : i32
    %328 = arith.addi %327, %c6_i32 : i32
    %c1_i32_181 = arith.constant 1 : i32
    %329 = arith.muli %328, %c1_i32_181 : i32
    %c0_i32_182 = arith.constant 0 : i32
    %330 = arith.addi %329, %c0_i32_182 : i32
    %331 = arith.index_cast %330 : i32 to index
    %332 = memref.load %arg2[%331] : memref<34xi32, #tpu.memory_space<smem>>
    %c0_183 = arith.constant 0 : index
    %333 = arith.index_cast %332 : i32 to index
    %c0_184 = arith.constant 0 : index
    %c0_185 = arith.constant 0 : index
    %334 = vector.load %arg3[%c0_183, %333, %c0_184, %c0_185] : memref<1x16x4x34xf32, #tpu.memory_space<vmem>>, vector<1x1x4x34xf32>
    %335 = vector.shape_cast %334 : vector<1x1x4x34xf32> to vector<4x34xf32>
    %336 = vector.extract_strided_slice %335 {offsets = [0, 0], sizes = [4, 32], strides = [1, 1]} : vector<4x34xf32> to vector<4x32xf32>
    %cst_186 = arith.constant dense<0.000000e+00> : vector<8x32xf32>
    %337 = tpu.matmul %1, %336, %cst_186 {dimension_numbers = #tpu.dot_dimension_numbers<[1], [0], [0], [1], [0, 0, 1, 1], [], []>} : vector<8x4xf32>, vector<4x32xf32>, vector<8x32xf32> -> vector<8x32xf32>
    %338 = arith.addf %20, %337 : vector<8x32xf32>
    %339 = vector.extract_strided_slice %335 {offsets = [0, 1], sizes = [4, 32], strides = [1, 1]} : vector<4x34xf32> to vector<4x32xf32>
    %cst_187 = arith.constant dense<0.000000e+00> : vector<8x32xf32>
    %340 = tpu.matmul %3, %339, %cst_187 {dimension_numbers = #tpu.dot_dimension_numbers<[1], [0], [0], [1], [0, 0, 1, 1], [], []>} : vector<8x4xf32>, vector<4x32xf32>, vector<8x32xf32> -> vector<8x32xf32>
    %341 = arith.addf %338, %340 : vector<8x32xf32>
    %342 = vector.extract_strided_slice %335 {offsets = [0, 2], sizes = [4, 32], strides = [1, 1]} : vector<4x34xf32> to vector<4x32xf32>
    %cst_188 = arith.constant dense<0.000000e+00> : vector<8x32xf32>
    %343 = tpu.matmul %5, %342, %cst_188 {dimension_numbers = #tpu.dot_dimension_numbers<[1], [0], [0], [1], [0, 0, 1, 1], [], []>} : vector<8x4xf32>, vector<4x32xf32>, vector<8x32xf32> -> vector<8x32xf32>
    %344 = arith.addf %341, %343 : vector<8x32xf32>
    %c1_i32_189 = arith.constant 1 : i32
    %345 = arith.addi %329, %c1_i32_189 : i32
    %346 = arith.index_cast %345 : i32 to index
    %347 = memref.load %arg2[%346] : memref<34xi32, #tpu.memory_space<smem>>
    %c0_190 = arith.constant 0 : index
    %348 = arith.index_cast %347 : i32 to index
    %c0_191 = arith.constant 0 : index
    %c0_192 = arith.constant 0 : index
    %349 = vector.load %arg3[%c0_190, %348, %c0_191, %c0_192] : memref<1x16x4x34xf32, #tpu.memory_space<vmem>>, vector<1x1x4x34xf32>
    %350 = vector.shape_cast %349 : vector<1x1x4x34xf32> to vector<4x34xf32>
    %351 = vector.extract_strided_slice %350 {offsets = [0, 0], sizes = [4, 32], strides = [1, 1]} : vector<4x34xf32> to vector<4x32xf32>
    %cst_193 = arith.constant dense<0.000000e+00> : vector<8x32xf32>
    %352 = tpu.matmul %7, %351, %cst_193 {dimension_numbers = #tpu.dot_dimension_numbers<[1], [0], [0], [1], [0, 0, 1, 1], [], []>} : vector<8x4xf32>, vector<4x32xf32>, vector<8x32xf32> -> vector<8x32xf32>
    %353 = arith.addf %344, %352 : vector<8x32xf32>
    %354 = vector.extract_strided_slice %350 {offsets = [0, 1], sizes = [4, 32], strides = [1, 1]} : vector<4x34xf32> to vector<4x32xf32>
    %cst_194 = arith.constant dense<0.000000e+00> : vector<8x32xf32>
    %355 = tpu.matmul %9, %354, %cst_194 {dimension_numbers = #tpu.dot_dimension_numbers<[1], [0], [0], [1], [0, 0, 1, 1], [], []>} : vector<8x4xf32>, vector<4x32xf32>, vector<8x32xf32> -> vector<8x32xf32>
    %356 = arith.addf %353, %355 : vector<8x32xf32>
    %357 = vector.extract_strided_slice %350 {offsets = [0, 2], sizes = [4, 32], strides = [1, 1]} : vector<4x34xf32> to vector<4x32xf32>
    %cst_195 = arith.constant dense<0.000000e+00> : vector<8x32xf32>
    %358 = tpu.matmul %11, %357, %cst_195 {dimension_numbers = #tpu.dot_dimension_numbers<[1], [0], [0], [1], [0, 0, 1, 1], [], []>} : vector<8x4xf32>, vector<4x32xf32>, vector<8x32xf32> -> vector<8x32xf32>
    %359 = arith.addf %356, %358 : vector<8x32xf32>
    %c2_i32_196 = arith.constant 2 : i32
    %360 = arith.addi %329, %c2_i32_196 : i32
    %361 = arith.index_cast %360 : i32 to index
    %362 = memref.load %arg2[%361] : memref<34xi32, #tpu.memory_space<smem>>
    %c0_197 = arith.constant 0 : index
    %363 = arith.index_cast %362 : i32 to index
    %c0_198 = arith.constant 0 : index
    %c0_199 = arith.constant 0 : index
    %364 = vector.load %arg3[%c0_197, %363, %c0_198, %c0_199] : memref<1x16x4x34xf32, #tpu.memory_space<vmem>>, vector<1x1x4x34xf32>
    %365 = vector.shape_cast %364 : vector<1x1x4x34xf32> to vector<4x34xf32>
    %366 = vector.extract_strided_slice %365 {offsets = [0, 0], sizes = [4, 32], strides = [1, 1]} : vector<4x34xf32> to vector<4x32xf32>
    %cst_200 = arith.constant dense<0.000000e+00> : vector<8x32xf32>
    %367 = tpu.matmul %13, %366, %cst_200 {dimension_numbers = #tpu.dot_dimension_numbers<[1], [0], [0], [1], [0, 0, 1, 1], [], []>} : vector<8x4xf32>, vector<4x32xf32>, vector<8x32xf32> -> vector<8x32xf32>
    %368 = arith.addf %359, %367 : vector<8x32xf32>
    %369 = vector.extract_strided_slice %365 {offsets = [0, 1], sizes = [4, 32], strides = [1, 1]} : vector<4x34xf32> to vector<4x32xf32>
    %cst_201 = arith.constant dense<0.000000e+00> : vector<8x32xf32>
    %370 = tpu.matmul %15, %369, %cst_201 {dimension_numbers = #tpu.dot_dimension_numbers<[1], [0], [0], [1], [0, 0, 1, 1], [], []>} : vector<8x4xf32>, vector<4x32xf32>, vector<8x32xf32> -> vector<8x32xf32>
    %371 = arith.addf %368, %370 : vector<8x32xf32>
    %372 = vector.extract_strided_slice %365 {offsets = [0, 2], sizes = [4, 32], strides = [1, 1]} : vector<4x34xf32> to vector<4x32xf32>
    %cst_202 = arith.constant dense<0.000000e+00> : vector<8x32xf32>
    %373 = tpu.matmul %17, %372, %cst_202 {dimension_numbers = #tpu.dot_dimension_numbers<[1], [0], [0], [1], [0, 0, 1, 1], [], []>} : vector<8x4xf32>, vector<4x32xf32>, vector<8x32xf32> -> vector<8x32xf32>
    %374 = arith.addf %371, %373 : vector<8x32xf32>
    %c0_203 = arith.constant 0 : index
    %c0_204 = arith.constant 0 : index
    %c6_205 = arith.constant 6 : index
    %c0_206 = arith.constant 0 : index
    %375 = vector.load %arg6[%c0_203, %c0_204, %c6_205, %c0_206] : memref<1x8x8x32xf32, #tpu.memory_space<vmem>>, vector<1x8x1x32xf32>
    %376 = vector.shape_cast %375 : vector<1x8x1x32xf32> to vector<8x32xf32>
    %377 = vector.shape_cast %374 : vector<8x32xf32> to vector<1x8x1x32xf32>
    tpu.vector_store %arg6[%c0_203, %c0_204, %c6_205, %c0_206], %377 {strides = array<i32>} : memref<1x8x8x32xf32, #tpu.memory_space<vmem>>, vector<1x8x1x32xf32>,
    %c8_i32_207 = arith.constant 8 : i32
    %378 = arith.muli %arg1, %c8_i32_207 : i32
    %c7_i32 = arith.constant 7 : i32
    %379 = arith.addi %378, %c7_i32 : i32
    %c1_i32_208 = arith.constant 1 : i32
    %380 = arith.muli %379, %c1_i32_208 : i32
    %c0_i32_209 = arith.constant 0 : i32
    %381 = arith.addi %380, %c0_i32_209 : i32
    %382 = arith.index_cast %381 : i32 to index
    %383 = memref.load %arg2[%382] : memref<34xi32, #tpu.memory_space<smem>>
    %c0_210 = arith.constant 0 : index
    %384 = arith.index_cast %383 : i32 to index
    %c0_211 = arith.constant 0 : index
    %c0_212 = arith.constant 0 : index
    %385 = vector.load %arg3[%c0_210, %384, %c0_211, %c0_212] : memref<1x16x4x34xf32, #tpu.memory_space<vmem>>, vector<1x1x4x34xf32>
    %386 = vector.shape_cast %385 : vector<1x1x4x34xf32> to vector<4x34xf32>
    %387 = vector.extract_strided_slice %386 {offsets = [0, 0], sizes = [4, 32], strides = [1, 1]} : vector<4x34xf32> to vector<4x32xf32>
    %cst_213 = arith.constant dense<0.000000e+00> : vector<8x32xf32>
    %388 = tpu.matmul %1, %387, %cst_213 {dimension_numbers = #tpu.dot_dimension_numbers<[1], [0], [0], [1], [0, 0, 1, 1], [], []>} : vector<8x4xf32>, vector<4x32xf32>, vector<8x32xf32> -> vector<8x32xf32>
    %389 = arith.addf %20, %388 : vector<8x32xf32>
    %390 = vector.extract_strided_slice %386 {offsets = [0, 1], sizes = [4, 32], strides = [1, 1]} : vector<4x34xf32> to vector<4x32xf32>
    %cst_214 = arith.constant dense<0.000000e+00> : vector<8x32xf32>
    %391 = tpu.matmul %3, %390, %cst_214 {dimension_numbers = #tpu.dot_dimension_numbers<[1], [0], [0], [1], [0, 0, 1, 1], [], []>} : vector<8x4xf32>, vector<4x32xf32>, vector<8x32xf32> -> vector<8x32xf32>
    %392 = arith.addf %389, %391 : vector<8x32xf32>
    %393 = vector.extract_strided_slice %386 {offsets = [0, 2], sizes = [4, 32], strides = [1, 1]} : vector<4x34xf32> to vector<4x32xf32>
    %cst_215 = arith.constant dense<0.000000e+00> : vector<8x32xf32>
    %394 = tpu.matmul %5, %393, %cst_215 {dimension_numbers = #tpu.dot_dimension_numbers<[1], [0], [0], [1], [0, 0, 1, 1], [], []>} : vector<8x4xf32>, vector<4x32xf32>, vector<8x32xf32> -> vector<8x32xf32>
    %395 = arith.addf %392, %394 : vector<8x32xf32>
    %c1_i32_216 = arith.constant 1 : i32
    %396 = arith.addi %380, %c1_i32_216 : i32
    %397 = arith.index_cast %396 : i32 to index
    %398 = memref.load %arg2[%397] : memref<34xi32, #tpu.memory_space<smem>>
    %c0_217 = arith.constant 0 : index
    %399 = arith.index_cast %398 : i32 to index
    %c0_218 = arith.constant 0 : index
    %c0_219 = arith.constant 0 : index
    %400 = vector.load %arg3[%c0_217, %399, %c0_218, %c0_219] : memref<1x16x4x34xf32, #tpu.memory_space<vmem>>, vector<1x1x4x34xf32>
    %401 = vector.shape_cast %400 : vector<1x1x4x34xf32> to vector<4x34xf32>
    %402 = vector.extract_strided_slice %401 {offsets = [0, 0], sizes = [4, 32], strides = [1, 1]} : vector<4x34xf32> to vector<4x32xf32>
    %cst_220 = arith.constant dense<0.000000e+00> : vector<8x32xf32>
    %403 = tpu.matmul %7, %402, %cst_220 {dimension_numbers = #tpu.dot_dimension_numbers<[1], [0], [0], [1], [0, 0, 1, 1], [], []>} : vector<8x4xf32>, vector<4x32xf32>, vector<8x32xf32> -> vector<8x32xf32>
    %404 = arith.addf %395, %403 : vector<8x32xf32>
    %405 = vector.extract_strided_slice %401 {offsets = [0, 1], sizes = [4, 32], strides = [1, 1]} : vector<4x34xf32> to vector<4x32xf32>
    %cst_221 = arith.constant dense<0.000000e+00> : vector<8x32xf32>
    %406 = tpu.matmul %9, %405, %cst_221 {dimension_numbers = #tpu.dot_dimension_numbers<[1], [0], [0], [1], [0, 0, 1, 1], [], []>} : vector<8x4xf32>, vector<4x32xf32>, vector<8x32xf32> -> vector<8x32xf32>
    %407 = arith.addf %404, %406 : vector<8x32xf32>
    %408 = vector.extract_strided_slice %401 {offsets = [0, 2], sizes = [4, 32], strides = [1, 1]} : vector<4x34xf32> to vector<4x32xf32>
    %cst_222 = arith.constant dense<0.000000e+00> : vector<8x32xf32>
    %409 = tpu.matmul %11, %408, %cst_222 {dimension_numbers = #tpu.dot_dimension_numbers<[1], [0], [0], [1], [0, 0, 1, 1], [], []>} : vector<8x4xf32>, vector<4x32xf32>, vector<8x32xf32> -> vector<8x32xf32>
    %410 = arith.addf %407, %409 : vector<8x32xf32>
    %c2_i32_223 = arith.constant 2 : i32
    %411 = arith.addi %380, %c2_i32_223 : i32
    %412 = arith.index_cast %411 : i32 to index
    %413 = memref.load %arg2[%412] : memref<34xi32, #tpu.memory_space<smem>>
    %c0_224 = arith.constant 0 : index
    %414 = arith.index_cast %413 : i32 to index
    %c0_225 = arith.constant 0 : index
    %c0_226 = arith.constant 0 : index
    %415 = vector.load %arg3[%c0_224, %414, %c0_225, %c0_226] : memref<1x16x4x34xf32, #tpu.memory_space<vmem>>, vector<1x1x4x34xf32>
    %416 = vector.shape_cast %415 : vector<1x1x4x34xf32> to vector<4x34xf32>
    %417 = vector.extract_strided_slice %416 {offsets = [0, 0], sizes = [4, 32], strides = [1, 1]} : vector<4x34xf32> to vector<4x32xf32>
    %cst_227 = arith.constant dense<0.000000e+00> : vector<8x32xf32>
    %418 = tpu.matmul %13, %417, %cst_227 {dimension_numbers = #tpu.dot_dimension_numbers<[1], [0], [0], [1], [0, 0, 1, 1], [], []>} : vector<8x4xf32>, vector<4x32xf32>, vector<8x32xf32> -> vector<8x32xf32>
    %419 = arith.addf %410, %418 : vector<8x32xf32>
    %420 = vector.extract_strided_slice %416 {offsets = [0, 1], sizes = [4, 32], strides = [1, 1]} : vector<4x34xf32> to vector<4x32xf32>
    %cst_228 = arith.constant dense<0.000000e+00> : vector<8x32xf32>
    %421 = tpu.matmul %15, %420, %cst_228 {dimension_numbers = #tpu.dot_dimension_numbers<[1], [0], [0], [1], [0, 0, 1, 1], [], []>} : vector<8x4xf32>, vector<4x32xf32>, vector<8x32xf32> -> vector<8x32xf32>
    %422 = arith.addf %419, %421 : vector<8x32xf32>
    %423 = vector.extract_strided_slice %416 {offsets = [0, 2], sizes = [4, 32], strides = [1, 1]} : vector<4x34xf32> to vector<4x32xf32>
    %cst_229 = arith.constant dense<0.000000e+00> : vector<8x32xf32>
    %424 = tpu.matmul %17, %423, %cst_229 {dimension_numbers = #tpu.dot_dimension_numbers<[1], [0], [0], [1], [0, 0, 1, 1], [], []>} : vector<8x4xf32>, vector<4x32xf32>, vector<8x32xf32> -> vector<8x32xf32>
    %425 = arith.addf %422, %424 : vector<8x32xf32>
    %c0_230 = arith.constant 0 : index
    %c0_231 = arith.constant 0 : index
    %c7_232 = arith.constant 7 : index
    %c0_233 = arith.constant 0 : index
    %426 = vector.load %arg6[%c0_230, %c0_231, %c7_232, %c0_233] : memref<1x8x8x32xf32, #tpu.memory_space<vmem>>, vector<1x8x1x32xf32>
    %427 = vector.shape_cast %426 : vector<1x8x1x32xf32> to vector<8x32xf32>
    %428 = vector.shape_cast %425 : vector<8x32xf32> to vector<1x8x1x32xf32>
    tpu.vector_store %arg6[%c0_230, %c0_231, %c7_232, %c0_233], %428 {strides = array<i32>} : memref<1x8x8x32xf32, #tpu.memory_space<vmem>>, vector<1x8x1x32xf32>,
    return
  }
  func.func @transform_0(%arg0: i32, %arg1: i32, %arg2: memref<34xi32, #tpu.memory_space<smem>>) -> (i32, i32, i32, i32) {
    %c0_i32 = arith.constant 0 : i32
    %c0_i32_0 = arith.constant 0 : i32
    %c0_i32_1 = arith.constant 0 : i32
    %c0_i32_2 = arith.constant 0 : i32
    return %arg0, %c0_i32, %c0_i32_0, %c0_i32_1 : i32, i32, i32, i32
  }
  func.func @transform_1(%arg0: i32, %arg1: i32, %arg2: memref<34xi32, #tpu.memory_space<smem>>) -> (i32, i32, i32) {
    %c0_i32 = arith.constant 0 : i32
    %c0_i32_0 = arith.constant 0 : i32
    %c0_i32_1 = arith.constant 0 : i32
    %c0_i32_2 = arith.constant 0 : i32
    return %c0_i32, %c0_i32_0, %c0_i32_1 : i32, i32, i32
  }
  func.func @transform_2(%arg0: i32, %arg1: i32, %arg2: memref<34xi32, #tpu.memory_space<smem>>) -> (i32, i32) {
    %c0_i32 = arith.constant 0 : i32
    %c0_i32_0 = arith.constant 0 : i32
    %c0_i32_1 = arith.constant 0 : i32
    return %c0_i32, %c0_i32_0 : i32, i32
  }
  func.func @transform_3(%arg0: i32, %arg1: i32, %arg2: memref<34xi32, #tpu.memory_space<smem>>) -> (i32, i32, i32, i32) {
    %c0_i32 = arith.constant 0 : i32
    %c0_i32_0 = arith.constant 0 : i32
    %c0_i32_1 = arith.constant 0 : i32
    return %arg0, %c0_i32, %arg1, %c0_i32_0 : i32, i32, i32, i32
  }
}

</mosaic_0001>

<llo_original>
// kernel: tpu_custom_call.1
$region0: #{tpu_custom_call.1}
  #allocation0 [shape = 'u32[]', space=smem, size = 0x4, offset = 0x4, fixed_abs, tag = 'smem constant byte address 0x4 - core index']
  #allocation1 [shape = 'u32[144,128]{1,0:T(1,128)}', space=vmem, size = 0x12000, scoped, tag = 'internal scratch']
  #allocation2 [shape = 's32[1]{0}', space=sflag, size = 0x4, scoped, tag = 'scoped memory for tpu_custom_call.1']
  #allocation3 [shape = 'u8[512]{0}', space=smem, size = 0x200, scoped, tag = 'prefetched SMEM operand 0']
  %s0 = inlined_call_operand.vmem [shape: s32[34], index: 0, kind: input, shape index: {}]
  %s1 = inlined_call_operand.hbm [shape: f32[2,16,4,34], index: 1, kind: input, shape index: {}]
  %s2 = inlined_call_operand.vmem [shape: f32[9,8,4], index: 2, kind: input, shape index: {}]
  %s3 = inlined_call_operand.vmem [shape: f32[8,1], index: 3, kind: input, shape index: {}]
  %s4 = inlined_call_operand.hbm [shape: f32[2,8,32,32], index: 4, kind: output, shape index: {}]
  %s5 = sld [smem:[#allocation0]]
  $region49: #{tpu_custom_call.1} parent=0
    _
  %s7 = ssub.s32 1, %s5
  %s8 = scalar_select 0, %s7, %s5
  %s9 = sshll.u32 %s0, 4
  %s10 = int_to_ptr.vmem [resolvable:$true] %s9
  %12 = dma.vmem_to_smem %s10, 16, [#allocation3], [#allocation2]
  %13 = dma.done [#allocation2], 16
  %14 = sfence
  $region1: #{tpu_custom_call.1} parent=0
    #allocation4 [shape = 'u8[65536]{0}', space=vmem, size = 0x10000, scoped, tag = 'input window, operand 1']
    #allocation5 [shape = 's32[2]{0}', space=sflag, size = 0x8, scoped, tag = 'scoped memory for tpu_custom_call.1']
    #allocation6 [shape = 's32[2]{0}', space=sflag, size = 0x8, scoped, tag = 'scoped memory for tpu_custom_call.1']
    #allocation7 [shape = 'u8[65536]{0}', space=vmem, size = 0x10000, scoped, tag = 'output window, operand 0']
    %15 = vsyncpa [#allocation5], 0
    %s16 = scalar_lea.sflag [#allocation5], 1
    %17 = vsyncpa %s16, 0
    %18 = vsyncpa [#allocation6], 0
    %s19 = scalar_lea.sflag [#allocation6], 1
    %20 = vsyncpa %s19, 0
    loop: start=0, step=1, limit=10
    $region2: #{tpu_custom_call.1} parent=1 // loop_pre_header
      _
    $region3: #{tpu_custom_call.1} parent=1 // loop_header
      %s22 = sphi 0, %s26
      %p23 = scmp.ge.s32.totalorder %s22, 10
      %s29 = sphi 0, %s41
      %s30 = sphi 0, %s37
      %s31 = sphi 0, %s29
      %s32 = sphi 0, %s30
      %s33 = sphi 0, %s31
      %s34 = sphi 0, %s32
      %s44 = sphi 0, %s46
      %s47 = sphi 0, %s44
      %s48 = sphi 0, %s47
      %s64 = sphi 0, %s48
      %s68 = sphi 0, %s68
      %s70 = sphi 0, %s68
      %s71 = sphi 0, %s70
      %s85 = sphi 0, %s71
      %s89 = sphi 0, %s89
      %s91 = sphi 0, %s89
      %s92 = sphi 0, %s91
      %s106 = sphi 0, %s92
      %s114 = sphi 0, %s116
      %s117 = sphi 0, %s114
      %s118 = sphi 0, %s117
      %s134 = sphi 0, %s118
    $region4: #{tpu_custom_call.1} parent=1 // loop_header_branch
      %25 = sbr.rel (%p23) target = $region8
    $region5: #{tpu_custom_call.1} parent=1 // loop_body
      %s27 = ssub.s32 %s22, 1
      %s28 = ssub.s32 %s22, 2
      %s35 = sadd.s32 1, %s30
      %p36 = scmp.ge.s32.totalorder %s35, 4
      %s37 = scalar_select %p36, 0, %s35
      %s38 = sadd.s32 1, %s29
      %s39 = scalar_select %p36, %s38, %s29
      %p40 = scmp.ge.s32.totalorder %s39, 2
      %s41 = scalar_select %p40, 0, %s39
      %s42 = ssub.s32 %s29, %s41
      %p43 = scmp.eq.s32.totalorder %s42, 0
      %s45 = sadd.s32 %s44, 1
      %s46 = scalar_select %p43, %s44, %s45
      %p49 = pneg %p43
      %p50 = scmp.eq.s32.totalorder %s22, 7
      %p51 = por %p49, %p50
      %p52 = scmp.ne.s32.totalorder %s44, %s47
      %p53 = scmp.eq.s32.totalorder %s22, 0
      %p54 = por %p52, %p53
      %p55 = scmp.ne.s32.totalorder %s44, %s47
      %p56 = scmp.eq.s32.totalorder %s27, 7
      %p57 = por %p55, %p56
      %p58 = scmp.ne.s32.totalorder %s47, %s48
      %p59 = scmp.eq.s32.totalorder %s27, 0
      %p60 = por %p58, %p59
      %p61 = scmp.ne.s32.totalorder %s47, %s48
      %p62 = scmp.eq.s32.totalorder %s28, 7
      %p63 = por %p61, %p62
      %p65 = scmp.ne.s32.totalorder %s48, %s64
      %p66 = scmp.eq.s32.totalorder %s28, 0
      %p67 = por %p65, %p66
      %s69 = sadd.s32 %s68, 1
      %p72 = scmp.eq.s32.totalorder %s22, 7
      %p73 = scmp.ne.s32.totalorder %s68, %s70
      %p74 = scmp.eq.s32.totalorder %s22, 0
      %p75 = por %p73, %p74
      %p76 = scmp.ne.s32.totalorder %s68, %s70
      %p77 = scmp.eq.s32.totalorder %s27, 7
      %p78 = por %p76, %p77
      %p79 = scmp.ne.s32.totalorder %s70, %s71
      %p80 = scmp.eq.s32.totalorder %s27, 0
      %p81 = por %p79, %p80
      %p82 = scmp.ne.s32.totalorder %s70, %s71
      %p83 = scmp.eq.s32.totalorder %s28, 7
      %p84 = por %p82, %p83
      %p86 = scmp.ne.s32.totalorder %s71, %s85
      %p87 = scmp.eq.s32.totalorder %s28, 0
      %p88 = por %p86, %p87
      %s90 = sadd.s32 %s89, 1
      %p93 = scmp.eq.s32.totalorder %s22, 7
      %p94 = scmp.ne.s32.totalorder %s89, %s91
      %p95 = scmp.eq.s32.totalorder %s22, 0
      %p96 = por %p94, %p95
      %p97 = scmp.ne.s32.totalorder %s89, %s91
      %p98 = scmp.eq.s32.totalorder %s27, 7
      %p99 = por %p97, %p98
      %p100 = scmp.ne.s32.totalorder %s91, %s92
      %p101 = scmp.eq.s32.totalorder %s27, 0
      %p102 = por %p100, %p101
      %p103 = scmp.ne.s32.totalorder %s91, %s92
      %p104 = scmp.eq.s32.totalorder %s28, 7
      %p105 = por %p103, %p104
      %p107 = scmp.ne.s32.totalorder %s92, %s106
      %p108 = scmp.eq.s32.totalorder %s28, 0
      %p109 = por %p107, %p108
      %s110 = ssub.s32 %s29, %s41
      %s111 = ssub.s32 %s30, %s37
      %s112 = sor.u32 %s110, %s111
      %p113 = scmp.eq.s32.totalorder %s112, 0
      %s115 = sadd.s32 %s114, 1
      %s116 = scalar_select %p113, %s114, %s115
      %p119 = pneg %p113
      %p120 = scmp.eq.s32.totalorder %s22, 7
      %p121 = por %p119, %p120
      %p122 = scmp.ne.s32.totalorder %s114, %s117
      %p123 = scmp.eq.s32.totalorder %s22, 0
      %p124 = por %p122, %p123
      %p125 = scmp.ne.s32.totalorder %s114, %s117
      %p126 = scmp.eq.s32.totalorder %s27, 7
      %p127 = por %p125, %p126
      %p128 = scmp.ne.s32.totalorder %s117, %s118
      %p129 = scmp.eq.s32.totalorder %s27, 0
      %p130 = por %p128, %p129
      %p131 = scmp.ne.s32.totalorder %s117, %s118
      %p132 = scmp.eq.s32.totalorder %s28, 7
      %p133 = por %p131, %p132
      %p135 = scmp.ne.s32.totalorder %s118, %s134
      %p136 = scmp.eq.s32.totalorder %s28, 0
      %p137 = por %p135, %p136
      %p138 = scmp.le.s32.totalorder 1, %s22
      %p139 = scmp.lt.s32.totalorder %s22, 9
      %p140 = pnand %p138, %p139
      %p141 = pneg %p140
      // Predicated region
      $region9: #{tpu_custom_call.1} parent=5 // pred_check
        _
      $region10: #{tpu_custom_call.1} parent=5 // pred_check_branch
        %143 = sbr.rel (%p140) target = $region12
      $region11: #{tpu_custom_call.1} parent=5 // pred_region
        %s144 = ssub.s32 %s22, 1
        // Predicated region
        $region13: #{tpu_custom_call.1} parent=11 // pred_check
          %p145 = pneg %p81
        $region14: #{tpu_custom_call.1} parent=11 // pred_check_branch
          %147 = sbr.rel (%p145) target = $region16
        $region15: #{tpu_custom_call.1} parent=11 // pred_region
          _
        $region16: #{tpu_custom_call.1} parent=11 // pred_fallthru
          _
        // Predicated region
        $region17: #{tpu_custom_call.1} parent=11 // pred_check
          %p148 = pneg %p102
        $region18: #{tpu_custom_call.1} parent=11 // pred_check_branch
          %150 = sbr.rel (%p148) target = $region20
        $region19: #{tpu_custom_call.1} parent=11 // pred_region
          _
        $region20: #{tpu_custom_call.1} parent=11 // pred_fallthru
          _
      $region12: #{tpu_custom_call.1} parent=5 // pred_fallthru
        _
      %p151 = scmp.lt.s32.totalorder %s22, 8
      // Predicated region
      $region21: #{tpu_custom_call.1} parent=5 // pred_check
        %p152 = pneg %p151
      $region22: #{tpu_custom_call.1} parent=5 // pred_check_branch
        %154 = sbr.rel (%p152) target = $region24
      $region23: #{tpu_custom_call.1} parent=5 // pred_region
        // Predicated region
        $region25: #{tpu_custom_call.1} parent=23 // pred_check
          %p155 = pneg %p54
        $region26: #{tpu_custom_call.1} parent=23 // pred_check_branch
          %157 = sbr.rel (%p155) target = $region28
        $region27: #{tpu_custom_call.1} parent=23 // pred_region
          %s158 = sand.u32 %s44, 1
          %s159 = scalar_lea.sflag [#allocation5], %s158
          %s160 = sand.u32 %s44, 1
          %s161 = smul.addr %s160, 64
          %s162 = scalar_lea.vmem [#allocation4], %s161
          %s164 = ssub.s32 1024, 1024
          %165 = vsyncadd %s159, %s164
          %s166 = smul.addr %s29, 16
          %s167 = smul.addr %s166, 64
          %s168 = scalar_lea.hbm %s1, %s167
          %s169 = sshll.u32 %s162, 4
          %s170 = int_to_ptr.vmem [resolvable:$true] %s169
          %175 = dma.hbm_to_vmem [thread:$0]  %s168, 1024, %s170, %s159, 64, 64, 4
        $region28: #{tpu_custom_call.1} parent=23 // pred_fallthru
          _
      $region24: #{tpu_custom_call.1} parent=5 // pred_fallthru
        _
      %p176 = scmp.le.s32.totalorder 1, %s22
      %p177 = scmp.lt.s32.totalorder %s22, 9
      %p178 = pnand %p176, %p177
      %p179 = pneg %p178
      // Predicated region
      $region29: #{tpu_custom_call.1} parent=5 // pred_check
        _
      $region30: #{tpu_custom_call.1} parent=5 // pred_check_branch
        %181 = sbr.rel (%p178) target = $region32
      $region31: #{tpu_custom_call.1} parent=5 // pred_region
        %s182 = ssub.s32 %s22, 1
        %s183 = sand.u32 %s47, 1
        %s184 = scalar_lea.sflag [#allocation5], %s183
        %s185 = sand.u32 %s47, 1
        %s186 = smul.addr %s185, 64
        %s187 = scalar_lea.vmem [#allocation4], %s186
        // Predicated region
        $region33: #{tpu_custom_call.1} parent=31 // pred_check
          %p188 = pneg %p60
        $region34: #{tpu_custom_call.1} parent=31 // pred_check_branch
          %190 = sbr.rel (%p188) target = $region36
        $region35: #{tpu_custom_call.1} parent=31 // pred_region
          %191 = dma.done %s184, 1024
        $region36: #{tpu_custom_call.1} parent=31 // pred_fallthru
          _
        %s192 = sand.u32 %s47, 1
        %s193 = scalar_lea.sflag [#allocation5], %s192
        %s194 = sand.u32 %s47, 1
        %s195 = smul.addr %s194, 64
        %s196 = scalar_lea.vmem [#allocation4], %s195
        %p197 = pneg %p60
        %p198 = pneg %p57
        %p199 = pneg %p81
        %p200 = pneg %p78
        %p201 = pneg %p102
        %p202 = pneg %p99
        %p203 = pneg %p130
        %p204 = pneg %p127
        %s205 = sand.u32 %s117, 1
        %s206 = scalar_lea.sflag [#allocation6], %s205
        %s207 = sand.u32 %s117, 1
        %s208 = smul.addr %s207, 64
        %s209 = scalar_lea.vmem [#allocation7], %s208
        %v210 = vld [vmem:[%s2] sm:$0xff]
        %s211 = scalar_lea.vmem %s2, 8
        %v212 = vld [vmem:[%s211] sm:$0xff]
        %s213 = scalar_lea.vmem %s2, 16
        %v214 = vld [vmem:[%s213] sm:$0xff]
        %s215 = scalar_lea.vmem %s2, 24
        %v216 = vld [vmem:[%s215] sm:$0xff]
        %s217 = scalar_lea.vmem %s2, 32
        %v218 = vld [vmem:[%s217] sm:$0xff]
        %s219 = scalar_lea.vmem %s2, 40
        %v220 = vld [vmem:[%s219] sm:$0xff]
        %s221 = scalar_lea.vmem %s2, 48
        %v222 = vld [vmem:[%s221] sm:$0xff]
        %s223 = scalar_lea.vmem %s2, 56
        %v224 = vld [vmem:[%s223] sm:$0xff]
        %s225 = scalar_lea.vmem %s2, 64
        %v226 = vld [vmem:[%s225] sm:$0xff]
        %v227 = vld [vmem:[%s3] sm:$0xff]
        %229 = vset.pattern.permute.xlu0 0
        %230 = vperm.xlu0 %229, %v227
        %v231 = vpop.permute.xlu0 %230
        %s233 = smul.u32 %s32, 8
        %s234 = sld [smem:[#allocation3 + %s233]]
        %s235 = smul.u32 %s234, 4
        %s236 = scalar_lea.vmem %s187, %s235 [#allocation4]
        %v237 = vld [vmem:[%s236] sm:$0xf]
        %vm238 = vcmask 31744
        %v240 = vsel %vm238, %v210, 0
        %vm242 = vcmask 1043456
        %v244 = vsel %vm242, %v237, 0
        %246 = vmatprep.subr.mxu0 0.0
        %247 = vmatpush1.msra.mxu0 %v244
        %248 = vmatprep.subr.mxu0 0.0
        %249 = vmatpush1.msra.mxu0 0.0
        %250 = vmatprep.subr.mxu0 0.0
        %251 = vmatpush1.msra.mxu0 0.0
        %252 = vmatprep.subr.mxu0 0.0
        %253 = vmatpush1.msra.mxu0 0.0
        %254 = vmatprep.subr.mxu0 0.0
        %255 = vmatpush1.msra.mxu0 0.0
        %256 = vmatprep.subr.mxu0 0.0
        %257 = vmatpush1.msra.mxu0 0.0
        %258 = vmatprep.subr.mxu0 0.0
        %259 = vmatpush1.msra.mxu0 0.0
        %260 = vmatprep.subr.mxu0 0.0
        %261 = vmatpush1.msra.mxu0 0.0
        %262 = vmatprep.subr.mxu0 0.0
        %263 = vmatpush1.msra.mxu0 0.0
        %264 = vmatprep.subr.mxu0 0.0
        %265 = vmatpush1.msra.mxu0 0.0
        %266 = vmatprep.subr.mxu0 0.0
        %267 = vmatpush1.msra.mxu0 0.0
        %268 = vmatprep.subr.mxu0 0.0
        %269 = vmatpush1.msra.mxu0 0.0
        %270 = vmatprep.subr.mxu0 0.0
        %271 = vmatpush1.msra.mxu0 0.0
        %272 = vmatprep.subr.mxu0 0.0
        %273 = vmatpush1.msra.mxu0 0.0
        %274 = vmatprep.subr.mxu0 0.0
        %275 = vmatpush1.msra.mxu0 0.0
        %276 = vmatprep.subr.mxu0 0.0
        %277 = vmatpush1.msra.mxu0 0.0
        %278 = vmatprep.subr.mxu0 0.0
        %279 = vmatpush1.msra.mxu0 0.0
        %280 = vmatprep.subr.mxu0 0.0
        %281 = vmatpush1.msra.mxu0 0.0
        %282 = vmatprep.subr.mxu0 0.0
        %283 = vmatpush1.msra.mxu0 0.0
        %284 = vmatprep.subr.mxu0 0.0
        %285 = vmatpush1.msra.mxu0 0.0
        %286 = vmatprep.subr.mxu0 0.0
        %287 = vmatpush1.msra.mxu0 0.0
        %288 = vmatprep.subr.mxu0 0.0
        %289 = vmatpush1.msra.mxu0 0.0
        %290 = vmatprep.subr.mxu0 0.0
        %291 = vmatpush1.msra.mxu0 0.0
        %292 = vmatprep.subr.mxu0 0.0
        %293 = vmatpush1.msra.mxu0 0.0
        %294 = vmatprep.subr.mxu0 0.0
        %295 = vmatpush1.msra.mxu0 0.0
        %296 = vmatprep.subr.mxu0 0.0
        %297 = vmatpush1.msra.mxu0 0.0
        %298 = vmatprep.subr.mxu0 0.0
        %299 = vmatpush1.msra.mxu0 0.0
        %300 = vmatprep.subr.mxu0 0.0
        %301 = vmatpush1.msra.mxu0 0.0
        %302 = vmatprep.subr.mxu0 0.0
        %303 = vmatpush1.msra.mxu0 0.0
        %304 = vmatprep.subr.mxu0 0.0
        %305 = vmatpush1.msra.mxu0 0.0
        %306 = vmatprep.subr.mxu0 0.0
        %307 = vmatpush1.msra.mxu0 0.0
        %308 = vmatprep.subr.mxu0 0.0
        %309 = vmatpush1.msra.mxu0 0.0
        %310 = vmatprep.mubr.f32.mxu0 0.0
        %311 = vmatmul.mubr.f32.gmra.mrb[0].mxu0 %v240
        %v312 = vpop.f32.mrb[0].mxu0
        %v313 = vadd.f32 0.0, %v312
        %v314 = vpop.f32.mrb[0].mxu0
        %315 = vdwg.mxu0
        %v316 = vadd.f32 %v231, %v313
        %317 = vrot.lane.b32.xlu0 %v237, 127
        %v318 = vpop.permute.xlu0 %317
        %v320 = vsel %vm238, %v212, 0
        %v322 = vsel %vm242, %v318, 0
        %324 = vmatprep.subr.mxu0 0.0
        %325 = vmatpush1.msra.mxu0 %v322
        %326 = vmatprep.subr.mxu0 0.0
        %327 = vmatpush1.msra.mxu0 0.0
        %328 = vmatprep.subr.mxu0 0.0
        %329 = vmatpush1.msra.mxu0 0.0
        %330 = vmatprep.subr.mxu0 0.0
        %331 = vmatpush1.msra.mxu0 0.0
        %332 = vmatprep.subr.mxu0 0.0
        %333 = vmatpush1.msra.mxu0 0.0
        %334 = vmatprep.subr.mxu0 0.0
        %335 = vmatpush1.msra.mxu0 0.0
        %336 = vmatprep.subr.mxu0 0.0
        %337 = vmatpush1.msra.mxu0 0.0
        %338 = vmatprep.subr.mxu0 0.0
        %339 = vmatpush1.msra.mxu0 0.0
        %340 = vmatprep.subr.mxu0 0.0
        %341 = vmatpush1.msra.mxu0 0.0
        %342 = vmatprep.subr.mxu0 0.0
        %343 = vmatpush1.msra.mxu0 0.0
        %344 = vmatprep.subr.mxu0 0.0
        %345 = vmatpush1.msra.mxu0 0.0
        %346 = vmatprep.subr.mxu0 0.0
        %347 = vmatpush1.msra.mxu0 0.0
        %348 = vmatprep.subr.mxu0 0.0
        %349 = vmatpush1.msra.mxu0 0.0
        %350 = vmatprep.subr.mxu0 0.0
        %351 = vmatpush1.msra.mxu0 0.0
        %352 = vmatprep.subr.mxu0 0.0
        %353 = vmatpush1.msra.mxu0 0.0
        %354 = vmatprep.subr.mxu0 0.0
        %355 = vmatpush1.msra.mxu0 0.0
        %356 = vmatprep.subr.mxu0 0.0
        %357 = vmatpush1.msra.mxu0 0.0
        %358 = vmatprep.subr.mxu0 0.0
        %359 = vmatpush1.msra.mxu0 0.0
        %360 = vmatprep.subr.mxu0 0.0
        %361 = vmatpush1.msra.mxu0 0.0
        %362 = vmatprep.subr.mxu0 0.0
        %363 = vmatpush1.msra.mxu0 0.0
        %364 = vmatprep.subr.mxu0 0.0
        %365 = vmatpush1.msra.mxu0 0.0
        %366 = vmatprep.subr.mxu0 0.0
        %367 = vmatpush1.msra.mxu0 0.0
        %368 = vmatprep.subr.mxu0 0.0
        %369 = vmatpush1.msra.mxu0 0.0
        %370 = vmatprep.subr.mxu0 0.0
        %371 = vmatpush1.msra.mxu0 0.0
        %372 = vmatprep.subr.mxu0 0.0
        %373 = vmatpush1.msra.mxu0 0.0
        %374 = vmatprep.subr.mxu0 0.0
        %375 = vmatpush1.msra.mxu0 0.0
        %376 = vmatprep.subr.mxu0 0.0
        %377 = vmatpush1.msra.mxu0 0.0
        %378 = vmatprep.subr.mxu0 0.0
        %379 = vmatpush1.msra.mxu0 0.0
        %380 = vmatprep.subr.mxu0 0.0
        %381 = vmatpush1.msra.mxu0 0.0
        %382 = vmatprep.subr.mxu0 0.0
        %383 = vmatpush1.msra.mxu0 0.0
        %384 = vmatprep.subr.mxu0 0.0
        %385 = vmatpush1.msra.mxu0 0.0
        %386 = vmatprep.subr.mxu0 0.0
        %387 = vmatpush1.msra.mxu0 0.0
        %388 = vmatprep.mubr.f32.mxu0 0.0
        %389 = vmatmul.mubr.f32.gmra.mrb[0].mxu0 %v320
        %v390 = vpop.f32.mrb[0].mxu0
        %v391 = vadd.f32 0.0, %v390
        %v392 = vpop.f32.mrb[0].mxu0
        %393 = vdwg.mxu0
        %v394 = vadd.f32 %v316, %v391
        %395 = vrot.lane.b32.xlu0 %v237, 126
        %v396 = vpop.permute.xlu0 %395
        %v398 = vsel %vm238, %v214, 0
        %v400 = vsel %vm242, %v396, 0
        %402 = vmatprep.subr.mxu0 0.0
        %403 = vmatpush1.msra.mxu0 %v400
        %404 = vmatprep.subr.mxu0 0.0
        %405 = vmatpush1.msra.mxu0 0.0
        %406 = vmatprep.subr.mxu0 0.0
        %407 = vmatpush1.msra.mxu0 0.0
        %408 = vmatprep.subr.mxu0 0.0
        %409 = vmatpush1.msra.mxu0 0.0
        %410 = vmatprep.subr.mxu0 0.0
        %411 = vmatpush1.msra.mxu0 0.0
        %412 = vmatprep.subr.mxu0 0.0
        %413 = vmatpush1.msra.mxu0 0.0
        %414 = vmatprep.subr.mxu0 0.0
        %415 = vmatpush1.msra.mxu0 0.0
        %416 = vmatprep.subr.mxu0 0.0
        %417 = vmatpush1.msra.mxu0 0.0
        %418 = vmatprep.subr.mxu0 0.0
        %419 = vmatpush1.msra.mxu0 0.0
        %420 = vmatprep.subr.mxu0 0.0
        %421 = vmatpush1.msra.mxu0 0.0
        %422 = vmatprep.subr.mxu0 0.0
        %423 = vmatpush1.msra.mxu0 0.0
        %424 = vmatprep.subr.mxu0 0.0
        %425 = vmatpush1.msra.mxu0 0.0
        %426 = vmatprep.subr.mxu0 0.0
        %427 = vmatpush1.msra.mxu0 0.0
        %428 = vmatprep.subr.mxu0 0.0
        %429 = vmatpush1.msra.mxu0 0.0
        %430 = vmatprep.subr.mxu0 0.0
        %431 = vmatpush1.msra.mxu0 0.0
        %432 = vmatprep.subr.mxu0 0.0
        %433 = vmatpush1.msra.mxu0 0.0
        %434 = vmatprep.subr.mxu0 0.0
        %435 = vmatpush1.msra.mxu0 0.0
        %436 = vmatprep.subr.mxu0 0.0
        %437 = vmatpush1.msra.mxu0 0.0
        %438 = vmatprep.subr.mxu0 0.0
        %439 = vmatpush1.msra.mxu0 0.0
        %440 = vmatprep.subr.mxu0 0.0
        %441 = vmatpush1.msra.mxu0 0.0
        %442 = vmatprep.subr.mxu0 0.0
        %443 = vmatpush1.msra.mxu0 0.0
        %444 = vmatprep.subr.mxu0 0.0
        %445 = vmatpush1.msra.mxu0 0.0
        %446 = vmatprep.subr.mxu0 0.0
        %447 = vmatpush1.msra.mxu0 0.0
        %448 = vmatprep.subr.mxu0 0.0
        %449 = vmatpush1.msra.mxu0 0.0
        %450 = vmatprep.subr.mxu0 0.0
        %451 = vmatpush1.msra.mxu0 0.0
        %452 = vmatprep.subr.mxu0 0.0
        %453 = vmatpush1.msra.mxu0 0.0
        %454 = vmatprep.subr.mxu0 0.0
        %455 = vmatpush1.msra.mxu0 0.0
        %456 = vmatprep.subr.mxu0 0.0
        %457 = vmatpush1.msra.mxu0 0.0
        %458 = vmatprep.subr.mxu0 0.0
        %459 = vmatpush1.msra.mxu0 0.0
        %460 = vmatprep.subr.mxu0 0.0
        %461 = vmatpush1.msra.mxu0 0.0
        %462 = vmatprep.subr.mxu0 0.0
        %463 = vmatpush1.msra.mxu0 0.0
        %464 = vmatprep.subr.mxu0 0.0
        %465 = vmatpush1.msra.mxu0 0.0
        %466 = vmatprep.mubr.f32.mxu0 0.0
        %467 = vmatmul.mubr.f32.gmra.mrb[0].mxu0 %v398
        %v468 = vpop.f32.mrb[0].mxu0
        %v469 = vadd.f32 0.0, %v468
        %v470 = vpop.f32.mrb[0].mxu0
        %471 = vdwg.mxu0
        %v472 = vadd.f32 %v394, %v469
        %s473 = sadd.s32 %s233, 1
        %s474 = sld [smem:[#allocation3 + %s473]]
        %s475 = smul.u32 %s474, 4
        %s476 = scalar_lea.vmem %s187, %s475 [#allocation4]
        %v477 = vld [vmem:[%s476] sm:$0xf]
        %v479 = vsel %vm238, %v216, 0
        %v482 = vsel %vm242, %v477, 0
        %484 = vmatprep.subr.mxu0 0.0
        %485 = vmatpush1.msra.mxu0 %v482
        %486 = vmatprep.subr.mxu0 0.0
        %487 = vmatpush1.msra.mxu0 0.0
        %488 = vmatprep.subr.mxu0 0.0
        %489 = vmatpush1.msra.mxu0 0.0
        %490 = vmatprep.subr.mxu0 0.0
        %491 = vmatpush1.msra.mxu0 0.0
        %492 = vmatprep.subr.mxu0 0.0
        %493 = vmatpush1.msra.mxu0 0.0
        %494 = vmatprep.subr.mxu0 0.0
        %495 = vmatpush1.msra.mxu0 0.0
        %496 = vmatprep.subr.mxu0 0.0
        %497 = vmatpush1.msra.mxu0 0.0
        %498 = vmatprep.subr.mxu0 0.0
        %499 = vmatpush1.msra.mxu0 0.0
        %500 = vmatprep.subr.mxu0 0.0
        %501 = vmatpush1.msra.mxu0 0.0
        %502 = vmatprep.subr.mxu0 0.0
        %503 = vmatpush1.msra.mxu0 0.0
        %504 = vmatprep.subr.mxu0 0.0
        %505 = vmatpush1.msra.mxu0 0.0
        %506 = vmatprep.subr.mxu0 0.0
        %507 = vmatpush1.msra.mxu0 0.0
        %508 = vmatprep.subr.mxu0 0.0
        %509 = vmatpush1.msra.mxu0 0.0
        %510 = vmatprep.subr.mxu0 0.0
        %511 = vmatpush1.msra.mxu0 0.0
        %512 = vmatprep.subr.mxu0 0.0
        %513 = vmatpush1.msra.mxu0 0.0
        %514 = vmatprep.subr.mxu0 0.0
        %515 = vmatpush1.msra.mxu0 0.0
        %516 = vmatprep.subr.mxu0 0.0
        %517 = vmatpush1.msra.mxu0 0.0
        %518 = vmatprep.subr.mxu0 0.0
        %519 = vmatpush1.msra.mxu0 0.0
        %520 = vmatprep.subr.mxu0 0.0
        %521 = vmatpush1.msra.mxu0 0.0
        %522 = vmatprep.subr.mxu0 0.0
        %523 = vmatpush1.msra.mxu0 0.0
        %524 = vmatprep.subr.mxu0 0.0
        %525 = vmatpush1.msra.mxu0 0.0
        %526 = vmatprep.subr.mxu0 0.0
        %527 = vmatpush1.msra.mxu0 0.0
        %528 = vmatprep.subr.mxu0 0.0
        %529 = vmatpush1.msra.mxu0 0.0
        %530 = vmatprep.subr.mxu0 0.0
        %531 = vmatpush1.msra.mxu0 0.0
        %532 = vmatprep.subr.mxu0 0.0
        %533 = vmatpush1.msra.mxu0 0.0
        %534 = vmatprep.subr.mxu0 0.0
        %535 = vmatpush1.msra.mxu0 0.0
        %536 = vmatprep.subr.mxu0 0.0
        %537 = vmatpush1.msra.mxu0 0.0
        %538 = vmatprep.subr.mxu0 0.0
        %539 = vmatpush1.msra.mxu0 0.0
        %540 = vmatprep.subr.mxu0 0.0
        %541 = vmatpush1.msra.mxu0 0.0
        %542 = vmatprep.subr.mxu0 0.0
        %543 = vmatpush1.msra.mxu0 0.0
        %544 = vmatprep.subr.mxu0 0.0
        %545 = vmatpush1.msra.mxu0 0.0
        %546 = vmatprep.subr.mxu0 0.0
        %547 = vmatpush1.msra.mxu0 0.0
        %548 = vmatprep.mubr.f32.mxu0 0.0
        %549 = vmatmul.mubr.f32.gmra.mrb[0].mxu0 %v479
        %v550 = vpop.f32.mrb[0].mxu0
        %v551 = vadd.f32 0.0, %v550
        %v552 = vpop.f32.mrb[0].mxu0
        %553 = vdwg.mxu0
        %v554 = vadd.f32 %v472, %v551
        %555 = vrot.lane.b32.xlu0 %v477, 127
        %v556 = vpop.permute.xlu0 %555
        %v558 = vsel %vm238, %v218, 0
        %v560 = vsel %vm242, %v556, 0
        %562 = vmatprep.subr.mxu0 0.0
        %563 = vmatpush1.msra.mxu0 %v560
        %564 = vmatprep.subr.mxu0 0.0
        %565 = vmatpush1.msra.mxu0 0.0
        %566 = vmatprep.subr.mxu0 0.0
        %567 = vmatpush1.msra.mxu0 0.0
        %568 = vmatprep.subr.mxu0 0.0
        %569 = vmatpush1.msra.mxu0 0.0
        %570 = vmatprep.subr.mxu0 0.0
        %571 = vmatpush1.msra.mxu0 0.0
        %572 = vmatprep.subr.mxu0 0.0
        %573 = vmatpush1.msra.mxu0 0.0
        %574 = vmatprep.subr.mxu0 0.0
        %575 = vmatpush1.msra.mxu0 0.0
        %576 = vmatprep.subr.mxu0 0.0
        %577 = vmatpush1.msra.mxu0 0.0
        %578 = vmatprep.subr.mxu0 0.0
        %579 = vmatpush1.msra.mxu0 0.0
        %580 = vmatprep.subr.mxu0 0.0
        %581 = vmatpush1.msra.mxu0 0.0
        %582 = vmatprep.subr.mxu0 0.0
        %583 = vmatpush1.msra.mxu0 0.0
        %584 = vmatprep.subr.mxu0 0.0
        %585 = vmatpush1.msra.mxu0 0.0
        %586 = vmatprep.subr.mxu0 0.0
        %587 = vmatpush1.msra.mxu0 0.0
        %588 = vmatprep.subr.mxu0 0.0
        %589 = vmatpush1.msra.mxu0 0.0
        %590 = vmatprep.subr.mxu0 0.0
        %591 = vmatpush1.msra.mxu0 0.0
        %592 = vmatprep.subr.mxu0 0.0
        %593 = vmatpush1.msra.mxu0 0.0
        %594 = vmatprep.subr.mxu0 0.0
        %595 = vmatpush1.msra.mxu0 0.0
        %596 = vmatprep.subr.mxu0 0.0
        %597 = vmatpush1.msra.mxu0 0.0
        %598 = vmatprep.subr.mxu0 0.0
        %599 = vmatpush1.msra.mxu0 0.0
        %600 = vmatprep.subr.mxu0 0.0
        %601 = vmatpush1.msra.mxu0 0.0
        %602 = vmatprep.subr.mxu0 0.0
        %603 = vmatpush1.msra.mxu0 0.0
        %604 = vmatprep.subr.mxu0 0.0
        %605 = vmatpush1.msra.mxu0 0.0
        %606 = vmatprep.subr.mxu0 0.0
        %607 = vmatpush1.msra.mxu0 0.0
        %608 = vmatprep.subr.mxu0 0.0
        %609 = vmatpush1.msra.mxu0 0.0
        %610 = vmatprep.subr.mxu0 0.0
        %611 = vmatpush1.msra.mxu0 0.0
        %612 = vmatprep.subr.mxu0 0.0
        %613 = vmatpush1.msra.mxu0 0.0
        %614 = vmatprep.subr.mxu0 0.0
        %615 = vmatpush1.msra.mxu0 0.0
        %616 = vmatprep.subr.mxu0 0.0
        %617 = vmatpush1.msra.mxu0 0.0
        %618 = vmatprep.subr.mxu0 0.0
        %619 = vmatpush1.msra.mxu0 0.0
        %620 = vmatprep.subr.mxu0 0.0
        %621 = vmatpush1.msra.mxu0 0.0
        %622 = vmatprep.subr.mxu0 0.0
        %623 = vmatpush1.msra.mxu0 0.0
        %624 = vmatprep.subr.mxu0 0.0
        %625 = vmatpush1.msra.mxu0 0.0
        %626 = vmatprep.mubr.f32.mxu0 0.0
        %627 = vmatmul.mubr.f32.gmra.mrb[0].mxu0 %v558
        %v628 = vpop.f32.mrb[0].mxu0
        %v629 = vadd.f32 0.0, %v628
        %v630 = vpop.f32.mrb[0].mxu0
        %631 = vdwg.mxu0
        %v632 = vadd.f32 %v554, %v629
        %633 = vrot.lane.b32.xlu0 %v477, 126
        %v634 = vpop.permute.xlu0 %633
        %v636 = vsel %vm238, %v220, 0
        %v638 = vsel %vm242, %v634, 0
        %640 = vmatprep.subr.mxu0 0.0
        %641 = vmatpush1.msra.mxu0 %v638
        %642 = vmatprep.subr.mxu0 0.0
        %643 = vmatpush1.msra.mxu0 0.0
        %644 = vmatprep.subr.mxu0 0.0
        %645 = vmatpush1.msra.mxu0 0.0
        %646 = vmatprep.subr.mxu0 0.0
        %647 = vmatpush1.msra.mxu0 0.0
        %648 = vmatprep.subr.mxu0 0.0
        %649 = vmatpush1.msra.mxu0 0.0
        %650 = vmatprep.subr.mxu0 0.0
        %651 = vmatpush1.msra.mxu0 0.0
        %652 = vmatprep.subr.mxu0 0.0
        %653 = vmatpush1.msra.mxu0 0.0
        %654 = vmatprep.subr.mxu0 0.0
        %655 = vmatpush1.msra.mxu0 0.0
        %656 = vmatprep.subr.mxu0 0.0
        %657 = vmatpush1.msra.mxu0 0.0
        %658 = vmatprep.subr.mxu0 0.0
        %659 = vmatpush1.msra.mxu0 0.0
        %660 = vmatprep.subr.mxu0 0.0
        %661 = vmatpush1.msra.mxu0 0.0
        %662 = vmatprep.subr.mxu0 0.0
        %663 = vmatpush1.msra.mxu0 0.0
        %664 = vmatprep.subr.mxu0 0.0
        %665 = vmatpush1.msra.mxu0 0.0
        %666 = vmatprep.subr.mxu0 0.0
        %667 = vmatpush1.msra.mxu0 0.0
        %668 = vmatprep.subr.mxu0 0.0
        %669 = vmatpush1.msra.mxu0 0.0
        %670 = vmatprep.subr.mxu0 0.0
        %671 = vmatpush1.msra.mxu0 0.0
        %672 = vmatprep.subr.mxu0 0.0
        %673 = vmatpush1.msra.mxu0 0.0
        %674 = vmatprep.subr.mxu0 0.0
        %675 = vmatpush1.msra.mxu0 0.0
        %676 = vmatprep.subr.mxu0 0.0
        %677 = vmatpush1.msra.mxu0 0.0
        %678 = vmatprep.subr.mxu0 0.0
        %679 = vmatpush1.msra.mxu0 0.0
        %680 = vmatprep.subr.mxu0 0.0
        %681 = vmatpush1.msra.mxu0 0.0
        %682 = vmatprep.subr.mxu0 0.0
        %683 = vmatpush1.msra.mxu0 0.0
        %684 = vmatprep.subr.mxu0 0.0
        %685 = vmatpush1.msra.mxu0 0.0
        %686 = vmatprep.subr.mxu0 0.0
        %687 = vmatpush1.msra.mxu0 0.0
        %688 = vmatprep.subr.mxu0 0.0
        %689 = vmatpush1.msra.mxu0 0.0
        %690 = vmatprep.subr.mxu0 0.0
        %691 = vmatpush1.msra.mxu0 0.0
        %692 = vmatprep.subr.mxu0 0.0
        %693 = vmatpush1.msra.mxu0 0.0
        %694 = vmatprep.subr.mxu0 0.0
        %695 = vmatpush1.msra.mxu0 0.0
        %696 = vmatprep.subr.mxu0 0.0
        %697 = vmatpush1.msra.mxu0 0.0
        %698 = vmatprep.subr.mxu0 0.0
        %699 = vmatpush1.msra.mxu0 0.0
        %700 = vmatprep.subr.mxu0 0.0
        %701 = vmatpush1.msra.mxu0 0.0
        %702 = vmatprep.subr.mxu0 0.0
        %703 = vmatpush1.msra.mxu0 0.0
        %704 = vmatprep.mubr.f32.mxu0 0.0
        %705 = vmatmul.mubr.f32.gmra.mrb[0].mxu0 %v636
        %v706 = vpop.f32.mrb[0].mxu0
        %v707 = vadd.f32 0.0, %v706
        %v708 = vpop.f32.mrb[0].mxu0
        %709 = vdwg.mxu0
        %v710 = vadd.f32 %v632, %v707
        %s711 = sadd.s32 %s233, 2
        %s712 = sld [smem:[#allocation3 + %s711]]
        %s713 = smul.u32 %s712, 4
        %s714 = scalar_lea.vmem %s187, %s713 [#allocation4]
        %v715 = vld [vmem:[%s714] sm:$0xf]
        %v717 = vsel %vm238, %v222, 0
        %v720 = vsel %vm242, %v715, 0
        %722 = vmatprep.subr.mxu0 0.0
        %723 = vmatpush1.msra.mxu0 %v720
        %724 = vmatprep.subr.mxu0 0.0
        %725 = vmatpush1.msra.mxu0 0.0
        %726 = vmatprep.subr.mxu0 0.0
        %727 = vmatpush1.msra.mxu0 0.0
        %728 = vmatprep.subr.mxu0 0.0
        %729 = vmatpush1.msra.mxu0 0.0
        %730 = vmatprep.subr.mxu0 0.0
        %731 = vmatpush1.msra.mxu0 0.0
        %732 = vmatprep.subr.mxu0 0.0
        %733 = vmatpush1.msra.mxu0 0.0
        %734 = vmatprep.subr.mxu0 0.0
        %735 = vmatpush1.msra.mxu0 0.0
        %736 = vmatprep.subr.mxu0 0.0
        %737 = vmatpush1.msra.mxu0 0.0
        %738 = vmatprep.subr.mxu0 0.0
        %739 = vmatpush1.msra.mxu0 0.0
        %740 = vmatprep.subr.mxu0 0.0
        %741 = vmatpush1.msra.mxu0 0.0
        %742 = vmatprep.subr.mxu0 0.0
        %743 = vmatpush1.msra.mxu0 0.0
        %744 = vmatprep.subr.mxu0 0.0
        %745 = vmatpush1.msra.mxu0 0.0
        %746 = vmatprep.subr.mxu0 0.0
        %747 = vmatpush1.msra.mxu0 0.0
        %748 = vmatprep.subr.mxu0 0.0
        %749 = vmatpush1.msra.mxu0 0.0
        %750 = vmatprep.subr.mxu0 0.0
        %751 = vmatpush1.msra.mxu0 0.0
        %752 = vmatprep.subr.mxu0 0.0
        %753 = vmatpush1.msra.mxu0 0.0
        %754 = vmatprep.subr.mxu0 0.0
        %755 = vmatpush1.msra.mxu0 0.0
        %756 = vmatprep.subr.mxu0 0.0
        %757 = vmatpush1.msra.mxu0 0.0
        %758 = vmatprep.subr.mxu0 0.0
        %759 = vmatpush1.msra.mxu0 0.0
        %760 = vmatprep.subr.mxu0 0.0
        %761 = vmatpush1.msra.mxu0 0.0
        %762 = vmatprep.subr.mxu0 0.0
        %763 = vmatpush1.msra.mxu0 0.0
        %764 = vmatprep.subr.mxu0 0.0
        %765 = vmatpush1.msra.mxu0 0.0
        %766 = vmatprep.subr.mxu0 0.0
        %767 = vmatpush1.msra.mxu0 0.0
        %768 = vmatprep.subr.mxu0 0.0
        %769 = vmatpush1.msra.mxu0 0.0
        %770 = vmatprep.subr.mxu0 0.0
        %771 = vmatpush1.msra.mxu0 0.0
        %772 = vmatprep.subr.mxu0 0.0
        %773 = vmatpush1.msra.mxu0 0.0
        %774 = vmatprep.subr.mxu0 0.0
        %775 = vmatpush1.msra.mxu0 0.0
        %776 = vmatprep.subr.mxu0 0.0
        %777 = vmatpush1.msra.mxu0 0.0
        %778 = vmatprep.subr.mxu0 0.0
        %779 = vmatpush1.msra.mxu0 0.0
        %780 = vmatprep.subr.mxu0 0.0
        %781 = vmatpush1.msra.mxu0 0.0
        %782 = vmatprep.subr.mxu0 0.0
        %783 = vmatpush1.msra.mxu0 0.0
        %784 = vmatprep.subr.mxu0 0.0
        %785 = vmatpush1.msra.mxu0 0.0
        %786 = vmatprep.mubr.f32.mxu0 0.0
        %787 = vmatmul.mubr.f32.gmra.mrb[0].mxu0 %v717
        %v788 = vpop.f32.mrb[0].mxu0
        %v789 = vadd.f32 0.0, %v788
        %v790 = vpop.f32.mrb[0].mxu0
        %791 = vdwg.mxu0
        %v792 = vadd.f32 %v710, %v789
        %793 = vrot.lane.b32.xlu0 %v715, 127
        %v794 = vpop.permute.xlu0 %793
        %v796 = vsel %vm238, %v224, 0
        %v798 = vsel %vm242, %v794, 0
        %800 = vmatprep.subr.mxu0 0.0
        %801 = vmatpush1.msra.mxu0 %v798
        %802 = vmatprep.subr.mxu0 0.0
        %803 = vmatpush1.msra.mxu0 0.0
        %804 = vmatprep.subr.mxu0 0.0
        %805 = vmatpush1.msra.mxu0 0.0
        %806 = vmatprep.subr.mxu0 0.0
        %807 = vmatpush1.msra.mxu0 0.0
        %808 = vmatprep.subr.mxu0 0.0
        %809 = vmatpush1.msra.mxu0 0.0
        %810 = vmatprep.subr.mxu0 0.0
        %811 = vmatpush1.msra.mxu0 0.0
        %812 = vmatprep.subr.mxu0 0.0
        %813 = vmatpush1.msra.mxu0 0.0
        %814 = vmatprep.subr.mxu0 0.0
        %815 = vmatpush1.msra.mxu0 0.0
        %816 = vmatprep.subr.mxu0 0.0
        %817 = vmatpush1.msra.mxu0 0.0
        %818 = vmatprep.subr.mxu0 0.0
        %819 = vmatpush1.msra.mxu0 0.0
        %820 = vmatprep.subr.mxu0 0.0
        %821 = vmatpush1.msra.mxu0 0.0
        %822 = vmatprep.subr.mxu0 0.0
        %823 = vmatpush1.msra.mxu0 0.0
        %824 = vmatprep.subr.mxu0 0.0
        %825 = vmatpush1.msra.mxu0 0.0
        %826 = vmatprep.subr.mxu0 0.0
        %827 = vmatpush1.msra.mxu0 0.0
        %828 = vmatprep.subr.mxu0 0.0
        %829 = vmatpush1.msra.mxu0 0.0
        %830 = vmatprep.subr.mxu0 0.0
        %831 = vmatpush1.msra.mxu0 0.0
        %832 = vmatprep.subr.mxu0 0.0
        %833 = vmatpush1.msra.mxu0 0.0
        %834 = vmatprep.subr.mxu0 0.0
        %835 = vmatpush1.msra.mxu0 0.0
        %836 = vmatprep.subr.mxu0 0.0
        %837 = vmatpush1.msra.mxu0 0.0
        %838 = vmatprep.subr.mxu0 0.0
        %839 = vmatpush1.msra.mxu0 0.0
        %840 = vmatprep.subr.mxu0 0.0
        %841 = vmatpush1.msra.mxu0 0.0
        %842 = vmatprep.subr.mxu0 0.0
        %843 = vmatpush1.msra.mxu0 0.0
        %844 = vmatprep.subr.mxu0 0.0
        %845 = vmatpush1.msra.mxu0 0.0
        %846 = vmatprep.subr.mxu0 0.0
        %847 = vmatpush1.msra.mxu0 0.0
        %848 = vmatprep.subr.mxu0 0.0
        %849 = vmatpush1.msra.mxu0 0.0
        %850 = vmatprep.subr.mxu0 0.0
        %851 = vmatpush1.msra.mxu0 0.0
        %852 = vmatprep.subr.mxu0 0.0
        %853 = vmatpush1.msra.mxu0 0.0
        %854 = vmatprep.subr.mxu0 0.0
        %855 = vmatpush1.msra.mxu0 0.0
        %856 = vmatprep.subr.mxu0 0.0
        %857 = vmatpush1.msra.mxu0 0.0
        %858 = vmatprep.subr.mxu0 0.0
        %859 = vmatpush1.msra.mxu0 0.0
        %860 = vmatprep.subr.mxu0 0.0
        %861 = vmatpush1.msra.mxu0 0.0
        %862 = vmatprep.subr.mxu0 0.0
        %863 = vmatpush1.msra.mxu0 0.0
        %864 = vmatprep.mubr.f32.mxu0 0.0
        %865 = vmatmul.mubr.f32.gmra.mrb[0].mxu0 %v796
        %v866 = vpop.f32.mrb[0].mxu0
        %v867 = vadd.f32 0.0, %v866
        %v868 = vpop.f32.mrb[0].mxu0
        %869 = vdwg.mxu0
        %v870 = vadd.f32 %v792, %v867
        %871 = vrot.lane.b32.xlu0 %v715, 126
        %v872 = vpop.permute.xlu0 %871
        %v874 = vsel %vm238, %v226, 0
        %v876 = vsel %vm242, %v872, 0
        %878 = vmatprep.subr.mxu0 0.0
        %879 = vmatpush1.msra.mxu0 %v876
        %880 = vmatprep.subr.mxu0 0.0
        %881 = vmatpush1.msra.mxu0 0.0
        %882 = vmatprep.subr.mxu0 0.0
        %883 = vmatpush1.msra.mxu0 0.0
        %884 = vmatprep.subr.mxu0 0.0
        %885 = vmatpush1.msra.mxu0 0.0
        %886 = vmatprep.subr.mxu0 0.0
        %887 = vmatpush1.msra.mxu0 0.0
        %888 = vmatprep.subr.mxu0 0.0
        %889 = vmatpush1.msra.mxu0 0.0
        %890 = vmatprep.subr.mxu0 0.0
        %891 = vmatpush1.msra.mxu0 0.0
        %892 = vmatprep.subr.mxu0 0.0
        %893 = vmatpush1.msra.mxu0 0.0
        %894 = vmatprep.subr.mxu0 0.0
        %895 = vmatpush1.msra.mxu0 0.0
        %896 = vmatprep.subr.mxu0 0.0
        %897 = vmatpush1.msra.mxu0 0.0
        %898 = vmatprep.subr.mxu0 0.0
        %899 = vmatpush1.msra.mxu0 0.0
        %900 = vmatprep.subr.mxu0 0.0
        %901 = vmatpush1.msra.mxu0 0.0
        %902 = vmatprep.subr.mxu0 0.0
        %903 = vmatpush1.msra.mxu0 0.0
        %904 = vmatprep.subr.mxu0 0.0
        %905 = vmatpush1.msra.mxu0 0.0
        %906 = vmatprep.subr.mxu0 0.0
        %907 = vmatpush1.msra.mxu0 0.0
        %908 = vmatprep.subr.mxu0 0.0
        %909 = vmatpush1.msra.mxu0 0.0
        %910 = vmatprep.subr.mxu0 0.0
        %911 = vmatpush1.msra.mxu0 0.0
        %912 = vmatprep.subr.mxu0 0.0
        %913 = vmatpush1.msra.mxu0 0.0
        %914 = vmatprep.subr.mxu0 0.0
        %915 = vmatpush1.msra.mxu0 0.0
        %916 = vmatprep.subr.mxu0 0.0
        %917 = vmatpush1.msra.mxu0 0.0
        %918 = vmatprep.subr.mxu0 0.0
        %919 = vmatpush1.msra.mxu0 0.0
        %920 = vmatprep.subr.mxu0 0.0
        %921 = vmatpush1.msra.mxu0 0.0
        %922 = vmatprep.subr.mxu0 0.0
        %923 = vmatpush1.msra.mxu0 0.0
        %924 = vmatprep.subr.mxu0 0.0
        %925 = vmatpush1.msra.mxu0 0.0
        %926 = vmatprep.subr.mxu0 0.0
        %927 = vmatpush1.msra.mxu0 0.0
        %928 = vmatprep.subr.mxu0 0.0
        %929 = vmatpush1.msra.mxu0 0.0
        %930 = vmatprep.subr.mxu0 0.0
        %931 = vmatpush1.msra.mxu0 0.0
        %932 = vmatprep.subr.mxu0 0.0
        %933 = vmatpush1.msra.mxu0 0.0
        %934 = vmatprep.subr.mxu0 0.0
        %935 = vmatpush1.msra.mxu0 0.0
        %936 = vmatprep.subr.mxu0 0.0
        %937 = vmatpush1.msra.mxu0 0.0
        %938 = vmatprep.subr.mxu0 0.0
        %939 = vmatpush1.msra.mxu0 0.0
        %940 = vmatprep.subr.mxu0 0.0
        %941 = vmatpush1.msra.mxu0 0.0
        %942 = vmatprep.mubr.f32.mxu0 0.0
        %943 = vmatmul.mubr.f32.gmra.mrb[0].mxu0 %v874
        %v944 = vpop.f32.mrb[0].mxu0
        %v945 = vadd.f32 0.0, %v944
        %v946 = vpop.f32.mrb[0].mxu0
        %947 = vdwg.mxu0
        %v948 = vadd.f32 %v870, %v945
        %v950 = vcombine.high %v948, %v948
        %v952 = vunpack.c.l.s4 1966171168
        %v953 = vunpack.c.0.s8 %v952
        %v954 = vlaneseq
        %v955 = vshrl.u32 %v954, 7
        %v956 = vsub.s32 %v953, %v955
        %v957 = vrot.slane %v948, %v956
        %v959 = vunpack.c.l.s4 1966171168
        %v960 = vunpack.c.0.s8 %v959
        %v961 = vlaneseq
        %v962 = vshrl.u32 %v961, 7
        %v963 = vsub.s32 %v960, %v962
        %v964 = vrot.slane %v950, %v963
        %v965 = vcombine.high %v957, %v957
        %v966 = vcombine.high %v964, %v964
        %v968 = vunpack.c.l.s4 1966171168
        %v969 = vunpack.c.0.s8 %v968
        %v970 = vlaneseq
        %v971 = vshrl.u32 %v970, 7
        %v972 = vsub.s32 %v969, %v971
        %v973 = vrot.slane %v957, %v972
        %v975 = vunpack.c.l.s4 1966171168
        %v976 = vunpack.c.0.s8 %v975
        %v977 = vlaneseq
        %v978 = vshrl.u32 %v977, 7
        %v979 = vsub.s32 %v976, %v978
        %v980 = vrot.slane %v964, %v979
        %v982 = vunpack.c.l.s4 1966171168
        %v983 = vunpack.c.0.s8 %v982
        %v984 = vlaneseq
        %v985 = vshrl.u32 %v984, 7
        %v986 = vsub.s32 %v983, %v985
        %v987 = vrot.slane %v965, %v986
        %v989 = vunpack.c.l.s4 1966171168
        %v990 = vunpack.c.0.s8 %v989
        %v991 = vlaneseq
        %v992 = vshrl.u32 %v991, 7
        %v993 = vsub.s32 %v990, %v992
        %v994 = vrot.slane %v966, %v993
        %v995 = vcombine.high %v973, %v973
        %v996 = vcombine.high %v980, %v980
        %v997 = vcombine.high %v987, %v987
        %v998 = vcombine.high %v994, %v994
        %vm1007 = vcmask 253952
        %1008 = vst.msk [vmem:[%s209] sm:$0x1] %vm1007, %v973
        %1009 = vst.msk [vmem:[%s209 + $0x8] sm:$0x1] %vm1007, %v987
        %1010 = vst.msk [vmem:[%s209 + $0x10] sm:$0x1] %vm1007, %v995
        %1011 = vst.msk [vmem:[%s209 + $0x18] sm:$0x1] %vm1007, %v997
        %1012 = vst.msk [vmem:[%s209 + $0x20] sm:$0x1] %vm1007, %v980
        %1013 = vst.msk [vmem:[%s209 + $0x28] sm:$0x1] %vm1007, %v994
        %1014 = vst.msk [vmem:[%s209 + $0x30] sm:$0x1] %vm1007, %v996
        %1015 = vst.msk [vmem:[%s209 + $0x38] sm:$0x1] %vm1007, %v998
        %s1016 = sld [smem:[#allocation3 + %s473]]
        %s1017 = smul.u32 %s1016, 4
        %s1018 = scalar_lea.vmem %s187, %s1017 [#allocation4]
        %v1019 = vld [vmem:[%s1018] sm:$0xf]
        %v1021 = vsel %vm242, %v1019, 0
        %1023 = vmatprep.subr.mxu0 0.0
        %1024 = vmatpush1.msra.mxu0 %v1021
        %1025 = vmatprep.subr.mxu0 0.0
        %1026 = vmatpush1.msra.mxu0 0.0
        %1027 = vmatprep.subr.mxu0 0.0
        %1028 = vmatpush1.msra.mxu0 0.0
        %1029 = vmatprep.subr.mxu0 0.0
        %1030 = vmatpush1.msra.mxu0 0.0
        %1031 = vmatprep.subr.mxu0 0.0
        %1032 = vmatpush1.msra.mxu0 0.0
        %1033 = vmatprep.subr.mxu0 0.0
        %1034 = vmatpush1.msra.mxu0 0.0
        %1035 = vmatprep.subr.mxu0 0.0
        %1036 = vmatpush1.msra.mxu0 0.0
        %1037 = vmatprep.subr.mxu0 0.0
        %1038 = vmatpush1.msra.mxu0 0.0
        %1039 = vmatprep.subr.mxu0 0.0
        %1040 = vmatpush1.msra.mxu0 0.0
        %1041 = vmatprep.subr.mxu0 0.0
        %1042 = vmatpush1.msra.mxu0 0.0
        %1043 = vmatprep.subr.mxu0 0.0
        %1044 = vmatpush1.msra.mxu0 0.0
        %1045 = vmatprep.subr.mxu0 0.0
        %1046 = vmatpush1.msra.mxu0 0.0
        %1047 = vmatprep.subr.mxu0 0.0
        %1048 = vmatpush1.msra.mxu0 0.0
        %1049 = vmatprep.subr.mxu0 0.0
        %1050 = vmatpush1.msra.mxu0 0.0
        %1051 = vmatprep.subr.mxu0 0.0
        %1052 = vmatpush1.msra.mxu0 0.0
        %1053 = vmatprep.subr.mxu0 0.0
        %1054 = vmatpush1.msra.mxu0 0.0
        %1055 = vmatprep.subr.mxu0 0.0
        %1056 = vmatpush1.msra.mxu0 0.0
        %1057 = vmatprep.subr.mxu0 0.0
        %1058 = vmatpush1.msra.mxu0 0.0
        %1059 = vmatprep.subr.mxu0 0.0
        %1060 = vmatpush1.msra.mxu0 0.0
        %1061 = vmatprep.subr.mxu0 0.0
        %1062 = vmatpush1.msra.mxu0 0.0
        %1063 = vmatprep.subr.mxu0 0.0
        %1064 = vmatpush1.msra.mxu0 0.0
        %1065 = vmatprep.subr.mxu0 0.0
        %1066 = vmatpush1.msra.mxu0 0.0
        %1067 = vmatprep.subr.mxu0 0.0
        %1068 = vmatpush1.msra.mxu0 0.0
        %1069 = vmatprep.subr.mxu0 0.0
        %1070 = vmatpush1.msra.mxu0 0.0
        %1071 = vmatprep.subr.mxu0 0.0
        %1072 = vmatpush1.msra.mxu0 0.0
        %1073 = vmatprep.subr.mxu0 0.0
        %1074 = vmatpush1.msra.mxu0 0.0
        %1075 = vmatprep.subr.mxu0 0.0
        %1076 = vmatpush1.msra.mxu0 0.0
        %1077 = vmatprep.subr.mxu0 0.0
        %1078 = vmatpush1.msra.mxu0 0.0
        %1079 = vmatprep.subr.mxu0 0.0
        %1080 = vmatpush1.msra.mxu0 0.0
        %1081 = vmatprep.subr.mxu0 0.0
        %1082 = vmatpush1.msra.mxu0 0.0
        %1083 = vmatprep.subr.mxu0 0.0
        %1084 = vmatpush1.msra.mxu0 0.0
        %1085 = vmatprep.subr.mxu0 0.0
        %1086 = vmatpush1.msra.mxu0 0.0
        %1087 = vmatprep.mubr.f32.mxu0 0.0
        %1088 = vmatmul.mubr.f32.gmra.mrb[0].mxu0 %v240
        %v1089 = vpop.f32.mrb[0].mxu0
        %v1090 = vadd.f32 0.0, %v1089
        %v1091 = vpop.f32.mrb[0].mxu0
        %1092 = vdwg.mxu0
        %v1093 = vadd.f32 %v231, %v1090
        %1094 = vrot.lane.b32.xlu0 %v1019, 127
        %v1095 = vpop.permute.xlu0 %1094
        %v1096 = vsel %vm242, %v1095, 0
        %1098 = vmatprep.subr.mxu0 0.0
        %1099 = vmatpush1.msra.mxu0 %v1096
        %1100 = vmatprep.subr.mxu0 0.0
        %1101 = vmatpush1.msra.mxu0 0.0
        %1102 = vmatprep.subr.mxu0 0.0
        %1103 = vmatpush1.msra.mxu0 0.0
        %1104 = vmatprep.subr.mxu0 0.0
        %1105 = vmatpush1.msra.mxu0 0.0
        %1106 = vmatprep.subr.mxu0 0.0
        %1107 = vmatpush1.msra.mxu0 0.0
        %1108 = vmatprep.subr.mxu0 0.0
        %1109 = vmatpush1.msra.mxu0 0.0
        %1110 = vmatprep.subr.mxu0 0.0
        %1111 = vmatpush1.msra.mxu0 0.0
        %1112 = vmatprep.subr.mxu0 0.0
        %1113 = vmatpush1.msra.mxu0 0.0
        %1114 = vmatprep.subr.mxu0 0.0
        %1115 = vmatpush1.msra.mxu0 0.0
        %1116 = vmatprep.subr.mxu0 0.0
        %1117 = vmatpush1.msra.mxu0 0.0
        %1118 = vmatprep.subr.mxu0 0.0
        %1119 = vmatpush1.msra.mxu0 0.0
        %1120 = vmatprep.subr.mxu0 0.0
        %1121 = vmatpush1.msra.mxu0 0.0
        %1122 = vmatprep.subr.mxu0 0.0
        %1123 = vmatpush1.msra.mxu0 0.0
        %1124 = vmatprep.subr.mxu0 0.0
        %1125 = vmatpush1.msra.mxu0 0.0
        %1126 = vmatprep.subr.mxu0 0.0
        %1127 = vmatpush1.msra.mxu0 0.0
        %1128 = vmatprep.subr.mxu0 0.0
        %1129 = vmatpush1.msra.mxu0 0.0
        %1130 = vmatprep.subr.mxu0 0.0
        %1131 = vmatpush1.msra.mxu0 0.0
        %1132 = vmatprep.subr.mxu0 0.0
        %1133 = vmatpush1.msra.mxu0 0.0
        %1134 = vmatprep.subr.mxu0 0.0
        %1135 = vmatpush1.msra.mxu0 0.0
        %1136 = vmatprep.subr.mxu0 0.0
        %1137 = vmatpush1.msra.mxu0 0.0
        %1138 = vmatprep.subr.mxu0 0.0
        %1139 = vmatpush1.msra.mxu0 0.0
        %1140 = vmatprep.subr.mxu0 0.0
        %1141 = vmatpush1.msra.mxu0 0.0
        %1142 = vmatprep.subr.mxu0 0.0
        %1143 = vmatpush1.msra.mxu0 0.0
        %1144 = vmatprep.subr.mxu0 0.0
        %1145 = vmatpush1.msra.mxu0 0.0
        %1146 = vmatprep.subr.mxu0 0.0
        %1147 = vmatpush1.msra.mxu0 0.0
        %1148 = vmatprep.subr.mxu0 0.0
        %1149 = vmatpush1.msra.mxu0 0.0
        %1150 = vmatprep.subr.mxu0 0.0
        %1151 = vmatpush1.msra.mxu0 0.0
        %1152 = vmatprep.subr.mxu0 0.0
        %1153 = vmatpush1.msra.mxu0 0.0
        %1154 = vmatprep.subr.mxu0 0.0
        %1155 = vmatpush1.msra.mxu0 0.0
        %1156 = vmatprep.subr.mxu0 0.0
        %1157 = vmatpush1.msra.mxu0 0.0
        %1158 = vmatprep.subr.mxu0 0.0
        %1159 = vmatpush1.msra.mxu0 0.0
        %1160 = vmatprep.subr.mxu0 0.0
        %1161 = vmatpush1.msra.mxu0 0.0
        %1162 = vmatprep.mubr.f32.mxu0 0.0
        %1163 = vmatmul.mubr.f32.gmra.mrb[0].mxu0 %v320
        %v1164 = vpop.f32.mrb[0].mxu0
        %v1165 = vadd.f32 0.0, %v1164
        %v1166 = vpop.f32.mrb[0].mxu0
        %1167 = vdwg.mxu0
        %v1168 = vadd.f32 %v1093, %v1165
        %1169 = vrot.lane.b32.xlu0 %v1019, 126
        %v1170 = vpop.permute.xlu0 %1169
        %v1171 = vsel %vm242, %v1170, 0
        %1173 = vmatprep.subr.mxu0 0.0
        %1174 = vmatpush1.msra.mxu0 %v1171
        %1175 = vmatprep.subr.mxu0 0.0
        %1176 = vmatpush1.msra.mxu0 0.0
        %1177 = vmatprep.subr.mxu0 0.0
        %1178 = vmatpush1.msra.mxu0 0.0
        %1179 = vmatprep.subr.mxu0 0.0
        %1180 = vmatpush1.msra.mxu0 0.0
        %1181 = vmatprep.subr.mxu0 0.0
        %1182 = vmatpush1.msra.mxu0 0.0
        %1183 = vmatprep.subr.mxu0 0.0
        %1184 = vmatpush1.msra.mxu0 0.0
        %1185 = vmatprep.subr.mxu0 0.0
        %1186 = vmatpush1.msra.mxu0 0.0
        %1187 = vmatprep.subr.mxu0 0.0
        %1188 = vmatpush1.msra.mxu0 0.0
        %1189 = vmatprep.subr.mxu0 0.0
        %1190 = vmatpush1.msra.mxu0 0.0
        %1191 = vmatprep.subr.mxu0 0.0
        %1192 = vmatpush1.msra.mxu0 0.0
        %1193 = vmatprep.subr.mxu0 0.0
        %1194 = vmatpush1.msra.mxu0 0.0
        %1195 = vmatprep.subr.mxu0 0.0
        %1196 = vmatpush1.msra.mxu0 0.0
        %1197 = vmatprep.subr.mxu0 0.0
        %1198 = vmatpush1.msra.mxu0 0.0
        %1199 = vmatprep.subr.mxu0 0.0
        %1200 = vmatpush1.msra.mxu0 0.0
        %1201 = vmatprep.subr.mxu0 0.0
        %1202 = vmatpush1.msra.mxu0 0.0
        %1203 = vmatprep.subr.mxu0 0.0
        %1204 = vmatpush1.msra.mxu0 0.0
        %1205 = vmatprep.subr.mxu0 0.0
        %1206 = vmatpush1.msra.mxu0 0.0
        %1207 = vmatprep.subr.mxu0 0.0
        %1208 = vmatpush1.msra.mxu0 0.0
        %1209 = vmatprep.subr.mxu0 0.0
        %1210 = vmatpush1.msra.mxu0 0.0
        %1211 = vmatprep.subr.mxu0 0.0
        %1212 = vmatpush1.msra.mxu0 0.0
        %1213 = vmatprep.subr.mxu0 0.0
        %1214 = vmatpush1.msra.mxu0 0.0
        %1215 = vmatprep.subr.mxu0 0.0
        %1216 = vmatpush1.msra.mxu0 0.0
        %1217 = vmatprep.subr.mxu0 0.0
        %1218 = vmatpush1.msra.mxu0 0.0
        %1219 = vmatprep.subr.mxu0 0.0
        %1220 = vmatpush1.msra.mxu0 0.0
        %1221 = vmatprep.subr.mxu0 0.0
        %1222 = vmatpush1.msra.mxu0 0.0
        %1223 = vmatprep.subr.mxu0 0.0
        %1224 = vmatpush1.msra.mxu0 0.0
        %1225 = vmatprep.subr.mxu0 0.0
        %1226 = vmatpush1.msra.mxu0 0.0
        %1227 = vmatprep.subr.mxu0 0.0
        %1228 = vmatpush1.msra.mxu0 0.0
        %1229 = vmatprep.subr.mxu0 0.0
        %1230 = vmatpush1.msra.mxu0 0.0
        %1231 = vmatprep.subr.mxu0 0.0
        %1232 = vmatpush1.msra.mxu0 0.0
        %1233 = vmatprep.subr.mxu0 0.0
        %1234 = vmatpush1.msra.mxu0 0.0
        %1235 = vmatprep.subr.mxu0 0.0
        %1236 = vmatpush1.msra.mxu0 0.0
        %1237 = vmatprep.mubr.f32.mxu0 0.0
        %1238 = vmatmul.mubr.f32.gmra.mrb[0].mxu0 %v398
        %v1239 = vpop.f32.mrb[0].mxu0
        %v1240 = vadd.f32 0.0, %v1239
        %v1241 = vpop.f32.mrb[0].mxu0
        %1242 = vdwg.mxu0
        %v1243 = vadd.f32 %v1168, %v1240
        %s1244 = sld [smem:[#allocation3 + %s711]]
        %s1245 = smul.u32 %s1244, 4
        %s1246 = scalar_lea.vmem %s187, %s1245 [#allocation4]
        %v1247 = vld [vmem:[%s1246] sm:$0xf]
        %v1249 = vsel %vm242, %v1247, 0
        %1251 = vmatprep.subr.mxu0 0.0
        %1252 = vmatpush1.msra.mxu0 %v1249
        %1253 = vmatprep.subr.mxu0 0.0
        %1254 = vmatpush1.msra.mxu0 0.0
        %1255 = vmatprep.subr.mxu0 0.0
        %1256 = vmatpush1.msra.mxu0 0.0
        %1257 = vmatprep.subr.mxu0 0.0
        %1258 = vmatpush1.msra.mxu0 0.0
        %1259 = vmatprep.subr.mxu0 0.0
        %1260 = vmatpush1.msra.mxu0 0.0
        %1261 = vmatprep.subr.mxu0 0.0
        %1262 = vmatpush1.msra.mxu0 0.0
        %1263 = vmatprep.subr.mxu0 0.0
        %1264 = vmatpush1.msra.mxu0 0.0
        %1265 = vmatprep.subr.mxu0 0.0
        %1266 = vmatpush1.msra.mxu0 0.0
        %1267 = vmatprep.subr.mxu0 0.0
        %1268 = vmatpush1.msra.mxu0 0.0
        %1269 = vmatprep.subr.mxu0 0.0
        %1270 = vmatpush1.msra.mxu0 0.0
        %1271 = vmatprep.subr.mxu0 0.0
        %1272 = vmatpush1.msra.mxu0 0.0
        %1273 = vmatprep.subr.mxu0 0.0
        %1274 = vmatpush1.msra.mxu0 0.0
        %1275 = vmatprep.subr.mxu0 0.0
        %1276 = vmatpush1.msra.mxu0 0.0
        %1277 = vmatprep.subr.mxu0 0.0
        %1278 = vmatpush1.msra.mxu0 0.0
        %1279 = vmatprep.subr.mxu0 0.0
        %1280 = vmatpush1.msra.mxu0 0.0
        %1281 = vmatprep.subr.mxu0 0.0
        %1282 = vmatpush1.msra.mxu0 0.0
        %1283 = vmatprep.subr.mxu0 0.0
        %1284 = vmatpush1.msra.mxu0 0.0
        %1285 = vmatprep.subr.mxu0 0.0
        %1286 = vmatpush1.msra.mxu0 0.0
        %1287 = vmatprep.subr.mxu0 0.0
        %1288 = vmatpush1.msra.mxu0 0.0
        %1289 = vmatprep.subr.mxu0 0.0
        %1290 = vmatpush1.msra.mxu0 0.0
        %1291 = vmatprep.subr.mxu0 0.0
        %1292 = vmatpush1.msra.mxu0 0.0
        %1293 = vmatprep.subr.mxu0 0.0
        %1294 = vmatpush1.msra.mxu0 0.0
        %1295 = vmatprep.subr.mxu0 0.0
        %1296 = vmatpush1.msra.mxu0 0.0
        %1297 = vmatprep.subr.mxu0 0.0
        %1298 = vmatpush1.msra.mxu0 0.0
        %1299 = vmatprep.subr.mxu0 0.0
        %1300 = vmatpush1.msra.mxu0 0.0
        %1301 = vmatprep.subr.mxu0 0.0
        %1302 = vmatpush1.msra.mxu0 0.0
        %1303 = vmatprep.subr.mxu0 0.0
        %1304 = vmatpush1.msra.mxu0 0.0
        %1305 = vmatprep.subr.mxu0 0.0
        %1306 = vmatpush1.msra.mxu0 0.0
        %1307 = vmatprep.subr.mxu0 0.0
        %1308 = vmatpush1.msra.mxu0 0.0
        %1309 = vmatprep.subr.mxu0 0.0
        %1310 = vmatpush1.msra.mxu0 0.0
        %1311 = vmatprep.subr.mxu0 0.0
        %1312 = vmatpush1.msra.mxu0 0.0
        %1313 = vmatprep.subr.mxu0 0.0
        %1314 = vmatpush1.msra.mxu0 0.0
        %1315 = vmatprep.mubr.f32.mxu0 0.0
        %1316 = vmatmul.mubr.f32.gmra.mrb[0].mxu0 %v479
        %v1317 = vpop.f32.mrb[0].mxu0
        %v1318 = vadd.f32 0.0, %v1317
        %v1319 = vpop.f32.mrb[0].mxu0
        %1320 = vdwg.mxu0
        %v1321 = vadd.f32 %v1243, %v1318
        %1322 = vrot.lane.b32.xlu0 %v1247, 127
        %v1323 = vpop.permute.xlu0 %1322
        %v1324 = vsel %vm242, %v1323, 0
        %1326 = vmatprep.subr.mxu0 0.0
        %1327 = vmatpush1.msra.mxu0 %v1324
        %1328 = vmatprep.subr.mxu0 0.0
        %1329 = vmatpush1.msra.mxu0 0.0
        %1330 = vmatprep.subr.mxu0 0.0
        %1331 = vmatpush1.msra.mxu0 0.0
        %1332 = vmatprep.subr.mxu0 0.0
        %1333 = vmatpush1.msra.mxu0 0.0
        %1334 = vmatprep.subr.mxu0 0.0
        %1335 = vmatpush1.msra.mxu0 0.0
        %1336 = vmatprep.subr.mxu0 0.0
        %1337 = vmatpush1.msra.mxu0 0.0
        %1338 = vmatprep.subr.mxu0 0.0
        %1339 = vmatpush1.msra.mxu0 0.0
        %1340 = vmatprep.subr.mxu0 0.0
        %1341 = vmatpush1.msra.mxu0 0.0
        %1342 = vmatprep.subr.mxu0 0.0
        %1343 = vmatpush1.msra.mxu0 0.0
        %1344 = vmatprep.subr.mxu0 0.0
        %1345 = vmatpush1.msra.mxu0 0.0
        %1346 = vmatprep.subr.mxu0 0.0
        %1347 = vmatpush1.msra.mxu0 0.0
        %1348 = vmatprep.subr.mxu0 0.0
        %1349 = vmatpush1.msra.mxu0 0.0
        %1350 = vmatprep.subr.mxu0 0.0
        %1351 = vmatpush1.msra.mxu0 0.0
        %1352 = vmatprep.subr.mxu0 0.0
        %1353 = vmatpush1.msra.mxu0 0.0
        %1354 = vmatprep.subr.mxu0 0.0
        %1355 = vmatpush1.msra.mxu0 0.0
        %1356 = vmatprep.subr.mxu0 0.0
        %1357 = vmatpush1.msra.mxu0 0.0
        %1358 = vmatprep.subr.mxu0 0.0
        %1359 = vmatpush1.msra.mxu0 0.0
        %1360 = vmatprep.subr.mxu0 0.0
        %1361 = vmatpush1.msra.mxu0 0.0
        %1362 = vmatprep.subr.mxu0 0.0
        %1363 = vmatpush1.msra.mxu0 0.0
        %1364 = vmatprep.subr.mxu0 0.0
        %1365 = vmatpush1.msra.mxu0 0.0
        %1366 = vmatprep.subr.mxu0 0.0
        %1367 = vmatpush1.msra.mxu0 0.0
        %1368 = vmatprep.subr.mxu0 0.0
        %1369 = vmatpush1.msra.mxu0 0.0
        %1370 = vmatprep.subr.mxu0 0.0
        %1371 = vmatpush1.msra.mxu0 0.0
        %1372 = vmatprep.subr.mxu0 0.0
        %1373 = vmatpush1.msra.mxu0 0.0
        %1374 = vmatprep.subr.mxu0 0.0
        %1375 = vmatpush1.msra.mxu0 0.0
        %1376 = vmatprep.subr.mxu0 0.0
        %1377 = vmatpush1.msra.mxu0 0.0
        %1378 = vmatprep.subr.mxu0 0.0
        %1379 = vmatpush1.msra.mxu0 0.0
        %1380 = vmatprep.subr.mxu0 0.0
        %1381 = vmatpush1.msra.mxu0 0.0
        %1382 = vmatprep.subr.mxu0 0.0
        %1383 = vmatpush1.msra.mxu0 0.0
        %1384 = vmatprep.subr.mxu0 0.0
        %1385 = vmatpush1.msra.mxu0 0.0
        %1386 = vmatprep.subr.mxu0 0.0
        %1387 = vmatpush1.msra.mxu0 0.0
        %1388 = vmatprep.subr.mxu0 0.0
        %1389 = vmatpush1.msra.mxu0 0.0
        %1390 = vmatprep.mubr.f32.mxu0 0.0
        %1391 = vmatmul.mubr.f32.gmra.mrb[0].mxu0 %v558
        %v1392 = vpop.f32.mrb[0].mxu0
        %v1393 = vadd.f32 0.0, %v1392
        %v1394 = vpop.f32.mrb[0].mxu0
        %1395 = vdwg.mxu0
        %v1396 = vadd.f32 %v1321, %v1393
        %1397 = vrot.lane.b32.xlu0 %v1247, 126
        %v1398 = vpop.permute.xlu0 %1397
        %v1399 = vsel %vm242, %v1398, 0
        %1401 = vmatprep.subr.mxu0 0.0
        %1402 = vmatpush1.msra.mxu0 %v1399
        %1403 = vmatprep.subr.mxu0 0.0
        %1404 = vmatpush1.msra.mxu0 0.0
        %1405 = vmatprep.subr.mxu0 0.0
        %1406 = vmatpush1.msra.mxu0 0.0
        %1407 = vmatprep.subr.mxu0 0.0
        %1408 = vmatpush1.msra.mxu0 0.0
        %1409 = vmatprep.subr.mxu0 0.0
        %1410 = vmatpush1.msra.mxu0 0.0
        %1411 = vmatprep.subr.mxu0 0.0
        %1412 = vmatpush1.msra.mxu0 0.0
        %1413 = vmatprep.subr.mxu0 0.0
        %1414 = vmatpush1.msra.mxu0 0.0
        %1415 = vmatprep.subr.mxu0 0.0
        %1416 = vmatpush1.msra.mxu0 0.0
        %1417 = vmatprep.subr.mxu0 0.0
        %1418 = vmatpush1.msra.mxu0 0.0
        %1419 = vmatprep.subr.mxu0 0.0
        %1420 = vmatpush1.msra.mxu0 0.0
        %1421 = vmatprep.subr.mxu0 0.0
        %1422 = vmatpush1.msra.mxu0 0.0
        %1423 = vmatprep.subr.mxu0 0.0
        %1424 = vmatpush1.msra.mxu0 0.0
        %1425 = vmatprep.subr.mxu0 0.0
        %1426 = vmatpush1.msra.mxu0 0.0
        %1427 = vmatprep.subr.mxu0 0.0
        %1428 = vmatpush1.msra.mxu0 0.0
        %1429 = vmatprep.subr.mxu0 0.0
        %1430 = vmatpush1.msra.mxu0 0.0
        %1431 = vmatprep.subr.mxu0 0.0
        %1432 = vmatpush1.msra.mxu0 0.0
        %1433 = vmatprep.subr.mxu0 0.0
        %1434 = vmatpush1.msra.mxu0 0.0
        %1435 = vmatprep.subr.mxu0 0.0
        %1436 = vmatpush1.msra.mxu0 0.0
        %1437 = vmatprep.subr.mxu0 0.0
        %1438 = vmatpush1.msra.mxu0 0.0
        %1439 = vmatprep.subr.mxu0 0.0
        %1440 = vmatpush1.msra.mxu0 0.0
        %1441 = vmatprep.subr.mxu0 0.0
        %1442 = vmatpush1.msra.mxu0 0.0
        %1443 = vmatprep.subr.mxu0 0.0
        %1444 = vmatpush1.msra.mxu0 0.0
        %1445 = vmatprep.subr.mxu0 0.0
        %1446 = vmatpush1.msra.mxu0 0.0
        %1447 = vmatprep.subr.mxu0 0.0
        %1448 = vmatpush1.msra.mxu0 0.0
        %1449 = vmatprep.subr.mxu0 0.0
        %1450 = vmatpush1.msra.mxu0 0.0
        %1451 = vmatprep.subr.mxu0 0.0
        %1452 = vmatpush1.msra.mxu0 0.0
        %1453 = vmatprep.subr.mxu0 0.0
        %1454 = vmatpush1.msra.mxu0 0.0
        %1455 = vmatprep.subr.mxu0 0.0
        %1456 = vmatpush1.msra.mxu0 0.0
        %1457 = vmatprep.subr.mxu0 0.0
        %1458 = vmatpush1.msra.mxu0 0.0
        %1459 = vmatprep.subr.mxu0 0.0
        %1460 = vmatpush1.msra.mxu0 0.0
        %1461 = vmatprep.subr.mxu0 0.0
        %1462 = vmatpush1.msra.mxu0 0.0
        %1463 = vmatprep.subr.mxu0 0.0
        %1464 = vmatpush1.msra.mxu0 0.0
        %1465 = vmatprep.mubr.f32.mxu0 0.0
        %1466 = vmatmul.mubr.f32.gmra.mrb[0].mxu0 %v636
        %v1467 = vpop.f32.mrb[0].mxu0
        %v1468 = vadd.f32 0.0, %v1467
        %v1469 = vpop.f32.mrb[0].mxu0
        %1470 = vdwg.mxu0
        %v1471 = vadd.f32 %v1396, %v1468
        %s1472 = sadd.s32 %s233, 3
        %s1473 = sld [smem:[#allocation3 + %s1472]]
        %s1474 = smul.u32 %s1473, 4
        %s1475 = scalar_lea.vmem %s187, %s1474 [#allocation4]
        %v1476 = vld [vmem:[%s1475] sm:$0xf]
        %v1478 = vsel %vm242, %v1476, 0
        %1480 = vmatprep.subr.mxu0 0.0
        %1481 = vmatpush1.msra.mxu0 %v1478
        %1482 = vmatprep.subr.mxu0 0.0
        %1483 = vmatpush1.msra.mxu0 0.0
        %1484 = vmatprep.subr.mxu0 0.0
        %1485 = vmatpush1.msra.mxu0 0.0
        %1486 = vmatprep.subr.mxu0 0.0
        %1487 = vmatpush1.msra.mxu0 0.0
        %1488 = vmatprep.subr.mxu0 0.0
        %1489 = vmatpush1.msra.mxu0 0.0
        %1490 = vmatprep.subr.mxu0 0.0
        %1491 = vmatpush1.msra.mxu0 0.0
        %1492 = vmatprep.subr.mxu0 0.0
        %1493 = vmatpush1.msra.mxu0 0.0
        %1494 = vmatprep.subr.mxu0 0.0
        %1495 = vmatpush1.msra.mxu0 0.0
        %1496 = vmatprep.subr.mxu0 0.0
        %1497 = vmatpush1.msra.mxu0 0.0
        %1498 = vmatprep.subr.mxu0 0.0
        %1499 = vmatpush1.msra.mxu0 0.0
        %1500 = vmatprep.subr.mxu0 0.0
        %1501 = vmatpush1.msra.mxu0 0.0
        %1502 = vmatprep.subr.mxu0 0.0
        %1503 = vmatpush1.msra.mxu0 0.0
        %1504 = vmatprep.subr.mxu0 0.0
        %1505 = vmatpush1.msra.mxu0 0.0
        %1506 = vmatprep.subr.mxu0 0.0
        %1507 = vmatpush1.msra.mxu0 0.0
        %1508 = vmatprep.subr.mxu0 0.0
        %1509 = vmatpush1.msra.mxu0 0.0
        %1510 = vmatprep.subr.mxu0 0.0
        %1511 = vmatpush1.msra.mxu0 0.0
        %1512 = vmatprep.subr.mxu0 0.0
        %1513 = vmatpush1.msra.mxu0 0.0
        %1514 = vmatprep.subr.mxu0 0.0
        %1515 = vmatpush1.msra.mxu0 0.0
        %1516 = vmatprep.subr.mxu0 0.0
        %1517 = vmatpush1.msra.mxu0 0.0
        %1518 = vmatprep.subr.mxu0 0.0
        %1519 = vmatpush1.msra.mxu0 0.0
        %1520 = vmatprep.subr.mxu0 0.0
        %1521 = vmatpush1.msra.mxu0 0.0
        %1522 = vmatprep.subr.mxu0 0.0
        %1523 = vmatpush1.msra.mxu0 0.0
        %1524 = vmatprep.subr.mxu0 0.0
        %1525 = vmatpush1.msra.mxu0 0.0
        %1526 = vmatprep.subr.mxu0 0.0
        %1527 = vmatpush1.msra.mxu0 0.0
        %1528 = vmatprep.subr.mxu0 0.0
        %1529 = vmatpush1.msra.mxu0 0.0
        %1530 = vmatprep.subr.mxu0 0.0
        %1531 = vmatpush1.msra.mxu0 0.0
        %1532 = vmatprep.subr.mxu0 0.0
        %1533 = vmatpush1.msra.mxu0 0.0
        %1534 = vmatprep.subr.mxu0 0.0
        %1535 = vmatpush1.msra.mxu0 0.0
        %1536 = vmatprep.subr.mxu0 0.0
        %1537 = vmatpush1.msra.mxu0 0.0
        %1538 = vmatprep.subr.mxu0 0.0
        %1539 = vmatpush1.msra.mxu0 0.0
        %1540 = vmatprep.subr.mxu0 0.0
        %1541 = vmatpush1.msra.mxu0 0.0
        %1542 = vmatprep.subr.mxu0 0.0
        %1543 = vmatpush1.msra.mxu0 0.0
        %1544 = vmatprep.mubr.f32.mxu0 0.0
        %1545 = vmatmul.mubr.f32.gmra.mrb[0].mxu0 %v717
        %v1546 = vpop.f32.mrb[0].mxu0
        %v1547 = vadd.f32 0.0, %v1546
        %v1548 = vpop.f32.mrb[0].mxu0
        %1549 = vdwg.mxu0
        %v1550 = vadd.f32 %v1471, %v1547
        %1551 = vrot.lane.b32.xlu0 %v1476, 127
        %v1552 = vpop.permute.xlu0 %1551
        %v1553 = vsel %vm242, %v1552, 0
        %1555 = vmatprep.subr.mxu0 0.0
        %1556 = vmatpush1.msra.mxu0 %v1553
        %1557 = vmatprep.subr.mxu0 0.0
        %1558 = vmatpush1.msra.mxu0 0.0
        %1559 = vmatprep.subr.mxu0 0.0
        %1560 = vmatpush1.msra.mxu0 0.0
        %1561 = vmatprep.subr.mxu0 0.0
        %1562 = vmatpush1.msra.mxu0 0.0
        %1563 = vmatprep.subr.mxu0 0.0
        %1564 = vmatpush1.msra.mxu0 0.0
        %1565 = vmatprep.subr.mxu0 0.0
        %1566 = vmatpush1.msra.mxu0 0.0
        %1567 = vmatprep.subr.mxu0 0.0
        %1568 = vmatpush1.msra.mxu0 0.0
        %1569 = vmatprep.subr.mxu0 0.0
        %1570 = vmatpush1.msra.mxu0 0.0
        %1571 = vmatprep.subr.mxu0 0.0
        %1572 = vmatpush1.msra.mxu0 0.0
        %1573 = vmatprep.subr.mxu0 0.0
        %1574 = vmatpush1.msra.mxu0 0.0
        %1575 = vmatprep.subr.mxu0 0.0
        %1576 = vmatpush1.msra.mxu0 0.0
        %1577 = vmatprep.subr.mxu0 0.0
        %1578 = vmatpush1.msra.mxu0 0.0
        %1579 = vmatprep.subr.mxu0 0.0
        %1580 = vmatpush1.msra.mxu0 0.0
        %1581 = vmatprep.subr.mxu0 0.0
        %1582 = vmatpush1.msra.mxu0 0.0
        %1583 = vmatprep.subr.mxu0 0.0
        %1584 = vmatpush1.msra.mxu0 0.0
        %1585 = vmatprep.subr.mxu0 0.0
        %1586 = vmatpush1.msra.mxu0 0.0
        %1587 = vmatprep.subr.mxu0 0.0
        %1588 = vmatpush1.msra.mxu0 0.0
        %1589 = vmatprep.subr.mxu0 0.0
        %1590 = vmatpush1.msra.mxu0 0.0
        %1591 = vmatprep.subr.mxu0 0.0
        %1592 = vmatpush1.msra.mxu0 0.0
        %1593 = vmatprep.subr.mxu0 0.0
        %1594 = vmatpush1.msra.mxu0 0.0
        %1595 = vmatprep.subr.mxu0 0.0
        %1596 = vmatpush1.msra.mxu0 0.0
        %1597 = vmatprep.subr.mxu0 0.0
        %1598 = vmatpush1.msra.mxu0 0.0
        %1599 = vmatprep.subr.mxu0 0.0
        %1600 = vmatpush1.msra.mxu0 0.0
        %1601 = vmatprep.subr.mxu0 0.0
        %1602 = vmatpush1.msra.mxu0 0.0
        %1603 = vmatprep.subr.mxu0 0.0
        %1604 = vmatpush1.msra.mxu0 0.0
        %1605 = vmatprep.subr.mxu0 0.0
        %1606 = vmatpush1.msra.mxu0 0.0
        %1607 = vmatprep.subr.mxu0 0.0
        %1608 = vmatpush1.msra.mxu0 0.0
        %1609 = vmatprep.subr.mxu0 0.0
        %1610 = vmatpush1.msra.mxu0 0.0
        %1611 = vmatprep.subr.mxu0 0.0
        %1612 = vmatpush1.msra.mxu0 0.0
        %1613 = vmatprep.subr.mxu0 0.0
        %1614 = vmatpush1.msra.mxu0 0.0
        %1615 = vmatprep.subr.mxu0 0.0
        %1616 = vmatpush1.msra.mxu0 0.0
        %1617 = vmatprep.subr.mxu0 0.0
        %1618 = vmatpush1.msra.mxu0 0.0
        %1619 = vmatprep.mubr.f32.mxu0 0.0
        %1620 = vmatmul.mubr.f32.gmra.mrb[0].mxu0 %v796
        %v1621 = vpop.f32.mrb[0].mxu0
        %v1622 = vadd.f32 0.0, %v1621
        %v1623 = vpop.f32.mrb[0].mxu0
        %1624 = vdwg.mxu0
        %v1625 = vadd.f32 %v1550, %v1622
        %1626 = vrot.lane.b32.xlu0 %v1476, 126
        %v1627 = vpop.permute.xlu0 %1626
        %v1628 = vsel %vm242, %v1627, 0
        %1630 = vmatprep.subr.mxu0 0.0
        %1631 = vmatpush1.msra.mxu0 %v1628
        %1632 = vmatprep.subr.mxu0 0.0
        %1633 = vmatpush1.msra.mxu0 0.0
        %1634 = vmatprep.subr.mxu0 0.0
        %1635 = vmatpush1.msra.mxu0 0.0
        %1636 = vmatprep.subr.mxu0 0.0
        %1637 = vmatpush1.msra.mxu0 0.0
        %1638 = vmatprep.subr.mxu0 0.0
        %1639 = vmatpush1.msra.mxu0 0.0
        %1640 = vmatprep.subr.mxu0 0.0
        %1641 = vmatpush1.msra.mxu0 0.0
        %1642 = vmatprep.subr.mxu0 0.0
        %1643 = vmatpush1.msra.mxu0 0.0
        %1644 = vmatprep.subr.mxu0 0.0
        %1645 = vmatpush1.msra.mxu0 0.0
        %1646 = vmatprep.subr.mxu0 0.0
        %1647 = vmatpush1.msra.mxu0 0.0
        %1648 = vmatprep.subr.mxu0 0.0
        %1649 = vmatpush1.msra.mxu0 0.0
        %1650 = vmatprep.subr.mxu0 0.0
        %1651 = vmatpush1.msra.mxu0 0.0
        %1652 = vmatprep.subr.mxu0 0.0
        %1653 = vmatpush1.msra.mxu0 0.0
        %1654 = vmatprep.subr.mxu0 0.0
        %1655 = vmatpush1.msra.mxu0 0.0
        %1656 = vmatprep.subr.mxu0 0.0
        %1657 = vmatpush1.msra.mxu0 0.0
        %1658 = vmatprep.subr.mxu0 0.0
        %1659 = vmatpush1.msra.mxu0 0.0
        %1660 = vmatprep.subr.mxu0 0.0
        %1661 = vmatpush1.msra.mxu0 0.0
        %1662 = vmatprep.subr.mxu0 0.0
        %1663 = vmatpush1.msra.mxu0 0.0
        %1664 = vmatprep.subr.mxu0 0.0
        %1665 = vmatpush1.msra.mxu0 0.0
        %1666 = vmatprep.subr.mxu0 0.0
        %1667 = vmatpush1.msra.mxu0 0.0
        %1668 = vmatprep.subr.mxu0 0.0
        %1669 = vmatpush1.msra.mxu0 0.0
        %1670 = vmatprep.subr.mxu0 0.0
        %1671 = vmatpush1.msra.mxu0 0.0
        %1672 = vmatprep.subr.mxu0 0.0
        %1673 = vmatpush1.msra.mxu0 0.0
        %1674 = vmatprep.subr.mxu0 0.0
        %1675 = vmatpush1.msra.mxu0 0.0
        %1676 = vmatprep.subr.mxu0 0.0
        %1677 = vmatpush1.msra.mxu0 0.0
        %1678 = vmatprep.subr.mxu0 0.0
        %1679 = vmatpush1.msra.mxu0 0.0
        %1680 = vmatprep.subr.mxu0 0.0
        %1681 = vmatpush1.msra.mxu0 0.0
        %1682 = vmatprep.subr.mxu0 0.0
        %1683 = vmatpush1.msra.mxu0 0.0
        %1684 = vmatprep.subr.mxu0 0.0
        %1685 = vmatpush1.msra.mxu0 0.0
        %1686 = vmatprep.subr.mxu0 0.0
        %1687 = vmatpush1.msra.mxu0 0.0
        %1688 = vmatprep.subr.mxu0 0.0
        %1689 = vmatpush1.msra.mxu0 0.0
        %1690 = vmatprep.subr.mxu0 0.0
        %1691 = vmatpush1.msra.mxu0 0.0
        %1692 = vmatprep.subr.mxu0 0.0
        %1693 = vmatpush1.msra.mxu0 0.0
        %1694 = vmatprep.mubr.f32.mxu0 0.0
        %1695 = vmatmul.mubr.f32.gmra.mrb[0].mxu0 %v874
        %v1696 = vpop.f32.mrb[0].mxu0
        %v1697 = vadd.f32 0.0, %v1696
        %v1698 = vpop.f32.mrb[0].mxu0
        %1699 = vdwg.mxu0
        %v1700 = vadd.f32 %v1625, %v1697
        %v1702 = vcombine.high %v1700, %v1700
        %v1704 = vunpack.c.l.s4 1966171168
        %v1705 = vunpack.c.0.s8 %v1704
        %v1706 = vlaneseq
        %v1707 = vshrl.u32 %v1706, 7
        %v1708 = vsub.s32 %v1705, %v1707
        %v1709 = vrot.slane %v1700, %v1708
        %v1711 = vunpack.c.l.s4 1966171168
        %v1712 = vunpack.c.0.s8 %v1711
        %v1713 = vlaneseq
        %v1714 = vshrl.u32 %v1713, 7
        %v1715 = vsub.s32 %v1712, %v1714
        %v1716 = vrot.slane %v1702, %v1715
        %v1717 = vcombine.high %v1709, %v1709
        %v1718 = vcombine.high %v1716, %v1716
        %v1720 = vunpack.c.l.s4 1966171168
        %v1721 = vunpack.c.0.s8 %v1720
        %v1722 = vlaneseq
        %v1723 = vshrl.u32 %v1722, 7
        %v1724 = vsub.s32 %v1721, %v1723
        %v1725 = vrot.slane %v1709, %v1724
        %v1727 = vunpack.c.l.s4 1966171168
        %v1728 = vunpack.c.0.s8 %v1727
        %v1729 = vlaneseq
        %v1730 = vshrl.u32 %v1729, 7
        %v1731 = vsub.s32 %v1728, %v1730
        %v1732 = vrot.slane %v1716, %v1731
        %v1734 = vunpack.c.l.s4 1966171168
        %v1735 = vunpack.c.0.s8 %v1734
        %v1736 = vlaneseq
        %v1737 = vshrl.u32 %v1736, 7
        %v1738 = vsub.s32 %v1735, %v1737
        %v1739 = vrot.slane %v1717, %v1738
        %v1741 = vunpack.c.l.s4 1966171168
        %v1742 = vunpack.c.0.s8 %v1741
        %v1743 = vlaneseq
        %v1744 = vshrl.u32 %v1743, 7
        %v1745 = vsub.s32 %v1742, %v1744
        %v1746 = vrot.slane %v1718, %v1745
        %v1747 = vcombine.high %v1725, %v1725
        %v1748 = vcombine.high %v1732, %v1732
        %v1749 = vcombine.high %v1739, %v1739
        %v1750 = vcombine.high %v1746, %v1746
        %1759 = vst.msk [vmem:[%s209 + $0x1] sm:$0x1] %vm1007, %v1725
        %1760 = vst.msk [vmem:[%s209 + $0x9] sm:$0x1] %vm1007, %v1739
        %1761 = vst.msk [vmem:[%s209 + $0x11] sm:$0x1] %vm1007, %v1747
        %1762 = vst.msk [vmem:[%s209 + $0x19] sm:$0x1] %vm1007, %v1749
        %1763 = vst.msk [vmem:[%s209 + $0x21] sm:$0x1] %vm1007, %v1732
        %1764 = vst.msk [vmem:[%s209 + $0x29] sm:$0x1] %vm1007, %v1746
        %1765 = vst.msk [vmem:[%s209 + $0x31] sm:$0x1] %vm1007, %v1748
        %1766 = vst.msk [vmem:[%s209 + $0x39] sm:$0x1] %vm1007, %v1750
        %s1767 = sld [smem:[#allocation3 + %s711]]
        %s1768 = smul.u32 %s1767, 4
        %s1769 = scalar_lea.vmem %s187, %s1768 [#allocation4]
        %v1770 = vld [vmem:[%s1769] sm:$0xf]
        %v1772 = vsel %vm242, %v1770, 0
        %1774 = vmatprep.subr.mxu0 0.0
        %1775 = vmatpush1.msra.mxu0 %v1772
        %1776 = vmatprep.subr.mxu0 0.0
        %1777 = vmatpush1.msra.mxu0 0.0
        %1778 = vmatprep.subr.mxu0 0.0
        %1779 = vmatpush1.msra.mxu0 0.0
        %1780 = vmatprep.subr.mxu0 0.0
        %1781 = vmatpush1.msra.mxu0 0.0
        %1782 = vmatprep.subr.mxu0 0.0
        %1783 = vmatpush1.msra.mxu0 0.0
        %1784 = vmatprep.subr.mxu0 0.0
        %1785 = vmatpush1.msra.mxu0 0.0
        %1786 = vmatprep.subr.mxu0 0.0
        %1787 = vmatpush1.msra.mxu0 0.0
        %1788 = vmatprep.subr.mxu0 0.0
        %1789 = vmatpush1.msra.mxu0 0.0
        %1790 = vmatprep.subr.mxu0 0.0
        %1791 = vmatpush1.msra.mxu0 0.0
        %1792 = vmatprep.subr.mxu0 0.0
        %1793 = vmatpush1.msra.mxu0 0.0
        %1794 = vmatprep.subr.mxu0 0.0
        %1795 = vmatpush1.msra.mxu0 0.0
        %1796 = vmatprep.subr.mxu0 0.0
        %1797 = vmatpush1.msra.mxu0 0.0
        %1798 = vmatprep.subr.mxu0 0.0
        %1799 = vmatpush1.msra.mxu0 0.0
        %1800 = vmatprep.subr.mxu0 0.0
        %1801 = vmatpush1.msra.mxu0 0.0
        %1802 = vmatprep.subr.mxu0 0.0
        %1803 = vmatpush1.msra.mxu0 0.0
        %1804 = vmatprep.subr.mxu0 0.0
        %1805 = vmatpush1.msra.mxu0 0.0
        %1806 = vmatprep.subr.mxu0 0.0
        %1807 = vmatpush1.msra.mxu0 0.0
        %1808 = vmatprep.subr.mxu0 0.0
        %1809 = vmatpush1.msra.mxu0 0.0
        %1810 = vmatprep.subr.mxu0 0.0
        %1811 = vmatpush1.msra.mxu0 0.0
        %1812 = vmatprep.subr.mxu0 0.0
        %1813 = vmatpush1.msra.mxu0 0.0
        %1814 = vmatprep.subr.mxu0 0.0
        %1815 = vmatpush1.msra.mxu0 0.0
        %1816 = vmatprep.subr.mxu0 0.0
        %1817 = vmatpush1.msra.mxu0 0.0
        %1818 = vmatprep.subr.mxu0 0.0
        %1819 = vmatpush1.msra.mxu0 0.0
        %1820 = vmatprep.subr.mxu0 0.0
        %1821 = vmatpush1.msra.mxu0 0.0
        %1822 = vmatprep.subr.mxu0 0.0
        %1823 = vmatpush1.msra.mxu0 0.0
        %1824 = vmatprep.subr.mxu0 0.0
        %1825 = vmatpush1.msra.mxu0 0.0
        %1826 = vmatprep.subr.mxu0 0.0
        %1827 = vmatpush1.msra.mxu0 0.0
        %1828 = vmatprep.subr.mxu0 0.0
        %1829 = vmatpush1.msra.mxu0 0.0
        %1830 = vmatprep.subr.mxu0 0.0
        %1831 = vmatpush1.msra.mxu0 0.0
        %1832 = vmatprep.subr.mxu0 0.0
        %1833 = vmatpush1.msra.mxu0 0.0
        %1834 = vmatprep.subr.mxu0 0.0
        %1835 = vmatpush1.msra.mxu0 0.0
        %1836 = vmatprep.subr.mxu0 0.0
        %1837 = vmatpush1.msra.mxu0 0.0
        %1838 = vmatprep.mubr.f32.mxu0 0.0
        %1839 = vmatmul.mubr.f32.gmra.mrb[0].mxu0 %v240
        %v1840 = vpop.f32.mrb[0].mxu0
        %v1841 = vadd.f32 0.0, %v1840
        %v1842 = vpop.f32.mrb[0].mxu0
        %1843 = vdwg.mxu0
        %v1844 = vadd.f32 %v231, %v1841
        %1845 = vrot.lane.b32.xlu0 %v1770, 127
        %v1846 = vpop.permute.xlu0 %1845
        %v1847 = vsel %vm242, %v1846, 0
        %1849 = vmatprep.subr.mxu0 0.0
        %1850 = vmatpush1.msra.mxu0 %v1847
        %1851 = vmatprep.subr.mxu0 0.0
        %1852 = vmatpush1.msra.mxu0 0.0
        %1853 = vmatprep.subr.mxu0 0.0
        %1854 = vmatpush1.msra.mxu0 0.0
        %1855 = vmatprep.subr.mxu0 0.0
        %1856 = vmatpush1.msra.mxu0 0.0
        %1857 = vmatprep.subr.mxu0 0.0
        %1858 = vmatpush1.msra.mxu0 0.0
        %1859 = vmatprep.subr.mxu0 0.0
        %1860 = vmatpush1.msra.mxu0 0.0
        %1861 = vmatprep.subr.mxu0 0.0
        %1862 = vmatpush1.msra.mxu0 0.0
        %1863 = vmatprep.subr.mxu0 0.0
        %1864 = vmatpush1.msra.mxu0 0.0
        %1865 = vmatprep.subr.mxu0 0.0
        %1866 = vmatpush1.msra.mxu0 0.0
        %1867 = vmatprep.subr.mxu0 0.0
        %1868 = vmatpush1.msra.mxu0 0.0
        %1869 = vmatprep.subr.mxu0 0.0
        %1870 = vmatpush1.msra.mxu0 0.0
        %1871 = vmatprep.subr.mxu0 0.0
        %1872 = vmatpush1.msra.mxu0 0.0
        %1873 = vmatprep.subr.mxu0 0.0
        %1874 = vmatpush1.msra.mxu0 0.0
        %1875 = vmatprep.subr.mxu0 0.0
        %1876 = vmatpush1.msra.mxu0 0.0
        %1877 = vmatprep.subr.mxu0 0.0
        %1878 = vmatpush1.msra.mxu0 0.0
        %1879 = vmatprep.subr.mxu0 0.0
        %1880 = vmatpush1.msra.mxu0 0.0
        %1881 = vmatprep.subr.mxu0 0.0
        %1882 = vmatpush1.msra.mxu0 0.0
        %1883 = vmatprep.subr.mxu0 0.0
        %1884 = vmatpush1.msra.mxu0 0.0
        %1885 = vmatprep.subr.mxu0 0.0
        %1886 = vmatpush1.msra.mxu0 0.0
        %1887 = vmatprep.subr.mxu0 0.0
        %1888 = vmatpush1.msra.mxu0 0.0
        %1889 = vmatprep.subr.mxu0 0.0
        %1890 = vmatpush1.msra.mxu0 0.0
        %1891 = vmatprep.subr.mxu0 0.0
        %1892 = vmatpush1.msra.mxu0 0.0
        %1893 = vmatprep.subr.mxu0 0.0
        %1894 = vmatpush1.msra.mxu0 0.0
        %1895 = vmatprep.subr.mxu0 0.0
        %1896 = vmatpush1.msra.mxu0 0.0
        %1897 = vmatprep.subr.mxu0 0.0
        %1898 = vmatpush1.msra.mxu0 0.0
        %1899 = vmatprep.subr.mxu0 0.0
        %1900 = vmatpush1.msra.mxu0 0.0
        %1901 = vmatprep.subr.mxu0 0.0
        %1902 = vmatpush1.msra.mxu0 0.0
        %1903 = vmatprep.subr.mxu0 0.0
        %1904 = vmatpush1.msra.mxu0 0.0
        %1905 = vmatprep.subr.mxu0 0.0
        %1906 = vmatpush1.msra.mxu0 0.0
        %1907 = vmatprep.subr.mxu0 0.0
        %1908 = vmatpush1.msra.mxu0 0.0
        %1909 = vmatprep.subr.mxu0 0.0
        %1910 = vmatpush1.msra.mxu0 0.0
        %1911 = vmatprep.subr.mxu0 0.0
        %1912 = vmatpush1.msra.mxu0 0.0
        %1913 = vmatprep.mubr.f32.mxu0 0.0
        %1914 = vmatmul.mubr.f32.gmra.mrb[0].mxu0 %v320
        %v1915 = vpop.f32.mrb[0].mxu0
        %v1916 = vadd.f32 0.0, %v1915
        %v1917 = vpop.f32.mrb[0].mxu0
        %1918 = vdwg.mxu0
        %v1919 = vadd.f32 %v1844, %v1916
        %1920 = vrot.lane.b32.xlu0 %v1770, 126
        %v1921 = vpop.permute.xlu0 %1920
        %v1922 = vsel %vm242, %v1921, 0
        %1924 = vmatprep.subr.mxu0 0.0
        %1925 = vmatpush1.msra.mxu0 %v1922
        %1926 = vmatprep.subr.mxu0 0.0
        %1927 = vmatpush1.msra.mxu0 0.0
        %1928 = vmatprep.subr.mxu0 0.0
        %1929 = vmatpush1.msra.mxu0 0.0
        %1930 = vmatprep.subr.mxu0 0.0
        %1931 = vmatpush1.msra.mxu0 0.0
        %1932 = vmatprep.subr.mxu0 0.0
        %1933 = vmatpush1.msra.mxu0 0.0
        %1934 = vmatprep.subr.mxu0 0.0
        %1935 = vmatpush1.msra.mxu0 0.0
        %1936 = vmatprep.subr.mxu0 0.0
        %1937 = vmatpush1.msra.mxu0 0.0
        %1938 = vmatprep.subr.mxu0 0.0
        %1939 = vmatpush1.msra.mxu0 0.0
        %1940 = vmatprep.subr.mxu0 0.0
        %1941 = vmatpush1.msra.mxu0 0.0
        %1942 = vmatprep.subr.mxu0 0.0
        %1943 = vmatpush1.msra.mxu0 0.0
        %1944 = vmatprep.subr.mxu0 0.0
        %1945 = vmatpush1.msra.mxu0 0.0
        %1946 = vmatprep.subr.mxu0 0.0
        %1947 = vmatpush1.msra.mxu0 0.0
        %1948 = vmatprep.subr.mxu0 0.0
        %1949 = vmatpush1.msra.mxu0 0.0
        %1950 = vmatprep.subr.mxu0 0.0
        %1951 = vmatpush1.msra.mxu0 0.0
        %1952 = vmatprep.subr.mxu0 0.0
        %1953 = vmatpush1.msra.mxu0 0.0
        %1954 = vmatprep.subr.mxu0 0.0
        %1955 = vmatpush1.msra.mxu0 0.0
        %1956 = vmatprep.subr.mxu0 0.0
        %1957 = vmatpush1.msra.mxu0 0.0
        %1958 = vmatprep.subr.mxu0 0.0
        %1959 = vmatpush1.msra.mxu0 0.0
        %1960 = vmatprep.subr.mxu0 0.0
        %1961 = vmatpush1.msra.mxu0 0.0
        %1962 = vmatprep.subr.mxu0 0.0
        %1963 = vmatpush1.msra.mxu0 0.0
        %1964 = vmatprep.subr.mxu0 0.0
        %1965 = vmatpush1.msra.mxu0 0.0
        %1966 = vmatprep.subr.mxu0 0.0
        %1967 = vmatpush1.msra.mxu0 0.0
        %1968 = vmatprep.subr.mxu0 0.0
        %1969 = vmatpush1.msra.mxu0 0.0
        %1970 = vmatprep.subr.mxu0 0.0
        %1971 = vmatpush1.msra.mxu0 0.0
        %1972 = vmatprep.subr.mxu0 0.0
        %1973 = vmatpush1.msra.mxu0 0.0
        %1974 = vmatprep.subr.mxu0 0.0
        %1975 = vmatpush1.msra.mxu0 0.0
        %1976 = vmatprep.subr.mxu0 0.0
        %1977 = vmatpush1.msra.mxu0 0.0
        %1978 = vmatprep.subr.mxu0 0.0
        %1979 = vmatpush1.msra.mxu0 0.0
        %1980 = vmatprep.subr.mxu0 0.0
        %1981 = vmatpush1.msra.mxu0 0.0
        %1982 = vmatprep.subr.mxu0 0.0
        %1983 = vmatpush1.msra.mxu0 0.0
        %1984 = vmatprep.subr.mxu0 0.0
        %1985 = vmatpush1.msra.mxu0 0.0
        %1986 = vmatprep.subr.mxu0 0.0
        %1987 = vmatpush1.msra.mxu0 0.0
        %1988 = vmatprep.mubr.f32.mxu0 0.0
        %1989 = vmatmul.mubr.f32.gmra.mrb[0].mxu0 %v398
        %v1990 = vpop.f32.mrb[0].mxu0
        %v1991 = vadd.f32 0.0, %v1990
        %v1992 = vpop.f32.mrb[0].mxu0
        %1993 = vdwg.mxu0
        %v1994 = vadd.f32 %v1919, %v1991
        %s1995 = sld [smem:[#allocation3 + %s1472]]
        %s1996 = smul.u32 %s1995, 4
        %s1997 = scalar_lea.vmem %s187, %s1996 [#allocation4]
        %v1998 = vld [vmem:[%s1997] sm:$0xf]
        %v2000 = vsel %vm242, %v1998, 0
        %2002 = vmatprep.subr.mxu0 0.0
        %2003 = vmatpush1.msra.mxu0 %v2000
        %2004 = vmatprep.subr.mxu0 0.0
        %2005 = vmatpush1.msra.mxu0 0.0
        %2006 = vmatprep.subr.mxu0 0.0
        %2007 = vmatpush1.msra.mxu0 0.0
        %2008 = vmatprep.subr.mxu0 0.0
        %2009 = vmatpush1.msra.mxu0 0.0
        %2010 = vmatprep.subr.mxu0 0.0
        %2011 = vmatpush1.msra.mxu0 0.0
        %2012 = vmatprep.subr.mxu0 0.0
        %2013 = vmatpush1.msra.mxu0 0.0
        %2014 = vmatprep.subr.mxu0 0.0
        %2015 = vmatpush1.msra.mxu0 0.0
        %2016 = vmatprep.subr.mxu0 0.0
        %2017 = vmatpush1.msra.mxu0 0.0
        %2018 = vmatprep.subr.mxu0 0.0
        %2019 = vmatpush1.msra.mxu0 0.0
        %2020 = vmatprep.subr.mxu0 0.0
        %2021 = vmatpush1.msra.mxu0 0.0
        %2022 = vmatprep.subr.mxu0 0.0
        %2023 = vmatpush1.msra.mxu0 0.0
        %2024 = vmatprep.subr.mxu0 0.0
        %2025 = vmatpush1.msra.mxu0 0.0
        %2026 = vmatprep.subr.mxu0 0.0
        %2027 = vmatpush1.msra.mxu0 0.0
        %2028 = vmatprep.subr.mxu0 0.0
        %2029 = vmatpush1.msra.mxu0 0.0
        %2030 = vmatprep.subr.mxu0 0.0
        %2031 = vmatpush1.msra.mxu0 0.0
        %2032 = vmatprep.subr.mxu0 0.0
        %2033 = vmatpush1.msra.mxu0 0.0
        %2034 = vmatprep.subr.mxu0 0.0
        %2035 = vmatpush1.msra.mxu0 0.0
        %2036 = vmatprep.subr.mxu0 0.0
        %2037 = vmatpush1.msra.mxu0 0.0
        %2038 = vmatprep.subr.mxu0 0.0
        %2039 = vmatpush1.msra.mxu0 0.0
        %2040 = vmatprep.subr.mxu0 0.0
        %2041 = vmatpush1.msra.mxu0 0.0
        %2042 = vmatprep.subr.mxu0 0.0
        %2043 = vmatpush1.msra.mxu0 0.0
        %2044 = vmatprep.subr.mxu0 0.0
        %2045 = vmatpush1.msra.mxu0 0.0
        %2046 = vmatprep.subr.mxu0 0.0
        %2047 = vmatpush1.msra.mxu0 0.0
        %2048 = vmatprep.subr.mxu0 0.0
        %2049 = vmatpush1.msra.mxu0 0.0
        %2050 = vmatprep.subr.mxu0 0.0
        %2051 = vmatpush1.msra.mxu0 0.0
        %2052 = vmatprep.subr.mxu0 0.0
        %2053 = vmatpush1.msra.mxu0 0.0
        %2054 = vmatprep.subr.mxu0 0.0
        %2055 = vmatpush1.msra.mxu0 0.0
        %2056 = vmatprep.subr.mxu0 0.0
        %2057 = vmatpush1.msra.mxu0 0.0
        %2058 = vmatprep.subr.mxu0 0.0
        %2059 = vmatpush1.msra.mxu0 0.0
        %2060 = vmatprep.subr.mxu0 0.0
        %2061 = vmatpush1.msra.mxu0 0.0
        %2062 = vmatprep.subr.mxu0 0.0
        %2063 = vmatpush1.msra.mxu0 0.0
        %2064 = vmatprep.subr.mxu0 0.0
        %2065 = vmatpush1.msra.mxu0 0.0
        %2066 = vmatprep.mubr.f32.mxu0 0.0
        %2067 = vmatmul.mubr.f32.gmra.mrb[0].mxu0 %v479
        %v2068 = vpop.f32.mrb[0].mxu0
        %v2069 = vadd.f32 0.0, %v2068
        %v2070 = vpop.f32.mrb[0].mxu0
        %2071 = vdwg.mxu0
        %v2072 = vadd.f32 %v1994, %v2069
        %2073 = vrot.lane.b32.xlu0 %v1998, 127
        %v2074 = vpop.permute.xlu0 %2073
        %v2075 = vsel %vm242, %v2074, 0
        %2077 = vmatprep.subr.mxu0 0.0
        %2078 = vmatpush1.msra.mxu0 %v2075
        %2079 = vmatprep.subr.mxu0 0.0
        %2080 = vmatpush1.msra.mxu0 0.0
        %2081 = vmatprep.subr.mxu0 0.0
        %2082 = vmatpush1.msra.mxu0 0.0
        %2083 = vmatprep.subr.mxu0 0.0
        %2084 = vmatpush1.msra.mxu0 0.0
        %2085 = vmatprep.subr.mxu0 0.0
        %2086 = vmatpush1.msra.mxu0 0.0
        %2087 = vmatprep.subr.mxu0 0.0
        %2088 = vmatpush1.msra.mxu0 0.0
        %2089 = vmatprep.subr.mxu0 0.0
        %2090 = vmatpush1.msra.mxu0 0.0
        %2091 = vmatprep.subr.mxu0 0.0
        %2092 = vmatpush1.msra.mxu0 0.0
        %2093 = vmatprep.subr.mxu0 0.0
        %2094 = vmatpush1.msra.mxu0 0.0
        %2095 = vmatprep.subr.mxu0 0.0
        %2096 = vmatpush1.msra.mxu0 0.0
        %2097 = vmatprep.subr.mxu0 0.0
        %2098 = vmatpush1.msra.mxu0 0.0
        %2099 = vmatprep.subr.mxu0 0.0
        %2100 = vmatpush1.msra.mxu0 0.0
        %2101 = vmatprep.subr.mxu0 0.0
        %2102 = vmatpush1.msra.mxu0 0.0
        %2103 = vmatprep.subr.mxu0 0.0
        %2104 = vmatpush1.msra.mxu0 0.0
        %2105 = vmatprep.subr.mxu0 0.0
        %2106 = vmatpush1.msra.mxu0 0.0
        %2107 = vmatprep.subr.mxu0 0.0
        %2108 = vmatpush1.msra.mxu0 0.0
        %2109 = vmatprep.subr.mxu0 0.0
        %2110 = vmatpush1.msra.mxu0 0.0
        %2111 = vmatprep.subr.mxu0 0.0
        %2112 = vmatpush1.msra.mxu0 0.0
        %2113 = vmatprep.subr.mxu0 0.0
        %2114 = vmatpush1.msra.mxu0 0.0
        %2115 = vmatprep.subr.mxu0 0.0
        %2116 = vmatpush1.msra.mxu0 0.0
        %2117 = vmatprep.subr.mxu0 0.0
        %2118 = vmatpush1.msra.mxu0 0.0
        %2119 = vmatprep.subr.mxu0 0.0
        %2120 = vmatpush1.msra.mxu0 0.0
        %2121 = vmatprep.subr.mxu0 0.0
        %2122 = vmatpush1.msra.mxu0 0.0
        %2123 = vmatprep.subr.mxu0 0.0
        %2124 = vmatpush1.msra.mxu0 0.0
        %2125 = vmatprep.subr.mxu0 0.0
        %2126 = vmatpush1.msra.mxu0 0.0
        %2127 = vmatprep.subr.mxu0 0.0
        %2128 = vmatpush1.msra.mxu0 0.0
        %2129 = vmatprep.subr.mxu0 0.0
        %2130 = vmatpush1.msra.mxu0 0.0
        %2131 = vmatprep.subr.mxu0 0.0
        %2132 = vmatpush1.msra.mxu0 0.0
        %2133 = vmatprep.subr.mxu0 0.0
        %2134 = vmatpush1.msra.mxu0 0.0
        %2135 = vmatprep.subr.mxu0 0.0
        %2136 = vmatpush1.msra.mxu0 0.0
        %2137 = vmatprep.subr.mxu0 0.0
        %2138 = vmatpush1.msra.mxu0 0.0
        %2139 = vmatprep.subr.mxu0 0.0
        %2140 = vmatpush1.msra.mxu0 0.0
        %2141 = vmatprep.mubr.f32.mxu0 0.0
        %2142 = vmatmul.mubr.f32.gmra.mrb[0].mxu0 %v558
        %v2143 = vpop.f32.mrb[0].mxu0
        %v2144 = vadd.f32 0.0, %v2143
        %v2145 = vpop.f32.mrb[0].mxu0
        %2146 = vdwg.mxu0
        %v2147 = vadd.f32 %v2072, %v2144
        %2148 = vrot.lane.b32.xlu0 %v1998, 126
        %v2149 = vpop.permute.xlu0 %2148
        %v2150 = vsel %vm242, %v2149, 0
        %2152 = vmatprep.subr.mxu0 0.0
        %2153 = vmatpush1.msra.mxu0 %v2150
        %2154 = vmatprep.subr.mxu0 0.0
        %2155 = vmatpush1.msra.mxu0 0.0
        %2156 = vmatprep.subr.mxu0 0.0
        %2157 = vmatpush1.msra.mxu0 0.0
        %2158 = vmatprep.subr.mxu0 0.0
        %2159 = vmatpush1.msra.mxu0 0.0
        %2160 = vmatprep.subr.mxu0 0.0
        %2161 = vmatpush1.msra.mxu0 0.0
        %2162 = vmatprep.subr.mxu0 0.0
        %2163 = vmatpush1.msra.mxu0 0.0
        %2164 = vmatprep.subr.mxu0 0.0
        %2165 = vmatpush1.msra.mxu0 0.0
        %2166 = vmatprep.subr.mxu0 0.0
        %2167 = vmatpush1.msra.mxu0 0.0
        %2168 = vmatprep.subr.mxu0 0.0
        %2169 = vmatpush1.msra.mxu0 0.0
        %2170 = vmatprep.subr.mxu0 0.0
        %2171 = vmatpush1.msra.mxu0 0.0
        %2172 = vmatprep.subr.mxu0 0.0
        %2173 = vmatpush1.msra.mxu0 0.0
        %2174 = vmatprep.subr.mxu0 0.0
        %2175 = vmatpush1.msra.mxu0 0.0
        %2176 = vmatprep.subr.mxu0 0.0
        %2177 = vmatpush1.msra.mxu0 0.0
        %2178 = vmatprep.subr.mxu0 0.0
        %2179 = vmatpush1.msra.mxu0 0.0
        %2180 = vmatprep.subr.mxu0 0.0
        %2181 = vmatpush1.msra.mxu0 0.0
        %2182 = vmatprep.subr.mxu0 0.0
        %2183 = vmatpush1.msra.mxu0 0.0
        %2184 = vmatprep.subr.mxu0 0.0
        %2185 = vmatpush1.msra.mxu0 0.0
        %2186 = vmatprep.subr.mxu0 0.0
        %2187 = vmatpush1.msra.mxu0 0.0
        %2188 = vmatprep.subr.mxu0 0.0
        %2189 = vmatpush1.msra.mxu0 0.0
        %2190 = vmatprep.subr.mxu0 0.0
        %2191 = vmatpush1.msra.mxu0 0.0
        %2192 = vmatprep.subr.mxu0 0.0
        %2193 = vmatpush1.msra.mxu0 0.0
        %2194 = vmatprep.subr.mxu0 0.0
        %2195 = vmatpush1.msra.mxu0 0.0
        %2196 = vmatprep.subr.mxu0 0.0
        %2197 = vmatpush1.msra.mxu0 0.0
        %2198 = vmatprep.subr.mxu0 0.0
        %2199 = vmatpush1.msra.mxu0 0.0
        %2200 = vmatprep.subr.mxu0 0.0
        %2201 = vmatpush1.msra.mxu0 0.0
        %2202 = vmatprep.subr.mxu0 0.0
        %2203 = vmatpush1.msra.mxu0 0.0
        %2204 = vmatprep.subr.mxu0 0.0
        %2205 = vmatpush1.msra.mxu0 0.0
        %2206 = vmatprep.subr.mxu0 0.0
        %2207 = vmatpush1.msra.mxu0 0.0
        %2208 = vmatprep.subr.mxu0 0.0
        %2209 = vmatpush1.msra.mxu0 0.0
        %2210 = vmatprep.subr.mxu0 0.0
        %2211 = vmatpush1.msra.mxu0 0.0
        %2212 = vmatprep.subr.mxu0 0.0
        %2213 = vmatpush1.msra.mxu0 0.0
        %2214 = vmatprep.subr.mxu0 0.0
        %2215 = vmatpush1.msra.mxu0 0.0
        %2216 = vmatprep.mubr.f32.mxu0 0.0
        %2217 = vmatmul.mubr.f32.gmra.mrb[0].mxu0 %v636
        %v2218 = vpop.f32.mrb[0].mxu0
        %v2219 = vadd.f32 0.0, %v2218
        %v2220 = vpop.f32.mrb[0].mxu0
        %2221 = vdwg.mxu0
        %v2222 = vadd.f32 %v2147, %v2219
        %s2223 = sadd.s32 %s233, 4
        %s2224 = sld [smem:[#allocation3 + %s2223]]
        %s2225 = smul.u32 %s2224, 4
        %s2226 = scalar_lea.vmem %s187, %s2225 [#allocation4]
        %v2227 = vld [vmem:[%s2226] sm:$0xf]
        %v2229 = vsel %vm242, %v2227, 0
        %2231 = vmatprep.subr.mxu0 0.0
        %2232 = vmatpush1.msra.mxu0 %v2229
        %2233 = vmatprep.subr.mxu0 0.0
        %2234 = vmatpush1.msra.mxu0 0.0
        %2235 = vmatprep.subr.mxu0 0.0
        %2236 = vmatpush1.msra.mxu0 0.0
        %2237 = vmatprep.subr.mxu0 0.0
        %2238 = vmatpush1.msra.mxu0 0.0
        %2239 = vmatprep.subr.mxu0 0.0
        %2240 = vmatpush1.msra.mxu0 0.0
        %2241 = vmatprep.subr.mxu0 0.0
        %2242 = vmatpush1.msra.mxu0 0.0
        %2243 = vmatprep.subr.mxu0 0.0
        %2244 = vmatpush1.msra.mxu0 0.0
        %2245 = vmatprep.subr.mxu0 0.0
        %2246 = vmatpush1.msra.mxu0 0.0
        %2247 = vmatprep.subr.mxu0 0.0
        %2248 = vmatpush1.msra.mxu0 0.0
        %2249 = vmatprep.subr.mxu0 0.0
        %2250 = vmatpush1.msra.mxu0 0.0
        %2251 = vmatprep.subr.mxu0 0.0
        %2252 = vmatpush1.msra.mxu0 0.0
        %2253 = vmatprep.subr.mxu0 0.0
        %2254 = vmatpush1.msra.mxu0 0.0
        %2255 = vmatprep.subr.mxu0 0.0
        %2256 = vmatpush1.msra.mxu0 0.0
        %2257 = vmatprep.subr.mxu0 0.0
        %2258 = vmatpush1.msra.mxu0 0.0
        %2259 = vmatprep.subr.mxu0 0.0
        %2260 = vmatpush1.msra.mxu0 0.0
        %2261 = vmatprep.subr.mxu0 0.0
        %2262 = vmatpush1.msra.mxu0 0.0
        %2263 = vmatprep.subr.mxu0 0.0
        %2264 = vmatpush1.msra.mxu0 0.0
        %2265 = vmatprep.subr.mxu0 0.0
        %2266 = vmatpush1.msra.mxu0 0.0
        %2267 = vmatprep.subr.mxu0 0.0
        %2268 = vmatpush1.msra.mxu0 0.0
        %2269 = vmatprep.subr.mxu0 0.0
        %2270 = vmatpush1.msra.mxu0 0.0
        %2271 = vmatprep.subr.mxu0 0.0
        %2272 = vmatpush1.msra.mxu0 0.0
        %2273 = vmatprep.subr.mxu0 0.0
        %2274 = vmatpush1.msra.mxu0 0.0
        %2275 = vmatprep.subr.mxu0 0.0
        %2276 = vmatpush1.msra.mxu0 0.0
        %2277 = vmatprep.subr.mxu0 0.0
        %2278 = vmatpush1.msra.mxu0 0.0
        %2279 = vmatprep.subr.mxu0 0.0
        %2280 = vmatpush1.msra.mxu0 0.0
        %2281 = vmatprep.subr.mxu0 0.0
        %2282 = vmatpush1.msra.mxu0 0.0
        %2283 = vmatprep.subr.mxu0 0.0
        %2284 = vmatpush1.msra.mxu0 0.0
        %2285 = vmatprep.subr.mxu0 0.0
        %2286 = vmatpush1.msra.mxu0 0.0
        %2287 = vmatprep.subr.mxu0 0.0
        %2288 = vmatpush1.msra.mxu0 0.0
        %2289 = vmatprep.subr.mxu0 0.0
        %2290 = vmatpush1.msra.mxu0 0.0
        %2291 = vmatprep.subr.mxu0 0.0
        %2292 = vmatpush1.msra.mxu0 0.0
        %2293 = vmatprep.subr.mxu0 0.0
        %2294 = vmatpush1.msra.mxu0 0.0
        %2295 = vmatprep.mubr.f32.mxu0 0.0
        %2296 = vmatmul.mubr.f32.gmra.mrb[0].mxu0 %v717
        %v2297 = vpop.f32.mrb[0].mxu0
        %v2298 = vadd.f32 0.0, %v2297
        %v2299 = vpop.f32.mrb[0].mxu0
        %2300 = vdwg.mxu0
        %v2301 = vadd.f32 %v2222, %v2298
        %2302 = vrot.lane.b32.xlu0 %v2227, 127
        %v2303 = vpop.permute.xlu0 %2302
        %v2304 = vsel %vm242, %v2303, 0
        %2306 = vmatprep.subr.mxu0 0.0
        %2307 = vmatpush1.msra.mxu0 %v2304
        %2308 = vmatprep.subr.mxu0 0.0
        %2309 = vmatpush1.msra.mxu0 0.0
        %2310 = vmatprep.subr.mxu0 0.0
        %2311 = vmatpush1.msra.mxu0 0.0
        %2312 = vmatprep.subr.mxu0 0.0
        %2313 = vmatpush1.msra.mxu0 0.0
        %2314 = vmatprep.subr.mxu0 0.0
        %2315 = vmatpush1.msra.mxu0 0.0
        %2316 = vmatprep.subr.mxu0 0.0
        %2317 = vmatpush1.msra.mxu0 0.0
        %2318 = vmatprep.subr.mxu0 0.0
        %2319 = vmatpush1.msra.mxu0 0.0
        %2320 = vmatprep.subr.mxu0 0.0
        %2321 = vmatpush1.msra.mxu0 0.0
        %2322 = vmatprep.subr.mxu0 0.0
        %2323 = vmatpush1.msra.mxu0 0.0
        %2324 = vmatprep.subr.mxu0 0.0
        %2325 = vmatpush1.msra.mxu0 0.0
        %2326 = vmatprep.subr.mxu0 0.0
        %2327 = vmatpush1.msra.mxu0 0.0
        %2328 = vmatprep.subr.mxu0 0.0
        %2329 = vmatpush1.msra.mxu0 0.0
        %2330 = vmatprep.subr.mxu0 0.0
        %2331 = vmatpush1.msra.mxu0 0.0
        %2332 = vmatprep.subr.mxu0 0.0
        %2333 = vmatpush1.msra.mxu0 0.0
        %2334 = vmatprep.subr.mxu0 0.0
        %2335 = vmatpush1.msra.mxu0 0.0
        %2336 = vmatprep.subr.mxu0 0.0
        %2337 = vmatpush1.msra.mxu0 0.0
        %2338 = vmatprep.subr.mxu0 0.0
        %2339 = vmatpush1.msra.mxu0 0.0
        %2340 = vmatprep.subr.mxu0 0.0
        %2341 = vmatpush1.msra.mxu0 0.0
        %2342 = vmatprep.subr.mxu0 0.0
        %2343 = vmatpush1.msra.mxu0 0.0
        %2344 = vmatprep.subr.mxu0 0.0
        %2345 = vmatpush1.msra.mxu0 0.0
        %2346 = vmatprep.subr.mxu0 0.0
        %2347 = vmatpush1.msra.mxu0 0.0
        %2348 = vmatprep.subr.mxu0 0.0
        %2349 = vmatpush1.msra.mxu0 0.0
        %2350 = vmatprep.subr.mxu0 0.0
        %2351 = vmatpush1.msra.mxu0 0.0
        %2352 = vmatprep.subr.mxu0 0.0
        %2353 = vmatpush1.msra.mxu0 0.0
        %2354 = vmatprep.subr.mxu0 0.0
        %2355 = vmatpush1.msra.mxu0 0.0
        %2356 = vmatprep.subr.mxu0 0.0
        %2357 = vmatpush1.msra.mxu0 0.0
        %2358 = vmatprep.subr.mxu0 0.0
        %2359 = vmatpush1.msra.mxu0 0.0
        %2360 = vmatprep.subr.mxu0 0.0
        %2361 = vmatpush1.msra.mxu0 0.0
        %2362 = vmatprep.subr.mxu0 0.0
        %2363 = vmatpush1.msra.mxu0 0.0
        %2364 = vmatprep.subr.mxu0 0.0
        %2365 = vmatpush1.msra.mxu0 0.0
        %2366 = vmatprep.subr.mxu0 0.0
        %2367 = vmatpush1.msra.mxu0 0.0
        %2368 = vmatprep.subr.mxu0 0.0
        %2369 = vmatpush1.msra.mxu0 0.0
        %2370 = vmatprep.mubr.f32.mxu0 0.0
        %2371 = vmatmul.mubr.f32.gmra.mrb[0].mxu0 %v796
        %v2372 = vpop.f32.mrb[0].mxu0
        %v2373 = vadd.f32 0.0, %v2372
        %v2374 = vpop.f32.mrb[0].mxu0
        %2375 = vdwg.mxu0
        %v2376 = vadd.f32 %v2301, %v2373
        %2377 = vrot.lane.b32.xlu0 %v2227, 126
        %v2378 = vpop.permute.xlu0 %2377
        %v2379 = vsel %vm242, %v2378, 0
        %2381 = vmatprep.subr.mxu0 0.0
        %2382 = vmatpush1.msra.mxu0 %v2379
        %2383 = vmatprep.subr.mxu0 0.0
        %2384 = vmatpush1.msra.mxu0 0.0
        %2385 = vmatprep.subr.mxu0 0.0
        %2386 = vmatpush1.msra.mxu0 0.0
        %2387 = vmatprep.subr.mxu0 0.0
        %2388 = vmatpush1.msra.mxu0 0.0
        %2389 = vmatprep.subr.mxu0 0.0
        %2390 = vmatpush1.msra.mxu0 0.0
        %2391 = vmatprep.subr.mxu0 0.0
        %2392 = vmatpush1.msra.mxu0 0.0
        %2393 = vmatprep.subr.mxu0 0.0
        %2394 = vmatpush1.msra.mxu0 0.0
        %2395 = vmatprep.subr.mxu0 0.0
        %2396 = vmatpush1.msra.mxu0 0.0
        %2397 = vmatprep.subr.mxu0 0.0
        %2398 = vmatpush1.msra.mxu0 0.0
        %2399 = vmatprep.subr.mxu0 0.0
        %2400 = vmatpush1.msra.mxu0 0.0
        %2401 = vmatprep.subr.mxu0 0.0
        %2402 = vmatpush1.msra.mxu0 0.0
        %2403 = vmatprep.subr.mxu0 0.0
        %2404 = vmatpush1.msra.mxu0 0.0
        %2405 = vmatprep.subr.mxu0 0.0
        %2406 = vmatpush1.msra.mxu0 0.0
        %2407 = vmatprep.subr.mxu0 0.0
        %2408 = vmatpush1.msra.mxu0 0.0
        %2409 = vmatprep.subr.mxu0 0.0
        %2410 = vmatpush1.msra.mxu0 0.0
        %2411 = vmatprep.subr.mxu0 0.0
        %2412 = vmatpush1.msra.mxu0 0.0
        %2413 = vmatprep.subr.mxu0 0.0
        %2414 = vmatpush1.msra.mxu0 0.0
        %2415 = vmatprep.subr.mxu0 0.0
        %2416 = vmatpush1.msra.mxu0 0.0
        %2417 = vmatprep.subr.mxu0 0.0
        %2418 = vmatpush1.msra.mxu0 0.0
        %2419 = vmatprep.subr.mxu0 0.0
        %2420 = vmatpush1.msra.mxu0 0.0
        %2421 = vmatprep.subr.mxu0 0.0
        %2422 = vmatpush1.msra.mxu0 0.0
        %2423 = vmatprep.subr.mxu0 0.0
        %2424 = vmatpush1.msra.mxu0 0.0
        %2425 = vmatprep.subr.mxu0 0.0
        %2426 = vmatpush1.msra.mxu0 0.0
        %2427 = vmatprep.subr.mxu0 0.0
        %2428 = vmatpush1.msra.mxu0 0.0
        %2429 = vmatprep.subr.mxu0 0.0
        %2430 = vmatpush1.msra.mxu0 0.0
        %2431 = vmatprep.subr.mxu0 0.0
        %2432 = vmatpush1.msra.mxu0 0.0
        %2433 = vmatprep.subr.mxu0 0.0
        %2434 = vmatpush1.msra.mxu0 0.0
        %2435 = vmatprep.subr.mxu0 0.0
        %2436 = vmatpush1.msra.mxu0 0.0
        %2437 = vmatprep.subr.mxu0 0.0
        %2438 = vmatpush1.msra.mxu0 0.0
        %2439 = vmatprep.subr.mxu0 0.0
        %2440 = vmatpush1.msra.mxu0 0.0
        %2441 = vmatprep.subr.mxu0 0.0
        %2442 = vmatpush1.msra.mxu0 0.0
        %2443 = vmatprep.subr.mxu0 0.0
        %2444 = vmatpush1.msra.mxu0 0.0
        %2445 = vmatprep.mubr.f32.mxu0 0.0
        %2446 = vmatmul.mubr.f32.gmra.mrb[0].mxu0 %v874
        %v2447 = vpop.f32.mrb[0].mxu0
        %v2448 = vadd.f32 0.0, %v2447
        %v2449 = vpop.f32.mrb[0].mxu0
        %2450 = vdwg.mxu0
        %v2451 = vadd.f32 %v2376, %v2448
        %v2453 = vcombine.high %v2451, %v2451
        %v2455 = vunpack.c.l.s4 1966171168
        %v2456 = vunpack.c.0.s8 %v2455
        %v2457 = vlaneseq
        %v2458 = vshrl.u32 %v2457, 7
        %v2459 = vsub.s32 %v2456, %v2458
        %v2460 = vrot.slane %v2451, %v2459
        %v2462 = vunpack.c.l.s4 1966171168
        %v2463 = vunpack.c.0.s8 %v2462
        %v2464 = vlaneseq
        %v2465 = vshrl.u32 %v2464, 7
        %v2466 = vsub.s32 %v2463, %v2465
        %v2467 = vrot.slane %v2453, %v2466
        %v2468 = vcombine.high %v2460, %v2460
        %v2469 = vcombine.high %v2467, %v2467
        %v2471 = vunpack.c.l.s4 1966171168
        %v2472 = vunpack.c.0.s8 %v2471
        %v2473 = vlaneseq
        %v2474 = vshrl.u32 %v2473, 7
        %v2475 = vsub.s32 %v2472, %v2474
        %v2476 = vrot.slane %v2460, %v2475
        %v2478 = vunpack.c.l.s4 1966171168
        %v2479 = vunpack.c.0.s8 %v2478
        %v2480 = vlaneseq
        %v2481 = vshrl.u32 %v2480, 7
        %v2482 = vsub.s32 %v2479, %v2481
        %v2483 = vrot.slane %v2467, %v2482
        %v2485 = vunpack.c.l.s4 1966171168
        %v2486 = vunpack.c.0.s8 %v2485
        %v2487 = vlaneseq
        %v2488 = vshrl.u32 %v2487, 7
        %v2489 = vsub.s32 %v2486, %v2488
        %v2490 = vrot.slane %v2468, %v2489
        %v2492 = vunpack.c.l.s4 1966171168
        %v2493 = vunpack.c.0.s8 %v2492
        %v2494 = vlaneseq
        %v2495 = vshrl.u32 %v2494, 7
        %v2496 = vsub.s32 %v2493, %v2495
        %v2497 = vrot.slane %v2469, %v2496
        %v2498 = vcombine.high %v2476, %v2476
        %v2499 = vcombine.high %v2483, %v2483
        %v2500 = vcombine.high %v2490, %v2490
        %v2501 = vcombine.high %v2497, %v2497
        %2510 = vst.msk [vmem:[%s209 + $0x2] sm:$0x1] %vm1007, %v2476
        %2511 = vst.msk [vmem:[%s209 + $0xa] sm:$0x1] %vm1007, %v2490
        %2512 = vst.msk [vmem:[%s209 + $0x12] sm:$0x1] %vm1007, %v2498
        %2513 = vst.msk [vmem:[%s209 + $0x1a] sm:$0x1] %vm1007, %v2500
        %2514 = vst.msk [vmem:[%s209 + $0x22] sm:$0x1] %vm1007, %v2483
        %2515 = vst.msk [vmem:[%s209 + $0x2a] sm:$0x1] %vm1007, %v2497
        %2516 = vst.msk [vmem:[%s209 + $0x32] sm:$0x1] %vm1007, %v2499
        %2517 = vst.msk [vmem:[%s209 + $0x3a] sm:$0x1] %vm1007, %v2501
        %s2518 = sld [smem:[#allocation3 + %s1472]]
        %s2519 = smul.u32 %s2518, 4
        %s2520 = scalar_lea.vmem %s187, %s2519 [#allocation4]
        %v2521 = vld [vmem:[%s2520] sm:$0xf]
        %v2523 = vsel %vm242, %v2521, 0
        %2525 = vmatprep.subr.mxu0 0.0
        %2526 = vmatpush1.msra.mxu0 %v2523
        %2527 = vmatprep.subr.mxu0 0.0
        %2528 = vmatpush1.msra.mxu0 0.0
        %2529 = vmatprep.subr.mxu0 0.0
        %2530 = vmatpush1.msra.mxu0 0.0
        %2531 = vmatprep.subr.mxu0 0.0
        %2532 = vmatpush1.msra.mxu0 0.0
        %2533 = vmatprep.subr.mxu0 0.0
        %2534 = vmatpush1.msra.mxu0 0.0
        %2535 = vmatprep.subr.mxu0 0.0
        %2536 = vmatpush1.msra.mxu0 0.0
        %2537 = vmatprep.subr.mxu0 0.0
        %2538 = vmatpush1.msra.mxu0 0.0
        %2539 = vmatprep.subr.mxu0 0.0
        %2540 = vmatpush1.msra.mxu0 0.0
        %2541 = vmatprep.subr.mxu0 0.0
        %2542 = vmatpush1.msra.mxu0 0.0
        %2543 = vmatprep.subr.mxu0 0.0
        %2544 = vmatpush1.msra.mxu0 0.0
        %2545 = vmatprep.subr.mxu0 0.0
        %2546 = vmatpush1.msra.mxu0 0.0
        %2547 = vmatprep.subr.mxu0 0.0
        %2548 = vmatpush1.msra.mxu0 0.0
        %2549 = vmatprep.subr.mxu0 0.0
        %2550 = vmatpush1.msra.mxu0 0.0
        %2551 = vmatprep.subr.mxu0 0.0
        %2552 = vmatpush1.msra.mxu0 0.0
        %2553 = vmatprep.subr.mxu0 0.0
        %2554 = vmatpush1.msra.mxu0 0.0
        %2555 = vmatprep.subr.mxu0 0.0
        %2556 = vmatpush1.msra.mxu0 0.0
        %2557 = vmatprep.subr.mxu0 0.0
        %2558 = vmatpush1.msra.mxu0 0.0
        %2559 = vmatprep.subr.mxu0 0.0
        %2560 = vmatpush1.msra.mxu0 0.0
        %2561 = vmatprep.subr.mxu0 0.0
        %2562 = vmatpush1.msra.mxu0 0.0
        %2563 = vmatprep.subr.mxu0 0.0
        %2564 = vmatpush1.msra.mxu0 0.0
        %2565 = vmatprep.subr.mxu0 0.0
        %2566 = vmatpush1.msra.mxu0 0.0
        %2567 = vmatprep.subr.mxu0 0.0
        %2568 = vmatpush1.msra.mxu0 0.0
        %2569 = vmatprep.subr.mxu0 0.0
        %2570 = vmatpush1.msra.mxu0 0.0
        %2571 = vmatprep.subr.mxu0 0.0
        %2572 = vmatpush1.msra.mxu0 0.0
        %2573 = vmatprep.subr.mxu0 0.0
        %2574 = vmatpush1.msra.mxu0 0.0
        %2575 = vmatprep.subr.mxu0 0.0
        %2576 = vmatpush1.msra.mxu0 0.0
        %2577 = vmatprep.subr.mxu0 0.0
        %2578 = vmatpush1.msra.mxu0 0.0
        %2579 = vmatprep.subr.mxu0 0.0
        %2580 = vmatpush1.msra.mxu0 0.0
        %2581 = vmatprep.subr.mxu0 0.0
        %2582 = vmatpush1.msra.mxu0 0.0
        %2583 = vmatprep.subr.mxu0 0.0
        %2584 = vmatpush1.msra.mxu0 0.0
        %2585 = vmatprep.subr.mxu0 0.0
        %2586 = vmatpush1.msra.mxu0 0.0
        %2587 = vmatprep.subr.mxu0 0.0
        %2588 = vmatpush1.msra.mxu0 0.0
        %2589 = vmatprep.mubr.f32.mxu0 0.0
        %2590 = vmatmul.mubr.f32.gmra.mrb[0].mxu0 %v240
        %v2591 = vpop.f32.mrb[0].mxu0
        %v2592 = vadd.f32 0.0, %v2591
        %v2593 = vpop.f32.mrb[0].mxu0
        %2594 = vdwg.mxu0
        %v2595 = vadd.f32 %v231, %v2592
        %2596 = vrot.lane.b32.xlu0 %v2521, 127
        %v2597 = vpop.permute.xlu0 %2596
        %v2598 = vsel %vm242, %v2597, 0
        %2600 = vmatprep.subr.mxu0 0.0
        %2601 = vmatpush1.msra.mxu0 %v2598
        %2602 = vmatprep.subr.mxu0 0.0
        %2603 = vmatpush1.msra.mxu0 0.0
        %2604 = vmatprep.subr.mxu0 0.0
        %2605 = vmatpush1.msra.mxu0 0.0
        %2606 = vmatprep.subr.mxu0 0.0
        %2607 = vmatpush1.msra.mxu0 0.0
        %2608 = vmatprep.subr.mxu0 0.0
        %2609 = vmatpush1.msra.mxu0 0.0
        %2610 = vmatprep.subr.mxu0 0.0
        %2611 = vmatpush1.msra.mxu0 0.0
        %2612 = vmatprep.subr.mxu0 0.0
        %2613 = vmatpush1.msra.mxu0 0.0
        %2614 = vmatprep.subr.mxu0 0.0
        %2615 = vmatpush1.msra.mxu0 0.0
        %2616 = vmatprep.subr.mxu0 0.0
        %2617 = vmatpush1.msra.mxu0 0.0
        %2618 = vmatprep.subr.mxu0 0.0
        %2619 = vmatpush1.msra.mxu0 0.0
        %2620 = vmatprep.subr.mxu0 0.0
        %2621 = vmatpush1.msra.mxu0 0.0
        %2622 = vmatprep.subr.mxu0 0.0
        %2623 = vmatpush1.msra.mxu0 0.0
        %2624 = vmatprep.subr.mxu0 0.0
        %2625 = vmatpush1.msra.mxu0 0.0
        %2626 = vmatprep.subr.mxu0 0.0
        %2627 = vmatpush1.msra.mxu0 0.0
        %2628 = vmatprep.subr.mxu0 0.0
        %2629 = vmatpush1.msra.mxu0 0.0
        %2630 = vmatprep.subr.mxu0 0.0
        %2631 = vmatpush1.msra.mxu0 0.0
        %2632 = vmatprep.subr.mxu0 0.0
        %2633 = vmatpush1.msra.mxu0 0.0
        %2634 = vmatprep.subr.mxu0 0.0
        %2635 = vmatpush1.msra.mxu0 0.0
        %2636 = vmatprep.subr.mxu0 0.0
        %2637 = vmatpush1.msra.mxu0 0.0
        %2638 = vmatprep.subr.mxu0 0.0
        %2639 = vmatpush1.msra.mxu0 0.0
        %2640 = vmatprep.subr.mxu0 0.0
        %2641 = vmatpush1.msra.mxu0 0.0
        %2642 = vmatprep.subr.mxu0 0.0
        %2643 = vmatpush1.msra.mxu0 0.0
        %2644 = vmatprep.subr.mxu0 0.0
        %2645 = vmatpush1.msra.mxu0 0.0
        %2646 = vmatprep.subr.mxu0 0.0
        %2647 = vmatpush1.msra.mxu0 0.0
        %2648 = vmatprep.subr.mxu0 0.0
        %2649 = vmatpush1.msra.mxu0 0.0
        %2650 = vmatprep.subr.mxu0 0.0
        %2651 = vmatpush1.msra.mxu0 0.0
        %2652 = vmatprep.subr.mxu0 0.0
        %2653 = vmatpush1.msra.mxu0 0.0
        %2654 = vmatprep.subr.mxu0 0.0
        %2655 = vmatpush1.msra.mxu0 0.0
        %2656 = vmatprep.subr.mxu0 0.0
        %2657 = vmatpush1.msra.mxu0 0.0
        %2658 = vmatprep.subr.mxu0 0.0
        %2659 = vmatpush1.msra.mxu0 0.0
        %2660 = vmatprep.subr.mxu0 0.0
        %2661 = vmatpush1.msra.mxu0 0.0
        %2662 = vmatprep.subr.mxu0 0.0
        %2663 = vmatpush1.msra.mxu0 0.0
        %2664 = vmatprep.mubr.f32.mxu0 0.0
        %2665 = vmatmul.mubr.f32.gmra.mrb[0].mxu0 %v320
        %v2666 = vpop.f32.mrb[0].mxu0
        %v2667 = vadd.f32 0.0, %v2666
        %v2668 = vpop.f32.mrb[0].mxu0
        %2669 = vdwg.mxu0
        %v2670 = vadd.f32 %v2595, %v2667
        %2671 = vrot.lane.b32.xlu0 %v2521, 126
        %v2672 = vpop.permute.xlu0 %2671
        %v2673 = vsel %vm242, %v2672, 0
        %2675 = vmatprep.subr.mxu0 0.0
        %2676 = vmatpush1.msra.mxu0 %v2673
        %2677 = vmatprep.subr.mxu0 0.0
        %2678 = vmatpush1.msra.mxu0 0.0
        %2679 = vmatprep.subr.mxu0 0.0
        %2680 = vmatpush1.msra.mxu0 0.0
        %2681 = vmatprep.subr.mxu0 0.0
        %2682 = vmatpush1.msra.mxu0 0.0
        %2683 = vmatprep.subr.mxu0 0.0
        %2684 = vmatpush1.msra.mxu0 0.0
        %2685 = vmatprep.subr.mxu0 0.0
        %2686 = vmatpush1.msra.mxu0 0.0
        %2687 = vmatprep.subr.mxu0 0.0
        %2688 = vmatpush1.msra.mxu0 0.0
        %2689 = vmatprep.subr.mxu0 0.0
        %2690 = vmatpush1.msra.mxu0 0.0
        %2691 = vmatprep.subr.mxu0 0.0
        %2692 = vmatpush1.msra.mxu0 0.0
        %2693 = vmatprep.subr.mxu0 0.0
        %2694 = vmatpush1.msra.mxu0 0.0
        %2695 = vmatprep.subr.mxu0 0.0
        %2696 = vmatpush1.msra.mxu0 0.0
        %2697 = vmatprep.subr.mxu0 0.0
        %2698 = vmatpush1.msra.mxu0 0.0
        %2699 = vmatprep.subr.mxu0 0.0
        %2700 = vmatpush1.msra.mxu0 0.0
        %2701 = vmatprep.subr.mxu0 0.0
        %2702 = vmatpush1.msra.mxu0 0.0
        %2703 = vmatprep.subr.mxu0 0.0
        %2704 = vmatpush1.msra.mxu0 0.0
        %2705 = vmatprep.subr.mxu0 0.0
        %2706 = vmatpush1.msra.mxu0 0.0
        %2707 = vmatprep.subr.mxu0 0.0
        %2708 = vmatpush1.msra.mxu0 0.0
        %2709 = vmatprep.subr.mxu0 0.0
        %2710 = vmatpush1.msra.mxu0 0.0
        %2711 = vmatprep.subr.mxu0 0.0
        %2712 = vmatpush1.msra.mxu0 0.0
        %2713 = vmatprep.subr.mxu0 0.0
        %2714 = vmatpush1.msra.mxu0 0.0
        %2715 = vmatprep.subr.mxu0 0.0
        %2716 = vmatpush1.msra.mxu0 0.0
        %2717 = vmatprep.subr.mxu0 0.0
        %2718 = vmatpush1.msra.mxu0 0.0
        %2719 = vmatprep.subr.mxu0 0.0
        %2720 = vmatpush1.msra.mxu0 0.0
        %2721 = vmatprep.subr.mxu0 0.0
        %2722 = vmatpush1.msra.mxu0 0.0
        %2723 = vmatprep.subr.mxu0 0.0
        %2724 = vmatpush1.msra.mxu0 0.0
        %2725 = vmatprep.subr.mxu0 0.0
        %2726 = vmatpush1.msra.mxu0 0.0
        %2727 = vmatprep.subr.mxu0 0.0
        %2728 = vmatpush1.msra.mxu0 0.0
        %2729 = vmatprep.subr.mxu0 0.0
        %2730 = vmatpush1.msra.mxu0 0.0
        %2731 = vmatprep.subr.mxu0 0.0
        %2732 = vmatpush1.msra.mxu0 0.0
        %2733 = vmatprep.subr.mxu0 0.0
        %2734 = vmatpush1.msra.mxu0 0.0
        %2735 = vmatprep.subr.mxu0 0.0
        %2736 = vmatpush1.msra.mxu0 0.0
        %2737 = vmatprep.subr.mxu0 0.0
        %2738 = vmatpush1.msra.mxu0 0.0
        %2739 = vmatprep.mubr.f32.mxu0 0.0
        %2740 = vmatmul.mubr.f32.gmra.mrb[0].mxu0 %v398
        %v2741 = vpop.f32.mrb[0].mxu0
        %v2742 = vadd.f32 0.0, %v2741
        %v2743 = vpop.f32.mrb[0].mxu0
        %2744 = vdwg.mxu0
        %v2745 = vadd.f32 %v2670, %v2742
        %s2746 = sld [smem:[#allocation3 + %s2223]]
        %s2747 = smul.u32 %s2746, 4
        %s2748 = scalar_lea.vmem %s187, %s2747 [#allocation4]
        %v2749 = vld [vmem:[%s2748] sm:$0xf]
        %v2751 = vsel %vm242, %v2749, 0
        %2753 = vmatprep.subr.mxu0 0.0
        %2754 = vmatpush1.msra.mxu0 %v2751
        %2755 = vmatprep.subr.mxu0 0.0
        %2756 = vmatpush1.msra.mxu0 0.0
        %2757 = vmatprep.subr.mxu0 0.0
        %2758 = vmatpush1.msra.mxu0 0.0
        %2759 = vmatprep.subr.mxu0 0.0
        %2760 = vmatpush1.msra.mxu0 0.0
        %2761 = vmatprep.subr.mxu0 0.0
        %2762 = vmatpush1.msra.mxu0 0.0
        %2763 = vmatprep.subr.mxu0 0.0
        %2764 = vmatpush1.msra.mxu0 0.0
        %2765 = vmatprep.subr.mxu0 0.0
        %2766 = vmatpush1.msra.mxu0 0.0
        %2767 = vmatprep.subr.mxu0 0.0
        %2768 = vmatpush1.msra.mxu0 0.0
        %2769 = vmatprep.subr.mxu0 0.0
        %2770 = vmatpush1.msra.mxu0 0.0
        %2771 = vmatprep.subr.mxu0 0.0
        %2772 = vmatpush1.msra.mxu0 0.0
        %2773 = vmatprep.subr.mxu0 0.0
        %2774 = vmatpush1.msra.mxu0 0.0
        %2775 = vmatprep.subr.mxu0 0.0
        %2776 = vmatpush1.msra.mxu0 0.0
        %2777 = vmatprep.subr.mxu0 0.0
        %2778 = vmatpush1.msra.mxu0 0.0
        %2779 = vmatprep.subr.mxu0 0.0
        %2780 = vmatpush1.msra.mxu0 0.0
        %2781 = vmatprep.subr.mxu0 0.0
        %2782 = vmatpush1.msra.mxu0 0.0
        %2783 = vmatprep.subr.mxu0 0.0
        %2784 = vmatpush1.msra.mxu0 0.0
        %2785 = vmatprep.subr.mxu0 0.0
        %2786 = vmatpush1.msra.mxu0 0.0
        %2787 = vmatprep.subr.mxu0 0.0
        %2788 = vmatpush1.msra.mxu0 0.0
        %2789 = vmatprep.subr.mxu0 0.0
        %2790 = vmatpush1.msra.mxu0 0.0
        %2791 = vmatprep.subr.mxu0 0.0
        %2792 = vmatpush1.msra.mxu0 0.0
        %2793 = vmatprep.subr.mxu0 0.0
        %2794 = vmatpush1.msra.mxu0 0.0
        %2795 = vmatprep.subr.mxu0 0.0
        %2796 = vmatpush1.msra.mxu0 0.0
        %2797 = vmatprep.subr.mxu0 0.0
        %2798 = vmatpush1.msra.mxu0 0.0
        %2799 = vmatprep.subr.mxu0 0.0
        %2800 = vmatpush1.msra.mxu0 0.0
        %2801 = vmatprep.subr.mxu0 0.0
        %2802 = vmatpush1.msra.mxu0 0.0
        %2803 = vmatprep.subr.mxu0 0.0
        %2804 = vmatpush1.msra.mxu0 0.0
        %2805 = vmatprep.subr.mxu0 0.0
        %2806 = vmatpush1.msra.mxu0 0.0
        %2807 = vmatprep.subr.mxu0 0.0
        %2808 = vmatpush1.msra.mxu0 0.0
        %2809 = vmatprep.subr.mxu0 0.0
        %2810 = vmatpush1.msra.mxu0 0.0
        %2811 = vmatprep.subr.mxu0 0.0
        %2812 = vmatpush1.msra.mxu0 0.0
        %2813 = vmatprep.subr.mxu0 0.0
        %2814 = vmatpush1.msra.mxu0 0.0
        %2815 = vmatprep.subr.mxu0 0.0
        %2816 = vmatpush1.msra.mxu0 0.0
        %2817 = vmatprep.mubr.f32.mxu0 0.0
        %2818 = vmatmul.mubr.f32.gmra.mrb[0].mxu0 %v479
        %v2819 = vpop.f32.mrb[0].mxu0
        %v2820 = vadd.f32 0.0, %v2819
        %v2821 = vpop.f32.mrb[0].mxu0
        %2822 = vdwg.mxu0
        %v2823 = vadd.f32 %v2745, %v2820
        %2824 = vrot.lane.b32.xlu0 %v2749, 127
        %v2825 = vpop.permute.xlu0 %2824
        %v2826 = vsel %vm242, %v2825, 0
        %2828 = vmatprep.subr.mxu0 0.0
        %2829 = vmatpush1.msra.mxu0 %v2826
        %2830 = vmatprep.subr.mxu0 0.0
        %2831 = vmatpush1.msra.mxu0 0.0
        %2832 = vmatprep.subr.mxu0 0.0
        %2833 = vmatpush1.msra.mxu0 0.0
        %2834 = vmatprep.subr.mxu0 0.0
        %2835 = vmatpush1.msra.mxu0 0.0
        %2836 = vmatprep.subr.mxu0 0.0
        %2837 = vmatpush1.msra.mxu0 0.0
        %2838 = vmatprep.subr.mxu0 0.0
        %2839 = vmatpush1.msra.mxu0 0.0
        %2840 = vmatprep.subr.mxu0 0.0
        %2841 = vmatpush1.msra.mxu0 0.0
        %2842 = vmatprep.subr.mxu0 0.0
        %2843 = vmatpush1.msra.mxu0 0.0
        %2844 = vmatprep.subr.mxu0 0.0
        %2845 = vmatpush1.msra.mxu0 0.0
        %2846 = vmatprep.subr.mxu0 0.0
        %2847 = vmatpush1.msra.mxu0 0.0
        %2848 = vmatprep.subr.mxu0 0.0
        %2849 = vmatpush1.msra.mxu0 0.0
        %2850 = vmatprep.subr.mxu0 0.0
        %2851 = vmatpush1.msra.mxu0 0.0
        %2852 = vmatprep.subr.mxu0 0.0
        %2853 = vmatpush1.msra.mxu0 0.0
        %2854 = vmatprep.subr.mxu0 0.0
        %2855 = vmatpush1.msra.mxu0 0.0
        %2856 = vmatprep.subr.mxu0 0.0
        %2857 = vmatpush1.msra.mxu0 0.0
        %2858 = vmatprep.subr.mxu0 0.0
        %2859 = vmatpush1.msra.mxu0 0.0
        %2860 = vmatprep.subr.mxu0 0.0
        %2861 = vmatpush1.msra.mxu0 0.0
        %2862 = vmatprep.subr.mxu0 0.0
        %2863 = vmatpush1.msra.mxu0 0.0
        %2864 = vmatprep.subr.mxu0 0.0
        %2865 = vmatpush1.msra.mxu0 0.0
        %2866 = vmatprep.subr.mxu0 0.0
        %2867 = vmatpush1.msra.mxu0 0.0
        %2868 = vmatprep.subr.mxu0 0.0
        %2869 = vmatpush1.msra.mxu0 0.0
        %2870 = vmatprep.subr.mxu0 0.0
        %2871 = vmatpush1.msra.mxu0 0.0
        %2872 = vmatprep.subr.mxu0 0.0
        %2873 = vmatpush1.msra.mxu0 0.0
        %2874 = vmatprep.subr.mxu0 0.0
        %2875 = vmatpush1.msra.mxu0 0.0
        %2876 = vmatprep.subr.mxu0 0.0
        %2877 = vmatpush1.msra.mxu0 0.0
        %2878 = vmatprep.subr.mxu0 0.0
        %2879 = vmatpush1.msra.mxu0 0.0
        %2880 = vmatprep.subr.mxu0 0.0
        %2881 = vmatpush1.msra.mxu0 0.0
        %2882 = vmatprep.subr.mxu0 0.0
        %2883 = vmatpush1.msra.mxu0 0.0
        %2884 = vmatprep.subr.mxu0 0.0
        %2885 = vmatpush1.msra.mxu0 0.0
        %2886 = vmatprep.subr.mxu0 0.0
        %2887 = vmatpush1.msra.mxu0 0.0
        %2888 = vmatprep.subr.mxu0 0.0
        %2889 = vmatpush1.msra.mxu0 0.0
        %2890 = vmatprep.subr.mxu0 0.0
        %2891 = vmatpush1.msra.mxu0 0.0
        %2892 = vmatprep.mubr.f32.mxu0 0.0
        %2893 = vmatmul.mubr.f32.gmra.mrb[0].mxu0 %v558
        %v2894 = vpop.f32.mrb[0].mxu0
        %v2895 = vadd.f32 0.0, %v2894
        %v2896 = vpop.f32.mrb[0].mxu0
        %2897 = vdwg.mxu0
        %v2898 = vadd.f32 %v2823, %v2895
        %2899 = vrot.lane.b32.xlu0 %v2749, 126
        %v2900 = vpop.permute.xlu0 %2899
        %v2901 = vsel %vm242, %v2900, 0
        %2903 = vmatprep.subr.mxu0 0.0
        %2904 = vmatpush1.msra.mxu0 %v2901
        %2905 = vmatprep.subr.mxu0 0.0
        %2906 = vmatpush1.msra.mxu0 0.0
        %2907 = vmatprep.subr.mxu0 0.0
        %2908 = vmatpush1.msra.mxu0 0.0
        %2909 = vmatprep.subr.mxu0 0.0
        %2910 = vmatpush1.msra.mxu0 0.0
        %2911 = vmatprep.subr.mxu0 0.0
        %2912 = vmatpush1.msra.mxu0 0.0
        %2913 = vmatprep.subr.mxu0 0.0
        %2914 = vmatpush1.msra.mxu0 0.0
        %2915 = vmatprep.subr.mxu0 0.0
        %2916 = vmatpush1.msra.mxu0 0.0
        %2917 = vmatprep.subr.mxu0 0.0
        %2918 = vmatpush1.msra.mxu0 0.0
        %2919 = vmatprep.subr.mxu0 0.0
        %2920 = vmatpush1.msra.mxu0 0.0
        %2921 = vmatprep.subr.mxu0 0.0
        %2922 = vmatpush1.msra.mxu0 0.0
        %2923 = vmatprep.subr.mxu0 0.0
        %2924 = vmatpush1.msra.mxu0 0.0
        %2925 = vmatprep.subr.mxu0 0.0
        %2926 = vmatpush1.msra.mxu0 0.0
        %2927 = vmatprep.subr.mxu0 0.0
        %2928 = vmatpush1.msra.mxu0 0.0
        %2929 = vmatprep.subr.mxu0 0.0
        %2930 = vmatpush1.msra.mxu0 0.0
        %2931 = vmatprep.subr.mxu0 0.0
        %2932 = vmatpush1.msra.mxu0 0.0
        %2933 = vmatprep.subr.mxu0 0.0
        %2934 = vmatpush1.msra.mxu0 0.0
        %2935 = vmatprep.subr.mxu0 0.0
        %2936 = vmatpush1.msra.mxu0 0.0
        %2937 = vmatprep.subr.mxu0 0.0
        %2938 = vmatpush1.msra.mxu0 0.0
        %2939 = vmatprep.subr.mxu0 0.0
        %2940 = vmatpush1.msra.mxu0 0.0
        %2941 = vmatprep.subr.mxu0 0.0
        %2942 = vmatpush1.msra.mxu0 0.0
        %2943 = vmatprep.subr.mxu0 0.0
        %2944 = vmatpush1.msra.mxu0 0.0
        %2945 = vmatprep.subr.mxu0 0.0
        %2946 = vmatpush1.msra.mxu0 0.0
        %2947 = vmatprep.subr.mxu0 0.0
        %2948 = vmatpush1.msra.mxu0 0.0
        %2949 = vmatprep.subr.mxu0 0.0
        %2950 = vmatpush1.msra.mxu0 0.0
        %2951 = vmatprep.subr.mxu0 0.0
        %2952 = vmatpush1.msra.mxu0 0.0
        %2953 = vmatprep.subr.mxu0 0.0
        %2954 = vmatpush1.msra.mxu0 0.0
        %2955 = vmatprep.subr.mxu0 0.0
        %2956 = vmatpush1.msra.mxu0 0.0
        %2957 = vmatprep.subr.mxu0 0.0
        %2958 = vmatpush1.msra.mxu0 0.0
        %2959 = vmatprep.subr.mxu0 0.0
        %2960 = vmatpush1.msra.mxu0 0.0
        %2961 = vmatprep.subr.mxu0 0.0
        %2962 = vmatpush1.msra.mxu0 0.0
        %2963 = vmatprep.subr.mxu0 0.0
        %2964 = vmatpush1.msra.mxu0 0.0
        %2965 = vmatprep.subr.mxu0 0.0
        %2966 = vmatpush1.msra.mxu0 0.0
        %2967 = vmatprep.mubr.f32.mxu0 0.0
        %2968 = vmatmul.mubr.f32.gmra.mrb[0].mxu0 %v636
        %v2969 = vpop.f32.mrb[0].mxu0
        %v2970 = vadd.f32 0.0, %v2969
        %v2971 = vpop.f32.mrb[0].mxu0
        %2972 = vdwg.mxu0
        %v2973 = vadd.f32 %v2898, %v2970
        %s2974 = sadd.s32 %s233, 5
        %s2975 = sld [smem:[#allocation3 + %s2974]]
        %s2976 = smul.u32 %s2975, 4
        %s2977 = scalar_lea.vmem %s187, %s2976 [#allocation4]
        %v2978 = vld [vmem:[%s2977] sm:$0xf]
        %v2980 = vsel %vm242, %v2978, 0
        %2982 = vmatprep.subr.mxu0 0.0
        %2983 = vmatpush1.msra.mxu0 %v2980
        %2984 = vmatprep.subr.mxu0 0.0
        %2985 = vmatpush1.msra.mxu0 0.0
        %2986 = vmatprep.subr.mxu0 0.0
        %2987 = vmatpush1.msra.mxu0 0.0
        %2988 = vmatprep.subr.mxu0 0.0
        %2989 = vmatpush1.msra.mxu0 0.0
        %2990 = vmatprep.subr.mxu0 0.0
        %2991 = vmatpush1.msra.mxu0 0.0
        %2992 = vmatprep.subr.mxu0 0.0
        %2993 = vmatpush1.msra.mxu0 0.0
        %2994 = vmatprep.subr.mxu0 0.0
        %2995 = vmatpush1.msra.mxu0 0.0
        %2996 = vmatprep.subr.mxu0 0.0
        %2997 = vmatpush1.msra.mxu0 0.0
        %2998 = vmatprep.subr.mxu0 0.0
        %2999 = vmatpush1.msra.mxu0 0.0
        %3000 = vmatprep.subr.mxu0 0.0
        %3001 = vmatpush1.msra.mxu0 0.0
        %3002 = vmatprep.subr.mxu0 0.0
        %3003 = vmatpush1.msra.mxu0 0.0
        %3004 = vmatprep.subr.mxu0 0.0
        %3005 = vmatpush1.msra.mxu0 0.0
        %3006 = vmatprep.subr.mxu0 0.0
        %3007 = vmatpush1.msra.mxu0 0.0
        %3008 = vmatprep.subr.mxu0 0.0
        %3009 = vmatpush1.msra.mxu0 0.0
        %3010 = vmatprep.subr.mxu0 0.0
        %3011 = vmatpush1.msra.mxu0 0.0
        %3012 = vmatprep.subr.mxu0 0.0
        %3013 = vmatpush1.msra.mxu0 0.0
        %3014 = vmatprep.subr.mxu0 0.0
        %3015 = vmatpush1.msra.mxu0 0.0
        %3016 = vmatprep.subr.mxu0 0.0
        %3017 = vmatpush1.msra.mxu0 0.0
        %3018 = vmatprep.subr.mxu0 0.0
        %3019 = vmatpush1.msra.mxu0 0.0
        %3020 = vmatprep.subr.mxu0 0.0
        %3021 = vmatpush1.msra.mxu0 0.0
        %3022 = vmatprep.subr.mxu0 0.0
        %3023 = vmatpush1.msra.mxu0 0.0
        %3024 = vmatprep.subr.mxu0 0.0
        %3025 = vmatpush1.msra.mxu0 0.0
        %3026 = vmatprep.subr.mxu0 0.0
        %3027 = vmatpush1.msra.mxu0 0.0
        %3028 = vmatprep.subr.mxu0 0.0
        %3029 = vmatpush1.msra.mxu0 0.0
        %3030 = vmatprep.subr.mxu0 0.0
        %3031 = vmatpush1.msra.mxu0 0.0
        %3032 = vmatprep.subr.mxu0 0.0
        %3033 = vmatpush1.msra.mxu0 0.0
        %3034 = vmatprep.subr.mxu0 0.0
        %3035 = vmatpush1.msra.mxu0 0.0
        %3036 = vmatprep.subr.mxu0 0.0
        %3037 = vmatpush1.msra.mxu0 0.0
        %3038 = vmatprep.subr.mxu0 0.0
        %3039 = vmatpush1.msra.mxu0 0.0
        %3040 = vmatprep.subr.mxu0 0.0
        %3041 = vmatpush1.msra.mxu0 0.0
        %3042 = vmatprep.subr.mxu0 0.0
        %3043 = vmatpush1.msra.mxu0 0.0
        %3044 = vmatprep.subr.mxu0 0.0
        %3045 = vmatpush1.msra.mxu0 0.0
        %3046 = vmatprep.mubr.f32.mxu0 0.0
        %3047 = vmatmul.mubr.f32.gmra.mrb[0].mxu0 %v717
        %v3048 = vpop.f32.mrb[0].mxu0
        %v3049 = vadd.f32 0.0, %v3048
        %v3050 = vpop.f32.mrb[0].mxu0
        %3051 = vdwg.mxu0
        %v3052 = vadd.f32 %v2973, %v3049
        %3053 = vrot.lane.b32.xlu0 %v2978, 127
        %v3054 = vpop.permute.xlu0 %3053
        %v3055 = vsel %vm242, %v3054, 0
        %3057 = vmatprep.subr.mxu0 0.0
        %3058 = vmatpush1.msra.mxu0 %v3055
        %3059 = vmatprep.subr.mxu0 0.0
        %3060 = vmatpush1.msra.mxu0 0.0
        %3061 = vmatprep.subr.mxu0 0.0
        %3062 = vmatpush1.msra.mxu0 0.0
        %3063 = vmatprep.subr.mxu0 0.0
        %3064 = vmatpush1.msra.mxu0 0.0
        %3065 = vmatprep.subr.mxu0 0.0
        %3066 = vmatpush1.msra.mxu0 0.0
        %3067 = vmatprep.subr.mxu0 0.0
        %3068 = vmatpush1.msra.mxu0 0.0
        %3069 = vmatprep.subr.mxu0 0.0
        %3070 = vmatpush1.msra.mxu0 0.0
        %3071 = vmatprep.subr.mxu0 0.0
        %3072 = vmatpush1.msra.mxu0 0.0
        %3073 = vmatprep.subr.mxu0 0.0
        %3074 = vmatpush1.msra.mxu0 0.0
        %3075 = vmatprep.subr.mxu0 0.0
        %3076 = vmatpush1.msra.mxu0 0.0
        %3077 = vmatprep.subr.mxu0 0.0
        %3078 = vmatpush1.msra.mxu0 0.0
        %3079 = vmatprep.subr.mxu0 0.0
        %3080 = vmatpush1.msra.mxu0 0.0
        %3081 = vmatprep.subr.mxu0 0.0
        %3082 = vmatpush1.msra.mxu0 0.0
        %3083 = vmatprep.subr.mxu0 0.0
        %3084 = vmatpush1.msra.mxu0 0.0
        %3085 = vmatprep.subr.mxu0 0.0
        %3086 = vmatpush1.msra.mxu0 0.0
        %3087 = vmatprep.subr.mxu0 0.0
        %3088 = vmatpush1.msra.mxu0 0.0
        %3089 = vmatprep.subr.mxu0 0.0
        %3090 = vmatpush1.msra.mxu0 0.0
        %3091 = vmatprep.subr.mxu0 0.0
        %3092 = vmatpush1.msra.mxu0 0.0
        %3093 = vmatprep.subr.mxu0 0.0
        %3094 = vmatpush1.msra.mxu0 0.0
        %3095 = vmatprep.subr.mxu0 0.0
        %3096 = vmatpush1.msra.mxu0 0.0
        %3097 = vmatprep.subr.mxu0 0.0
        %3098 = vmatpush1.msra.mxu0 0.0
        %3099 = vmatprep.subr.mxu0 0.0
        %3100 = vmatpush1.msra.mxu0 0.0
        %3101 = vmatprep.subr.mxu0 0.0
        %3102 = vmatpush1.msra.mxu0 0.0
        %3103 = vmatprep.subr.mxu0 0.0
        %3104 = vmatpush1.msra.mxu0 0.0
        %3105 = vmatprep.subr.mxu0 0.0
        %3106 = vmatpush1.msra.mxu0 0.0
        %3107 = vmatprep.subr.mxu0 0.0
        %3108 = vmatpush1.msra.mxu0 0.0
        %3109 = vmatprep.subr.mxu0 0.0
        %3110 = vmatpush1.msra.mxu0 0.0
        %3111 = vmatprep.subr.mxu0 0.0
        %3112 = vmatpush1.msra.mxu0 0.0
        %3113 = vmatprep.subr.mxu0 0.0
        %3114 = vmatpush1.msra.mxu0 0.0
        %3115 = vmatprep.subr.mxu0 0.0
        %3116 = vmatpush1.msra.mxu0 0.0
        %3117 = vmatprep.subr.mxu0 0.0
        %3118 = vmatpush1.msra.mxu0 0.0
        %3119 = vmatprep.subr.mxu0 0.0
        %3120 = vmatpush1.msra.mxu0 0.0
        %3121 = vmatprep.mubr.f32.mxu0 0.0
        %3122 = vmatmul.mubr.f32.gmra.mrb[0].mxu0 %v796
        %v3123 = vpop.f32.mrb[0].mxu0
        %v3124 = vadd.f32 0.0, %v3123
        %v3125 = vpop.f32.mrb[0].mxu0
        %3126 = vdwg.mxu0
        %v3127 = vadd.f32 %v3052, %v3124
        %3128 = vrot.lane.b32.xlu0 %v2978, 126
        %v3129 = vpop.permute.xlu0 %3128
        %v3130 = vsel %vm242, %v3129, 0
        %3132 = vmatprep.subr.mxu0 0.0
        %3133 = vmatpush1.msra.mxu0 %v3130
        %3134 = vmatprep.subr.mxu0 0.0
        %3135 = vmatpush1.msra.mxu0 0.0
        %3136 = vmatprep.subr.mxu0 0.0
        %3137 = vmatpush1.msra.mxu0 0.0
        %3138 = vmatprep.subr.mxu0 0.0
        %3139 = vmatpush1.msra.mxu0 0.0
        %3140 = vmatprep.subr.mxu0 0.0
        %3141 = vmatpush1.msra.mxu0 0.0
        %3142 = vmatprep.subr.mxu0 0.0
        %3143 = vmatpush1.msra.mxu0 0.0
        %3144 = vmatprep.subr.mxu0 0.0
        %3145 = vmatpush1.msra.mxu0 0.0
        %3146 = vmatprep.subr.mxu0 0.0
        %3147 = vmatpush1.msra.mxu0 0.0
        %3148 = vmatprep.subr.mxu0 0.0
        %3149 = vmatpush1.msra.mxu0 0.0
        %3150 = vmatprep.subr.mxu0 0.0
        %3151 = vmatpush1.msra.mxu0 0.0
        %3152 = vmatprep.subr.mxu0 0.0
        %3153 = vmatpush1.msra.mxu0 0.0
        %3154 = vmatprep.subr.mxu0 0.0
        %3155 = vmatpush1.msra.mxu0 0.0
        %3156 = vmatprep.subr.mxu0 0.0
        %3157 = vmatpush1.msra.mxu0 0.0
        %3158 = vmatprep.subr.mxu0 0.0
        %3159 = vmatpush1.msra.mxu0 0.0
        %3160 = vmatprep.subr.mxu0 0.0
        %3161 = vmatpush1.msra.mxu0 0.0
        %3162 = vmatprep.subr.mxu0 0.0
        %3163 = vmatpush1.msra.mxu0 0.0
        %3164 = vmatprep.subr.mxu0 0.0
        %3165 = vmatpush1.msra.mxu0 0.0
        %3166 = vmatprep.subr.mxu0 0.0
        %3167 = vmatpush1.msra.mxu0 0.0
        %3168 = vmatprep.subr.mxu0 0.0
        %3169 = vmatpush1.msra.mxu0 0.0
        %3170 = vmatprep.subr.mxu0 0.0
        %3171 = vmatpush1.msra.mxu0 0.0
        %3172 = vmatprep.subr.mxu0 0.0
        %3173 = vmatpush1.msra.mxu0 0.0
        %3174 = vmatprep.subr.mxu0 0.0
        %3175 = vmatpush1.msra.mxu0 0.0
        %3176 = vmatprep.subr.mxu0 0.0
        %3177 = vmatpush1.msra.mxu0 0.0
        %3178 = vmatprep.subr.mxu0 0.0
        %3179 = vmatpush1.msra.mxu0 0.0
        %3180 = vmatprep.subr.mxu0 0.0
        %3181 = vmatpush1.msra.mxu0 0.0
        %3182 = vmatprep.subr.mxu0 0.0
        %3183 = vmatpush1.msra.mxu0 0.0
        %3184 = vmatprep.subr.mxu0 0.0
        %3185 = vmatpush1.msra.mxu0 0.0
        %3186 = vmatprep.subr.mxu0 0.0
        %3187 = vmatpush1.msra.mxu0 0.0
        %3188 = vmatprep.subr.mxu0 0.0
        %3189 = vmatpush1.msra.mxu0 0.0
        %3190 = vmatprep.subr.mxu0 0.0
        %3191 = vmatpush1.msra.mxu0 0.0
        %3192 = vmatprep.subr.mxu0 0.0
        %3193 = vmatpush1.msra.mxu0 0.0
        %3194 = vmatprep.subr.mxu0 0.0
        %3195 = vmatpush1.msra.mxu0 0.0
        %3196 = vmatprep.mubr.f32.mxu0 0.0
        %3197 = vmatmul.mubr.f32.gmra.mrb[0].mxu0 %v874
        %v3198 = vpop.f32.mrb[0].mxu0
        %v3199 = vadd.f32 0.0, %v3198
        %v3200 = vpop.f32.mrb[0].mxu0
        %3201 = vdwg.mxu0
        %v3202 = vadd.f32 %v3127, %v3199
        %v3204 = vcombine.high %v3202, %v3202
        %v3206 = vunpack.c.l.s4 1966171168
        %v3207 = vunpack.c.0.s8 %v3206
        %v3208 = vlaneseq
        %v3209 = vshrl.u32 %v3208, 7
        %v3210 = vsub.s32 %v3207, %v3209
        %v3211 = vrot.slane %v3202, %v3210
        %v3213 = vunpack.c.l.s4 1966171168
        %v3214 = vunpack.c.0.s8 %v3213
        %v3215 = vlaneseq
        %v3216 = vshrl.u32 %v3215, 7
        %v3217 = vsub.s32 %v3214, %v3216
        %v3218 = vrot.slane %v3204, %v3217
        %v3219 = vcombine.high %v3211, %v3211
        %v3220 = vcombine.high %v3218, %v3218
        %v3222 = vunpack.c.l.s4 1966171168
        %v3223 = vunpack.c.0.s8 %v3222
        %v3224 = vlaneseq
        %v3225 = vshrl.u32 %v3224, 7
        %v3226 = vsub.s32 %v3223, %v3225
        %v3227 = vrot.slane %v3211, %v3226
        %v3229 = vunpack.c.l.s4 1966171168
        %v3230 = vunpack.c.0.s8 %v3229
        %v3231 = vlaneseq
        %v3232 = vshrl.u32 %v3231, 7
        %v3233 = vsub.s32 %v3230, %v3232
        %v3234 = vrot.slane %v3218, %v3233
        %v3236 = vunpack.c.l.s4 1966171168
        %v3237 = vunpack.c.0.s8 %v3236
        %v3238 = vlaneseq
        %v3239 = vshrl.u32 %v3238, 7
        %v3240 = vsub.s32 %v3237, %v3239
        %v3241 = vrot.slane %v3219, %v3240
        %v3243 = vunpack.c.l.s4 1966171168
        %v3244 = vunpack.c.0.s8 %v3243
        %v3245 = vlaneseq
        %v3246 = vshrl.u32 %v3245, 7
        %v3247 = vsub.s32 %v3244, %v3246
        %v3248 = vrot.slane %v3220, %v3247
        %v3249 = vcombine.high %v3227, %v3227
        %v3250 = vcombine.high %v3234, %v3234
        %v3251 = vcombine.high %v3241, %v3241
        %v3252 = vcombine.high %v3248, %v3248
        %3261 = vst.msk [vmem:[%s209 + $0x3] sm:$0x1] %vm1007, %v3227
        %3262 = vst.msk [vmem:[%s209 + $0xb] sm:$0x1] %vm1007, %v3241
        %3263 = vst.msk [vmem:[%s209 + $0x13] sm:$0x1] %vm1007, %v3249
        %3264 = vst.msk [vmem:[%s209 + $0x1b] sm:$0x1] %vm1007, %v3251
        %3265 = vst.msk [vmem:[%s209 + $0x23] sm:$0x1] %vm1007, %v3234
        %3266 = vst.msk [vmem:[%s209 + $0x2b] sm:$0x1] %vm1007, %v3248
        %3267 = vst.msk [vmem:[%s209 + $0x33] sm:$0x1] %vm1007, %v3250
        %3268 = vst.msk [vmem:[%s209 + $0x3b] sm:$0x1] %vm1007, %v3252
        %s3269 = sld [smem:[#allocation3 + %s2223]]
        %s3270 = smul.u32 %s3269, 4
        %s3271 = scalar_lea.vmem %s187, %s3270 [#allocation4]
        %v3272 = vld [vmem:[%s3271] sm:$0xf]
        %v3274 = vsel %vm242, %v3272, 0
        %3276 = vmatprep.subr.mxu0 0.0
        %3277 = vmatpush1.msra.mxu0 %v3274
        %3278 = vmatprep.subr.mxu0 0.0
        %3279 = vmatpush1.msra.mxu0 0.0
        %3280 = vmatprep.subr.mxu0 0.0
        %3281 = vmatpush1.msra.mxu0 0.0
        %3282 = vmatprep.subr.mxu0 0.0
        %3283 = vmatpush1.msra.mxu0 0.0
        %3284 = vmatprep.subr.mxu0 0.0
        %3285 = vmatpush1.msra.mxu0 0.0
        %3286 = vmatprep.subr.mxu0 0.0
        %3287 = vmatpush1.msra.mxu0 0.0
        %3288 = vmatprep.subr.mxu0 0.0
        %3289 = vmatpush1.msra.mxu0 0.0
        %3290 = vmatprep.subr.mxu0 0.0
        %3291 = vmatpush1.msra.mxu0 0.0
        %3292 = vmatprep.subr.mxu0 0.0
        %3293 = vmatpush1.msra.mxu0 0.0
        %3294 = vmatprep.subr.mxu0 0.0
        %3295 = vmatpush1.msra.mxu0 0.0
        %3296 = vmatprep.subr.mxu0 0.0
        %3297 = vmatpush1.msra.mxu0 0.0
        %3298 = vmatprep.subr.mxu0 0.0
        %3299 = vmatpush1.msra.mxu0 0.0
        %3300 = vmatprep.subr.mxu0 0.0
        %3301 = vmatpush1.msra.mxu0 0.0
        %3302 = vmatprep.subr.mxu0 0.0
        %3303 = vmatpush1.msra.mxu0 0.0
        %3304 = vmatprep.subr.mxu0 0.0
        %3305 = vmatpush1.msra.mxu0 0.0
        %3306 = vmatprep.subr.mxu0 0.0
        %3307 = vmatpush1.msra.mxu0 0.0
        %3308 = vmatprep.subr.mxu0 0.0
        %3309 = vmatpush1.msra.mxu0 0.0
        %3310 = vmatprep.subr.mxu0 0.0
        %3311 = vmatpush1.msra.mxu0 0.0
        %3312 = vmatprep.subr.mxu0 0.0
        %3313 = vmatpush1.msra.mxu0 0.0
        %3314 = vmatprep.subr.mxu0 0.0
        %3315 = vmatpush1.msra.mxu0 0.0
        %3316 = vmatprep.subr.mxu0 0.0
        %3317 = vmatpush1.msra.mxu0 0.0
        %3318 = vmatprep.subr.mxu0 0.0
        %3319 = vmatpush1.msra.mxu0 0.0
        %3320 = vmatprep.subr.mxu0 0.0
        %3321 = vmatpush1.msra.mxu0 0.0
        %3322 = vmatprep.subr.mxu0 0.0
        %3323 = vmatpush1.msra.mxu0 0.0
        %3324 = vmatprep.subr.mxu0 0.0
        %3325 = vmatpush1.msra.mxu0 0.0
        %3326 = vmatprep.subr.mxu0 0.0
        %3327 = vmatpush1.msra.mxu0 0.0
        %3328 = vmatprep.subr.mxu0 0.0
        %3329 = vmatpush1.msra.mxu0 0.0
        %3330 = vmatprep.subr.mxu0 0.0
        %3331 = vmatpush1.msra.mxu0 0.0
        %3332 = vmatprep.subr.mxu0 0.0
        %3333 = vmatpush1.msra.mxu0 0.0
        %3334 = vmatprep.subr.mxu0 0.0
        %3335 = vmatpush1.msra.mxu0 0.0
        %3336 = vmatprep.subr.mxu0 0.0
        %3337 = vmatpush1.msra.mxu0 0.0
        %3338 = vmatprep.subr.mxu0 0.0
        %3339 = vmatpush1.msra.mxu0 0.0
        %3340 = vmatprep.mubr.f32.mxu0 0.0
        %3341 = vmatmul.mubr.f32.gmra.mrb[0].mxu0 %v240
        %v3342 = vpop.f32.mrb[0].mxu0
        %v3343 = vadd.f32 0.0, %v3342
        %v3344 = vpop.f32.mrb[0].mxu0
        %3345 = vdwg.mxu0
        %v3346 = vadd.f32 %v231, %v3343
        %3347 = vrot.lane.b32.xlu0 %v3272, 127
        %v3348 = vpop.permute.xlu0 %3347
        %v3349 = vsel %vm242, %v3348, 0
        %3351 = vmatprep.subr.mxu0 0.0
        %3352 = vmatpush1.msra.mxu0 %v3349
        %3353 = vmatprep.subr.mxu0 0.0
        %3354 = vmatpush1.msra.mxu0 0.0
        %3355 = vmatprep.subr.mxu0 0.0
        %3356 = vmatpush1.msra.mxu0 0.0
        %3357 = vmatprep.subr.mxu0 0.0
        %3358 = vmatpush1.msra.mxu0 0.0
        %3359 = vmatprep.subr.mxu0 0.0
        %3360 = vmatpush1.msra.mxu0 0.0
        %3361 = vmatprep.subr.mxu0 0.0
        %3362 = vmatpush1.msra.mxu0 0.0
        %3363 = vmatprep.subr.mxu0 0.0
        %3364 = vmatpush1.msra.mxu0 0.0
        %3365 = vmatprep.subr.mxu0 0.0
        %3366 = vmatpush1.msra.mxu0 0.0
        %3367 = vmatprep.subr.mxu0 0.0
        %3368 = vmatpush1.msra.mxu0 0.0
        %3369 = vmatprep.subr.mxu0 0.0
        %3370 = vmatpush1.msra.mxu0 0.0
        %3371 = vmatprep.subr.mxu0 0.0
        %3372 = vmatpush1.msra.mxu0 0.0
        %3373 = vmatprep.subr.mxu0 0.0
        %3374 = vmatpush1.msra.mxu0 0.0
        %3375 = vmatprep.subr.mxu0 0.0
        %3376 = vmatpush1.msra.mxu0 0.0
        %3377 = vmatprep.subr.mxu0 0.0
        %3378 = vmatpush1.msra.mxu0 0.0
        %3379 = vmatprep.subr.mxu0 0.0
        %3380 = vmatpush1.msra.mxu0 0.0
        %3381 = vmatprep.subr.mxu0 0.0
        %3382 = vmatpush1.msra.mxu0 0.0
        %3383 = vmatprep.subr.mxu0 0.0
        %3384 = vmatpush1.msra.mxu0 0.0
        %3385 = vmatprep.subr.mxu0 0.0
        %3386 = vmatpush1.msra.mxu0 0.0
        %3387 = vmatprep.subr.mxu0 0.0
        %3388 = vmatpush1.msra.mxu0 0.0
        %3389 = vmatprep.subr.mxu0 0.0
        %3390 = vmatpush1.msra.mxu0 0.0
        %3391 = vmatprep.subr.mxu0 0.0
        %3392 = vmatpush1.msra.mxu0 0.0
        %3393 = vmatprep.subr.mxu0 0.0
        %3394 = vmatpush1.msra.mxu0 0.0
        %3395 = vmatprep.subr.mxu0 0.0
        %3396 = vmatpush1.msra.mxu0 0.0
        %3397 = vmatprep.subr.mxu0 0.0
        %3398 = vmatpush1.msra.mxu0 0.0
        %3399 = vmatprep.subr.mxu0 0.0
        %3400 = vmatpush1.msra.mxu0 0.0
        %3401 = vmatprep.subr.mxu0 0.0
        %3402 = vmatpush1.msra.mxu0 0.0
        %3403 = vmatprep.subr.mxu0 0.0
        %3404 = vmatpush1.msra.mxu0 0.0
        %3405 = vmatprep.subr.mxu0 0.0
        %3406 = vmatpush1.msra.mxu0 0.0
        %3407 = vmatprep.subr.mxu0 0.0
        %3408 = vmatpush1.msra.mxu0 0.0
        %3409 = vmatprep.subr.mxu0 0.0
        %3410 = vmatpush1.msra.mxu0 0.0
        %3411 = vmatprep.subr.mxu0 0.0
        %3412 = vmatpush1.msra.mxu0 0.0
        %3413 = vmatprep.subr.mxu0 0.0
        %3414 = vmatpush1.msra.mxu0 0.0
        %3415 = vmatprep.mubr.f32.mxu0 0.0
        %3416 = vmatmul.mubr.f32.gmra.mrb[0].mxu0 %v320
        %v3417 = vpop.f32.mrb[0].mxu0
        %v3418 = vadd.f32 0.0, %v3417
        %v3419 = vpop.f32.mrb[0].mxu0
        %3420 = vdwg.mxu0
        %v3421 = vadd.f32 %v3346, %v3418
        %3422 = vrot.lane.b32.xlu0 %v3272, 126
        %v3423 = vpop.permute.xlu0 %3422
        %v3424 = vsel %vm242, %v3423, 0
        %3426 = vmatprep.subr.mxu0 0.0
        %3427 = vmatpush1.msra.mxu0 %v3424
        %3428 = vmatprep.subr.mxu0 0.0
        %3429 = vmatpush1.msra.mxu0 0.0
        %3430 = vmatprep.subr.mxu0 0.0
        %3431 = vmatpush1.msra.mxu0 0.0
        %3432 = vmatprep.subr.mxu0 0.0
        %3433 = vmatpush1.msra.mxu0 0.0
        %3434 = vmatprep.subr.mxu0 0.0
        %3435 = vmatpush1.msra.mxu0 0.0
        %3436 = vmatprep.subr.mxu0 0.0
        %3437 = vmatpush1.msra.mxu0 0.0
        %3438 = vmatprep.subr.mxu0 0.0
        %3439 = vmatpush1.msra.mxu0 0.0
        %3440 = vmatprep.subr.mxu0 0.0
        %3441 = vmatpush1.msra.mxu0 0.0
        %3442 = vmatprep.subr.mxu0 0.0
        %3443 = vmatpush1.msra.mxu0 0.0
        %3444 = vmatprep.subr.mxu0 0.0
        %3445 = vmatpush1.msra.mxu0 0.0
        %3446 = vmatprep.subr.mxu0 0.0
        %3447 = vmatpush1.msra.mxu0 0.0
        %3448 = vmatprep.subr.mxu0 0.0
        %3449 = vmatpush1.msra.mxu0 0.0
        %3450 = vmatprep.subr.mxu0 0.0
        %3451 = vmatpush1.msra.mxu0 0.0
        %3452 = vmatprep.subr.mxu0 0.0
        %3453 = vmatpush1.msra.mxu0 0.0
        %3454 = vmatprep.subr.mxu0 0.0
        %3455 = vmatpush1.msra.mxu0 0.0
        %3456 = vmatprep.subr.mxu0 0.0
        %3457 = vmatpush1.msra.mxu0 0.0
        %3458 = vmatprep.subr.mxu0 0.0
        %3459 = vmatpush1.msra.mxu0 0.0
        %3460 = vmatprep.subr.mxu0 0.0
        %3461 = vmatpush1.msra.mxu0 0.0
        %3462 = vmatprep.subr.mxu0 0.0
        %3463 = vmatpush1.msra.mxu0 0.0
        %3464 = vmatprep.subr.mxu0 0.0
        %3465 = vmatpush1.msra.mxu0 0.0
        %3466 = vmatprep.subr.mxu0 0.0
        %3467 = vmatpush1.msra.mxu0 0.0
        %3468 = vmatprep.subr.mxu0 0.0
        %3469 = vmatpush1.msra.mxu0 0.0
        %3470 = vmatprep.subr.mxu0 0.0
        %3471 = vmatpush1.msra.mxu0 0.0
        %3472 = vmatprep.subr.mxu0 0.0
        %3473 = vmatpush1.msra.mxu0 0.0
        %3474 = vmatprep.subr.mxu0 0.0
        %3475 = vmatpush1.msra.mxu0 0.0
        %3476 = vmatprep.subr.mxu0 0.0
        %3477 = vmatpush1.msra.mxu0 0.0
        %3478 = vmatprep.subr.mxu0 0.0
        %3479 = vmatpush1.msra.mxu0 0.0
        %3480 = vmatprep.subr.mxu0 0.0
        %3481 = vmatpush1.msra.mxu0 0.0
        %3482 = vmatprep.subr.mxu0 0.0
        %3483 = vmatpush1.msra.mxu0 0.0
        %3484 = vmatprep.subr.mxu0 0.0
        %3485 = vmatpush1.msra.mxu0 0.0
        %3486 = vmatprep.subr.mxu0 0.0
        %3487 = vmatpush1.msra.mxu0 0.0
        %3488 = vmatprep.subr.mxu0 0.0
        %3489 = vmatpush1.msra.mxu0 0.0
        %3490 = vmatprep.mubr.f32.mxu0 0.0
        %3491 = vmatmul.mubr.f32.gmra.mrb[0].mxu0 %v398
        %v3492 = vpop.f32.mrb[0].mxu0
        %v3493 = vadd.f32 0.0, %v3492
        %v3494 = vpop.f32.mrb[0].mxu0
        %3495 = vdwg.mxu0
        %v3496 = vadd.f32 %v3421, %v3493
        %s3497 = sld [smem:[#allocation3 + %s2974]]
        %s3498 = smul.u32 %s3497, 4
        %s3499 = scalar_lea.vmem %s187, %s3498 [#allocation4]
        %v3500 = vld [vmem:[%s3499] sm:$0xf]
        %v3502 = vsel %vm242, %v3500, 0
        %3504 = vmatprep.subr.mxu0 0.0
        %3505 = vmatpush1.msra.mxu0 %v3502
        %3506 = vmatprep.subr.mxu0 0.0
        %3507 = vmatpush1.msra.mxu0 0.0
        %3508 = vmatprep.subr.mxu0 0.0
        %3509 = vmatpush1.msra.mxu0 0.0
        %3510 = vmatprep.subr.mxu0 0.0
        %3511 = vmatpush1.msra.mxu0 0.0
        %3512 = vmatprep.subr.mxu0 0.0
        %3513 = vmatpush1.msra.mxu0 0.0
        %3514 = vmatprep.subr.mxu0 0.0
        %3515 = vmatpush1.msra.mxu0 0.0
        %3516 = vmatprep.subr.mxu0 0.0
        %3517 = vmatpush1.msra.mxu0 0.0
        %3518 = vmatprep.subr.mxu0 0.0
        %3519 = vmatpush1.msra.mxu0 0.0
        %3520 = vmatprep.subr.mxu0 0.0
        %3521 = vmatpush1.msra.mxu0 0.0
        %3522 = vmatprep.subr.mxu0 0.0
        %3523 = vmatpush1.msra.mxu0 0.0
        %3524 = vmatprep.subr.mxu0 0.0
        %3525 = vmatpush1.msra.mxu0 0.0
        %3526 = vmatprep.subr.mxu0 0.0
        %3527 = vmatpush1.msra.mxu0 0.0
        %3528 = vmatprep.subr.mxu0 0.0
        %3529 = vmatpush1.msra.mxu0 0.0
        %3530 = vmatprep.subr.mxu0 0.0
        %3531 = vmatpush1.msra.mxu0 0.0
        %3532 = vmatprep.subr.mxu0 0.0
        %3533 = vmatpush1.msra.mxu0 0.0
        %3534 = vmatprep.subr.mxu0 0.0
        %3535 = vmatpush1.msra.mxu0 0.0
        %3536 = vmatprep.subr.mxu0 0.0
        %3537 = vmatpush1.msra.mxu0 0.0
        %3538 = vmatprep.subr.mxu0 0.0
        %3539 = vmatpush1.msra.mxu0 0.0
        %3540 = vmatprep.subr.mxu0 0.0
        %3541 = vmatpush1.msra.mxu0 0.0
        %3542 = vmatprep.subr.mxu0 0.0
        %3543 = vmatpush1.msra.mxu0 0.0
        %3544 = vmatprep.subr.mxu0 0.0
        %3545 = vmatpush1.msra.mxu0 0.0
        %3546 = vmatprep.subr.mxu0 0.0
        %3547 = vmatpush1.msra.mxu0 0.0
        %3548 = vmatprep.subr.mxu0 0.0
        %3549 = vmatpush1.msra.mxu0 0.0
        %3550 = vmatprep.subr.mxu0 0.0
        %3551 = vmatpush1.msra.mxu0 0.0
        %3552 = vmatprep.subr.mxu0 0.0
        %3553 = vmatpush1.msra.mxu0 0.0
        %3554 = vmatprep.subr.mxu0 0.0
        %3555 = vmatpush1.msra.mxu0 0.0
        %3556 = vmatprep.subr.mxu0 0.0
        %3557 = vmatpush1.msra.mxu0 0.0
        %3558 = vmatprep.subr.mxu0 0.0
        %3559 = vmatpush1.msra.mxu0 0.0
        %3560 = vmatprep.subr.mxu0 0.0
        %3561 = vmatpush1.msra.mxu0 0.0
        %3562 = vmatprep.subr.mxu0 0.0
        %3563 = vmatpush1.msra.mxu0 0.0
        %3564 = vmatprep.subr.mxu0 0.0
        %3565 = vmatpush1.msra.mxu0 0.0
        %3566 = vmatprep.subr.mxu0 0.0
        %3567 = vmatpush1.msra.mxu0 0.0
        %3568 = vmatprep.mubr.f32.mxu0 0.0
        %3569 = vmatmul.mubr.f32.gmra.mrb[0].mxu0 %v479
        %v3570 = vpop.f32.mrb[0].mxu0
        %v3571 = vadd.f32 0.0, %v3570
        %v3572 = vpop.f32.mrb[0].mxu0
        %3573 = vdwg.mxu0
        %v3574 = vadd.f32 %v3496, %v3571
        %3575 = vrot.lane.b32.xlu0 %v3500, 127
        %v3576 = vpop.permute.xlu0 %3575
        %v3577 = vsel %vm242, %v3576, 0
        %3579 = vmatprep.subr.mxu0 0.0
        %3580 = vmatpush1.msra.mxu0 %v3577
        %3581 = vmatprep.subr.mxu0 0.0
        %3582 = vmatpush1.msra.mxu0 0.0
        %3583 = vmatprep.subr.mxu0 0.0
        %3584 = vmatpush1.msra.mxu0 0.0
        %3585 = vmatprep.subr.mxu0 0.0
        %3586 = vmatpush1.msra.mxu0 0.0
        %3587 = vmatprep.subr.mxu0 0.0
        %3588 = vmatpush1.msra.mxu0 0.0
        %3589 = vmatprep.subr.mxu0 0.0
        %3590 = vmatpush1.msra.mxu0 0.0
        %3591 = vmatprep.subr.mxu0 0.0
        %3592 = vmatpush1.msra.mxu0 0.0
        %3593 = vmatprep.subr.mxu0 0.0
        %3594 = vmatpush1.msra.mxu0 0.0
        %3595 = vmatprep.subr.mxu0 0.0
        %3596 = vmatpush1.msra.mxu0 0.0
        %3597 = vmatprep.subr.mxu0 0.0
        %3598 = vmatpush1.msra.mxu0 0.0
        %3599 = vmatprep.subr.mxu0 0.0
        %3600 = vmatpush1.msra.mxu0 0.0
        %3601 = vmatprep.subr.mxu0 0.0
        %3602 = vmatpush1.msra.mxu0 0.0
        %3603 = vmatprep.subr.mxu0 0.0
        %3604 = vmatpush1.msra.mxu0 0.0
        %3605 = vmatprep.subr.mxu0 0.0
        %3606 = vmatpush1.msra.mxu0 0.0
        %3607 = vmatprep.subr.mxu0 0.0
        %3608 = vmatpush1.msra.mxu0 0.0
        %3609 = vmatprep.subr.mxu0 0.0
        %3610 = vmatpush1.msra.mxu0 0.0
        %3611 = vmatprep.subr.mxu0 0.0
        %3612 = vmatpush1.msra.mxu0 0.0
        %3613 = vmatprep.subr.mxu0 0.0
        %3614 = vmatpush1.msra.mxu0 0.0
        %3615 = vmatprep.subr.mxu0 0.0
        %3616 = vmatpush1.msra.mxu0 0.0
        %3617 = vmatprep.subr.mxu0 0.0
        %3618 = vmatpush1.msra.mxu0 0.0
        %3619 = vmatprep.subr.mxu0 0.0
        %3620 = vmatpush1.msra.mxu0 0.0
        %3621 = vmatprep.subr.mxu0 0.0
        %3622 = vmatpush1.msra.mxu0 0.0
        %3623 = vmatprep.subr.mxu0 0.0
        %3624 = vmatpush1.msra.mxu0 0.0
        %3625 = vmatprep.subr.mxu0 0.0
        %3626 = vmatpush1.msra.mxu0 0.0
        %3627 = vmatprep.subr.mxu0 0.0
        %3628 = vmatpush1.msra.mxu0 0.0
        %3629 = vmatprep.subr.mxu0 0.0
        %3630 = vmatpush1.msra.mxu0 0.0
        %3631 = vmatprep.subr.mxu0 0.0
        %3632 = vmatpush1.msra.mxu0 0.0
        %3633 = vmatprep.subr.mxu0 0.0
        %3634 = vmatpush1.msra.mxu0 0.0
        %3635 = vmatprep.subr.mxu0 0.0
        %3636 = vmatpush1.msra.mxu0 0.0
        %3637 = vmatprep.subr.mxu0 0.0
        %3638 = vmatpush1.msra.mxu0 0.0
        %3639 = vmatprep.subr.mxu0 0.0
        %3640 = vmatpush1.msra.mxu0 0.0
        %3641 = vmatprep.subr.mxu0 0.0
        %3642 = vmatpush1.msra.mxu0 0.0
        %3643 = vmatprep.mubr.f32.mxu0 0.0
        %3644 = vmatmul.mubr.f32.gmra.mrb[0].mxu0 %v558
        %v3645 = vpop.f32.mrb[0].mxu0
        %v3646 = vadd.f32 0.0, %v3645
        %v3647 = vpop.f32.mrb[0].mxu0
        %3648 = vdwg.mxu0
        %v3649 = vadd.f32 %v3574, %v3646
        %3650 = vrot.lane.b32.xlu0 %v3500, 126
        %v3651 = vpop.permute.xlu0 %3650
        %v3652 = vsel %vm242, %v3651, 0
        %3654 = vmatprep.subr.mxu0 0.0
        %3655 = vmatpush1.msra.mxu0 %v3652
        %3656 = vmatprep.subr.mxu0 0.0
        %3657 = vmatpush1.msra.mxu0 0.0
        %3658 = vmatprep.subr.mxu0 0.0
        %3659 = vmatpush1.msra.mxu0 0.0
        %3660 = vmatprep.subr.mxu0 0.0
        %3661 = vmatpush1.msra.mxu0 0.0
        %3662 = vmatprep.subr.mxu0 0.0
        %3663 = vmatpush1.msra.mxu0 0.0
        %3664 = vmatprep.subr.mxu0 0.0
        %3665 = vmatpush1.msra.mxu0 0.0
        %3666 = vmatprep.subr.mxu0 0.0
        %3667 = vmatpush1.msra.mxu0 0.0
        %3668 = vmatprep.subr.mxu0 0.0
        %3669 = vmatpush1.msra.mxu0 0.0
        %3670 = vmatprep.subr.mxu0 0.0
        %3671 = vmatpush1.msra.mxu0 0.0
        %3672 = vmatprep.subr.mxu0 0.0
        %3673 = vmatpush1.msra.mxu0 0.0
        %3674 = vmatprep.subr.mxu0 0.0
        %3675 = vmatpush1.msra.mxu0 0.0
        %3676 = vmatprep.subr.mxu0 0.0
        %3677 = vmatpush1.msra.mxu0 0.0
        %3678 = vmatprep.subr.mxu0 0.0
        %3679 = vmatpush1.msra.mxu0 0.0
        %3680 = vmatprep.subr.mxu0 0.0
        %3681 = vmatpush1.msra.mxu0 0.0
        %3682 = vmatprep.subr.mxu0 0.0
        %3683 = vmatpush1.msra.mxu0 0.0
        %3684 = vmatprep.subr.mxu0 0.0
        %3685 = vmatpush1.msra.mxu0 0.0
        %3686 = vmatprep.subr.mxu0 0.0
        %3687 = vmatpush1.msra.mxu0 0.0
        %3688 = vmatprep.subr.mxu0 0.0
        %3689 = vmatpush1.msra.mxu0 0.0
        %3690 = vmatprep.subr.mxu0 0.0
        %3691 = vmatpush1.msra.mxu0 0.0
        %3692 = vmatprep.subr.mxu0 0.0
        %3693 = vmatpush1.msra.mxu0 0.0
        %3694 = vmatprep.subr.mxu0 0.0
        %3695 = vmatpush1.msra.mxu0 0.0
        %3696 = vmatprep.subr.mxu0 0.0
        %3697 = vmatpush1.msra.mxu0 0.0
        %3698 = vmatprep.subr.mxu0 0.0
        %3699 = vmatpush1.msra.mxu0 0.0
        %3700 = vmatprep.subr.mxu0 0.0
        %3701 = vmatpush1.msra.mxu0 0.0
        %3702 = vmatprep.subr.mxu0 0.0
        %3703 = vmatpush1.msra.mxu0 0.0
        %3704 = vmatprep.subr.mxu0 0.0
        %3705 = vmatpush1.msra.mxu0 0.0
        %3706 = vmatprep.subr.mxu0 0.0
        %3707 = vmatpush1.msra.mxu0 0.0
        %3708 = vmatprep.subr.mxu0 0.0
        %3709 = vmatpush1.msra.mxu0 0.0
        %3710 = vmatprep.subr.mxu0 0.0
        %3711 = vmatpush1.msra.mxu0 0.0
        %3712 = vmatprep.subr.mxu0 0.0
        %3713 = vmatpush1.msra.mxu0 0.0
        %3714 = vmatprep.subr.mxu0 0.0
        %3715 = vmatpush1.msra.mxu0 0.0
        %3716 = vmatprep.subr.mxu0 0.0
        %3717 = vmatpush1.msra.mxu0 0.0
        %3718 = vmatprep.mubr.f32.mxu0 0.0
        %3719 = vmatmul.mubr.f32.gmra.mrb[0].mxu0 %v636
        %v3720 = vpop.f32.mrb[0].mxu0
        %v3721 = vadd.f32 0.0, %v3720
        %v3722 = vpop.f32.mrb[0].mxu0
        %3723 = vdwg.mxu0
        %v3724 = vadd.f32 %v3649, %v3721
        %s3725 = sadd.s32 %s233, 6
        %s3726 = sld [smem:[#allocation3 + %s3725]]
        %s3727 = smul.u32 %s3726, 4
        %s3728 = scalar_lea.vmem %s187, %s3727 [#allocation4]
        %v3729 = vld [vmem:[%s3728] sm:$0xf]
        %v3731 = vsel %vm242, %v3729, 0
        %3733 = vmatprep.subr.mxu0 0.0
        %3734 = vmatpush1.msra.mxu0 %v3731
        %3735 = vmatprep.subr.mxu0 0.0
        %3736 = vmatpush1.msra.mxu0 0.0
        %3737 = vmatprep.subr.mxu0 0.0
        %3738 = vmatpush1.msra.mxu0 0.0
        %3739 = vmatprep.subr.mxu0 0.0
        %3740 = vmatpush1.msra.mxu0 0.0
        %3741 = vmatprep.subr.mxu0 0.0
        %3742 = vmatpush1.msra.mxu0 0.0
        %3743 = vmatprep.subr.mxu0 0.0
        %3744 = vmatpush1.msra.mxu0 0.0
        %3745 = vmatprep.subr.mxu0 0.0
        %3746 = vmatpush1.msra.mxu0 0.0
        %3747 = vmatprep.subr.mxu0 0.0
        %3748 = vmatpush1.msra.mxu0 0.0
        %3749 = vmatprep.subr.mxu0 0.0
        %3750 = vmatpush1.msra.mxu0 0.0
        %3751 = vmatprep.subr.mxu0 0.0
        %3752 = vmatpush1.msra.mxu0 0.0
        %3753 = vmatprep.subr.mxu0 0.0
        %3754 = vmatpush1.msra.mxu0 0.0
        %3755 = vmatprep.subr.mxu0 0.0
        %3756 = vmatpush1.msra.mxu0 0.0
        %3757 = vmatprep.subr.mxu0 0.0
        %3758 = vmatpush1.msra.mxu0 0.0
        %3759 = vmatprep.subr.mxu0 0.0
        %3760 = vmatpush1.msra.mxu0 0.0
        %3761 = vmatprep.subr.mxu0 0.0
        %3762 = vmatpush1.msra.mxu0 0.0
        %3763 = vmatprep.subr.mxu0 0.0
        %3764 = vmatpush1.msra.mxu0 0.0
        %3765 = vmatprep.subr.mxu0 0.0
        %3766 = vmatpush1.msra.mxu0 0.0
        %3767 = vmatprep.subr.mxu0 0.0
        %3768 = vmatpush1.msra.mxu0 0.0
        %3769 = vmatprep.subr.mxu0 0.0
        %3770 = vmatpush1.msra.mxu0 0.0
        %3771 = vmatprep.subr.mxu0 0.0
        %3772 = vmatpush1.msra.mxu0 0.0
        %3773 = vmatprep.subr.mxu0 0.0
        %3774 = vmatpush1.msra.mxu0 0.0
        %3775 = vmatprep.subr.mxu0 0.0
        %3776 = vmatpush1.msra.mxu0 0.0
        %3777 = vmatprep.subr.mxu0 0.0
        %3778 = vmatpush1.msra.mxu0 0.0
        %3779 = vmatprep.subr.mxu0 0.0
        %3780 = vmatpush1.msra.mxu0 0.0
        %3781 = vmatprep.subr.mxu0 0.0
        %3782 = vmatpush1.msra.mxu0 0.0
        %3783 = vmatprep.subr.mxu0 0.0
        %3784 = vmatpush1.msra.mxu0 0.0
        %3785 = vmatprep.subr.mxu0 0.0
        %3786 = vmatpush1.msra.mxu0 0.0
        %3787 = vmatprep.subr.mxu0 0.0
        %3788 = vmatpush1.msra.mxu0 0.0
        %3789 = vmatprep.subr.mxu0 0.0
        %3790 = vmatpush1.msra.mxu0 0.0
        %3791 = vmatprep.subr.mxu0 0.0
        %3792 = vmatpush1.msra.mxu0 0.0
        %3793 = vmatprep.subr.mxu0 0.0
        %3794 = vmatpush1.msra.mxu0 0.0
        %3795 = vmatprep.subr.mxu0 0.0
        %3796 = vmatpush1.msra.mxu0 0.0
        %3797 = vmatprep.mubr.f32.mxu0 0.0
        %3798 = vmatmul.mubr.f32.gmra.mrb[0].mxu0 %v717
        %v3799 = vpop.f32.mrb[0].mxu0
        %v3800 = vadd.f32 0.0, %v3799
        %v3801 = vpop.f32.mrb[0].mxu0
        %3802 = vdwg.mxu0
        %v3803 = vadd.f32 %v3724, %v3800
        %3804 = vrot.lane.b32.xlu0 %v3729, 127
        %v3805 = vpop.permute.xlu0 %3804
        %v3806 = vsel %vm242, %v3805, 0
        %3808 = vmatprep.subr.mxu0 0.0
        %3809 = vmatpush1.msra.mxu0 %v3806
        %3810 = vmatprep.subr.mxu0 0.0
        %3811 = vmatpush1.msra.mxu0 0.0
        %3812 = vmatprep.subr.mxu0 0.0
        %3813 = vmatpush1.msra.mxu0 0.0
        %3814 = vmatprep.subr.mxu0 0.0
        %3815 = vmatpush1.msra.mxu0 0.0
        %3816 = vmatprep.subr.mxu0 0.0
        %3817 = vmatpush1.msra.mxu0 0.0
        %3818 = vmatprep.subr.mxu0 0.0
        %3819 = vmatpush1.msra.mxu0 0.0
        %3820 = vmatprep.subr.mxu0 0.0
        %3821 = vmatpush1.msra.mxu0 0.0
        %3822 = vmatprep.subr.mxu0 0.0
        %3823 = vmatpush1.msra.mxu0 0.0
        %3824 = vmatprep.subr.mxu0 0.0
        %3825 = vmatpush1.msra.mxu0 0.0
        %3826 = vmatprep.subr.mxu0 0.0
        %3827 = vmatpush1.msra.mxu0 0.0
        %3828 = vmatprep.subr.mxu0 0.0
        %3829 = vmatpush1.msra.mxu0 0.0
        %3830 = vmatprep.subr.mxu0 0.0
        %3831 = vmatpush1.msra.mxu0 0.0
        %3832 = vmatprep.subr.mxu0 0.0
        %3833 = vmatpush1.msra.mxu0 0.0
        %3834 = vmatprep.subr.mxu0 0.0
        %3835 = vmatpush1.msra.mxu0 0.0
        %3836 = vmatprep.subr.mxu0 0.0
        %3837 = vmatpush1.msra.mxu0 0.0
        %3838 = vmatprep.subr.mxu0 0.0
        %3839 = vmatpush1.msra.mxu0 0.0
        %3840 = vmatprep.subr.mxu0 0.0
        %3841 = vmatpush1.msra.mxu0 0.0
        %3842 = vmatprep.subr.mxu0 0.0
        %3843 = vmatpush1.msra.mxu0 0.0
        %3844 = vmatprep.subr.mxu0 0.0
        %3845 = vmatpush1.msra.mxu0 0.0
        %3846 = vmatprep.subr.mxu0 0.0
        %3847 = vmatpush1.msra.mxu0 0.0
        %3848 = vmatprep.subr.mxu0 0.0
        %3849 = vmatpush1.msra.mxu0 0.0
        %3850 = vmatprep.subr.mxu0 0.0
        %3851 = vmatpush1.msra.mxu0 0.0
        %3852 = vmatprep.subr.mxu0 0.0
        %3853 = vmatpush1.msra.mxu0 0.0
        %3854 = vmatprep.subr.mxu0 0.0
        %3855 = vmatpush1.msra.mxu0 0.0
        %3856 = vmatprep.subr.mxu0 0.0
        %3857 = vmatpush1.msra.mxu0 0.0
        %3858 = vmatprep.subr.mxu0 0.0
        %3859 = vmatpush1.msra.mxu0 0.0
        %3860 = vmatprep.subr.mxu0 0.0
        %3861 = vmatpush1.msra.mxu0 0.0
        %3862 = vmatprep.subr.mxu0 0.0
        %3863 = vmatpush1.msra.mxu0 0.0
        %3864 = vmatprep.subr.mxu0 0.0
        %3865 = vmatpush1.msra.mxu0 0.0
        %3866 = vmatprep.subr.mxu0 0.0
        %3867 = vmatpush1.msra.mxu0 0.0
        %3868 = vmatprep.subr.mxu0 0.0
        %3869 = vmatpush1.msra.mxu0 0.0
        %3870 = vmatprep.subr.mxu0 0.0
        %3871 = vmatpush1.msra.mxu0 0.0
        %3872 = vmatprep.mubr.f32.mxu0 0.0
        %3873 = vmatmul.mubr.f32.gmra.mrb[0].mxu0 %v796
        %v3874 = vpop.f32.mrb[0].mxu0
        %v3875 = vadd.f32 0.0, %v3874
        %v3876 = vpop.f32.mrb[0].mxu0
        %3877 = vdwg.mxu0
        %v3878 = vadd.f32 %v3803, %v3875
        %3879 = vrot.lane.b32.xlu0 %v3729, 126
        %v3880 = vpop.permute.xlu0 %3879
        %v3881 = vsel %vm242, %v3880, 0
        %3883 = vmatprep.subr.mxu0 0.0
        %3884 = vmatpush1.msra.mxu0 %v3881
        %3885 = vmatprep.subr.mxu0 0.0
        %3886 = vmatpush1.msra.mxu0 0.0
        %3887 = vmatprep.subr.mxu0 0.0
        %3888 = vmatpush1.msra.mxu0 0.0
        %3889 = vmatprep.subr.mxu0 0.0
        %3890 = vmatpush1.msra.mxu0 0.0
        %3891 = vmatprep.subr.mxu0 0.0
        %3892 = vmatpush1.msra.mxu0 0.0
        %3893 = vmatprep.subr.mxu0 0.0
        %3894 = vmatpush1.msra.mxu0 0.0
        %3895 = vmatprep.subr.mxu0 0.0
        %3896 = vmatpush1.msra.mxu0 0.0
        %3897 = vmatprep.subr.mxu0 0.0
        %3898 = vmatpush1.msra.mxu0 0.0
        %3899 = vmatprep.subr.mxu0 0.0
        %3900 = vmatpush1.msra.mxu0 0.0
        %3901 = vmatprep.subr.mxu0 0.0
        %3902 = vmatpush1.msra.mxu0 0.0
        %3903 = vmatprep.subr.mxu0 0.0
        %3904 = vmatpush1.msra.mxu0 0.0
        %3905 = vmatprep.subr.mxu0 0.0
        %3906 = vmatpush1.msra.mxu0 0.0
        %3907 = vmatprep.subr.mxu0 0.0
        %3908 = vmatpush1.msra.mxu0 0.0
        %3909 = vmatprep.subr.mxu0 0.0
        %3910 = vmatpush1.msra.mxu0 0.0
        %3911 = vmatprep.subr.mxu0 0.0
        %3912 = vmatpush1.msra.mxu0 0.0
        %3913 = vmatprep.subr.mxu0 0.0
        %3914 = vmatpush1.msra.mxu0 0.0
        %3915 = vmatprep.subr.mxu0 0.0
        %3916 = vmatpush1.msra.mxu0 0.0
        %3917 = vmatprep.subr.mxu0 0.0
        %3918 = vmatpush1.msra.mxu0 0.0
        %3919 = vmatprep.subr.mxu0 0.0
        %3920 = vmatpush1.msra.mxu0 0.0
        %3921 = vmatprep.subr.mxu0 0.0
        %3922 = vmatpush1.msra.mxu0 0.0
        %3923 = vmatprep.subr.mxu0 0.0
        %3924 = vmatpush1.msra.mxu0 0.0
        %3925 = vmatprep.subr.mxu0 0.0
        %3926 = vmatpush1.msra.mxu0 0.0
        %3927 = vmatprep.subr.mxu0 0.0
        %3928 = vmatpush1.msra.mxu0 0.0
        %3929 = vmatprep.subr.mxu0 0.0
        %3930 = vmatpush1.msra.mxu0 0.0
        %3931 = vmatprep.subr.mxu0 0.0
        %3932 = vmatpush1.msra.mxu0 0.0
        %3933 = vmatprep.subr.mxu0 0.0
        %3934 = vmatpush1.msra.mxu0 0.0
        %3935 = vmatprep.subr.mxu0 0.0
        %3936 = vmatpush1.msra.mxu0 0.0
        %3937 = vmatprep.subr.mxu0 0.0
        %3938 = vmatpush1.msra.mxu0 0.0
        %3939 = vmatprep.subr.mxu0 0.0
        %3940 = vmatpush1.msra.mxu0 0.0
        %3941 = vmatprep.subr.mxu0 0.0
        %3942 = vmatpush1.msra.mxu0 0.0
        %3943 = vmatprep.subr.mxu0 0.0
        %3944 = vmatpush1.msra.mxu0 0.0
        %3945 = vmatprep.subr.mxu0 0.0
        %3946 = vmatpush1.msra.mxu0 0.0
        %3947 = vmatprep.mubr.f32.mxu0 0.0
        %3948 = vmatmul.mubr.f32.gmra.mrb[0].mxu0 %v874
        %v3949 = vpop.f32.mrb[0].mxu0
        %v3950 = vadd.f32 0.0, %v3949
        %v3951 = vpop.f32.mrb[0].mxu0
        %3952 = vdwg.mxu0
        %v3953 = vadd.f32 %v3878, %v3950
        %v3955 = vcombine.high %v3953, %v3953
        %v3957 = vunpack.c.l.s4 1966171168
        %v3958 = vunpack.c.0.s8 %v3957
        %v3959 = vlaneseq
        %v3960 = vshrl.u32 %v3959, 7
        %v3961 = vsub.s32 %v3958, %v3960
        %v3962 = vrot.slane %v3953, %v3961
        %v3964 = vunpack.c.l.s4 1966171168
        %v3965 = vunpack.c.0.s8 %v3964
        %v3966 = vlaneseq
        %v3967 = vshrl.u32 %v3966, 7
        %v3968 = vsub.s32 %v3965, %v3967
        %v3969 = vrot.slane %v3955, %v3968
        %v3970 = vcombine.high %v3962, %v3962
        %v3971 = vcombine.high %v3969, %v3969
        %v3973 = vunpack.c.l.s4 1966171168
        %v3974 = vunpack.c.0.s8 %v3973
        %v3975 = vlaneseq
        %v3976 = vshrl.u32 %v3975, 7
        %v3977 = vsub.s32 %v3974, %v3976
        %v3978 = vrot.slane %v3962, %v3977
        %v3980 = vunpack.c.l.s4 1966171168
        %v3981 = vunpack.c.0.s8 %v3980
        %v3982 = vlaneseq
        %v3983 = vshrl.u32 %v3982, 7
        %v3984 = vsub.s32 %v3981, %v3983
        %v3985 = vrot.slane %v3969, %v3984
        %v3987 = vunpack.c.l.s4 1966171168
        %v3988 = vunpack.c.0.s8 %v3987
        %v3989 = vlaneseq
        %v3990 = vshrl.u32 %v3989, 7
        %v3991 = vsub.s32 %v3988, %v3990
        %v3992 = vrot.slane %v3970, %v3991
        %v3994 = vunpack.c.l.s4 1966171168
        %v3995 = vunpack.c.0.s8 %v3994
        %v3996 = vlaneseq
        %v3997 = vshrl.u32 %v3996, 7
        %v3998 = vsub.s32 %v3995, %v3997
        %v3999 = vrot.slane %v3971, %v3998
        %v4000 = vcombine.high %v3978, %v3978
        %v4001 = vcombine.high %v3985, %v3985
        %v4002 = vcombine.high %v3992, %v3992
        %v4003 = vcombine.high %v3999, %v3999
        %4012 = vst.msk [vmem:[%s209 + $0x4] sm:$0x1] %vm1007, %v3978
        %4013 = vst.msk [vmem:[%s209 + $0xc] sm:$0x1] %vm1007, %v3992
        %4014 = vst.msk [vmem:[%s209 + $0x14] sm:$0x1] %vm1007, %v4000
        %4015 = vst.msk [vmem:[%s209 + $0x1c] sm:$0x1] %vm1007, %v4002
        %4016 = vst.msk [vmem:[%s209 + $0x24] sm:$0x1] %vm1007, %v3985
        %4017 = vst.msk [vmem:[%s209 + $0x2c] sm:$0x1] %vm1007, %v3999
        %4018 = vst.msk [vmem:[%s209 + $0x34] sm:$0x1] %vm1007, %v4001
        %4019 = vst.msk [vmem:[%s209 + $0x3c] sm:$0x1] %vm1007, %v4003
        %s4020 = sld [smem:[#allocation3 + %s2974]]
        %s4021 = smul.u32 %s4020, 4
        %s4022 = scalar_lea.vmem %s187, %s4021 [#allocation4]
        %v4023 = vld [vmem:[%s4022] sm:$0xf]
        %v4025 = vsel %vm242, %v4023, 0
        %4027 = vmatprep.subr.mxu0 0.0
        %4028 = vmatpush1.msra.mxu0 %v4025
        %4029 = vmatprep.subr.mxu0 0.0
        %4030 = vmatpush1.msra.mxu0 0.0
        %4031 = vmatprep.subr.mxu0 0.0
        %4032 = vmatpush1.msra.mxu0 0.0
        %4033 = vmatprep.subr.mxu0 0.0
        %4034 = vmatpush1.msra.mxu0 0.0
        %4035 = vmatprep.subr.mxu0 0.0
        %4036 = vmatpush1.msra.mxu0 0.0
        %4037 = vmatprep.subr.mxu0 0.0
        %4038 = vmatpush1.msra.mxu0 0.0
        %4039 = vmatprep.subr.mxu0 0.0
        %4040 = vmatpush1.msra.mxu0 0.0
        %4041 = vmatprep.subr.mxu0 0.0
        %4042 = vmatpush1.msra.mxu0 0.0
        %4043 = vmatprep.subr.mxu0 0.0
        %4044 = vmatpush1.msra.mxu0 0.0
        %4045 = vmatprep.subr.mxu0 0.0
        %4046 = vmatpush1.msra.mxu0 0.0
        %4047 = vmatprep.subr.mxu0 0.0
        %4048 = vmatpush1.msra.mxu0 0.0
        %4049 = vmatprep.subr.mxu0 0.0
        %4050 = vmatpush1.msra.mxu0 0.0
        %4051 = vmatprep.subr.mxu0 0.0
        %4052 = vmatpush1.msra.mxu0 0.0
        %4053 = vmatprep.subr.mxu0 0.0
        %4054 = vmatpush1.msra.mxu0 0.0
        %4055 = vmatprep.subr.mxu0 0.0
        %4056 = vmatpush1.msra.mxu0 0.0
        %4057 = vmatprep.subr.mxu0 0.0
        %4058 = vmatpush1.msra.mxu0 0.0
        %4059 = vmatprep.subr.mxu0 0.0
        %4060 = vmatpush1.msra.mxu0 0.0
        %4061 = vmatprep.subr.mxu0 0.0
        %4062 = vmatpush1.msra.mxu0 0.0
        %4063 = vmatprep.subr.mxu0 0.0
        %4064 = vmatpush1.msra.mxu0 0.0
        %4065 = vmatprep.subr.mxu0 0.0
        %4066 = vmatpush1.msra.mxu0 0.0
        %4067 = vmatprep.subr.mxu0 0.0
        %4068 = vmatpush1.msra.mxu0 0.0
        %4069 = vmatprep.subr.mxu0 0.0
        %4070 = vmatpush1.msra.mxu0 0.0
        %4071 = vmatprep.subr.mxu0 0.0
        %4072 = vmatpush1.msra.mxu0 0.0
        %4073 = vmatprep.subr.mxu0 0.0
        %4074 = vmatpush1.msra.mxu0 0.0
        %4075 = vmatprep.subr.mxu0 0.0
        %4076 = vmatpush1.msra.mxu0 0.0
        %4077 = vmatprep.subr.mxu0 0.0
        %4078 = vmatpush1.msra.mxu0 0.0
        %4079 = vmatprep.subr.mxu0 0.0
        %4080 = vmatpush1.msra.mxu0 0.0
        %4081 = vmatprep.subr.mxu0 0.0
        %4082 = vmatpush1.msra.mxu0 0.0
        %4083 = vmatprep.subr.mxu0 0.0
        %4084 = vmatpush1.msra.mxu0 0.0
        %4085 = vmatprep.subr.mxu0 0.0
        %4086 = vmatpush1.msra.mxu0 0.0
        %4087 = vmatprep.subr.mxu0 0.0
        %4088 = vmatpush1.msra.mxu0 0.0
        %4089 = vmatprep.subr.mxu0 0.0
        %4090 = vmatpush1.msra.mxu0 0.0
        %4091 = vmatprep.mubr.f32.mxu0 0.0
        %4092 = vmatmul.mubr.f32.gmra.mrb[0].mxu0 %v240
        %v4093 = vpop.f32.mrb[0].mxu0
        %v4094 = vadd.f32 0.0, %v4093
        %v4095 = vpop.f32.mrb[0].mxu0
        %4096 = vdwg.mxu0
        %v4097 = vadd.f32 %v231, %v4094
        %4098 = vrot.lane.b32.xlu0 %v4023, 127
        %v4099 = vpop.permute.xlu0 %4098
        %v4100 = vsel %vm242, %v4099, 0
        %4102 = vmatprep.subr.mxu0 0.0
        %4103 = vmatpush1.msra.mxu0 %v4100
        %4104 = vmatprep.subr.mxu0 0.0
        %4105 = vmatpush1.msra.mxu0 0.0
        %4106 = vmatprep.subr.mxu0 0.0
        %4107 = vmatpush1.msra.mxu0 0.0
        %4108 = vmatprep.subr.mxu0 0.0
        %4109 = vmatpush1.msra.mxu0 0.0
        %4110 = vmatprep.subr.mxu0 0.0
        %4111 = vmatpush1.msra.mxu0 0.0
        %4112 = vmatprep.subr.mxu0 0.0
        %4113 = vmatpush1.msra.mxu0 0.0
        %4114 = vmatprep.subr.mxu0 0.0
        %4115 = vmatpush1.msra.mxu0 0.0
        %4116 = vmatprep.subr.mxu0 0.0
        %4117 = vmatpush1.msra.mxu0 0.0
        %4118 = vmatprep.subr.mxu0 0.0
        %4119 = vmatpush1.msra.mxu0 0.0
        %4120 = vmatprep.subr.mxu0 0.0
        %4121 = vmatpush1.msra.mxu0 0.0
        %4122 = vmatprep.subr.mxu0 0.0
        %4123 = vmatpush1.msra.mxu0 0.0
        %4124 = vmatprep.subr.mxu0 0.0
        %4125 = vmatpush1.msra.mxu0 0.0
        %4126 = vmatprep.subr.mxu0 0.0
        %4127 = vmatpush1.msra.mxu0 0.0
        %4128 = vmatprep.subr.mxu0 0.0
        %4129 = vmatpush1.msra.mxu0 0.0
        %4130 = vmatprep.subr.mxu0 0.0
        %4131 = vmatpush1.msra.mxu0 0.0
        %4132 = vmatprep.subr.mxu0 0.0
        %4133 = vmatpush1.msra.mxu0 0.0
        %4134 = vmatprep.subr.mxu0 0.0
        %4135 = vmatpush1.msra.mxu0 0.0
        %4136 = vmatprep.subr.mxu0 0.0
        %4137 = vmatpush1.msra.mxu0 0.0
        %4138 = vmatprep.subr.mxu0 0.0
        %4139 = vmatpush1.msra.mxu0 0.0
        %4140 = vmatprep.subr.mxu0 0.0
        %4141 = vmatpush1.msra.mxu0 0.0
        %4142 = vmatprep.subr.mxu0 0.0
        %4143 = vmatpush1.msra.mxu0 0.0
        %4144 = vmatprep.subr.mxu0 0.0
        %4145 = vmatpush1.msra.mxu0 0.0
        %4146 = vmatprep.subr.mxu0 0.0
        %4147 = vmatpush1.msra.mxu0 0.0
        %4148 = vmatprep.subr.mxu0 0.0
        %4149 = vmatpush1.msra.mxu0 0.0
        %4150 = vmatprep.subr.mxu0 0.0
        %4151 = vmatpush1.msra.mxu0 0.0
        %4152 = vmatprep.subr.mxu0 0.0
        %4153 = vmatpush1.msra.mxu0 0.0
        %4154 = vmatprep.subr.mxu0 0.0
        %4155 = vmatpush1.msra.mxu0 0.0
        %4156 = vmatprep.subr.mxu0 0.0
        %4157 = vmatpush1.msra.mxu0 0.0
        %4158 = vmatprep.subr.mxu0 0.0
        %4159 = vmatpush1.msra.mxu0 0.0
        %4160 = vmatprep.subr.mxu0 0.0
        %4161 = vmatpush1.msra.mxu0 0.0
        %4162 = vmatprep.subr.mxu0 0.0
        %4163 = vmatpush1.msra.mxu0 0.0
        %4164 = vmatprep.subr.mxu0 0.0
        %4165 = vmatpush1.msra.mxu0 0.0
        %4166 = vmatprep.mubr.f32.mxu0 0.0
        %4167 = vmatmul.mubr.f32.gmra.mrb[0].mxu0 %v320
        %v4168 = vpop.f32.mrb[0].mxu0
        %v4169 = vadd.f32 0.0, %v4168
        %v4170 = vpop.f32.mrb[0].mxu0
        %4171 = vdwg.mxu0
        %v4172 = vadd.f32 %v4097, %v4169
        %4173 = vrot.lane.b32.xlu0 %v4023, 126
        %v4174 = vpop.permute.xlu0 %4173
        %v4175 = vsel %vm242, %v4174, 0
        %4177 = vmatprep.subr.mxu0 0.0
        %4178 = vmatpush1.msra.mxu0 %v4175
        %4179 = vmatprep.subr.mxu0 0.0
        %4180 = vmatpush1.msra.mxu0 0.0
        %4181 = vmatprep.subr.mxu0 0.0
        %4182 = vmatpush1.msra.mxu0 0.0
        %4183 = vmatprep.subr.mxu0 0.0
        %4184 = vmatpush1.msra.mxu0 0.0
        %4185 = vmatprep.subr.mxu0 0.0
        %4186 = vmatpush1.msra.mxu0 0.0
        %4187 = vmatprep.subr.mxu0 0.0
        %4188 = vmatpush1.msra.mxu0 0.0
        %4189 = vmatprep.subr.mxu0 0.0
        %4190 = vmatpush1.msra.mxu0 0.0
        %4191 = vmatprep.subr.mxu0 0.0
        %4192 = vmatpush1.msra.mxu0 0.0
        %4193 = vmatprep.subr.mxu0 0.0
        %4194 = vmatpush1.msra.mxu0 0.0
        %4195 = vmatprep.subr.mxu0 0.0
        %4196 = vmatpush1.msra.mxu0 0.0
        %4197 = vmatprep.subr.mxu0 0.0
        %4198 = vmatpush1.msra.mxu0 0.0
        %4199 = vmatprep.subr.mxu0 0.0
        %4200 = vmatpush1.msra.mxu0 0.0
        %4201 = vmatprep.subr.mxu0 0.0
        %4202 = vmatpush1.msra.mxu0 0.0
        %4203 = vmatprep.subr.mxu0 0.0
        %4204 = vmatpush1.msra.mxu0 0.0
        %4205 = vmatprep.subr.mxu0 0.0
        %4206 = vmatpush1.msra.mxu0 0.0
        %4207 = vmatprep.subr.mxu0 0.0
        %4208 = vmatpush1.msra.mxu0 0.0
        %4209 = vmatprep.subr.mxu0 0.0
        %4210 = vmatpush1.msra.mxu0 0.0
        %4211 = vmatprep.subr.mxu0 0.0
        %4212 = vmatpush1.msra.mxu0 0.0
        %4213 = vmatprep.subr.mxu0 0.0
        %4214 = vmatpush1.msra.mxu0 0.0
        %4215 = vmatprep.subr.mxu0 0.0
        %4216 = vmatpush1.msra.mxu0 0.0
        %4217 = vmatprep.subr.mxu0 0.0
        %4218 = vmatpush1.msra.mxu0 0.0
        %4219 = vmatprep.subr.mxu0 0.0
        %4220 = vmatpush1.msra.mxu0 0.0
        %4221 = vmatprep.subr.mxu0 0.0
        %4222 = vmatpush1.msra.mxu0 0.0
        %4223 = vmatprep.subr.mxu0 0.0
        %4224 = vmatpush1.msra.mxu0 0.0
        %4225 = vmatprep.subr.mxu0 0.0
        %4226 = vmatpush1.msra.mxu0 0.0
        %4227 = vmatprep.subr.mxu0 0.0
        %4228 = vmatpush1.msra.mxu0 0.0
        %4229 = vmatprep.subr.mxu0 0.0
        %4230 = vmatpush1.msra.mxu0 0.0
        %4231 = vmatprep.subr.mxu0 0.0
        %4232 = vmatpush1.msra.mxu0 0.0
        %4233 = vmatprep.subr.mxu0 0.0
        %4234 = vmatpush1.msra.mxu0 0.0
        %4235 = vmatprep.subr.mxu0 0.0
        %4236 = vmatpush1.msra.mxu0 0.0
        %4237 = vmatprep.subr.mxu0 0.0
        %4238 = vmatpush1.msra.mxu0 0.0
        %4239 = vmatprep.subr.mxu0 0.0
        %4240 = vmatpush1.msra.mxu0 0.0
        %4241 = vmatprep.mubr.f32.mxu0 0.0
        %4242 = vmatmul.mubr.f32.gmra.mrb[0].mxu0 %v398
        %v4243 = vpop.f32.mrb[0].mxu0
        %v4244 = vadd.f32 0.0, %v4243
        %v4245 = vpop.f32.mrb[0].mxu0
        %4246 = vdwg.mxu0
        %v4247 = vadd.f32 %v4172, %v4244
        %s4248 = sld [smem:[#allocation3 + %s3725]]
        %s4249 = smul.u32 %s4248, 4
        %s4250 = scalar_lea.vmem %s187, %s4249 [#allocation4]
        %v4251 = vld [vmem:[%s4250] sm:$0xf]
        %v4253 = vsel %vm242, %v4251, 0
        %4255 = vmatprep.subr.mxu0 0.0
        %4256 = vmatpush1.msra.mxu0 %v4253
        %4257 = vmatprep.subr.mxu0 0.0
        %4258 = vmatpush1.msra.mxu0 0.0
        %4259 = vmatprep.subr.mxu0 0.0
        %4260 = vmatpush1.msra.mxu0 0.0
        %4261 = vmatprep.subr.mxu0 0.0
        %4262 = vmatpush1.msra.mxu0 0.0
        %4263 = vmatprep.subr.mxu0 0.0
        %4264 = vmatpush1.msra.mxu0 0.0
        %4265 = vmatprep.subr.mxu0 0.0
        %4266 = vmatpush1.msra.mxu0 0.0
        %4267 = vmatprep.subr.mxu0 0.0
        %4268 = vmatpush1.msra.mxu0 0.0
        %4269 = vmatprep.subr.mxu0 0.0
        %4270 = vmatpush1.msra.mxu0 0.0
        %4271 = vmatprep.subr.mxu0 0.0
        %4272 = vmatpush1.msra.mxu0 0.0
        %4273 = vmatprep.subr.mxu0 0.0
        %4274 = vmatpush1.msra.mxu0 0.0
        %4275 = vmatprep.subr.mxu0 0.0
        %4276 = vmatpush1.msra.mxu0 0.0
        %4277 = vmatprep.subr.mxu0 0.0
        %4278 = vmatpush1.msra.mxu0 0.0
        %4279 = vmatprep.subr.mxu0 0.0
        %4280 = vmatpush1.msra.mxu0 0.0
        %4281 = vmatprep.subr.mxu0 0.0
        %4282 = vmatpush1.msra.mxu0 0.0
        %4283 = vmatprep.subr.mxu0 0.0
        %4284 = vmatpush1.msra.mxu0 0.0
        %4285 = vmatprep.subr.mxu0 0.0
        %4286 = vmatpush1.msra.mxu0 0.0
        %4287 = vmatprep.subr.mxu0 0.0
        %4288 = vmatpush1.msra.mxu0 0.0
        %4289 = vmatprep.subr.mxu0 0.0
        %4290 = vmatpush1.msra.mxu0 0.0
        %4291 = vmatprep.subr.mxu0 0.0
        %4292 = vmatpush1.msra.mxu0 0.0
        %4293 = vmatprep.subr.mxu0 0.0
        %4294 = vmatpush1.msra.mxu0 0.0
        %4295 = vmatprep.subr.mxu0 0.0
        %4296 = vmatpush1.msra.mxu0 0.0
        %4297 = vmatprep.subr.mxu0 0.0
        %4298 = vmatpush1.msra.mxu0 0.0
        %4299 = vmatprep.subr.mxu0 0.0
        %4300 = vmatpush1.msra.mxu0 0.0
        %4301 = vmatprep.subr.mxu0 0.0
        %4302 = vmatpush1.msra.mxu0 0.0
        %4303 = vmatprep.subr.mxu0 0.0
        %4304 = vmatpush1.msra.mxu0 0.0
        %4305 = vmatprep.subr.mxu0 0.0
        %4306 = vmatpush1.msra.mxu0 0.0
        %4307 = vmatprep.subr.mxu0 0.0
        %4308 = vmatpush1.msra.mxu0 0.0
        %4309 = vmatprep.subr.mxu0 0.0
        %4310 = vmatpush1.msra.mxu0 0.0
        %4311 = vmatprep.subr.mxu0 0.0
        %4312 = vmatpush1.msra.mxu0 0.0
        %4313 = vmatprep.subr.mxu0 0.0
        %4314 = vmatpush1.msra.mxu0 0.0
        %4315 = vmatprep.subr.mxu0 0.0
        %4316 = vmatpush1.msra.mxu0 0.0
        %4317 = vmatprep.subr.mxu0 0.0
        %4318 = vmatpush1.msra.mxu0 0.0
        %4319 = vmatprep.mubr.f32.mxu0 0.0
        %4320 = vmatmul.mubr.f32.gmra.mrb[0].mxu0 %v479
        %v4321 = vpop.f32.mrb[0].mxu0
        %v4322 = vadd.f32 0.0, %v4321
        %v4323 = vpop.f32.mrb[0].mxu0
        %4324 = vdwg.mxu0
        %v4325 = vadd.f32 %v4247, %v4322
        %4326 = vrot.lane.b32.xlu0 %v4251, 127
        %v4327 = vpop.permute.xlu0 %4326
        %v4328 = vsel %vm242, %v4327, 0
        %4330 = vmatprep.subr.mxu0 0.0
        %4331 = vmatpush1.msra.mxu0 %v4328
        %4332 = vmatprep.subr.mxu0 0.0
        %4333 = vmatpush1.msra.mxu0 0.0
        %4334 = vmatprep.subr.mxu0 0.0
        %4335 = vmatpush1.msra.mxu0 0.0
        %4336 = vmatprep.subr.mxu0 0.0
        %4337 = vmatpush1.msra.mxu0 0.0
        %4338 = vmatprep.subr.mxu0 0.0
        %4339 = vmatpush1.msra.mxu0 0.0
        %4340 = vmatprep.subr.mxu0 0.0
        %4341 = vmatpush1.msra.mxu0 0.0
        %4342 = vmatprep.subr.mxu0 0.0
        %4343 = vmatpush1.msra.mxu0 0.0
        %4344 = vmatprep.subr.mxu0 0.0
        %4345 = vmatpush1.msra.mxu0 0.0
        %4346 = vmatprep.subr.mxu0 0.0
        %4347 = vmatpush1.msra.mxu0 0.0
        %4348 = vmatprep.subr.mxu0 0.0
        %4349 = vmatpush1.msra.mxu0 0.0
        %4350 = vmatprep.subr.mxu0 0.0
        %4351 = vmatpush1.msra.mxu0 0.0
        %4352 = vmatprep.subr.mxu0 0.0
        %4353 = vmatpush1.msra.mxu0 0.0
        %4354 = vmatprep.subr.mxu0 0.0
        %4355 = vmatpush1.msra.mxu0 0.0
        %4356 = vmatprep.subr.mxu0 0.0
        %4357 = vmatpush1.msra.mxu0 0.0
        %4358 = vmatprep.subr.mxu0 0.0
        %4359 = vmatpush1.msra.mxu0 0.0
        %4360 = vmatprep.subr.mxu0 0.0
        %4361 = vmatpush1.msra.mxu0 0.0
        %4362 = vmatprep.subr.mxu0 0.0
        %4363 = vmatpush1.msra.mxu0 0.0
        %4364 = vmatprep.subr.mxu0 0.0
        %4365 = vmatpush1.msra.mxu0 0.0
        %4366 = vmatprep.subr.mxu0 0.0
        %4367 = vmatpush1.msra.mxu0 0.0
        %4368 = vmatprep.subr.mxu0 0.0
        %4369 = vmatpush1.msra.mxu0 0.0
        %4370 = vmatprep.subr.mxu0 0.0
        %4371 = vmatpush1.msra.mxu0 0.0
        %4372 = vmatprep.subr.mxu0 0.0
        %4373 = vmatpush1.msra.mxu0 0.0
        %4374 = vmatprep.subr.mxu0 0.0
        %4375 = vmatpush1.msra.mxu0 0.0
        %4376 = vmatprep.subr.mxu0 0.0
        %4377 = vmatpush1.msra.mxu0 0.0
        %4378 = vmatprep.subr.mxu0 0.0
        %4379 = vmatpush1.msra.mxu0 0.0
        %4380 = vmatprep.subr.mxu0 0.0
        %4381 = vmatpush1.msra.mxu0 0.0
        %4382 = vmatprep.subr.mxu0 0.0
        %4383 = vmatpush1.msra.mxu0 0.0
        %4384 = vmatprep.subr.mxu0 0.0
        %4385 = vmatpush1.msra.mxu0 0.0
        %4386 = vmatprep.subr.mxu0 0.0
        %4387 = vmatpush1.msra.mxu0 0.0
        %4388 = vmatprep.subr.mxu0 0.0
        %4389 = vmatpush1.msra.mxu0 0.0
        %4390 = vmatprep.subr.mxu0 0.0
        %4391 = vmatpush1.msra.mxu0 0.0
        %4392 = vmatprep.subr.mxu0 0.0
        %4393 = vmatpush1.msra.mxu0 0.0
        %4394 = vmatprep.mubr.f32.mxu0 0.0
        %4395 = vmatmul.mubr.f32.gmra.mrb[0].mxu0 %v558
        %v4396 = vpop.f32.mrb[0].mxu0
        %v4397 = vadd.f32 0.0, %v4396
        %v4398 = vpop.f32.mrb[0].mxu0
        %4399 = vdwg.mxu0
        %v4400 = vadd.f32 %v4325, %v4397
        %4401 = vrot.lane.b32.xlu0 %v4251, 126
        %v4402 = vpop.permute.xlu0 %4401
        %v4403 = vsel %vm242, %v4402, 0
        %4405 = vmatprep.subr.mxu0 0.0
        %4406 = vmatpush1.msra.mxu0 %v4403
        %4407 = vmatprep.subr.mxu0 0.0
        %4408 = vmatpush1.msra.mxu0 0.0
        %4409 = vmatprep.subr.mxu0 0.0
        %4410 = vmatpush1.msra.mxu0 0.0
        %4411 = vmatprep.subr.mxu0 0.0
        %4412 = vmatpush1.msra.mxu0 0.0
        %4413 = vmatprep.subr.mxu0 0.0
        %4414 = vmatpush1.msra.mxu0 0.0
        %4415 = vmatprep.subr.mxu0 0.0
        %4416 = vmatpush1.msra.mxu0 0.0
        %4417 = vmatprep.subr.mxu0 0.0
        %4418 = vmatpush1.msra.mxu0 0.0
        %4419 = vmatprep.subr.mxu0 0.0
        %4420 = vmatpush1.msra.mxu0 0.0
        %4421 = vmatprep.subr.mxu0 0.0
        %4422 = vmatpush1.msra.mxu0 0.0
        %4423 = vmatprep.subr.mxu0 0.0
        %4424 = vmatpush1.msra.mxu0 0.0
        %4425 = vmatprep.subr.mxu0 0.0
        %4426 = vmatpush1.msra.mxu0 0.0
        %4427 = vmatprep.subr.mxu0 0.0
        %4428 = vmatpush1.msra.mxu0 0.0
        %4429 = vmatprep.subr.mxu0 0.0
        %4430 = vmatpush1.msra.mxu0 0.0
        %4431 = vmatprep.subr.mxu0 0.0
        %4432 = vmatpush1.msra.mxu0 0.0
        %4433 = vmatprep.subr.mxu0 0.0
        %4434 = vmatpush1.msra.mxu0 0.0
        %4435 = vmatprep.subr.mxu0 0.0
        %4436 = vmatpush1.msra.mxu0 0.0
        %4437 = vmatprep.subr.mxu0 0.0
        %4438 = vmatpush1.msra.mxu0 0.0
        %4439 = vmatprep.subr.mxu0 0.0
        %4440 = vmatpush1.msra.mxu0 0.0
        %4441 = vmatprep.subr.mxu0 0.0
        %4442 = vmatpush1.msra.mxu0 0.0
        %4443 = vmatprep.subr.mxu0 0.0
        %4444 = vmatpush1.msra.mxu0 0.0
        %4445 = vmatprep.subr.mxu0 0.0
        %4446 = vmatpush1.msra.mxu0 0.0
        %4447 = vmatprep.subr.mxu0 0.0
        %4448 = vmatpush1.msra.mxu0 0.0
        %4449 = vmatprep.subr.mxu0 0.0
        %4450 = vmatpush1.msra.mxu0 0.0
        %4451 = vmatprep.subr.mxu0 0.0
        %4452 = vmatpush1.msra.mxu0 0.0
        %4453 = vmatprep.subr.mxu0 0.0
        %4454 = vmatpush1.msra.mxu0 0.0
        %4455 = vmatprep.subr.mxu0 0.0
        %4456 = vmatpush1.msra.mxu0 0.0
        %4457 = vmatprep.subr.mxu0 0.0
        %4458 = vmatpush1.msra.mxu0 0.0
        %4459 = vmatprep.subr.mxu0 0.0
        %4460 = vmatpush1.msra.mxu0 0.0
        %4461 = vmatprep.subr.mxu0 0.0
        %4462 = vmatpush1.msra.mxu0 0.0
        %4463 = vmatprep.subr.mxu0 0.0
        %4464 = vmatpush1.msra.mxu0 0.0
        %4465 = vmatprep.subr.mxu0 0.0
        %4466 = vmatpush1.msra.mxu0 0.0
        %4467 = vmatprep.subr.mxu0 0.0
        %4468 = vmatpush1.msra.mxu0 0.0
        %4469 = vmatprep.mubr.f32.mxu0 0.0
        %4470 = vmatmul.mubr.f32.gmra.mrb[0].mxu0 %v636
        %v4471 = vpop.f32.mrb[0].mxu0
        %v4472 = vadd.f32 0.0, %v4471
        %v4473 = vpop.f32.mrb[0].mxu0
        %4474 = vdwg.mxu0
        %v4475 = vadd.f32 %v4400, %v4472
        %s4476 = sadd.s32 %s233, 7
        %s4477 = sld [smem:[#allocation3 + %s4476]]
        %s4478 = smul.u32 %s4477, 4
        %s4479 = scalar_lea.vmem %s187, %s4478 [#allocation4]
        %v4480 = vld [vmem:[%s4479] sm:$0xf]
        %v4482 = vsel %vm242, %v4480, 0
        %4484 = vmatprep.subr.mxu0 0.0
        %4485 = vmatpush1.msra.mxu0 %v4482
        %4486 = vmatprep.subr.mxu0 0.0
        %4487 = vmatpush1.msra.mxu0 0.0
        %4488 = vmatprep.subr.mxu0 0.0
        %4489 = vmatpush1.msra.mxu0 0.0
        %4490 = vmatprep.subr.mxu0 0.0
        %4491 = vmatpush1.msra.mxu0 0.0
        %4492 = vmatprep.subr.mxu0 0.0
        %4493 = vmatpush1.msra.mxu0 0.0
        %4494 = vmatprep.subr.mxu0 0.0
        %4495 = vmatpush1.msra.mxu0 0.0
        %4496 = vmatprep.subr.mxu0 0.0
        %4497 = vmatpush1.msra.mxu0 0.0
        %4498 = vmatprep.subr.mxu0 0.0
        %4499 = vmatpush1.msra.mxu0 0.0
        %4500 = vmatprep.subr.mxu0 0.0
        %4501 = vmatpush1.msra.mxu0 0.0
        %4502 = vmatprep.subr.mxu0 0.0
        %4503 = vmatpush1.msra.mxu0 0.0
        %4504 = vmatprep.subr.mxu0 0.0
        %4505 = vmatpush1.msra.mxu0 0.0
        %4506 = vmatprep.subr.mxu0 0.0
        %4507 = vmatpush1.msra.mxu0 0.0
        %4508 = vmatprep.subr.mxu0 0.0
        %4509 = vmatpush1.msra.mxu0 0.0
        %4510 = vmatprep.subr.mxu0 0.0
        %4511 = vmatpush1.msra.mxu0 0.0
        %4512 = vmatprep.subr.mxu0 0.0
        %4513 = vmatpush1.msra.mxu0 0.0
        %4514 = vmatprep.subr.mxu0 0.0
        %4515 = vmatpush1.msra.mxu0 0.0
        %4516 = vmatprep.subr.mxu0 0.0
        %4517 = vmatpush1.msra.mxu0 0.0
        %4518 = vmatprep.subr.mxu0 0.0
        %4519 = vmatpush1.msra.mxu0 0.0
        %4520 = vmatprep.subr.mxu0 0.0
        %4521 = vmatpush1.msra.mxu0 0.0
        %4522 = vmatprep.subr.mxu0 0.0
        %4523 = vmatpush1.msra.mxu0 0.0
        %4524 = vmatprep.subr.mxu0 0.0
        %4525 = vmatpush1.msra.mxu0 0.0
        %4526 = vmatprep.subr.mxu0 0.0
        %4527 = vmatpush1.msra.mxu0 0.0
        %4528 = vmatprep.subr.mxu0 0.0
        %4529 = vmatpush1.msra.mxu0 0.0
        %4530 = vmatprep.subr.mxu0 0.0
        %4531 = vmatpush1.msra.mxu0 0.0
        %4532 = vmatprep.subr.mxu0 0.0
        %4533 = vmatpush1.msra.mxu0 0.0
        %4534 = vmatprep.subr.mxu0 0.0
        %4535 = vmatpush1.msra.mxu0 0.0
        %4536 = vmatprep.subr.mxu0 0.0
        %4537 = vmatpush1.msra.mxu0 0.0
        %4538 = vmatprep.subr.mxu0 0.0
        %4539 = vmatpush1.msra.mxu0 0.0
        %4540 = vmatprep.subr.mxu0 0.0
        %4541 = vmatpush1.msra.mxu0 0.0
        %4542 = vmatprep.subr.mxu0 0.0
        %4543 = vmatpush1.msra.mxu0 0.0
        %4544 = vmatprep.subr.mxu0 0.0
        %4545 = vmatpush1.msra.mxu0 0.0
        %4546 = vmatprep.subr.mxu0 0.0
        %4547 = vmatpush1.msra.mxu0 0.0
        %4548 = vmatprep.mubr.f32.mxu0 0.0
        %4549 = vmatmul.mubr.f32.gmra.mrb[0].mxu0 %v717
        %v4550 = vpop.f32.mrb[0].mxu0
        %v4551 = vadd.f32 0.0, %v4550
        %v4552 = vpop.f32.mrb[0].mxu0
        %4553 = vdwg.mxu0
        %v4554 = vadd.f32 %v4475, %v4551
        %4555 = vrot.lane.b32.xlu0 %v4480, 127
        %v4556 = vpop.permute.xlu0 %4555
        %v4557 = vsel %vm242, %v4556, 0
        %4559 = vmatprep.subr.mxu0 0.0
        %4560 = vmatpush1.msra.mxu0 %v4557
        %4561 = vmatprep.subr.mxu0 0.0
        %4562 = vmatpush1.msra.mxu0 0.0
        %4563 = vmatprep.subr.mxu0 0.0
        %4564 = vmatpush1.msra.mxu0 0.0
        %4565 = vmatprep.subr.mxu0 0.0
        %4566 = vmatpush1.msra.mxu0 0.0
        %4567 = vmatprep.subr.mxu0 0.0
        %4568 = vmatpush1.msra.mxu0 0.0
        %4569 = vmatprep.subr.mxu0 0.0
        %4570 = vmatpush1.msra.mxu0 0.0
        %4571 = vmatprep.subr.mxu0 0.0
        %4572 = vmatpush1.msra.mxu0 0.0
        %4573 = vmatprep.subr.mxu0 0.0
        %4574 = vmatpush1.msra.mxu0 0.0
        %4575 = vmatprep.subr.mxu0 0.0
        %4576 = vmatpush1.msra.mxu0 0.0
        %4577 = vmatprep.subr.mxu0 0.0
        %4578 = vmatpush1.msra.mxu0 0.0
        %4579 = vmatprep.subr.mxu0 0.0
        %4580 = vmatpush1.msra.mxu0 0.0
        %4581 = vmatprep.subr.mxu0 0.0
        %4582 = vmatpush1.msra.mxu0 0.0
        %4583 = vmatprep.subr.mxu0 0.0
        %4584 = vmatpush1.msra.mxu0 0.0
        %4585 = vmatprep.subr.mxu0 0.0
        %4586 = vmatpush1.msra.mxu0 0.0
        %4587 = vmatprep.subr.mxu0 0.0
        %4588 = vmatpush1.msra.mxu0 0.0
        %4589 = vmatprep.subr.mxu0 0.0
        %4590 = vmatpush1.msra.mxu0 0.0
        %4591 = vmatprep.subr.mxu0 0.0
        %4592 = vmatpush1.msra.mxu0 0.0
        %4593 = vmatprep.subr.mxu0 0.0
        %4594 = vmatpush1.msra.mxu0 0.0
        %4595 = vmatprep.subr.mxu0 0.0
        %4596 = vmatpush1.msra.mxu0 0.0
        %4597 = vmatprep.subr.mxu0 0.0
        %4598 = vmatpush1.msra.mxu0 0.0
        %4599 = vmatprep.subr.mxu0 0.0
        %4600 = vmatpush1.msra.mxu0 0.0
        %4601 = vmatprep.subr.mxu0 0.0
        %4602 = vmatpush1.msra.mxu0 0.0
        %4603 = vmatprep.subr.mxu0 0.0
        %4604 = vmatpush1.msra.mxu0 0.0
        %4605 = vmatprep.subr.mxu0 0.0
        %4606 = vmatpush1.msra.mxu0 0.0
        %4607 = vmatprep.subr.mxu0 0.0
        %4608 = vmatpush1.msra.mxu0 0.0
        %4609 = vmatprep.subr.mxu0 0.0
        %4610 = vmatpush1.msra.mxu0 0.0
        %4611 = vmatprep.subr.mxu0 0.0
        %4612 = vmatpush1.msra.mxu0 0.0
        %4613 = vmatprep.subr.mxu0 0.0
        %4614 = vmatpush1.msra.mxu0 0.0
        %4615 = vmatprep.subr.mxu0 0.0
        %4616 = vmatpush1.msra.mxu0 0.0
        %4617 = vmatprep.subr.mxu0 0.0
        %4618 = vmatpush1.msra.mxu0 0.0
        %4619 = vmatprep.subr.mxu0 0.0
        %4620 = vmatpush1.msra.mxu0 0.0
        %4621 = vmatprep.subr.mxu0 0.0
        %4622 = vmatpush1.msra.mxu0 0.0
        %4623 = vmatprep.mubr.f32.mxu0 0.0
        %4624 = vmatmul.mubr.f32.gmra.mrb[0].mxu0 %v796
        %v4625 = vpop.f32.mrb[0].mxu0
        %v4626 = vadd.f32 0.0, %v4625
        %v4627 = vpop.f32.mrb[0].mxu0
        %4628 = vdwg.mxu0
        %v4629 = vadd.f32 %v4554, %v4626
        %4630 = vrot.lane.b32.xlu0 %v4480, 126
        %v4631 = vpop.permute.xlu0 %4630
        %v4632 = vsel %vm242, %v4631, 0
        %4634 = vmatprep.subr.mxu0 0.0
        %4635 = vmatpush1.msra.mxu0 %v4632
        %4636 = vmatprep.subr.mxu0 0.0
        %4637 = vmatpush1.msra.mxu0 0.0
        %4638 = vmatprep.subr.mxu0 0.0
        %4639 = vmatpush1.msra.mxu0 0.0
        %4640 = vmatprep.subr.mxu0 0.0
        %4641 = vmatpush1.msra.mxu0 0.0
        %4642 = vmatprep.subr.mxu0 0.0
        %4643 = vmatpush1.msra.mxu0 0.0
        %4644 = vmatprep.subr.mxu0 0.0
        %4645 = vmatpush1.msra.mxu0 0.0
        %4646 = vmatprep.subr.mxu0 0.0
        %4647 = vmatpush1.msra.mxu0 0.0
        %4648 = vmatprep.subr.mxu0 0.0
        %4649 = vmatpush1.msra.mxu0 0.0
        %4650 = vmatprep.subr.mxu0 0.0
        %4651 = vmatpush1.msra.mxu0 0.0
        %4652 = vmatprep.subr.mxu0 0.0
        %4653 = vmatpush1.msra.mxu0 0.0
        %4654 = vmatprep.subr.mxu0 0.0
        %4655 = vmatpush1.msra.mxu0 0.0
        %4656 = vmatprep.subr.mxu0 0.0
        %4657 = vmatpush1.msra.mxu0 0.0
        %4658 = vmatprep.subr.mxu0 0.0
        %4659 = vmatpush1.msra.mxu0 0.0
        %4660 = vmatprep.subr.mxu0 0.0
        %4661 = vmatpush1.msra.mxu0 0.0
        %4662 = vmatprep.subr.mxu0 0.0
        %4663 = vmatpush1.msra.mxu0 0.0
        %4664 = vmatprep.subr.mxu0 0.0
        %4665 = vmatpush1.msra.mxu0 0.0
        %4666 = vmatprep.subr.mxu0 0.0
        %4667 = vmatpush1.msra.mxu0 0.0
        %4668 = vmatprep.subr.mxu0 0.0
        %4669 = vmatpush1.msra.mxu0 0.0
        %4670 = vmatprep.subr.mxu0 0.0
        %4671 = vmatpush1.msra.mxu0 0.0
        %4672 = vmatprep.subr.mxu0 0.0
        %4673 = vmatpush1.msra.mxu0 0.0
        %4674 = vmatprep.subr.mxu0 0.0
        %4675 = vmatpush1.msra.mxu0 0.0
        %4676 = vmatprep.subr.mxu0 0.0
        %4677 = vmatpush1.msra.mxu0 0.0
        %4678 = vmatprep.subr.mxu0 0.0
        %4679 = vmatpush1.msra.mxu0 0.0
        %4680 = vmatprep.subr.mxu0 0.0
        %4681 = vmatpush1.msra.mxu0 0.0
        %4682 = vmatprep.subr.mxu0 0.0
        %4683 = vmatpush1.msra.mxu0 0.0
        %4684 = vmatprep.subr.mxu0 0.0
        %4685 = vmatpush1.msra.mxu0 0.0
        %4686 = vmatprep.subr.mxu0 0.0
        %4687 = vmatpush1.msra.mxu0 0.0
        %4688 = vmatprep.subr.mxu0 0.0
        %4689 = vmatpush1.msra.mxu0 0.0
        %4690 = vmatprep.subr.mxu0 0.0
        %4691 = vmatpush1.msra.mxu0 0.0
        %4692 = vmatprep.subr.mxu0 0.0
        %4693 = vmatpush1.msra.mxu0 0.0
        %4694 = vmatprep.subr.mxu0 0.0
        %4695 = vmatpush1.msra.mxu0 0.0
        %4696 = vmatprep.subr.mxu0 0.0
        %4697 = vmatpush1.msra.mxu0 0.0
        %4698 = vmatprep.mubr.f32.mxu0 0.0
        %4699 = vmatmul.mubr.f32.gmra.mrb[0].mxu0 %v874
        %v4700 = vpop.f32.mrb[0].mxu0
        %v4701 = vadd.f32 0.0, %v4700
        %v4702 = vpop.f32.mrb[0].mxu0
        %4703 = vdwg.mxu0
        %v4704 = vadd.f32 %v4629, %v4701
        %v4706 = vcombine.high %v4704, %v4704
        %v4708 = vunpack.c.l.s4 1966171168
        %v4709 = vunpack.c.0.s8 %v4708
        %v4710 = vlaneseq
        %v4711 = vshrl.u32 %v4710, 7
        %v4712 = vsub.s32 %v4709, %v4711
        %v4713 = vrot.slane %v4704, %v4712
        %v4715 = vunpack.c.l.s4 1966171168
        %v4716 = vunpack.c.0.s8 %v4715
        %v4717 = vlaneseq
        %v4718 = vshrl.u32 %v4717, 7
        %v4719 = vsub.s32 %v4716, %v4718
        %v4720 = vrot.slane %v4706, %v4719
        %v4721 = vcombine.high %v4713, %v4713
        %v4722 = vcombine.high %v4720, %v4720
        %v4724 = vunpack.c.l.s4 1966171168
        %v4725 = vunpack.c.0.s8 %v4724
        %v4726 = vlaneseq
        %v4727 = vshrl.u32 %v4726, 7
        %v4728 = vsub.s32 %v4725, %v4727
        %v4729 = vrot.slane %v4713, %v4728
        %v4731 = vunpack.c.l.s4 1966171168
        %v4732 = vunpack.c.0.s8 %v4731
        %v4733 = vlaneseq
        %v4734 = vshrl.u32 %v4733, 7
        %v4735 = vsub.s32 %v4732, %v4734
        %v4736 = vrot.slane %v4720, %v4735
        %v4738 = vunpack.c.l.s4 1966171168
        %v4739 = vunpack.c.0.s8 %v4738
        %v4740 = vlaneseq
        %v4741 = vshrl.u32 %v4740, 7
        %v4742 = vsub.s32 %v4739, %v4741
        %v4743 = vrot.slane %v4721, %v4742
        %v4745 = vunpack.c.l.s4 1966171168
        %v4746 = vunpack.c.0.s8 %v4745
        %v4747 = vlaneseq
        %v4748 = vshrl.u32 %v4747, 7
        %v4749 = vsub.s32 %v4746, %v4748
        %v4750 = vrot.slane %v4722, %v4749
        %v4751 = vcombine.high %v4729, %v4729
        %v4752 = vcombine.high %v4736, %v4736
        %v4753 = vcombine.high %v4743, %v4743
        %v4754 = vcombine.high %v4750, %v4750
        %4763 = vst.msk [vmem:[%s209 + $0x5] sm:$0x1] %vm1007, %v4729
        %4764 = vst.msk [vmem:[%s209 + $0xd] sm:$0x1] %vm1007, %v4743
        %4765 = vst.msk [vmem:[%s209 + $0x15] sm:$0x1] %vm1007, %v4751
        %4766 = vst.msk [vmem:[%s209 + $0x1d] sm:$0x1] %vm1007, %v4753
        %4767 = vst.msk [vmem:[%s209 + $0x25] sm:$0x1] %vm1007, %v4736
        %4768 = vst.msk [vmem:[%s209 + $0x2d] sm:$0x1] %vm1007, %v4750
        %4769 = vst.msk [vmem:[%s209 + $0x35] sm:$0x1] %vm1007, %v4752
        %4770 = vst.msk [vmem:[%s209 + $0x3d] sm:$0x1] %vm1007, %v4754
        %s4771 = sld [smem:[#allocation3 + %s3725]]
        %s4772 = smul.u32 %s4771, 4
        %s4773 = scalar_lea.vmem %s187, %s4772 [#allocation4]
        %v4774 = vld [vmem:[%s4773] sm:$0xf]
        %v4776 = vsel %vm242, %v4774, 0
        %4778 = vmatprep.subr.mxu0 0.0
        %4779 = vmatpush1.msra.mxu0 %v4776
        %4780 = vmatprep.subr.mxu0 0.0
        %4781 = vmatpush1.msra.mxu0 0.0
        %4782 = vmatprep.subr.mxu0 0.0
        %4783 = vmatpush1.msra.mxu0 0.0
        %4784 = vmatprep.subr.mxu0 0.0
        %4785 = vmatpush1.msra.mxu0 0.0
        %4786 = vmatprep.subr.mxu0 0.0
        %4787 = vmatpush1.msra.mxu0 0.0
        %4788 = vmatprep.subr.mxu0 0.0
        %4789 = vmatpush1.msra.mxu0 0.0
        %4790 = vmatprep.subr.mxu0 0.0
        %4791 = vmatpush1.msra.mxu0 0.0
        %4792 = vmatprep.subr.mxu0 0.0
        %4793 = vmatpush1.msra.mxu0 0.0
        %4794 = vmatprep.subr.mxu0 0.0
        %4795 = vmatpush1.msra.mxu0 0.0
        %4796 = vmatprep.subr.mxu0 0.0
        %4797 = vmatpush1.msra.mxu0 0.0
        %4798 = vmatprep.subr.mxu0 0.0
        %4799 = vmatpush1.msra.mxu0 0.0
        %4800 = vmatprep.subr.mxu0 0.0
        %4801 = vmatpush1.msra.mxu0 0.0
        %4802 = vmatprep.subr.mxu0 0.0
        %4803 = vmatpush1.msra.mxu0 0.0
        %4804 = vmatprep.subr.mxu0 0.0
        %4805 = vmatpush1.msra.mxu0 0.0
        %4806 = vmatprep.subr.mxu0 0.0
        %4807 = vmatpush1.msra.mxu0 0.0
        %4808 = vmatprep.subr.mxu0 0.0
        %4809 = vmatpush1.msra.mxu0 0.0
        %4810 = vmatprep.subr.mxu0 0.0
        %4811 = vmatpush1.msra.mxu0 0.0
        %4812 = vmatprep.subr.mxu0 0.0
        %4813 = vmatpush1.msra.mxu0 0.0
        %4814 = vmatprep.subr.mxu0 0.0
        %4815 = vmatpush1.msra.mxu0 0.0
        %4816 = vmatprep.subr.mxu0 0.0
        %4817 = vmatpush1.msra.mxu0 0.0
        %4818 = vmatprep.subr.mxu0 0.0
        %4819 = vmatpush1.msra.mxu0 0.0
        %4820 = vmatprep.subr.mxu0 0.0
        %4821 = vmatpush1.msra.mxu0 0.0
        %4822 = vmatprep.subr.mxu0 0.0
        %4823 = vmatpush1.msra.mxu0 0.0
        %4824 = vmatprep.subr.mxu0 0.0
        %4825 = vmatpush1.msra.mxu0 0.0
        %4826 = vmatprep.subr.mxu0 0.0
        %4827 = vmatpush1.msra.mxu0 0.0
        %4828 = vmatprep.subr.mxu0 0.0
        %4829 = vmatpush1.msra.mxu0 0.0
        %4830 = vmatprep.subr.mxu0 0.0
        %4831 = vmatpush1.msra.mxu0 0.0
        %4832 = vmatprep.subr.mxu0 0.0
        %4833 = vmatpush1.msra.mxu0 0.0
        %4834 = vmatprep.subr.mxu0 0.0
        %4835 = vmatpush1.msra.mxu0 0.0
        %4836 = vmatprep.subr.mxu0 0.0
        %4837 = vmatpush1.msra.mxu0 0.0
        %4838 = vmatprep.subr.mxu0 0.0
        %4839 = vmatpush1.msra.mxu0 0.0
        %4840 = vmatprep.subr.mxu0 0.0
        %4841 = vmatpush1.msra.mxu0 0.0
        %4842 = vmatprep.mubr.f32.mxu0 0.0
        %4843 = vmatmul.mubr.f32.gmra.mrb[0].mxu0 %v240
        %v4844 = vpop.f32.mrb[0].mxu0
        %v4845 = vadd.f32 0.0, %v4844
        %v4846 = vpop.f32.mrb[0].mxu0
        %4847 = vdwg.mxu0
        %v4848 = vadd.f32 %v231, %v4845
        %4849 = vrot.lane.b32.xlu0 %v4774, 127
        %v4850 = vpop.permute.xlu0 %4849
        %v4851 = vsel %vm242, %v4850, 0
        %4853 = vmatprep.subr.mxu0 0.0
        %4854 = vmatpush1.msra.mxu0 %v4851
        %4855 = vmatprep.subr.mxu0 0.0
        %4856 = vmatpush1.msra.mxu0 0.0
        %4857 = vmatprep.subr.mxu0 0.0
        %4858 = vmatpush1.msra.mxu0 0.0
        %4859 = vmatprep.subr.mxu0 0.0
        %4860 = vmatpush1.msra.mxu0 0.0
        %4861 = vmatprep.subr.mxu0 0.0
        %4862 = vmatpush1.msra.mxu0 0.0
        %4863 = vmatprep.subr.mxu0 0.0
        %4864 = vmatpush1.msra.mxu0 0.0
        %4865 = vmatprep.subr.mxu0 0.0
        %4866 = vmatpush1.msra.mxu0 0.0
        %4867 = vmatprep.subr.mxu0 0.0
        %4868 = vmatpush1.msra.mxu0 0.0
        %4869 = vmatprep.subr.mxu0 0.0
        %4870 = vmatpush1.msra.mxu0 0.0
        %4871 = vmatprep.subr.mxu0 0.0
        %4872 = vmatpush1.msra.mxu0 0.0
        %4873 = vmatprep.subr.mxu0 0.0
        %4874 = vmatpush1.msra.mxu0 0.0
        %4875 = vmatprep.subr.mxu0 0.0
        %4876 = vmatpush1.msra.mxu0 0.0
        %4877 = vmatprep.subr.mxu0 0.0
        %4878 = vmatpush1.msra.mxu0 0.0
        %4879 = vmatprep.subr.mxu0 0.0
        %4880 = vmatpush1.msra.mxu0 0.0
        %4881 = vmatprep.subr.mxu0 0.0
        %4882 = vmatpush1.msra.mxu0 0.0
        %4883 = vmatprep.subr.mxu0 0.0
        %4884 = vmatpush1.msra.mxu0 0.0
        %4885 = vmatprep.subr.mxu0 0.0
        %4886 = vmatpush1.msra.mxu0 0.0
        %4887 = vmatprep.subr.mxu0 0.0
        %4888 = vmatpush1.msra.mxu0 0.0
        %4889 = vmatprep.subr.mxu0 0.0
        %4890 = vmatpush1.msra.mxu0 0.0
        %4891 = vmatprep.subr.mxu0 0.0
        %4892 = vmatpush1.msra.mxu0 0.0
        %4893 = vmatprep.subr.mxu0 0.0
        %4894 = vmatpush1.msra.mxu0 0.0
        %4895 = vmatprep.subr.mxu0 0.0
        %4896 = vmatpush1.msra.mxu0 0.0
        %4897 = vmatprep.subr.mxu0 0.0
        %4898 = vmatpush1.msra.mxu0 0.0
        %4899 = vmatprep.subr.mxu0 0.0
        %4900 = vmatpush1.msra.mxu0 0.0
        %4901 = vmatprep.subr.mxu0 0.0
        %4902 = vmatpush1.msra.mxu0 0.0
        %4903 = vmatprep.subr.mxu0 0.0
        %4904 = vmatpush1.msra.mxu0 0.0
        %4905 = vmatprep.subr.mxu0 0.0
        %4906 = vmatpush1.msra.mxu0 0.0
        %4907 = vmatprep.subr.mxu0 0.0
        %4908 = vmatpush1.msra.mxu0 0.0
        %4909 = vmatprep.subr.mxu0 0.0
        %4910 = vmatpush1.msra.mxu0 0.0
        %4911 = vmatprep.subr.mxu0 0.0
        %4912 = vmatpush1.msra.mxu0 0.0
        %4913 = vmatprep.subr.mxu0 0.0
        %4914 = vmatpush1.msra.mxu0 0.0
        %4915 = vmatprep.subr.mxu0 0.0
        %4916 = vmatpush1.msra.mxu0 0.0
        %4917 = vmatprep.mubr.f32.mxu0 0.0
        %4918 = vmatmul.mubr.f32.gmra.mrb[0].mxu0 %v320
        %v4919 = vpop.f32.mrb[0].mxu0
        %v4920 = vadd.f32 0.0, %v4919
        %v4921 = vpop.f32.mrb[0].mxu0
        %4922 = vdwg.mxu0
        %v4923 = vadd.f32 %v4848, %v4920
        %4924 = vrot.lane.b32.xlu0 %v4774, 126
        %v4925 = vpop.permute.xlu0 %4924
        %v4926 = vsel %vm242, %v4925, 0
        %4928 = vmatprep.subr.mxu0 0.0
        %4929 = vmatpush1.msra.mxu0 %v4926
        %4930 = vmatprep.subr.mxu0 0.0
        %4931 = vmatpush1.msra.mxu0 0.0
        %4932 = vmatprep.subr.mxu0 0.0
        %4933 = vmatpush1.msra.mxu0 0.0
        %4934 = vmatprep.subr.mxu0 0.0
        %4935 = vmatpush1.msra.mxu0 0.0
        %4936 = vmatprep.subr.mxu0 0.0
        %4937 = vmatpush1.msra.mxu0 0.0
        %4938 = vmatprep.subr.mxu0 0.0
        %4939 = vmatpush1.msra.mxu0 0.0
        %4940 = vmatprep.subr.mxu0 0.0
        %4941 = vmatpush1.msra.mxu0 0.0
        %4942 = vmatprep.subr.mxu0 0.0
        %4943 = vmatpush1.msra.mxu0 0.0
        %4944 = vmatprep.subr.mxu0 0.0
        %4945 = vmatpush1.msra.mxu0 0.0
        %4946 = vmatprep.subr.mxu0 0.0
        %4947 = vmatpush1.msra.mxu0 0.0
        %4948 = vmatprep.subr.mxu0 0.0
        %4949 = vmatpush1.msra.mxu0 0.0
        %4950 = vmatprep.subr.mxu0 0.0
        %4951 = vmatpush1.msra.mxu0 0.0
        %4952 = vmatprep.subr.mxu0 0.0
        %4953 = vmatpush1.msra.mxu0 0.0
        %4954 = vmatprep.subr.mxu0 0.0
        %4955 = vmatpush1.msra.mxu0 0.0
        %4956 = vmatprep.subr.mxu0 0.0
        %4957 = vmatpush1.msra.mxu0 0.0
        %4958 = vmatprep.subr.mxu0 0.0
        %4959 = vmatpush1.msra.mxu0 0.0
        %4960 = vmatprep.subr.mxu0 0.0
        %4961 = vmatpush1.msra.mxu0 0.0
        %4962 = vmatprep.subr.mxu0 0.0
        %4963 = vmatpush1.msra.mxu0 0.0
        %4964 = vmatprep.subr.mxu0 0.0
        %4965 = vmatpush1.msra.mxu0 0.0
        %4966 = vmatprep.subr.mxu0 0.0
        %4967 = vmatpush1.msra.mxu0 0.0
        %4968 = vmatprep.subr.mxu0 0.0
        %4969 = vmatpush1.msra.mxu0 0.0
        %4970 = vmatprep.subr.mxu0 0.0
        %4971 = vmatpush1.msra.mxu0 0.0
        %4972 = vmatprep.subr.mxu0 0.0
        %4973 = vmatpush1.msra.mxu0 0.0
        %4974 = vmatprep.subr.mxu0 0.0
        %4975 = vmatpush1.msra.mxu0 0.0
        %4976 = vmatprep.subr.mxu0 0.0
        %4977 = vmatpush1.msra.mxu0 0.0
        %4978 = vmatprep.subr.mxu0 0.0
        %4979 = vmatpush1.msra.mxu0 0.0
        %4980 = vmatprep.subr.mxu0 0.0
        %4981 = vmatpush1.msra.mxu0 0.0
        %4982 = vmatprep.subr.mxu0 0.0
        %4983 = vmatpush1.msra.mxu0 0.0
        %4984 = vmatprep.subr.mxu0 0.0
        %4985 = vmatpush1.msra.mxu0 0.0
        %4986 = vmatprep.subr.mxu0 0.0
        %4987 = vmatpush1.msra.mxu0 0.0
        %4988 = vmatprep.subr.mxu0 0.0
        %4989 = vmatpush1.msra.mxu0 0.0
        %4990 = vmatprep.subr.mxu0 0.0
        %4991 = vmatpush1.msra.mxu0 0.0
        %4992 = vmatprep.mubr.f32.mxu0 0.0
        %4993 = vmatmul.mubr.f32.gmra.mrb[0].mxu0 %v398
        %v4994 = vpop.f32.mrb[0].mxu0
        %v4995 = vadd.f32 0.0, %v4994
        %v4996 = vpop.f32.mrb[0].mxu0
        %4997 = vdwg.mxu0
        %v4998 = vadd.f32 %v4923, %v4995
        %s4999 = sld [smem:[#allocation3 + %s4476]]
        %s5000 = smul.u32 %s4999, 4
        %s5001 = scalar_lea.vmem %s187, %s5000 [#allocation4]
        %v5002 = vld [vmem:[%s5001] sm:$0xf]
        %v5004 = vsel %vm242, %v5002, 0
        %5006 = vmatprep.subr.mxu0 0.0
        %5007 = vmatpush1.msra.mxu0 %v5004
        %5008 = vmatprep.subr.mxu0 0.0
        %5009 = vmatpush1.msra.mxu0 0.0
        %5010 = vmatprep.subr.mxu0 0.0
        %5011 = vmatpush1.msra.mxu0 0.0
        %5012 = vmatprep.subr.mxu0 0.0
        %5013 = vmatpush1.msra.mxu0 0.0
        %5014 = vmatprep.subr.mxu0 0.0
        %5015 = vmatpush1.msra.mxu0 0.0
        %5016 = vmatprep.subr.mxu0 0.0
        %5017 = vmatpush1.msra.mxu0 0.0
        %5018 = vmatprep.subr.mxu0 0.0
        %5019 = vmatpush1.msra.mxu0 0.0
        %5020 = vmatprep.subr.mxu0 0.0
        %5021 = vmatpush1.msra.mxu0 0.0
        %5022 = vmatprep.subr.mxu0 0.0
        %5023 = vmatpush1.msra.mxu0 0.0
        %5024 = vmatprep.subr.mxu0 0.0
        %5025 = vmatpush1.msra.mxu0 0.0
        %5026 = vmatprep.subr.mxu0 0.0
        %5027 = vmatpush1.msra.mxu0 0.0
        %5028 = vmatprep.subr.mxu0 0.0
        %5029 = vmatpush1.msra.mxu0 0.0
        %5030 = vmatprep.subr.mxu0 0.0
        %5031 = vmatpush1.msra.mxu0 0.0
        %5032 = vmatprep.subr.mxu0 0.0
        %5033 = vmatpush1.msra.mxu0 0.0
        %5034 = vmatprep.subr.mxu0 0.0
        %5035 = vmatpush1.msra.mxu0 0.0
        %5036 = vmatprep.subr.mxu0 0.0
        %5037 = vmatpush1.msra.mxu0 0.0
        %5038 = vmatprep.subr.mxu0 0.0
        %5039 = vmatpush1.msra.mxu0 0.0
        %5040 = vmatprep.subr.mxu0 0.0
        %5041 = vmatpush1.msra.mxu0 0.0
        %5042 = vmatprep.subr.mxu0 0.0
        %5043 = vmatpush1.msra.mxu0 0.0
        %5044 = vmatprep.subr.mxu0 0.0
        %5045 = vmatpush1.msra.mxu0 0.0
        %5046 = vmatprep.subr.mxu0 0.0
        %5047 = vmatpush1.msra.mxu0 0.0
        %5048 = vmatprep.subr.mxu0 0.0
        %5049 = vmatpush1.msra.mxu0 0.0
        %5050 = vmatprep.subr.mxu0 0.0
        %5051 = vmatpush1.msra.mxu0 0.0
        %5052 = vmatprep.subr.mxu0 0.0
        %5053 = vmatpush1.msra.mxu0 0.0
        %5054 = vmatprep.subr.mxu0 0.0
        %5055 = vmatpush1.msra.mxu0 0.0
        %5056 = vmatprep.subr.mxu0 0.0
        %5057 = vmatpush1.msra.mxu0 0.0
        %5058 = vmatprep.subr.mxu0 0.0
        %5059 = vmatpush1.msra.mxu0 0.0
        %5060 = vmatprep.subr.mxu0 0.0
        %5061 = vmatpush1.msra.mxu0 0.0
        %5062 = vmatprep.subr.mxu0 0.0
        %5063 = vmatpush1.msra.mxu0 0.0
        %5064 = vmatprep.subr.mxu0 0.0
        %5065 = vmatpush1.msra.mxu0 0.0
        %5066 = vmatprep.subr.mxu0 0.0
        %5067 = vmatpush1.msra.mxu0 0.0
        %5068 = vmatprep.subr.mxu0 0.0
        %5069 = vmatpush1.msra.mxu0 0.0
        %5070 = vmatprep.mubr.f32.mxu0 0.0
        %5071 = vmatmul.mubr.f32.gmra.mrb[0].mxu0 %v479
        %v5072 = vpop.f32.mrb[0].mxu0
        %v5073 = vadd.f32 0.0, %v5072
        %v5074 = vpop.f32.mrb[0].mxu0
        %5075 = vdwg.mxu0
        %v5076 = vadd.f32 %v4998, %v5073
        %5077 = vrot.lane.b32.xlu0 %v5002, 127
        %v5078 = vpop.permute.xlu0 %5077
        %v5079 = vsel %vm242, %v5078, 0
        %5081 = vmatprep.subr.mxu0 0.0
        %5082 = vmatpush1.msra.mxu0 %v5079
        %5083 = vmatprep.subr.mxu0 0.0
        %5084 = vmatpush1.msra.mxu0 0.0
        %5085 = vmatprep.subr.mxu0 0.0
        %5086 = vmatpush1.msra.mxu0 0.0
        %5087 = vmatprep.subr.mxu0 0.0
        %5088 = vmatpush1.msra.mxu0 0.0
        %5089 = vmatprep.subr.mxu0 0.0
        %5090 = vmatpush1.msra.mxu0 0.0
        %5091 = vmatprep.subr.mxu0 0.0
        %5092 = vmatpush1.msra.mxu0 0.0
        %5093 = vmatprep.subr.mxu0 0.0
        %5094 = vmatpush1.msra.mxu0 0.0
        %5095 = vmatprep.subr.mxu0 0.0
        %5096 = vmatpush1.msra.mxu0 0.0
        %5097 = vmatprep.subr.mxu0 0.0
        %5098 = vmatpush1.msra.mxu0 0.0
        %5099 = vmatprep.subr.mxu0 0.0
        %5100 = vmatpush1.msra.mxu0 0.0
        %5101 = vmatprep.subr.mxu0 0.0
        %5102 = vmatpush1.msra.mxu0 0.0
        %5103 = vmatprep.subr.mxu0 0.0
        %5104 = vmatpush1.msra.mxu0 0.0
        %5105 = vmatprep.subr.mxu0 0.0
        %5106 = vmatpush1.msra.mxu0 0.0
        %5107 = vmatprep.subr.mxu0 0.0
        %5108 = vmatpush1.msra.mxu0 0.0
        %5109 = vmatprep.subr.mxu0 0.0
        %5110 = vmatpush1.msra.mxu0 0.0
        %5111 = vmatprep.subr.mxu0 0.0
        %5112 = vmatpush1.msra.mxu0 0.0
        %5113 = vmatprep.subr.mxu0 0.0
        %5114 = vmatpush1.msra.mxu0 0.0
        %5115 = vmatprep.subr.mxu0 0.0
        %5116 = vmatpush1.msra.mxu0 0.0
        %5117 = vmatprep.subr.mxu0 0.0
        %5118 = vmatpush1.msra.mxu0 0.0
        %5119 = vmatprep.subr.mxu0 0.0
        %5120 = vmatpush1.msra.mxu0 0.0
        %5121 = vmatprep.subr.mxu0 0.0
        %5122 = vmatpush1.msra.mxu0 0.0
        %5123 = vmatprep.subr.mxu0 0.0
        %5124 = vmatpush1.msra.mxu0 0.0
        %5125 = vmatprep.subr.mxu0 0.0
        %5126 = vmatpush1.msra.mxu0 0.0
        %5127 = vmatprep.subr.mxu0 0.0
        %5128 = vmatpush1.msra.mxu0 0.0
        %5129 = vmatprep.subr.mxu0 0.0
        %5130 = vmatpush1.msra.mxu0 0.0
        %5131 = vmatprep.subr.mxu0 0.0
        %5132 = vmatpush1.msra.mxu0 0.0
        %5133 = vmatprep.subr.mxu0 0.0
        %5134 = vmatpush1.msra.mxu0 0.0
        %5135 = vmatprep.subr.mxu0 0.0
        %5136 = vmatpush1.msra.mxu0 0.0
        %5137 = vmatprep.subr.mxu0 0.0
        %5138 = vmatpush1.msra.mxu0 0.0
        %5139 = vmatprep.subr.mxu0 0.0
        %5140 = vmatpush1.msra.mxu0 0.0
        %5141 = vmatprep.subr.mxu0 0.0
        %5142 = vmatpush1.msra.mxu0 0.0
        %5143 = vmatprep.subr.mxu0 0.0
        %5144 = vmatpush1.msra.mxu0 0.0
        %5145 = vmatprep.mubr.f32.mxu0 0.0
        %5146 = vmatmul.mubr.f32.gmra.mrb[0].mxu0 %v558
        %v5147 = vpop.f32.mrb[0].mxu0
        %v5148 = vadd.f32 0.0, %v5147
        %v5149 = vpop.f32.mrb[0].mxu0
        %5150 = vdwg.mxu0
        %v5151 = vadd.f32 %v5076, %v5148
        %5152 = vrot.lane.b32.xlu0 %v5002, 126
        %v5153 = vpop.permute.xlu0 %5152
        %v5154 = vsel %vm242, %v5153, 0
        %5156 = vmatprep.subr.mxu0 0.0
        %5157 = vmatpush1.msra.mxu0 %v5154
        %5158 = vmatprep.subr.mxu0 0.0
        %5159 = vmatpush1.msra.mxu0 0.0
        %5160 = vmatprep.subr.mxu0 0.0
        %5161 = vmatpush1.msra.mxu0 0.0
        %5162 = vmatprep.subr.mxu0 0.0
        %5163 = vmatpush1.msra.mxu0 0.0
        %5164 = vmatprep.subr.mxu0 0.0
        %5165 = vmatpush1.msra.mxu0 0.0
        %5166 = vmatprep.subr.mxu0 0.0
        %5167 = vmatpush1.msra.mxu0 0.0
        %5168 = vmatprep.subr.mxu0 0.0
        %5169 = vmatpush1.msra.mxu0 0.0
        %5170 = vmatprep.subr.mxu0 0.0
        %5171 = vmatpush1.msra.mxu0 0.0
        %5172 = vmatprep.subr.mxu0 0.0
        %5173 = vmatpush1.msra.mxu0 0.0
        %5174 = vmatprep.subr.mxu0 0.0
        %5175 = vmatpush1.msra.mxu0 0.0
        %5176 = vmatprep.subr.mxu0 0.0
        %5177 = vmatpush1.msra.mxu0 0.0
        %5178 = vmatprep.subr.mxu0 0.0
        %5179 = vmatpush1.msra.mxu0 0.0
        %5180 = vmatprep.subr.mxu0 0.0
        %5181 = vmatpush1.msra.mxu0 0.0
        %5182 = vmatprep.subr.mxu0 0.0
        %5183 = vmatpush1.msra.mxu0 0.0
        %5184 = vmatprep.subr.mxu0 0.0
        %5185 = vmatpush1.msra.mxu0 0.0
        %5186 = vmatprep.subr.mxu0 0.0
        %5187 = vmatpush1.msra.mxu0 0.0
        %5188 = vmatprep.subr.mxu0 0.0
        %5189 = vmatpush1.msra.mxu0 0.0
        %5190 = vmatprep.subr.mxu0 0.0
        %5191 = vmatpush1.msra.mxu0 0.0
        %5192 = vmatprep.subr.mxu0 0.0
        %5193 = vmatpush1.msra.mxu0 0.0
        %5194 = vmatprep.subr.mxu0 0.0
        %5195 = vmatpush1.msra.mxu0 0.0
        %5196 = vmatprep.subr.mxu0 0.0
        %5197 = vmatpush1.msra.mxu0 0.0
        %5198 = vmatprep.subr.mxu0 0.0
        %5199 = vmatpush1.msra.mxu0 0.0
        %5200 = vmatprep.subr.mxu0 0.0
        %5201 = vmatpush1.msra.mxu0 0.0
        %5202 = vmatprep.subr.mxu0 0.0
        %5203 = vmatpush1.msra.mxu0 0.0
        %5204 = vmatprep.subr.mxu0 0.0
        %5205 = vmatpush1.msra.mxu0 0.0
        %5206 = vmatprep.subr.mxu0 0.0
        %5207 = vmatpush1.msra.mxu0 0.0
        %5208 = vmatprep.subr.mxu0 0.0
        %5209 = vmatpush1.msra.mxu0 0.0
        %5210 = vmatprep.subr.mxu0 0.0
        %5211 = vmatpush1.msra.mxu0 0.0
        %5212 = vmatprep.subr.mxu0 0.0
        %5213 = vmatpush1.msra.mxu0 0.0
        %5214 = vmatprep.subr.mxu0 0.0
        %5215 = vmatpush1.msra.mxu0 0.0
        %5216 = vmatprep.subr.mxu0 0.0
        %5217 = vmatpush1.msra.mxu0 0.0
        %5218 = vmatprep.subr.mxu0 0.0
        %5219 = vmatpush1.msra.mxu0 0.0
        %5220 = vmatprep.mubr.f32.mxu0 0.0
        %5221 = vmatmul.mubr.f32.gmra.mrb[0].mxu0 %v636
        %v5222 = vpop.f32.mrb[0].mxu0
        %v5223 = vadd.f32 0.0, %v5222
        %v5224 = vpop.f32.mrb[0].mxu0
        %5225 = vdwg.mxu0
        %v5226 = vadd.f32 %v5151, %v5223
        %s5227 = sadd.s32 %s233, 8
        %s5228 = sld [smem:[#allocation3 + %s5227]]
        %s5229 = smul.u32 %s5228, 4
        %s5230 = scalar_lea.vmem %s187, %s5229 [#allocation4]
        %v5231 = vld [vmem:[%s5230] sm:$0xf]
        %v5233 = vsel %vm242, %v5231, 0
        %5235 = vmatprep.subr.mxu0 0.0
        %5236 = vmatpush1.msra.mxu0 %v5233
        %5237 = vmatprep.subr.mxu0 0.0
        %5238 = vmatpush1.msra.mxu0 0.0
        %5239 = vmatprep.subr.mxu0 0.0
        %5240 = vmatpush1.msra.mxu0 0.0
        %5241 = vmatprep.subr.mxu0 0.0
        %5242 = vmatpush1.msra.mxu0 0.0
        %5243 = vmatprep.subr.mxu0 0.0
        %5244 = vmatpush1.msra.mxu0 0.0
        %5245 = vmatprep.subr.mxu0 0.0
        %5246 = vmatpush1.msra.mxu0 0.0
        %5247 = vmatprep.subr.mxu0 0.0
        %5248 = vmatpush1.msra.mxu0 0.0
        %5249 = vmatprep.subr.mxu0 0.0
        %5250 = vmatpush1.msra.mxu0 0.0
        %5251 = vmatprep.subr.mxu0 0.0
        %5252 = vmatpush1.msra.mxu0 0.0
        %5253 = vmatprep.subr.mxu0 0.0
        %5254 = vmatpush1.msra.mxu0 0.0
        %5255 = vmatprep.subr.mxu0 0.0
        %5256 = vmatpush1.msra.mxu0 0.0
        %5257 = vmatprep.subr.mxu0 0.0
        %5258 = vmatpush1.msra.mxu0 0.0
        %5259 = vmatprep.subr.mxu0 0.0
        %5260 = vmatpush1.msra.mxu0 0.0
        %5261 = vmatprep.subr.mxu0 0.0
        %5262 = vmatpush1.msra.mxu0 0.0
        %5263 = vmatprep.subr.mxu0 0.0
        %5264 = vmatpush1.msra.mxu0 0.0
        %5265 = vmatprep.subr.mxu0 0.0
        %5266 = vmatpush1.msra.mxu0 0.0
        %5267 = vmatprep.subr.mxu0 0.0
        %5268 = vmatpush1.msra.mxu0 0.0
        %5269 = vmatprep.subr.mxu0 0.0
        %5270 = vmatpush1.msra.mxu0 0.0
        %5271 = vmatprep.subr.mxu0 0.0
        %5272 = vmatpush1.msra.mxu0 0.0
        %5273 = vmatprep.subr.mxu0 0.0
        %5274 = vmatpush1.msra.mxu0 0.0
        %5275 = vmatprep.subr.mxu0 0.0
        %5276 = vmatpush1.msra.mxu0 0.0
        %5277 = vmatprep.subr.mxu0 0.0
        %5278 = vmatpush1.msra.mxu0 0.0
        %5279 = vmatprep.subr.mxu0 0.0
        %5280 = vmatpush1.msra.mxu0 0.0
        %5281 = vmatprep.subr.mxu0 0.0
        %5282 = vmatpush1.msra.mxu0 0.0
        %5283 = vmatprep.subr.mxu0 0.0
        %5284 = vmatpush1.msra.mxu0 0.0
        %5285 = vmatprep.subr.mxu0 0.0
        %5286 = vmatpush1.msra.mxu0 0.0
        %5287 = vmatprep.subr.mxu0 0.0
        %5288 = vmatpush1.msra.mxu0 0.0
        %5289 = vmatprep.subr.mxu0 0.0
        %5290 = vmatpush1.msra.mxu0 0.0
        %5291 = vmatprep.subr.mxu0 0.0
        %5292 = vmatpush1.msra.mxu0 0.0
        %5293 = vmatprep.subr.mxu0 0.0
        %5294 = vmatpush1.msra.mxu0 0.0
        %5295 = vmatprep.subr.mxu0 0.0
        %5296 = vmatpush1.msra.mxu0 0.0
        %5297 = vmatprep.subr.mxu0 0.0
        %5298 = vmatpush1.msra.mxu0 0.0
        %5299 = vmatprep.mubr.f32.mxu0 0.0
        %5300 = vmatmul.mubr.f32.gmra.mrb[0].mxu0 %v717
        %v5301 = vpop.f32.mrb[0].mxu0
        %v5302 = vadd.f32 0.0, %v5301
        %v5303 = vpop.f32.mrb[0].mxu0
        %5304 = vdwg.mxu0
        %v5305 = vadd.f32 %v5226, %v5302
        %5306 = vrot.lane.b32.xlu0 %v5231, 127
        %v5307 = vpop.permute.xlu0 %5306
        %v5308 = vsel %vm242, %v5307, 0
        %5310 = vmatprep.subr.mxu0 0.0
        %5311 = vmatpush1.msra.mxu0 %v5308
        %5312 = vmatprep.subr.mxu0 0.0
        %5313 = vmatpush1.msra.mxu0 0.0
        %5314 = vmatprep.subr.mxu0 0.0
        %5315 = vmatpush1.msra.mxu0 0.0
        %5316 = vmatprep.subr.mxu0 0.0
        %5317 = vmatpush1.msra.mxu0 0.0
        %5318 = vmatprep.subr.mxu0 0.0
        %5319 = vmatpush1.msra.mxu0 0.0
        %5320 = vmatprep.subr.mxu0 0.0
        %5321 = vmatpush1.msra.mxu0 0.0
        %5322 = vmatprep.subr.mxu0 0.0
        %5323 = vmatpush1.msra.mxu0 0.0
        %5324 = vmatprep.subr.mxu0 0.0
        %5325 = vmatpush1.msra.mxu0 0.0
        %5326 = vmatprep.subr.mxu0 0.0
        %5327 = vmatpush1.msra.mxu0 0.0
        %5328 = vmatprep.subr.mxu0 0.0
        %5329 = vmatpush1.msra.mxu0 0.0
        %5330 = vmatprep.subr.mxu0 0.0
        %5331 = vmatpush1.msra.mxu0 0.0
        %5332 = vmatprep.subr.mxu0 0.0
        %5333 = vmatpush1.msra.mxu0 0.0
        %5334 = vmatprep.subr.mxu0 0.0
        %5335 = vmatpush1.msra.mxu0 0.0
        %5336 = vmatprep.subr.mxu0 0.0
        %5337 = vmatpush1.msra.mxu0 0.0
        %5338 = vmatprep.subr.mxu0 0.0
        %5339 = vmatpush1.msra.mxu0 0.0
        %5340 = vmatprep.subr.mxu0 0.0
        %5341 = vmatpush1.msra.mxu0 0.0
        %5342 = vmatprep.subr.mxu0 0.0
        %5343 = vmatpush1.msra.mxu0 0.0
        %5344 = vmatprep.subr.mxu0 0.0
        %5345 = vmatpush1.msra.mxu0 0.0
        %5346 = vmatprep.subr.mxu0 0.0
        %5347 = vmatpush1.msra.mxu0 0.0
        %5348 = vmatprep.subr.mxu0 0.0
        %5349 = vmatpush1.msra.mxu0 0.0
        %5350 = vmatprep.subr.mxu0 0.0
        %5351 = vmatpush1.msra.mxu0 0.0
        %5352 = vmatprep.subr.mxu0 0.0
        %5353 = vmatpush1.msra.mxu0 0.0
        %5354 = vmatprep.subr.mxu0 0.0
        %5355 = vmatpush1.msra.mxu0 0.0
        %5356 = vmatprep.subr.mxu0 0.0
        %5357 = vmatpush1.msra.mxu0 0.0
        %5358 = vmatprep.subr.mxu0 0.0
        %5359 = vmatpush1.msra.mxu0 0.0
        %5360 = vmatprep.subr.mxu0 0.0
        %5361 = vmatpush1.msra.mxu0 0.0
        %5362 = vmatprep.subr.mxu0 0.0
        %5363 = vmatpush1.msra.mxu0 0.0
        %5364 = vmatprep.subr.mxu0 0.0
        %5365 = vmatpush1.msra.mxu0 0.0
        %5366 = vmatprep.subr.mxu0 0.0
        %5367 = vmatpush1.msra.mxu0 0.0
        %5368 = vmatprep.subr.mxu0 0.0
        %5369 = vmatpush1.msra.mxu0 0.0
        %5370 = vmatprep.subr.mxu0 0.0
        %5371 = vmatpush1.msra.mxu0 0.0
        %5372 = vmatprep.subr.mxu0 0.0
        %5373 = vmatpush1.msra.mxu0 0.0
        %5374 = vmatprep.mubr.f32.mxu0 0.0
        %5375 = vmatmul.mubr.f32.gmra.mrb[0].mxu0 %v796
        %v5376 = vpop.f32.mrb[0].mxu0
        %v5377 = vadd.f32 0.0, %v5376
        %v5378 = vpop.f32.mrb[0].mxu0
        %5379 = vdwg.mxu0
        %v5380 = vadd.f32 %v5305, %v5377
        %5381 = vrot.lane.b32.xlu0 %v5231, 126
        %v5382 = vpop.permute.xlu0 %5381
        %v5383 = vsel %vm242, %v5382, 0
        %5385 = vmatprep.subr.mxu0 0.0
        %5386 = vmatpush1.msra.mxu0 %v5383
        %5387 = vmatprep.subr.mxu0 0.0
        %5388 = vmatpush1.msra.mxu0 0.0
        %5389 = vmatprep.subr.mxu0 0.0
        %5390 = vmatpush1.msra.mxu0 0.0
        %5391 = vmatprep.subr.mxu0 0.0
        %5392 = vmatpush1.msra.mxu0 0.0
        %5393 = vmatprep.subr.mxu0 0.0
        %5394 = vmatpush1.msra.mxu0 0.0
        %5395 = vmatprep.subr.mxu0 0.0
        %5396 = vmatpush1.msra.mxu0 0.0
        %5397 = vmatprep.subr.mxu0 0.0
        %5398 = vmatpush1.msra.mxu0 0.0
        %5399 = vmatprep.subr.mxu0 0.0
        %5400 = vmatpush1.msra.mxu0 0.0
        %5401 = vmatprep.subr.mxu0 0.0
        %5402 = vmatpush1.msra.mxu0 0.0
        %5403 = vmatprep.subr.mxu0 0.0
        %5404 = vmatpush1.msra.mxu0 0.0
        %5405 = vmatprep.subr.mxu0 0.0
        %5406 = vmatpush1.msra.mxu0 0.0
        %5407 = vmatprep.subr.mxu0 0.0
        %5408 = vmatpush1.msra.mxu0 0.0
        %5409 = vmatprep.subr.mxu0 0.0
        %5410 = vmatpush1.msra.mxu0 0.0
        %5411 = vmatprep.subr.mxu0 0.0
        %5412 = vmatpush1.msra.mxu0 0.0
        %5413 = vmatprep.subr.mxu0 0.0
        %5414 = vmatpush1.msra.mxu0 0.0
        %5415 = vmatprep.subr.mxu0 0.0
        %5416 = vmatpush1.msra.mxu0 0.0
        %5417 = vmatprep.subr.mxu0 0.0
        %5418 = vmatpush1.msra.mxu0 0.0
        %5419 = vmatprep.subr.mxu0 0.0
        %5420 = vmatpush1.msra.mxu0 0.0
        %5421 = vmatprep.subr.mxu0 0.0
        %5422 = vmatpush1.msra.mxu0 0.0
        %5423 = vmatprep.subr.mxu0 0.0
        %5424 = vmatpush1.msra.mxu0 0.0
        %5425 = vmatprep.subr.mxu0 0.0
        %5426 = vmatpush1.msra.mxu0 0.0
        %5427 = vmatprep.subr.mxu0 0.0
        %5428 = vmatpush1.msra.mxu0 0.0
        %5429 = vmatprep.subr.mxu0 0.0
        %5430 = vmatpush1.msra.mxu0 0.0
        %5431 = vmatprep.subr.mxu0 0.0
        %5432 = vmatpush1.msra.mxu0 0.0
        %5433 = vmatprep.subr.mxu0 0.0
        %5434 = vmatpush1.msra.mxu0 0.0
        %5435 = vmatprep.subr.mxu0 0.0
        %5436 = vmatpush1.msra.mxu0 0.0
        %5437 = vmatprep.subr.mxu0 0.0
        %5438 = vmatpush1.msra.mxu0 0.0
        %5439 = vmatprep.subr.mxu0 0.0
        %5440 = vmatpush1.msra.mxu0 0.0
        %5441 = vmatprep.subr.mxu0 0.0
        %5442 = vmatpush1.msra.mxu0 0.0
        %5443 = vmatprep.subr.mxu0 0.0
        %5444 = vmatpush1.msra.mxu0 0.0
        %5445 = vmatprep.subr.mxu0 0.0
        %5446 = vmatpush1.msra.mxu0 0.0
        %5447 = vmatprep.subr.mxu0 0.0
        %5448 = vmatpush1.msra.mxu0 0.0
        %5449 = vmatprep.mubr.f32.mxu0 0.0
        %5450 = vmatmul.mubr.f32.gmra.mrb[0].mxu0 %v874
        %v5451 = vpop.f32.mrb[0].mxu0
        %v5452 = vadd.f32 0.0, %v5451
        %v5453 = vpop.f32.mrb[0].mxu0
        %5454 = vdwg.mxu0
        %v5455 = vadd.f32 %v5380, %v5452
        %v5457 = vcombine.high %v5455, %v5455
        %v5459 = vunpack.c.l.s4 1966171168
        %v5460 = vunpack.c.0.s8 %v5459
        %v5461 = vlaneseq
        %v5462 = vshrl.u32 %v5461, 7
        %v5463 = vsub.s32 %v5460, %v5462
        %v5464 = vrot.slane %v5455, %v5463
        %v5466 = vunpack.c.l.s4 1966171168
        %v5467 = vunpack.c.0.s8 %v5466
        %v5468 = vlaneseq
        %v5469 = vshrl.u32 %v5468, 7
        %v5470 = vsub.s32 %v5467, %v5469
        %v5471 = vrot.slane %v5457, %v5470
        %v5472 = vcombine.high %v5464, %v5464
        %v5473 = vcombine.high %v5471, %v5471
        %v5475 = vunpack.c.l.s4 1966171168
        %v5476 = vunpack.c.0.s8 %v5475
        %v5477 = vlaneseq
        %v5478 = vshrl.u32 %v5477, 7
        %v5479 = vsub.s32 %v5476, %v5478
        %v5480 = vrot.slane %v5464, %v5479
        %v5482 = vunpack.c.l.s4 1966171168
        %v5483 = vunpack.c.0.s8 %v5482
        %v5484 = vlaneseq
        %v5485 = vshrl.u32 %v5484, 7
        %v5486 = vsub.s32 %v5483, %v5485
        %v5487 = vrot.slane %v5471, %v5486
        %v5489 = vunpack.c.l.s4 1966171168
        %v5490 = vunpack.c.0.s8 %v5489
        %v5491 = vlaneseq
        %v5492 = vshrl.u32 %v5491, 7
        %v5493 = vsub.s32 %v5490, %v5492
        %v5494 = vrot.slane %v5472, %v5493
        %v5496 = vunpack.c.l.s4 1966171168
        %v5497 = vunpack.c.0.s8 %v5496
        %v5498 = vlaneseq
        %v5499 = vshrl.u32 %v5498, 7
        %v5500 = vsub.s32 %v5497, %v5499
        %v5501 = vrot.slane %v5473, %v5500
        %v5502 = vcombine.high %v5480, %v5480
        %v5503 = vcombine.high %v5487, %v5487
        %v5504 = vcombine.high %v5494, %v5494
        %v5505 = vcombine.high %v5501, %v5501
        %5514 = vst.msk [vmem:[%s209 + $0x6] sm:$0x1] %vm1007, %v5480
        %5515 = vst.msk [vmem:[%s209 + $0xe] sm:$0x1] %vm1007, %v5494
        %5516 = vst.msk [vmem:[%s209 + $0x16] sm:$0x1] %vm1007, %v5502
        %5517 = vst.msk [vmem:[%s209 + $0x1e] sm:$0x1] %vm1007, %v5504
        %5518 = vst.msk [vmem:[%s209 + $0x26] sm:$0x1] %vm1007, %v5487
        %5519 = vst.msk [vmem:[%s209 + $0x2e] sm:$0x1] %vm1007, %v5501
        %5520 = vst.msk [vmem:[%s209 + $0x36] sm:$0x1] %vm1007, %v5503
        %5521 = vst.msk [vmem:[%s209 + $0x3e] sm:$0x1] %vm1007, %v5505
        %s5522 = sld [smem:[#allocation3 + %s4476]]
        %s5523 = smul.u32 %s5522, 4
        %s5524 = scalar_lea.vmem %s187, %s5523 [#allocation4]
        %v5525 = vld [vmem:[%s5524] sm:$0xf]
        %v5527 = vsel %vm242, %v5525, 0
        %5529 = vmatprep.subr.mxu0 0.0
        %5530 = vmatpush1.msra.mxu0 %v5527
        %5531 = vmatprep.subr.mxu0 0.0
        %5532 = vmatpush1.msra.mxu0 0.0
        %5533 = vmatprep.subr.mxu0 0.0
        %5534 = vmatpush1.msra.mxu0 0.0
        %5535 = vmatprep.subr.mxu0 0.0
        %5536 = vmatpush1.msra.mxu0 0.0
        %5537 = vmatprep.subr.mxu0 0.0
        %5538 = vmatpush1.msra.mxu0 0.0
        %5539 = vmatprep.subr.mxu0 0.0
        %5540 = vmatpush1.msra.mxu0 0.0
        %5541 = vmatprep.subr.mxu0 0.0
        %5542 = vmatpush1.msra.mxu0 0.0
        %5543 = vmatprep.subr.mxu0 0.0
        %5544 = vmatpush1.msra.mxu0 0.0
        %5545 = vmatprep.subr.mxu0 0.0
        %5546 = vmatpush1.msra.mxu0 0.0
        %5547 = vmatprep.subr.mxu0 0.0
        %5548 = vmatpush1.msra.mxu0 0.0
        %5549 = vmatprep.subr.mxu0 0.0
        %5550 = vmatpush1.msra.mxu0 0.0
        %5551 = vmatprep.subr.mxu0 0.0
        %5552 = vmatpush1.msra.mxu0 0.0
        %5553 = vmatprep.subr.mxu0 0.0
        %5554 = vmatpush1.msra.mxu0 0.0
        %5555 = vmatprep.subr.mxu0 0.0
        %5556 = vmatpush1.msra.mxu0 0.0
        %5557 = vmatprep.subr.mxu0 0.0
        %5558 = vmatpush1.msra.mxu0 0.0
        %5559 = vmatprep.subr.mxu0 0.0
        %5560 = vmatpush1.msra.mxu0 0.0
        %5561 = vmatprep.subr.mxu0 0.0
        %5562 = vmatpush1.msra.mxu0 0.0
        %5563 = vmatprep.subr.mxu0 0.0
        %5564 = vmatpush1.msra.mxu0 0.0
        %5565 = vmatprep.subr.mxu0 0.0
        %5566 = vmatpush1.msra.mxu0 0.0
        %5567 = vmatprep.subr.mxu0 0.0
        %5568 = vmatpush1.msra.mxu0 0.0
        %5569 = vmatprep.subr.mxu0 0.0
        %5570 = vmatpush1.msra.mxu0 0.0
        %5571 = vmatprep.subr.mxu0 0.0
        %5572 = vmatpush1.msra.mxu0 0.0
        %5573 = vmatprep.subr.mxu0 0.0
        %5574 = vmatpush1.msra.mxu0 0.0
        %5575 = vmatprep.subr.mxu0 0.0
        %5576 = vmatpush1.msra.mxu0 0.0
        %5577 = vmatprep.subr.mxu0 0.0
        %5578 = vmatpush1.msra.mxu0 0.0
        %5579 = vmatprep.subr.mxu0 0.0
        %5580 = vmatpush1.msra.mxu0 0.0
        %5581 = vmatprep.subr.mxu0 0.0
        %5582 = vmatpush1.msra.mxu0 0.0
        %5583 = vmatprep.subr.mxu0 0.0
        %5584 = vmatpush1.msra.mxu0 0.0
        %5585 = vmatprep.subr.mxu0 0.0
        %5586 = vmatpush1.msra.mxu0 0.0
        %5587 = vmatprep.subr.mxu0 0.0
        %5588 = vmatpush1.msra.mxu0 0.0
        %5589 = vmatprep.subr.mxu0 0.0
        %5590 = vmatpush1.msra.mxu0 0.0
        %5591 = vmatprep.subr.mxu0 0.0
        %5592 = vmatpush1.msra.mxu0 0.0
        %5593 = vmatprep.mubr.f32.mxu0 0.0
        %5594 = vmatmul.mubr.f32.gmra.mrb[0].mxu0 %v240
        %v5595 = vpop.f32.mrb[0].mxu0
        %v5596 = vadd.f32 0.0, %v5595
        %v5597 = vpop.f32.mrb[0].mxu0
        %5598 = vdwg.mxu0
        %v5599 = vadd.f32 %v231, %v5596
        %5600 = vrot.lane.b32.xlu0 %v5525, 127
        %v5601 = vpop.permute.xlu0 %5600
        %v5602 = vsel %vm242, %v5601, 0
        %5604 = vmatprep.subr.mxu0 0.0
        %5605 = vmatpush1.msra.mxu0 %v5602
        %5606 = vmatprep.subr.mxu0 0.0
        %5607 = vmatpush1.msra.mxu0 0.0
        %5608 = vmatprep.subr.mxu0 0.0
        %5609 = vmatpush1.msra.mxu0 0.0
        %5610 = vmatprep.subr.mxu0 0.0
        %5611 = vmatpush1.msra.mxu0 0.0
        %5612 = vmatprep.subr.mxu0 0.0
        %5613 = vmatpush1.msra.mxu0 0.0
        %5614 = vmatprep.subr.mxu0 0.0
        %5615 = vmatpush1.msra.mxu0 0.0
        %5616 = vmatprep.subr.mxu0 0.0
        %5617 = vmatpush1.msra.mxu0 0.0
        %5618 = vmatprep.subr.mxu0 0.0
        %5619 = vmatpush1.msra.mxu0 0.0
        %5620 = vmatprep.subr.mxu0 0.0
        %5621 = vmatpush1.msra.mxu0 0.0
        %5622 = vmatprep.subr.mxu0 0.0
        %5623 = vmatpush1.msra.mxu0 0.0
        %5624 = vmatprep.subr.mxu0 0.0
        %5625 = vmatpush1.msra.mxu0 0.0
        %5626 = vmatprep.subr.mxu0 0.0
        %5627 = vmatpush1.msra.mxu0 0.0
        %5628 = vmatprep.subr.mxu0 0.0
        %5629 = vmatpush1.msra.mxu0 0.0
        %5630 = vmatprep.subr.mxu0 0.0
        %5631 = vmatpush1.msra.mxu0 0.0
        %5632 = vmatprep.subr.mxu0 0.0
        %5633 = vmatpush1.msra.mxu0 0.0
        %5634 = vmatprep.subr.mxu0 0.0
        %5635 = vmatpush1.msra.mxu0 0.0
        %5636 = vmatprep.subr.mxu0 0.0
        %5637 = vmatpush1.msra.mxu0 0.0
        %5638 = vmatprep.subr.mxu0 0.0
        %5639 = vmatpush1.msra.mxu0 0.0
        %5640 = vmatprep.subr.mxu0 0.0
        %5641 = vmatpush1.msra.mxu0 0.0
        %5642 = vmatprep.subr.mxu0 0.0
        %5643 = vmatpush1.msra.mxu0 0.0
        %5644 = vmatprep.subr.mxu0 0.0
        %5645 = vmatpush1.msra.mxu0 0.0
        %5646 = vmatprep.subr.mxu0 0.0
        %5647 = vmatpush1.msra.mxu0 0.0
        %5648 = vmatprep.subr.mxu0 0.0
        %5649 = vmatpush1.msra.mxu0 0.0
        %5650 = vmatprep.subr.mxu0 0.0
        %5651 = vmatpush1.msra.mxu0 0.0
        %5652 = vmatprep.subr.mxu0 0.0
        %5653 = vmatpush1.msra.mxu0 0.0
        %5654 = vmatprep.subr.mxu0 0.0
        %5655 = vmatpush1.msra.mxu0 0.0
        %5656 = vmatprep.subr.mxu0 0.0
        %5657 = vmatpush1.msra.mxu0 0.0
        %5658 = vmatprep.subr.mxu0 0.0
        %5659 = vmatpush1.msra.mxu0 0.0
        %5660 = vmatprep.subr.mxu0 0.0
        %5661 = vmatpush1.msra.mxu0 0.0
        %5662 = vmatprep.subr.mxu0 0.0
        %5663 = vmatpush1.msra.mxu0 0.0
        %5664 = vmatprep.subr.mxu0 0.0
        %5665 = vmatpush1.msra.mxu0 0.0
        %5666 = vmatprep.subr.mxu0 0.0
        %5667 = vmatpush1.msra.mxu0 0.0
        %5668 = vmatprep.mubr.f32.mxu0 0.0
        %5669 = vmatmul.mubr.f32.gmra.mrb[0].mxu0 %v320
        %v5670 = vpop.f32.mrb[0].mxu0
        %v5671 = vadd.f32 0.0, %v5670
        %v5672 = vpop.f32.mrb[0].mxu0
        %5673 = vdwg.mxu0
        %v5674 = vadd.f32 %v5599, %v5671
        %5675 = vrot.lane.b32.xlu0 %v5525, 126
        %v5676 = vpop.permute.xlu0 %5675
        %v5677 = vsel %vm242, %v5676, 0
        %5679 = vmatprep.subr.mxu0 0.0
        %5680 = vmatpush1.msra.mxu0 %v5677
        %5681 = vmatprep.subr.mxu0 0.0
        %5682 = vmatpush1.msra.mxu0 0.0
        %5683 = vmatprep.subr.mxu0 0.0
        %5684 = vmatpush1.msra.mxu0 0.0
        %5685 = vmatprep.subr.mxu0 0.0
        %5686 = vmatpush1.msra.mxu0 0.0
        %5687 = vmatprep.subr.mxu0 0.0
        %5688 = vmatpush1.msra.mxu0 0.0
        %5689 = vmatprep.subr.mxu0 0.0
        %5690 = vmatpush1.msra.mxu0 0.0
        %5691 = vmatprep.subr.mxu0 0.0
        %5692 = vmatpush1.msra.mxu0 0.0
        %5693 = vmatprep.subr.mxu0 0.0
        %5694 = vmatpush1.msra.mxu0 0.0
        %5695 = vmatprep.subr.mxu0 0.0
        %5696 = vmatpush1.msra.mxu0 0.0
        %5697 = vmatprep.subr.mxu0 0.0
        %5698 = vmatpush1.msra.mxu0 0.0
        %5699 = vmatprep.subr.mxu0 0.0
        %5700 = vmatpush1.msra.mxu0 0.0
        %5701 = vmatprep.subr.mxu0 0.0
        %5702 = vmatpush1.msra.mxu0 0.0
        %5703 = vmatprep.subr.mxu0 0.0
        %5704 = vmatpush1.msra.mxu0 0.0
        %5705 = vmatprep.subr.mxu0 0.0
        %5706 = vmatpush1.msra.mxu0 0.0
        %5707 = vmatprep.subr.mxu0 0.0
        %5708 = vmatpush1.msra.mxu0 0.0
        %5709 = vmatprep.subr.mxu0 0.0
        %5710 = vmatpush1.msra.mxu0 0.0
        %5711 = vmatprep.subr.mxu0 0.0
        %5712 = vmatpush1.msra.mxu0 0.0
        %5713 = vmatprep.subr.mxu0 0.0
        %5714 = vmatpush1.msra.mxu0 0.0
        %5715 = vmatprep.subr.mxu0 0.0
        %5716 = vmatpush1.msra.mxu0 0.0
        %5717 = vmatprep.subr.mxu0 0.0
        %5718 = vmatpush1.msra.mxu0 0.0
        %5719 = vmatprep.subr.mxu0 0.0
        %5720 = vmatpush1.msra.mxu0 0.0
        %5721 = vmatprep.subr.mxu0 0.0
        %5722 = vmatpush1.msra.mxu0 0.0
        %5723 = vmatprep.subr.mxu0 0.0
        %5724 = vmatpush1.msra.mxu0 0.0
        %5725 = vmatprep.subr.mxu0 0.0
        %5726 = vmatpush1.msra.mxu0 0.0
        %5727 = vmatprep.subr.mxu0 0.0
        %5728 = vmatpush1.msra.mxu0 0.0
        %5729 = vmatprep.subr.mxu0 0.0
        %5730 = vmatpush1.msra.mxu0 0.0
        %5731 = vmatprep.subr.mxu0 0.0
        %5732 = vmatpush1.msra.mxu0 0.0
        %5733 = vmatprep.subr.mxu0 0.0
        %5734 = vmatpush1.msra.mxu0 0.0
        %5735 = vmatprep.subr.mxu0 0.0
        %5736 = vmatpush1.msra.mxu0 0.0
        %5737 = vmatprep.subr.mxu0 0.0
        %5738 = vmatpush1.msra.mxu0 0.0
        %5739 = vmatprep.subr.mxu0 0.0
        %5740 = vmatpush1.msra.mxu0 0.0
        %5741 = vmatprep.subr.mxu0 0.0
        %5742 = vmatpush1.msra.mxu0 0.0
        %5743 = vmatprep.mubr.f32.mxu0 0.0
        %5744 = vmatmul.mubr.f32.gmra.mrb[0].mxu0 %v398
        %v5745 = vpop.f32.mrb[0].mxu0
        %v5746 = vadd.f32 0.0, %v5745
        %v5747 = vpop.f32.mrb[0].mxu0
        %5748 = vdwg.mxu0
        %v5749 = vadd.f32 %v5674, %v5746
        %s5750 = sld [smem:[#allocation3 + %s5227]]
        %s5751 = smul.u32 %s5750, 4
        %s5752 = scalar_lea.vmem %s187, %s5751 [#allocation4]
        %v5753 = vld [vmem:[%s5752] sm:$0xf]
        %v5755 = vsel %vm242, %v5753, 0
        %5757 = vmatprep.subr.mxu0 0.0
        %5758 = vmatpush1.msra.mxu0 %v5755
        %5759 = vmatprep.subr.mxu0 0.0
        %5760 = vmatpush1.msra.mxu0 0.0
        %5761 = vmatprep.subr.mxu0 0.0
        %5762 = vmatpush1.msra.mxu0 0.0
        %5763 = vmatprep.subr.mxu0 0.0
        %5764 = vmatpush1.msra.mxu0 0.0
        %5765 = vmatprep.subr.mxu0 0.0
        %5766 = vmatpush1.msra.mxu0 0.0
        %5767 = vmatprep.subr.mxu0 0.0
        %5768 = vmatpush1.msra.mxu0 0.0
        %5769 = vmatprep.subr.mxu0 0.0
        %5770 = vmatpush1.msra.mxu0 0.0
        %5771 = vmatprep.subr.mxu0 0.0
        %5772 = vmatpush1.msra.mxu0 0.0
        %5773 = vmatprep.subr.mxu0 0.0
        %5774 = vmatpush1.msra.mxu0 0.0
        %5775 = vmatprep.subr.mxu0 0.0
        %5776 = vmatpush1.msra.mxu0 0.0
        %5777 = vmatprep.subr.mxu0 0.0
        %5778 = vmatpush1.msra.mxu0 0.0
        %5779 = vmatprep.subr.mxu0 0.0
        %5780 = vmatpush1.msra.mxu0 0.0
        %5781 = vmatprep.subr.mxu0 0.0
        %5782 = vmatpush1.msra.mxu0 0.0
        %5783 = vmatprep.subr.mxu0 0.0
        %5784 = vmatpush1.msra.mxu0 0.0
        %5785 = vmatprep.subr.mxu0 0.0
        %5786 = vmatpush1.msra.mxu0 0.0
        %5787 = vmatprep.subr.mxu0 0.0
        %5788 = vmatpush1.msra.mxu0 0.0
        %5789 = vmatprep.subr.mxu0 0.0
        %5790 = vmatpush1.msra.mxu0 0.0
        %5791 = vmatprep.subr.mxu0 0.0
        %5792 = vmatpush1.msra.mxu0 0.0
        %5793 = vmatprep.subr.mxu0 0.0
        %5794 = vmatpush1.msra.mxu0 0.0
        %5795 = vmatprep.subr.mxu0 0.0
        %5796 = vmatpush1.msra.mxu0 0.0
        %5797 = vmatprep.subr.mxu0 0.0
        %5798 = vmatpush1.msra.mxu0 0.0
        %5799 = vmatprep.subr.mxu0 0.0
        %5800 = vmatpush1.msra.mxu0 0.0
        %5801 = vmatprep.subr.mxu0 0.0
        %5802 = vmatpush1.msra.mxu0 0.0
        %5803 = vmatprep.subr.mxu0 0.0
        %5804 = vmatpush1.msra.mxu0 0.0
        %5805 = vmatprep.subr.mxu0 0.0
        %5806 = vmatpush1.msra.mxu0 0.0
        %5807 = vmatprep.subr.mxu0 0.0
        %5808 = vmatpush1.msra.mxu0 0.0
        %5809 = vmatprep.subr.mxu0 0.0
        %5810 = vmatpush1.msra.mxu0 0.0
        %5811 = vmatprep.subr.mxu0 0.0
        %5812 = vmatpush1.msra.mxu0 0.0
        %5813 = vmatprep.subr.mxu0 0.0
        %5814 = vmatpush1.msra.mxu0 0.0
        %5815 = vmatprep.subr.mxu0 0.0
        %5816 = vmatpush1.msra.mxu0 0.0
        %5817 = vmatprep.subr.mxu0 0.0
        %5818 = vmatpush1.msra.mxu0 0.0
        %5819 = vmatprep.subr.mxu0 0.0
        %5820 = vmatpush1.msra.mxu0 0.0
        %5821 = vmatprep.mubr.f32.mxu0 0.0
        %5822 = vmatmul.mubr.f32.gmra.mrb[0].mxu0 %v479
        %v5823 = vpop.f32.mrb[0].mxu0
        %v5824 = vadd.f32 0.0, %v5823
        %v5825 = vpop.f32.mrb[0].mxu0
        %5826 = vdwg.mxu0
        %v5827 = vadd.f32 %v5749, %v5824
        %5828 = vrot.lane.b32.xlu0 %v5753, 127
        %v5829 = vpop.permute.xlu0 %5828
        %v5830 = vsel %vm242, %v5829, 0
        %5832 = vmatprep.subr.mxu0 0.0
        %5833 = vmatpush1.msra.mxu0 %v5830
        %5834 = vmatprep.subr.mxu0 0.0
        %5835 = vmatpush1.msra.mxu0 0.0
        %5836 = vmatprep.subr.mxu0 0.0
        %5837 = vmatpush1.msra.mxu0 0.0
        %5838 = vmatprep.subr.mxu0 0.0
        %5839 = vmatpush1.msra.mxu0 0.0
        %5840 = vmatprep.subr.mxu0 0.0
        %5841 = vmatpush1.msra.mxu0 0.0
        %5842 = vmatprep.subr.mxu0 0.0
        %5843 = vmatpush1.msra.mxu0 0.0
        %5844 = vmatprep.subr.mxu0 0.0
        %5845 = vmatpush1.msra.mxu0 0.0
        %5846 = vmatprep.subr.mxu0 0.0
        %5847 = vmatpush1.msra.mxu0 0.0
        %5848 = vmatprep.subr.mxu0 0.0
        %5849 = vmatpush1.msra.mxu0 0.0
        %5850 = vmatprep.subr.mxu0 0.0
        %5851 = vmatpush1.msra.mxu0 0.0
        %5852 = vmatprep.subr.mxu0 0.0
        %5853 = vmatpush1.msra.mxu0 0.0
        %5854 = vmatprep.subr.mxu0 0.0
        %5855 = vmatpush1.msra.mxu0 0.0
        %5856 = vmatprep.subr.mxu0 0.0
        %5857 = vmatpush1.msra.mxu0 0.0
        %5858 = vmatprep.subr.mxu0 0.0
        %5859 = vmatpush1.msra.mxu0 0.0
        %5860 = vmatprep.subr.mxu0 0.0
        %5861 = vmatpush1.msra.mxu0 0.0
        %5862 = vmatprep.subr.mxu0 0.0
        %5863 = vmatpush1.msra.mxu0 0.0
        %5864 = vmatprep.subr.mxu0 0.0
        %5865 = vmatpush1.msra.mxu0 0.0
        %5866 = vmatprep.subr.mxu0 0.0
        %5867 = vmatpush1.msra.mxu0 0.0
        %5868 = vmatprep.subr.mxu0 0.0
        %5869 = vmatpush1.msra.mxu0 0.0
        %5870 = vmatprep.subr.mxu0 0.0
        %5871 = vmatpush1.msra.mxu0 0.0
        %5872 = vmatprep.subr.mxu0 0.0
        %5873 = vmatpush1.msra.mxu0 0.0
        %5874 = vmatprep.subr.mxu0 0.0
        %5875 = vmatpush1.msra.mxu0 0.0
        %5876 = vmatprep.subr.mxu0 0.0
        %5877 = vmatpush1.msra.mxu0 0.0
        %5878 = vmatprep.subr.mxu0 0.0
        %5879 = vmatpush1.msra.mxu0 0.0
        %5880 = vmatprep.subr.mxu0 0.0
        %5881 = vmatpush1.msra.mxu0 0.0
        %5882 = vmatprep.subr.mxu0 0.0
        %5883 = vmatpush1.msra.mxu0 0.0
        %5884 = vmatprep.subr.mxu0 0.0
        %5885 = vmatpush1.msra.mxu0 0.0
        %5886 = vmatprep.subr.mxu0 0.0
        %5887 = vmatpush1.msra.mxu0 0.0
        %5888 = vmatprep.subr.mxu0 0.0
        %5889 = vmatpush1.msra.mxu0 0.0
        %5890 = vmatprep.subr.mxu0 0.0
        %5891 = vmatpush1.msra.mxu0 0.0
        %5892 = vmatprep.subr.mxu0 0.0
        %5893 = vmatpush1.msra.mxu0 0.0
        %5894 = vmatprep.subr.mxu0 0.0
        %5895 = vmatpush1.msra.mxu0 0.0
        %5896 = vmatprep.mubr.f32.mxu0 0.0
        %5897 = vmatmul.mubr.f32.gmra.mrb[0].mxu0 %v558
        %v5898 = vpop.f32.mrb[0].mxu0
        %v5899 = vadd.f32 0.0, %v5898
        %v5900 = vpop.f32.mrb[0].mxu0
        %5901 = vdwg.mxu0
        %v5902 = vadd.f32 %v5827, %v5899
        %5903 = vrot.lane.b32.xlu0 %v5753, 126
        %v5904 = vpop.permute.xlu0 %5903
        %v5905 = vsel %vm242, %v5904, 0
        %5907 = vmatprep.subr.mxu0 0.0
        %5908 = vmatpush1.msra.mxu0 %v5905
        %5909 = vmatprep.subr.mxu0 0.0
        %5910 = vmatpush1.msra.mxu0 0.0
        %5911 = vmatprep.subr.mxu0 0.0
        %5912 = vmatpush1.msra.mxu0 0.0
        %5913 = vmatprep.subr.mxu0 0.0
        %5914 = vmatpush1.msra.mxu0 0.0
        %5915 = vmatprep.subr.mxu0 0.0
        %5916 = vmatpush1.msra.mxu0 0.0
        %5917 = vmatprep.subr.mxu0 0.0
        %5918 = vmatpush1.msra.mxu0 0.0
        %5919 = vmatprep.subr.mxu0 0.0
        %5920 = vmatpush1.msra.mxu0 0.0
        %5921 = vmatprep.subr.mxu0 0.0
        %5922 = vmatpush1.msra.mxu0 0.0
        %5923 = vmatprep.subr.mxu0 0.0
        %5924 = vmatpush1.msra.mxu0 0.0
        %5925 = vmatprep.subr.mxu0 0.0
        %5926 = vmatpush1.msra.mxu0 0.0
        %5927 = vmatprep.subr.mxu0 0.0
        %5928 = vmatpush1.msra.mxu0 0.0
        %5929 = vmatprep.subr.mxu0 0.0
        %5930 = vmatpush1.msra.mxu0 0.0
        %5931 = vmatprep.subr.mxu0 0.0
        %5932 = vmatpush1.msra.mxu0 0.0
        %5933 = vmatprep.subr.mxu0 0.0
        %5934 = vmatpush1.msra.mxu0 0.0
        %5935 = vmatprep.subr.mxu0 0.0
        %5936 = vmatpush1.msra.mxu0 0.0
        %5937 = vmatprep.subr.mxu0 0.0
        %5938 = vmatpush1.msra.mxu0 0.0
        %5939 = vmatprep.subr.mxu0 0.0
        %5940 = vmatpush1.msra.mxu0 0.0
        %5941 = vmatprep.subr.mxu0 0.0
        %5942 = vmatpush1.msra.mxu0 0.0
        %5943 = vmatprep.subr.mxu0 0.0
        %5944 = vmatpush1.msra.mxu0 0.0
        %5945 = vmatprep.subr.mxu0 0.0
        %5946 = vmatpush1.msra.mxu0 0.0
        %5947 = vmatprep.subr.mxu0 0.0
        %5948 = vmatpush1.msra.mxu0 0.0
        %5949 = vmatprep.subr.mxu0 0.0
        %5950 = vmatpush1.msra.mxu0 0.0
        %5951 = vmatprep.subr.mxu0 0.0
        %5952 = vmatpush1.msra.mxu0 0.0
        %5953 = vmatprep.subr.mxu0 0.0
        %5954 = vmatpush1.msra.mxu0 0.0
        %5955 = vmatprep.subr.mxu0 0.0
        %5956 = vmatpush1.msra.mxu0 0.0
        %5957 = vmatprep.subr.mxu0 0.0
        %5958 = vmatpush1.msra.mxu0 0.0
        %5959 = vmatprep.subr.mxu0 0.0
        %5960 = vmatpush1.msra.mxu0 0.0
        %5961 = vmatprep.subr.mxu0 0.0
        %5962 = vmatpush1.msra.mxu0 0.0
        %5963 = vmatprep.subr.mxu0 0.0
        %5964 = vmatpush1.msra.mxu0 0.0
        %5965 = vmatprep.subr.mxu0 0.0
        %5966 = vmatpush1.msra.mxu0 0.0
        %5967 = vmatprep.subr.mxu0 0.0
        %5968 = vmatpush1.msra.mxu0 0.0
        %5969 = vmatprep.subr.mxu0 0.0
        %5970 = vmatpush1.msra.mxu0 0.0
        %5971 = vmatprep.mubr.f32.mxu0 0.0
        %5972 = vmatmul.mubr.f32.gmra.mrb[0].mxu0 %v636
        %v5973 = vpop.f32.mrb[0].mxu0
        %v5974 = vadd.f32 0.0, %v5973
        %v5975 = vpop.f32.mrb[0].mxu0
        %5976 = vdwg.mxu0
        %v5977 = vadd.f32 %v5902, %v5974
        %s5978 = sadd.s32 %s233, 9
        %s5979 = sld [smem:[#allocation3 + %s5978]]
        %s5980 = smul.u32 %s5979, 4
        %s5981 = scalar_lea.vmem %s187, %s5980 [#allocation4]
        %v5982 = vld [vmem:[%s5981] sm:$0xf]
        %v5984 = vsel %vm242, %v5982, 0
        %5986 = vmatprep.subr.mxu0 0.0
        %5987 = vmatpush1.msra.mxu0 %v5984
        %5988 = vmatprep.subr.mxu0 0.0
        %5989 = vmatpush1.msra.mxu0 0.0
        %5990 = vmatprep.subr.mxu0 0.0
        %5991 = vmatpush1.msra.mxu0 0.0
        %5992 = vmatprep.subr.mxu0 0.0
        %5993 = vmatpush1.msra.mxu0 0.0
        %5994 = vmatprep.subr.mxu0 0.0
        %5995 = vmatpush1.msra.mxu0 0.0
        %5996 = vmatprep.subr.mxu0 0.0
        %5997 = vmatpush1.msra.mxu0 0.0
        %5998 = vmatprep.subr.mxu0 0.0
        %5999 = vmatpush1.msra.mxu0 0.0
        %6000 = vmatprep.subr.mxu0 0.0
        %6001 = vmatpush1.msra.mxu0 0.0
        %6002 = vmatprep.subr.mxu0 0.0
        %6003 = vmatpush1.msra.mxu0 0.0
        %6004 = vmatprep.subr.mxu0 0.0
        %6005 = vmatpush1.msra.mxu0 0.0
        %6006 = vmatprep.subr.mxu0 0.0
        %6007 = vmatpush1.msra.mxu0 0.0
        %6008 = vmatprep.subr.mxu0 0.0
        %6009 = vmatpush1.msra.mxu0 0.0
        %6010 = vmatprep.subr.mxu0 0.0
        %6011 = vmatpush1.msra.mxu0 0.0
        %6012 = vmatprep.subr.mxu0 0.0
        %6013 = vmatpush1.msra.mxu0 0.0
        %6014 = vmatprep.subr.mxu0 0.0
        %6015 = vmatpush1.msra.mxu0 0.0
        %6016 = vmatprep.subr.mxu0 0.0
        %6017 = vmatpush1.msra.mxu0 0.0
        %6018 = vmatprep.subr.mxu0 0.0
        %6019 = vmatpush1.msra.mxu0 0.0
        %6020 = vmatprep.subr.mxu0 0.0
        %6021 = vmatpush1.msra.mxu0 0.0
        %6022 = vmatprep.subr.mxu0 0.0
        %6023 = vmatpush1.msra.mxu0 0.0
        %6024 = vmatprep.subr.mxu0 0.0
        %6025 = vmatpush1.msra.mxu0 0.0
        %6026 = vmatprep.subr.mxu0 0.0
        %6027 = vmatpush1.msra.mxu0 0.0
        %6028 = vmatprep.subr.mxu0 0.0
        %6029 = vmatpush1.msra.mxu0 0.0
        %6030 = vmatprep.subr.mxu0 0.0
        %6031 = vmatpush1.msra.mxu0 0.0
        %6032 = vmatprep.subr.mxu0 0.0
        %6033 = vmatpush1.msra.mxu0 0.0
        %6034 = vmatprep.subr.mxu0 0.0
        %6035 = vmatpush1.msra.mxu0 0.0
        %6036 = vmatprep.subr.mxu0 0.0
        %6037 = vmatpush1.msra.mxu0 0.0
        %6038 = vmatprep.subr.mxu0 0.0
        %6039 = vmatpush1.msra.mxu0 0.0
        %6040 = vmatprep.subr.mxu0 0.0
        %6041 = vmatpush1.msra.mxu0 0.0
        %6042 = vmatprep.subr.mxu0 0.0
        %6043 = vmatpush1.msra.mxu0 0.0
        %6044 = vmatprep.subr.mxu0 0.0
        %6045 = vmatpush1.msra.mxu0 0.0
        %6046 = vmatprep.subr.mxu0 0.0
        %6047 = vmatpush1.msra.mxu0 0.0
        %6048 = vmatprep.subr.mxu0 0.0
        %6049 = vmatpush1.msra.mxu0 0.0
        %6050 = vmatprep.mubr.f32.mxu0 0.0
        %6051 = vmatmul.mubr.f32.gmra.mrb[0].mxu0 %v717
        %v6052 = vpop.f32.mrb[0].mxu0
        %v6053 = vadd.f32 0.0, %v6052
        %v6054 = vpop.f32.mrb[0].mxu0
        %6055 = vdwg.mxu0
        %v6056 = vadd.f32 %v5977, %v6053
        %6057 = vrot.lane.b32.xlu0 %v5982, 127
        %v6058 = vpop.permute.xlu0 %6057
        %v6059 = vsel %vm242, %v6058, 0
        %6061 = vmatprep.subr.mxu0 0.0
        %6062 = vmatpush1.msra.mxu0 %v6059
        %6063 = vmatprep.subr.mxu0 0.0
        %6064 = vmatpush1.msra.mxu0 0.0
        %6065 = vmatprep.subr.mxu0 0.0
        %6066 = vmatpush1.msra.mxu0 0.0
        %6067 = vmatprep.subr.mxu0 0.0
        %6068 = vmatpush1.msra.mxu0 0.0
        %6069 = vmatprep.subr.mxu0 0.0
        %6070 = vmatpush1.msra.mxu0 0.0
        %6071 = vmatprep.subr.mxu0 0.0
        %6072 = vmatpush1.msra.mxu0 0.0
        %6073 = vmatprep.subr.mxu0 0.0
        %6074 = vmatpush1.msra.mxu0 0.0
        %6075 = vmatprep.subr.mxu0 0.0
        %6076 = vmatpush1.msra.mxu0 0.0
        %6077 = vmatprep.subr.mxu0 0.0
        %6078 = vmatpush1.msra.mxu0 0.0
        %6079 = vmatprep.subr.mxu0 0.0
        %6080 = vmatpush1.msra.mxu0 0.0
        %6081 = vmatprep.subr.mxu0 0.0
        %6082 = vmatpush1.msra.mxu0 0.0
        %6083 = vmatprep.subr.mxu0 0.0
        %6084 = vmatpush1.msra.mxu0 0.0
        %6085 = vmatprep.subr.mxu0 0.0
        %6086 = vmatpush1.msra.mxu0 0.0
        %6087 = vmatprep.subr.mxu0 0.0
        %6088 = vmatpush1.msra.mxu0 0.0
        %6089 = vmatprep.subr.mxu0 0.0
        %6090 = vmatpush1.msra.mxu0 0.0
        %6091 = vmatprep.subr.mxu0 0.0
        %6092 = vmatpush1.msra.mxu0 0.0
        %6093 = vmatprep.subr.mxu0 0.0
        %6094 = vmatpush1.msra.mxu0 0.0
        %6095 = vmatprep.subr.mxu0 0.0
        %6096 = vmatpush1.msra.mxu0 0.0
        %6097 = vmatprep.subr.mxu0 0.0
        %6098 = vmatpush1.msra.mxu0 0.0
        %6099 = vmatprep.subr.mxu0 0.0
        %6100 = vmatpush1.msra.mxu0 0.0
        %6101 = vmatprep.subr.mxu0 0.0
        %6102 = vmatpush1.msra.mxu0 0.0
        %6103 = vmatprep.subr.mxu0 0.0
        %6104 = vmatpush1.msra.mxu0 0.0
        %6105 = vmatprep.subr.mxu0 0.0
        %6106 = vmatpush1.msra.mxu0 0.0
        %6107 = vmatprep.subr.mxu0 0.0
        %6108 = vmatpush1.msra.mxu0 0.0
        %6109 = vmatprep.subr.mxu0 0.0
        %6110 = vmatpush1.msra.mxu0 0.0
        %6111 = vmatprep.subr.mxu0 0.0
        %6112 = vmatpush1.msra.mxu0 0.0
        %6113 = vmatprep.subr.mxu0 0.0
        %6114 = vmatpush1.msra.mxu0 0.0
        %6115 = vmatprep.subr.mxu0 0.0
        %6116 = vmatpush1.msra.mxu0 0.0
        %6117 = vmatprep.subr.mxu0 0.0
        %6118 = vmatpush1.msra.mxu0 0.0
        %6119 = vmatprep.subr.mxu0 0.0
        %6120 = vmatpush1.msra.mxu0 0.0
        %6121 = vmatprep.subr.mxu0 0.0
        %6122 = vmatpush1.msra.mxu0 0.0
        %6123 = vmatprep.subr.mxu0 0.0
        %6124 = vmatpush1.msra.mxu0 0.0
        %6125 = vmatprep.mubr.f32.mxu0 0.0
        %6126 = vmatmul.mubr.f32.gmra.mrb[0].mxu0 %v796
        %v6127 = vpop.f32.mrb[0].mxu0
        %v6128 = vadd.f32 0.0, %v6127
        %v6129 = vpop.f32.mrb[0].mxu0
        %6130 = vdwg.mxu0
        %v6131 = vadd.f32 %v6056, %v6128
        %6132 = vrot.lane.b32.xlu0 %v5982, 126
        %v6133 = vpop.permute.xlu0 %6132
        %v6134 = vsel %vm242, %v6133, 0
        %6136 = vmatprep.subr.mxu0 0.0
        %6137 = vmatpush1.msra.mxu0 %v6134
        %6138 = vmatprep.subr.mxu0 0.0
        %6139 = vmatpush1.msra.mxu0 0.0
        %6140 = vmatprep.subr.mxu0 0.0
        %6141 = vmatpush1.msra.mxu0 0.0
        %6142 = vmatprep.subr.mxu0 0.0
        %6143 = vmatpush1.msra.mxu0 0.0
        %6144 = vmatprep.subr.mxu0 0.0
        %6145 = vmatpush1.msra.mxu0 0.0
        %6146 = vmatprep.subr.mxu0 0.0
        %6147 = vmatpush1.msra.mxu0 0.0
        %6148 = vmatprep.subr.mxu0 0.0
        %6149 = vmatpush1.msra.mxu0 0.0
        %6150 = vmatprep.subr.mxu0 0.0
        %6151 = vmatpush1.msra.mxu0 0.0
        %6152 = vmatprep.subr.mxu0 0.0
        %6153 = vmatpush1.msra.mxu0 0.0
        %6154 = vmatprep.subr.mxu0 0.0
        %6155 = vmatpush1.msra.mxu0 0.0
        %6156 = vmatprep.subr.mxu0 0.0
        %6157 = vmatpush1.msra.mxu0 0.0
        %6158 = vmatprep.subr.mxu0 0.0
        %6159 = vmatpush1.msra.mxu0 0.0
        %6160 = vmatprep.subr.mxu0 0.0
        %6161 = vmatpush1.msra.mxu0 0.0
        %6162 = vmatprep.subr.mxu0 0.0
        %6163 = vmatpush1.msra.mxu0 0.0
        %6164 = vmatprep.subr.mxu0 0.0
        %6165 = vmatpush1.msra.mxu0 0.0
        %6166 = vmatprep.subr.mxu0 0.0
        %6167 = vmatpush1.msra.mxu0 0.0
        %6168 = vmatprep.subr.mxu0 0.0
        %6169 = vmatpush1.msra.mxu0 0.0
        %6170 = vmatprep.subr.mxu0 0.0
        %6171 = vmatpush1.msra.mxu0 0.0
        %6172 = vmatprep.subr.mxu0 0.0
        %6173 = vmatpush1.msra.mxu0 0.0
        %6174 = vmatprep.subr.mxu0 0.0
        %6175 = vmatpush1.msra.mxu0 0.0
        %6176 = vmatprep.subr.mxu0 0.0
        %6177 = vmatpush1.msra.mxu0 0.0
        %6178 = vmatprep.subr.mxu0 0.0
        %6179 = vmatpush1.msra.mxu0 0.0
        %6180 = vmatprep.subr.mxu0 0.0
        %6181 = vmatpush1.msra.mxu0 0.0
        %6182 = vmatprep.subr.mxu0 0.0
        %6183 = vmatpush1.msra.mxu0 0.0
        %6184 = vmatprep.subr.mxu0 0.0
        %6185 = vmatpush1.msra.mxu0 0.0
        %6186 = vmatprep.subr.mxu0 0.0
        %6187 = vmatpush1.msra.mxu0 0.0
        %6188 = vmatprep.subr.mxu0 0.0
        %6189 = vmatpush1.msra.mxu0 0.0
        %6190 = vmatprep.subr.mxu0 0.0
        %6191 = vmatpush1.msra.mxu0 0.0
        %6192 = vmatprep.subr.mxu0 0.0
        %6193 = vmatpush1.msra.mxu0 0.0
        %6194 = vmatprep.subr.mxu0 0.0
        %6195 = vmatpush1.msra.mxu0 0.0
        %6196 = vmatprep.subr.mxu0 0.0
        %6197 = vmatpush1.msra.mxu0 0.0
        %6198 = vmatprep.subr.mxu0 0.0
        %6199 = vmatpush1.msra.mxu0 0.0
        %6200 = vmatprep.mubr.f32.mxu0 0.0
        %6201 = vmatmul.mubr.f32.gmra.mrb[0].mxu0 %v874
        %v6202 = vpop.f32.mrb[0].mxu0
        %v6203 = vadd.f32 0.0, %v6202
        %v6204 = vpop.f32.mrb[0].mxu0
        %6205 = vdwg.mxu0
        %v6206 = vadd.f32 %v6131, %v6203
        %v6208 = vcombine.high %v6206, %v6206
        %v6210 = vunpack.c.l.s4 1966171168
        %v6211 = vunpack.c.0.s8 %v6210
        %v6212 = vlaneseq
        %v6213 = vshrl.u32 %v6212, 7
        %v6214 = vsub.s32 %v6211, %v6213
        %v6215 = vrot.slane %v6206, %v6214
        %v6217 = vunpack.c.l.s4 1966171168
        %v6218 = vunpack.c.0.s8 %v6217
        %v6219 = vlaneseq
        %v6220 = vshrl.u32 %v6219, 7
        %v6221 = vsub.s32 %v6218, %v6220
        %v6222 = vrot.slane %v6208, %v6221
        %v6223 = vcombine.high %v6215, %v6215
        %v6224 = vcombine.high %v6222, %v6222
        %v6226 = vunpack.c.l.s4 1966171168
        %v6227 = vunpack.c.0.s8 %v6226
        %v6228 = vlaneseq
        %v6229 = vshrl.u32 %v6228, 7
        %v6230 = vsub.s32 %v6227, %v6229
        %v6231 = vrot.slane %v6215, %v6230
        %v6233 = vunpack.c.l.s4 1966171168
        %v6234 = vunpack.c.0.s8 %v6233
        %v6235 = vlaneseq
        %v6236 = vshrl.u32 %v6235, 7
        %v6237 = vsub.s32 %v6234, %v6236
        %v6238 = vrot.slane %v6222, %v6237
        %v6240 = vunpack.c.l.s4 1966171168
        %v6241 = vunpack.c.0.s8 %v6240
        %v6242 = vlaneseq
        %v6243 = vshrl.u32 %v6242, 7
        %v6244 = vsub.s32 %v6241, %v6243
        %v6245 = vrot.slane %v6223, %v6244
        %v6247 = vunpack.c.l.s4 1966171168
        %v6248 = vunpack.c.0.s8 %v6247
        %v6249 = vlaneseq
        %v6250 = vshrl.u32 %v6249, 7
        %v6251 = vsub.s32 %v6248, %v6250
        %v6252 = vrot.slane %v6224, %v6251
        %v6253 = vcombine.high %v6231, %v6231
        %v6254 = vcombine.high %v6238, %v6238
        %v6255 = vcombine.high %v6245, %v6245
        %v6256 = vcombine.high %v6252, %v6252
        %6265 = vst.msk [vmem:[%s209 + $0x7] sm:$0x1] %vm1007, %v6231
        %6266 = vst.msk [vmem:[%s209 + $0xf] sm:$0x1] %vm1007, %v6245
        %6267 = vst.msk [vmem:[%s209 + $0x17] sm:$0x1] %vm1007, %v6253
        %6268 = vst.msk [vmem:[%s209 + $0x1f] sm:$0x1] %vm1007, %v6255
        %6269 = vst.msk [vmem:[%s209 + $0x27] sm:$0x1] %vm1007, %v6238
        %6270 = vst.msk [vmem:[%s209 + $0x2f] sm:$0x1] %vm1007, %v6252
        %6271 = vst.msk [vmem:[%s209 + $0x37] sm:$0x1] %vm1007, %v6254
        %6272 = vst.msk [vmem:[%s209 + $0x3f] sm:$0x1] %vm1007, %v6256
        %s6273 = sand.u32 %s117, 1
        %s6274 = scalar_lea.sflag [#allocation6], %s6273
        %s6275 = sand.u32 %s117, 1
        %s6276 = smul.addr %s6275, 64
        %s6277 = scalar_lea.vmem [#allocation7], %s6276
        // Predicated region
        $region37: #{tpu_custom_call.1} parent=31 // pred_check
          %p6278 = pneg %p127
        $region38: #{tpu_custom_call.1} parent=31 // pred_check_branch
          %6280 = sbr.rel (%p6278) target = $region40
        $region39: #{tpu_custom_call.1} parent=31 // pred_region
          %s6282 = ssub.s32 1024, 1024
          %6283 = vsyncadd %s6274, %s6282
          %s6284 = smul.addr %s31, 32
          %s6285 = sadd.s32 %s32, %s6284
          %s6286 = smul.addr %s6285, 128
          %s6287 = scalar_lea.hbm %s4, %s6286
          %s6288 = sshll.u32 %s6277, 4
          %s6289 = int_to_ptr.vmem [resolvable:$true] %s6288
          %6294 = dma.vmem_to_hbm [thread:$0]  %s6289, 1024, %s6287, %s6274, 128, 512, 8
        $region40: #{tpu_custom_call.1} parent=31 // pred_fallthru
          _
      $region32: #{tpu_custom_call.1} parent=5 // pred_fallthru
        _
      %p6295 = scmp.le.s32.totalorder 2, %s22
      // Predicated region
      $region41: #{tpu_custom_call.1} parent=5 // pred_check
        %p6296 = pneg %p6295
      $region42: #{tpu_custom_call.1} parent=5 // pred_check_branch
        %6298 = sbr.rel (%p6296) target = $region44
      $region43: #{tpu_custom_call.1} parent=5 // pred_region
        %s6299 = ssub.s32 %s22, 2
        // Predicated region
        $region45: #{tpu_custom_call.1} parent=43 // pred_check
          %p6300 = pneg %p133
        $region46: #{tpu_custom_call.1} parent=43 // pred_check_branch
          %6302 = sbr.rel (%p6300) target = $region48
        $region47: #{tpu_custom_call.1} parent=43 // pred_region
          %s6303 = sand.u32 %s118, 1
          %s6304 = scalar_lea.sflag [#allocation6], %s6303
          %s6305 = sand.u32 %s118, 1
          %s6306 = smul.addr %s6305, 64
          %s6307 = scalar_lea.vmem [#allocation7], %s6306
          %6308 = dma.done %s6304, 1024
        $region48: #{tpu_custom_call.1} parent=43 // pred_fallthru
          _
      $region44: #{tpu_custom_call.1} parent=5 // pred_fallthru
        _
    $region6: #{tpu_custom_call.1} parent=1 // loop_footer
      %s26 = sadd.s32 1, %s22
    $region7: #{tpu_custom_call.1} parent=1 // loop_footer_branch
      %21 = sbr.rel target = $region3
    $region8: #{tpu_custom_call.1} parent=1 // loop_exit
      _
    %6309 = vsyncpa [#allocation5], 1
    %s6310 = scalar_lea.sflag [#allocation5], 1
    %6311 = vsyncpa %s6310, 1
    %6312 = vsyncpa [#allocation6], 1
    %s6313 = scalar_lea.sflag [#allocation6], 1
    %6314 = vsyncpa %s6313, 1

</llo_original>
